<compile_context>
chip_gen: v7x
topology: tpu7x:2x2x1
jax: 0.10.0
libtpu: 0.0.40
codegen_flags: <defaults>
</compile_context>

<pallas_src>
import functools

import numpy as np

import jax
import jax.numpy as jnp
from jax import lax
from jax.experimental import pallas as pl
from jax.experimental.pallas import tpu as pltpu

EPS = 1e-5
ENC_CH = [(3, 8), (8, 16), (16, 32), (32, 64)]
DEC_CH = [(64, 32), (32, 16), (16, 8), (8, 3)]


# ----------------------------------------------------------------------------
# Static geometry
# ----------------------------------------------------------------------------
def _make_meta(s):
    """Static per-layer geometry (all spatial extents are squares)."""
    meta, size = [], s
    for cin, cout in ENC_CH:
        meta.append(dict(kind="conv", hin=size, ho=size // 2, cin=cin, cout=cout))
        size //= 2
    for i, (cin, cout) in enumerate(DEC_CH):
        meta.append(dict(kind="deconv", hin=size, ho=2 * size, cin=cin, cout=cout,
                         last=i == len(DEC_CH) - 1))
        size *= 2
    return meta


def _cost(meta, n_batch):
    flops = 0
    for lyr in meta:
        hin, ho, cin, cout = lyr["hin"], lyr["ho"], lyr["cin"], lyr["cout"]
        if lyr["kind"] == "conv":
            flops += n_batch * 2 * (4 * ho) * (hin + 2) * (hin * cin)       # tap select
            flops += n_batch * 2 * ho * (4 * hin * cin) * (ho * cout)       # conv matmul
        else:
            flops += n_batch * 2 * 2 * hin * (2 * hin * cin) * (ho * cout)  # even+odd
            if not lyr["last"]:
                flops += n_batch * 2 * ho * ho * (ho * cout)                # interleave
    last = meta[-1]
    transc = n_batch * last["ho"] * last["ho"] * last["cout"]               # final tanh
    return flops, transc


# ----------------------------------------------------------------------------
# One-time weight packing (numpy, at init -- no per-forward repacking)
# ----------------------------------------------------------------------------
def _pack_conv_weight(w, hin):
    """PyTorch Conv2d weight (Cout, Cin, 4, 4) -> (4*hin*Cin, (hin//2)*Cout).

    Row index = kh*hin*Cin + wi*Cin + ci (matches the tap-concatenated LHS),
    col index = wo*Cout + co, entry = w[co, ci, kh, kw] with kw = wi - 2*wo + 1
    when 0 <= kw < 4 (column taps + zero column padding folded in)."""
    cout, cin = w.shape[0], w.shape[1]
    wo_n = hin // 2
    b = np.zeros((4, hin, cin, wo_n, cout), np.float32)
    for wo in range(wo_n):
        for kw in range(4):
            wi = 2 * wo - 1 + kw
            if 0 <= wi < hin:
                b[:, wi, :, wo, :] = np.transpose(w[:, :, :, kw], (2, 1, 0))
    return b.reshape(4 * hin * cin, wo_n * cout)


def _pack_deconv_weight(w, hin):
    """PyTorch ConvTranspose2d weight (Cin, Cout, 4, 4) -> even/odd output-row
    matrices, each (2*hin*Cin, 2*hin*Cout).

    Even output rows R=2r use input rows (r, r-1) with kernel rows (1, 3);
    odd rows R=2r+1 use input rows (r, r+1) with kernel rows (2, 0).  Input
    column wi contributes to output column C iff kw = C - 2*wi + 1 in [0, 4)."""
    cin, cout = w.shape[0], w.shape[1]
    wo_n = 2 * hin
    de = np.zeros((2, hin, cin, wo_n, cout), np.float32)
    do = np.zeros((2, hin, cin, wo_n, cout), np.float32)
    for c_out in range(wo_n):
        for wi in range(hin):
            kw = c_out - 2 * wi + 1
            if 0 <= kw < 4:
                de[0, wi, :, c_out, :] = w[:, :, 1, kw]
                de[1, wi, :, c_out, :] = w[:, :, 3, kw]
                do[0, wi, :, c_out, :] = w[:, :, 2, kw]
                do[1, wi, :, c_out, :] = w[:, :, 0, kw]
    return (de.reshape(2 * hin * cin, wo_n * cout),
            do.reshape(2 * hin * cin, wo_n * cout))


def _row_tap_select(hin):
    """0/1 matrix (4*Ho, hin+2): row kh*Ho + r picks padded input row 2r + kh."""
    ho = hin // 2
    t = np.zeros((4 * ho, hin + 2), np.float32)
    for kh in range(4):
        for r in range(ho):
            t[kh * ho + r, 2 * r + kh] = 1.0
    return t


def _row_interleave(hin):
    """0/1 permutation (2*hin, 2*hin) interleaving [even-rows ; odd-rows]."""
    p = np.zeros((2 * hin, 2 * hin), np.float32)
    for r in range(hin):
        p[2 * r, r] = 1.0
        p[2 * r + 1, hin + r] = 1.0
    return p


def _channel_fold(groups, c):
    """0/1 matrix (groups*c, groups*c) summing lanes with equal channel idx."""
    return np.kron(np.ones((groups, groups), np.float32),
                   np.eye(c, dtype=np.float32))


def init_params(key):
    """Raw PyTorch-layout parameters (same structure as the nn.Module)."""
    params = []
    for cin, cout in ENC_CH:
        key, kw, kb = jax.random.split(key, 3)
        params.append(dict(
            w=jax.random.normal(kw, (cout, cin, 4, 4), jnp.float32) * 0.1,
            # conv bias kept for parity with PyTorch; unused (cancelled by BN)
            b=jax.random.normal(kb, (cout,), jnp.float32) * 0.1,
            gamma=jnp.ones((cout,), jnp.float32),
            beta=jnp.zeros((cout,), jnp.float32)))
    for i, (cin, cout) in enumerate(DEC_CH):
        key, kw, kb = jax.random.split(key, 3)
        last = i == len(DEC_CH) - 1
        params.append(dict(
            w=jax.random.normal(kw, (cin, cout, 4, 4), jnp.float32) * 0.1,
            b=jax.random.normal(kb, (cout,), jnp.float32) * 0.1,
            gamma=None if last else jnp.ones((cout,), jnp.float32),
            beta=None if last else jnp.zeros((cout,), jnp.float32)))
    return params


def pack_params(params, s=32):
    """Pack weights into the kernel's matrix operands (done once at init)."""
    packed, size = [], s
    for p, (cin, cout) in zip(params[:4], ENC_CH):
        w = np.asarray(p["w"], np.float32)
        ho = size // 2
        packed += [
            jnp.asarray(_row_tap_select(size), jnp.bfloat16),
            jnp.asarray(_pack_conv_weight(w, size), jnp.bfloat16),
            jnp.asarray(_channel_fold(ho, cout), jnp.float32),
            jnp.asarray(np.tile(np.asarray(p["gamma"], np.float32), ho)[None]),
            jnp.asarray(np.tile(np.asarray(p["beta"], np.float32), ho)[None]),
        ]
        size = ho
    for i, (p, (cin, cout)) in enumerate(zip(params[4:], DEC_CH)):
        w = np.asarray(p["w"], np.float32)
        de, do = _pack_deconv_weight(w, size)
        packed += [jnp.asarray(de, jnp.bfloat16), jnp.asarray(do, jnp.bfloat16)]
        if i == len(DEC_CH) - 1:
            packed += [jnp.asarray(
                np.tile(np.asarray(p["b"], np.float32), 2 * size)[None])]
        else:
            packed += [
                jnp.asarray(_row_interleave(size), jnp.bfloat16),
                jnp.asarray(_channel_fold(2 * size, cout), jnp.float32),
                jnp.asarray(np.tile(np.asarray(p["gamma"], np.float32),
                                    2 * size)[None]),
                jnp.asarray(np.tile(np.asarray(p["beta"], np.float32),
                                    2 * size)[None]),
            ]
        size *= 2
    return packed


# ----------------------------------------------------------------------------
# Fused whole-network Pallas kernel
# ----------------------------------------------------------------------------
def _bn_relu(ys, mmat, g_w, b_w, count):
    """Training-mode BatchNorm2d (batch stats, biased var) + ReLU.

    ys: list of f32 (rows, groups*C) matmul outputs (all valid positions).
    mmat: 0/1 (groups*C, groups*C) channel-match matrix.  Single pass:
    per-lane sum / sum-of-squares, folded to per-channel (replicated) stats."""
    s1 = jnp.sum(ys[0], axis=0, keepdims=True)
    s2 = jnp.sum(ys[0] * ys[0], axis=0, keepdims=True)
    for y in ys[1:]:
        s1 = s1 + jnp.sum(y, axis=0, keepdims=True)
        s2 = s2 + jnp.sum(y * y, axis=0, keepdims=True)
    stats = jnp.concatenate([s1, s2], axis=0)                          # (2, K)
    red = jnp.dot(stats, mmat,
                  preferred_element_type=jnp.float32) / float(count)   # (2, K)
    mean = red[0:1, :]
    var = jnp.maximum(red[1:2, :] - mean * mean, 0.0)
    scale = g_w * lax.rsqrt(var + EPS)
    shift = b_w - mean * scale
    return [jnp.maximum(y * scale + shift, 0.0) for y in ys]


def _fcn_kernel(meta, *refs):
    """refs = (x0, *packed_weights, out).

    Activation layout between layers (per batch element): bf16 matrix of shape
    (H + 2, W * C) -- one image row per matrix row (channels fastest along
    lanes) with one zero padding row at the top and bottom."""
    x_ref, out_ref = refs[0], refs[-1]
    wrefs = refs[1:-1]
    n_batch = x_ref.shape[0]

    acts = [x_ref[n] for n in range(n_batch)]       # VMEM-resident activations

    idx = 0
    for lyr in meta:
        ho, cout = lyr["ho"], lyr["cout"]
        k_out = ho * cout                            # output lanes (= W_out*Cout)
        if lyr["kind"] == "conv":
            t_sel, bmat, mmat, g_w, b_w = (wrefs[idx + j][...] for j in range(5))
            idx += 5
            ys = []
            for n in range(n_batch):
                # stride-2 row taps via a constant 0/1 selection matmul (exact)
                taps = jnp.dot(t_sel, acts[n],
                               preferred_element_type=jnp.float32
                               ).astype(jnp.bfloat16)
                # fold the 4 kernel-row taps into the contraction dim (K=4*W*Cin)
                lhs = jnp.concatenate(
                    [taps[k * ho:(k + 1) * ho, :] for k in range(4)], axis=1)
                ys.append(jnp.dot(lhs, bmat, preferred_element_type=jnp.float32))
            zs = _bn_relu(ys, mmat, g_w, b_w, n_batch * ho * ho)
            zpad = jnp.zeros((1, k_out), jnp.bfloat16)
            acts = [jnp.concatenate([zpad, z.astype(jnp.bfloat16), zpad], axis=0)
                    for z in zs]
        else:
            de, do = wrefs[idx][...], wrefs[idx + 1][...]
            hi = lyr["hin"]
            y_ev, y_od = [], []
            for n in range(n_batch):
                xr = acts[n]                         # (hi+2, W*Cin), zero rows 0, hi+1
                # sub-pixel decomposition: two taps per output-row parity,
                # folded into K via lane concatenation (unit-stride slices only)
                lhs_e = jnp.concatenate([xr[1:1 + hi, :], xr[0:hi, :]], axis=1)
                lhs_o = jnp.concatenate([xr[1:1 + hi, :], xr[2:2 + hi, :]], axis=1)
                y_ev.append(jnp.dot(lhs_e, de, preferred_element_type=jnp.float32))
                y_od.append(jnp.dot(lhs_o, do, preferred_element_type=jnp.float32))
            if lyr["last"]:
                bias_w = wrefs[idx + 2][...]
                idx += 3
                for n in range(n_batch):             # even / odd output-row blocks
                    out_ref[2 * n] = jnp.tanh(y_ev[n] + bias_w)
                    out_ref[2 * n + 1] = jnp.tanh(y_od[n] + bias_w)
            else:
                pmat, mmat, g_w, b_w = (wrefs[idx + 2 + j][...] for j in range(4))
                idx += 6
                zs = _bn_relu(y_ev + y_od, mmat, g_w, b_w, n_batch * ho * ho)
                zpad = jnp.zeros((1, k_out), jnp.bfloat16)
                new_acts = []
                for n in range(n_batch):
                    both = jnp.concatenate([zs[n], zs[n_batch + n]],
                                           axis=0).astype(jnp.bfloat16)
                    # interleave even/odd rows: constant 0/1 permutation matmul
                    full = jnp.dot(pmat, both, preferred_element_type=jnp.float32
                                   ).astype(jnp.bfloat16)
                    new_acts.append(jnp.concatenate([zpad, full, zpad], axis=0))
                acts = new_acts


# ----------------------------------------------------------------------------
# Forward pass wrapper (layout plumbing only)
# ----------------------------------------------------------------------------
def fully_conv_network(x_nchw, packed):
    """x_nchw: (N, 3, S, S) float32, S divisible by 16. Returns (N, 3, S, S)."""
    n, _, s, _ = x_nchw.shape
    meta = _make_meta(s)

    # NCHW -> row-matrix layout (N, S+2, S*3) with zero padding rows, bf16.
    x = jnp.transpose(x_nchw, (0, 2, 3, 1)).reshape(n, s, s * 3)
    x = jnp.pad(x, ((0, 0), (1, 1), (0, 0))).astype(jnp.bfloat16)

    flops, transc = _cost(meta, n)
    bytes_acc = (x.size * 2
                 + sum(int(a.size) * a.dtype.itemsize for a in packed)
                 + 2 * n * (s // 2) * s * 3 * 4)

    out = pl.pallas_call(
        functools.partial(_fcn_kernel, meta),
        out_shape=jax.ShapeDtypeStruct((2 * n, s // 2, s * 3), jnp.float32),
        compiler_params=pltpu.CompilerParams(vmem_limit_bytes=16 * 1024 * 1024),
        cost_estimate=pl.CostEstimate(flops=flops, transcendentals=transc,
                                      bytes_accessed=bytes_acc),
    )(x, *packed)
    # TODO(synk): tile the batch/row dim into a "parallel" grid axis once the
    # workload is large enough to benefit from v7x's second TensorCore.

    # (2N, S/2, S*3): block [2n + p] holds output rows of parity p.
    out = out.reshape(n, 2, s // 2, s, 3)
    out = jnp.transpose(out, (0, 2, 1, 3, 4)).reshape(n, s, s, 3)
    return jnp.transpose(out, (0, 3, 1, 2))          # back to NCHW


if __name__ == "__main__":
    key = jax.random.PRNGKey(0)
    key, kx = jax.random.split(key)

    # batch=2, channels=3 (fixed by conv1), spatial=32 (divisible by 2^4)
    x = jax.random.normal(kx, (2, 3, 32, 32), jnp.float32)
    params = init_params(key)
    packed = pack_params(params, s=32)      # one-time weight packing

    fwd = jax.jit(fully_conv_network)
    out = jax.block_until_ready(fwd(x, packed))

    assert out.shape == (2, 3, 32, 32), out.shape
    assert bool(jnp.all(jnp.isfinite(out)))
    assert bool(jnp.all(jnp.abs(out) <= 1.0 + 1e-6))  # tanh range
    print("KERNEL_OK")
</pallas_src>

<mosaic_0001>
module attributes {stable_mosaic.version = 11 : i64} {
  func.func @_fcn_kernel(%arg0: memref<2x34x96xbf16, #tpu.memory_space<vmem>>, %arg1: memref<64x34xbf16, #tpu.memory_space<vmem>>, %arg2: memref<384x128xbf16, #tpu.memory_space<vmem>>, %arg3: memref<128x128xf32, #tpu.memory_space<vmem>>, %arg4: memref<1x128xf32, #tpu.memory_space<vmem>>, %arg5: memref<1x128xf32, #tpu.memory_space<vmem>>, %arg6: memref<32x18xbf16, #tpu.memory_space<vmem>>, %arg7: memref<512x128xbf16, #tpu.memory_space<vmem>>, %arg8: memref<128x128xf32, #tpu.memory_space<vmem>>, %arg9: memref<1x128xf32, #tpu.memory_space<vmem>>, %arg10: memref<1x128xf32, #tpu.memory_space<vmem>>, %arg11: memref<16x10xbf16, #tpu.memory_space<vmem>>, %arg12: memref<512x128xbf16, #tpu.memory_space<vmem>>, %arg13: memref<128x128xf32, #tpu.memory_space<vmem>>, %arg14: memref<1x128xf32, #tpu.memory_space<vmem>>, %arg15: memref<1x128xf32, #tpu.memory_space<vmem>>, %arg16: memref<8x6xbf16, #tpu.memory_space<vmem>>, %arg17: memref<512x128xbf16, #tpu.memory_space<vmem>>, %arg18: memref<128x128xf32, #tpu.memory_space<vmem>>, %arg19: memref<1x128xf32, #tpu.memory_space<vmem>>, %arg20: memref<1x128xf32, #tpu.memory_space<vmem>>, %arg21: memref<256x128xbf16, #tpu.memory_space<vmem>>, %arg22: memref<256x128xbf16, #tpu.memory_space<vmem>>, %arg23: memref<4x4xbf16, #tpu.memory_space<vmem>>, %arg24: memref<128x128xf32, #tpu.memory_space<vmem>>, %arg25: memref<1x128xf32, #tpu.memory_space<vmem>>, %arg26: memref<1x128xf32, #tpu.memory_space<vmem>>, %arg27: memref<256x128xbf16, #tpu.memory_space<vmem>>, %arg28: memref<256x128xbf16, #tpu.memory_space<vmem>>, %arg29: memref<8x8xbf16, #tpu.memory_space<vmem>>, %arg30: memref<128x128xf32, #tpu.memory_space<vmem>>, %arg31: memref<1x128xf32, #tpu.memory_space<vmem>>, %arg32: memref<1x128xf32, #tpu.memory_space<vmem>>, %arg33: memref<256x128xbf16, #tpu.memory_space<vmem>>, %arg34: memref<256x128xbf16, #tpu.memory_space<vmem>>, %arg35: memref<16x16xbf16, #tpu.memory_space<vmem>>, %arg36: memref<128x128xf32, #tpu.memory_space<vmem>>, %arg37: memref<1x128xf32, #tpu.memory_space<vmem>>, %arg38: memref<1x128xf32, #tpu.memory_space<vmem>>, %arg39: memref<256x96xbf16, #tpu.memory_space<vmem>>, %arg40: memref<256x96xbf16, #tpu.memory_space<vmem>>, %arg41: memref<1x96xf32, #tpu.memory_space<vmem>>, %arg42: memref<4x16x96xf32, #tpu.memory_space<vmem>>) attributes {dimension_semantics = [], scalar_prefetch = 0 : i64, scratch_operands = 0 : i64, tpu.core_type = #tpu.core_type<tc>} {
    %c0 = arith.constant 0 : index
    %c0_0 = arith.constant 0 : index
    %c0_1 = arith.constant 0 : index
    %0 = vector.load %arg0[%c0, %c0_0, %c0_1] : memref<2x34x96xbf16, #tpu.memory_space<vmem>>, vector<1x34x96xbf16>
    %1 = vector.shape_cast %0 : vector<1x34x96xbf16> to vector<34x96xbf16>
    %c1 = arith.constant 1 : index
    %c0_2 = arith.constant 0 : index
    %c0_3 = arith.constant 0 : index
    %2 = vector.load %arg0[%c1, %c0_2, %c0_3] : memref<2x34x96xbf16, #tpu.memory_space<vmem>>, vector<1x34x96xbf16>
    %3 = vector.shape_cast %2 : vector<1x34x96xbf16> to vector<34x96xbf16>
    %c0_4 = arith.constant 0 : index
    %c0_5 = arith.constant 0 : index
    %4 = vector.load %arg1[%c0_4, %c0_5] : memref<64x34xbf16, #tpu.memory_space<vmem>>, vector<64x34xbf16>
    %c0_6 = arith.constant 0 : index
    %c0_7 = arith.constant 0 : index
    %5 = vector.load %arg2[%c0_6, %c0_7] : memref<384x128xbf16, #tpu.memory_space<vmem>>, vector<384x128xbf16>
    %c0_8 = arith.constant 0 : index
    %c0_9 = arith.constant 0 : index
    %6 = vector.load %arg3[%c0_8, %c0_9] : memref<128x128xf32, #tpu.memory_space<vmem>>, vector<128x128xf32>
    %c0_10 = arith.constant 0 : index
    %c0_11 = arith.constant 0 : index
    %7 = vector.load %arg4[%c0_10, %c0_11] : memref<1x128xf32, #tpu.memory_space<vmem>>, vector<1x128xf32>
    %c0_12 = arith.constant 0 : index
    %c0_13 = arith.constant 0 : index
    %8 = vector.load %arg5[%c0_12, %c0_13] : memref<1x128xf32, #tpu.memory_space<vmem>>, vector<1x128xf32>
    %cst = arith.constant dense<0.000000e+00> : vector<64x96xf32>
    %9 = tpu.matmul %4, %1, %cst {dimension_numbers = #tpu.dot_dimension_numbers<[1], [0], [0], [1], [0, 0, 1, 1], [], []>} : vector<64x34xbf16>, vector<34x96xbf16>, vector<64x96xf32> -> vector<64x96xf32>
    %10 = arith.truncf %9 : vector<64x96xf32> to vector<64x96xbf16>
    %11 = vector.extract_strided_slice %10 {offsets = [0, 0], sizes = [16, 96], strides = [1, 1]} : vector<64x96xbf16> to vector<16x96xbf16>
    %12 = vector.extract_strided_slice %10 {offsets = [16, 0], sizes = [16, 96], strides = [1, 1]} : vector<64x96xbf16> to vector<16x96xbf16>
    %13 = vector.extract_strided_slice %10 {offsets = [32, 0], sizes = [16, 96], strides = [1, 1]} : vector<64x96xbf16> to vector<16x96xbf16>
    %14 = vector.extract_strided_slice %10 {offsets = [48, 0], sizes = [16, 96], strides = [1, 1]} : vector<64x96xbf16> to vector<16x96xbf16>
    %15 = tpu.concatenate %11, %12, %13, %14 in 1 : vector<16x96xbf16>, vector<16x96xbf16>, vector<16x96xbf16>, vector<16x96xbf16> -> vector<16x384xbf16>
    %cst_14 = arith.constant dense<0.000000e+00> : vector<16x128xf32>
    %16 = tpu.matmul %15, %5, %cst_14 {dimension_numbers = #tpu.dot_dimension_numbers<[1], [0], [0], [1], [0, 0, 1, 1], [], []>} : vector<16x384xbf16>, vector<384x128xbf16>, vector<16x128xf32> -> vector<16x128xf32>
    %cst_15 = arith.constant dense<0.000000e+00> : vector<64x96xf32>
    %17 = tpu.matmul %4, %3, %cst_15 {dimension_numbers = #tpu.dot_dimension_numbers<[1], [0], [0], [1], [0, 0, 1, 1], [], []>} : vector<64x34xbf16>, vector<34x96xbf16>, vector<64x96xf32> -> vector<64x96xf32>
    %18 = arith.truncf %17 : vector<64x96xf32> to vector<64x96xbf16>
    %19 = vector.extract_strided_slice %18 {offsets = [0, 0], sizes = [16, 96], strides = [1, 1]} : vector<64x96xbf16> to vector<16x96xbf16>
    %20 = vector.extract_strided_slice %18 {offsets = [16, 0], sizes = [16, 96], strides = [1, 1]} : vector<64x96xbf16> to vector<16x96xbf16>
    %21 = vector.extract_strided_slice %18 {offsets = [32, 0], sizes = [16, 96], strides = [1, 1]} : vector<64x96xbf16> to vector<16x96xbf16>
    %22 = vector.extract_strided_slice %18 {offsets = [48, 0], sizes = [16, 96], strides = [1, 1]} : vector<64x96xbf16> to vector<16x96xbf16>
    %23 = tpu.concatenate %19, %20, %21, %22 in 1 : vector<16x96xbf16>, vector<16x96xbf16>, vector<16x96xbf16>, vector<16x96xbf16> -> vector<16x384xbf16>
    %cst_16 = arith.constant dense<0.000000e+00> : vector<16x128xf32>
    %24 = tpu.matmul %23, %5, %cst_16 {dimension_numbers = #tpu.dot_dimension_numbers<[1], [0], [0], [1], [0, 0, 1, 1], [], []>} : vector<16x384xbf16>, vector<384x128xbf16>, vector<16x128xf32> -> vector<16x128xf32>
    %cst_17 = arith.constant dense<0.000000e+00> : vector<128xf32>
    %25 = vector.multi_reduction <add>, %16, %cst_17 [0] : vector<16x128xf32> to vector<128xf32>
    %26 = vector.shape_cast %25 : vector<128xf32> to vector<1x128xf32>
    %27 = arith.mulf %16, %16 : vector<16x128xf32>
    %cst_18 = arith.constant dense<0.000000e+00> : vector<128xf32>
    %28 = vector.multi_reduction <add>, %27, %cst_18 [0] : vector<16x128xf32> to vector<128xf32>
    %29 = vector.shape_cast %28 : vector<128xf32> to vector<1x128xf32>
    %cst_19 = arith.constant dense<0.000000e+00> : vector<128xf32>
    %30 = vector.multi_reduction <add>, %24, %cst_19 [0] : vector<16x128xf32> to vector<128xf32>
    %31 = vector.shape_cast %30 : vector<128xf32> to vector<1x128xf32>
    %32 = arith.addf %26, %31 : vector<1x128xf32>
    %33 = arith.mulf %24, %24 : vector<16x128xf32>
    %cst_20 = arith.constant dense<0.000000e+00> : vector<128xf32>
    %34 = vector.multi_reduction <add>, %33, %cst_20 [0] : vector<16x128xf32> to vector<128xf32>
    %35 = vector.shape_cast %34 : vector<128xf32> to vector<1x128xf32>
    %36 = arith.addf %29, %35 : vector<1x128xf32>
    %37 = tpu.concatenate %32, %36 in 0 : vector<1x128xf32>, vector<1x128xf32> -> vector<2x128xf32>
    %cst_21 = arith.constant dense<0.000000e+00> : vector<2x128xf32>
    %38 = tpu.matmul %37, %6, %cst_21 {dimension_numbers = #tpu.dot_dimension_numbers<[1], [0], [0], [1], [0, 0, 1, 1], [], []>} : vector<2x128xf32>, vector<128x128xf32>, vector<2x128xf32> -> vector<2x128xf32>
    %cst_22 = arith.constant 5.120000e+02 : f32
    %39 = vector.broadcast %cst_22 : f32 to vector<2x128xf32>
    %40 = arith.divf %38, %39 : vector<2x128xf32>
    %41 = vector.extract_strided_slice %40 {offsets = [0, 0], sizes = [1, 128], strides = [1, 1]} : vector<2x128xf32> to vector<1x128xf32>
    %42 = vector.extract_strided_slice %40 {offsets = [1, 0], sizes = [1, 128], strides = [1, 1]} : vector<2x128xf32> to vector<1x128xf32>
    %43 = arith.mulf %41, %41 : vector<1x128xf32>
    %44 = arith.subf %42, %43 : vector<1x128xf32>
    %cst_23 = arith.constant 0.000000e+00 : f32
    %45 = vector.broadcast %cst_23 : f32 to vector<1x128xf32>
    %46 = arith.maximumf %44, %45 : vector<1x128xf32>
    %cst_24 = arith.constant 9.99999974E-6 : f32
    %47 = vector.broadcast %cst_24 : f32 to vector<1x128xf32>
    %48 = arith.addf %46, %47 : vector<1x128xf32>
    %49 = math.rsqrt %48 : vector<1x128xf32>
    %50 = arith.mulf %7, %49 : vector<1x128xf32>
    %51 = arith.mulf %41, %50 : vector<1x128xf32>
    %52 = arith.subf %8, %51 : vector<1x128xf32>
    %53 = vector.broadcast %50 : vector<1x128xf32> to vector<16x128xf32>
    %54 = arith.mulf %16, %53 : vector<16x128xf32>
    %55 = vector.broadcast %52 : vector<1x128xf32> to vector<16x128xf32>
    %56 = arith.addf %54, %55 : vector<16x128xf32>
    %cst_25 = arith.constant 0.000000e+00 : f32
    %57 = vector.broadcast %cst_25 : f32 to vector<16x128xf32>
    %58 = arith.maximumf %56, %57 : vector<16x128xf32>
    %59 = vector.broadcast %50 : vector<1x128xf32> to vector<16x128xf32>
    %60 = arith.mulf %24, %59 : vector<16x128xf32>
    %61 = vector.broadcast %52 : vector<1x128xf32> to vector<16x128xf32>
    %62 = arith.addf %60, %61 : vector<16x128xf32>
    %cst_26 = arith.constant 0.000000e+00 : f32
    %63 = vector.broadcast %cst_26 : f32 to vector<16x128xf32>
    %64 = arith.maximumf %62, %63 : vector<16x128xf32>
    %cst_27 = arith.constant 0.000000e+00 : bf16
    %65 = vector.broadcast %cst_27 : bf16 to vector<1x128xbf16>
    %66 = arith.truncf %58 : vector<16x128xf32> to vector<16x128xbf16>
    %67 = tpu.concatenate %65, %66, %65 in 0 : vector<1x128xbf16>, vector<16x128xbf16>, vector<1x128xbf16> -> vector<18x128xbf16>
    %68 = arith.truncf %64 : vector<16x128xf32> to vector<16x128xbf16>
    %69 = tpu.concatenate %65, %68, %65 in 0 : vector<1x128xbf16>, vector<16x128xbf16>, vector<1x128xbf16> -> vector<18x128xbf16>
    %c0_28 = arith.constant 0 : index
    %c0_29 = arith.constant 0 : index
    %70 = vector.load %arg6[%c0_28, %c0_29] : memref<32x18xbf16, #tpu.memory_space<vmem>>, vector<32x18xbf16>
    %c0_30 = arith.constant 0 : index
    %c0_31 = arith.constant 0 : index
    %71 = vector.load %arg7[%c0_30, %c0_31] : memref<512x128xbf16, #tpu.memory_space<vmem>>, vector<512x128xbf16>
    %c0_32 = arith.constant 0 : index
    %c0_33 = arith.constant 0 : index
    %72 = vector.load %arg8[%c0_32, %c0_33] : memref<128x128xf32, #tpu.memory_space<vmem>>, vector<128x128xf32>
    %c0_34 = arith.constant 0 : index
    %c0_35 = arith.constant 0 : index
    %73 = vector.load %arg9[%c0_34, %c0_35] : memref<1x128xf32, #tpu.memory_space<vmem>>, vector<1x128xf32>
    %c0_36 = arith.constant 0 : index
    %c0_37 = arith.constant 0 : index
    %74 = vector.load %arg10[%c0_36, %c0_37] : memref<1x128xf32, #tpu.memory_space<vmem>>, vector<1x128xf32>
    %cst_38 = arith.constant dense<0.000000e+00> : vector<32x128xf32>
    %75 = tpu.matmul %70, %67, %cst_38 {dimension_numbers = #tpu.dot_dimension_numbers<[1], [0], [0], [1], [0, 0, 1, 1], [], []>} : vector<32x18xbf16>, vector<18x128xbf16>, vector<32x128xf32> -> vector<32x128xf32>
    %76 = arith.truncf %75 : vector<32x128xf32> to vector<32x128xbf16>
    %77 = vector.extract_strided_slice %76 {offsets = [0, 0], sizes = [8, 128], strides = [1, 1]} : vector<32x128xbf16> to vector<8x128xbf16>
    %78 = vector.extract_strided_slice %76 {offsets = [8, 0], sizes = [8, 128], strides = [1, 1]} : vector<32x128xbf16> to vector<8x128xbf16>
    %79 = vector.extract_strided_slice %76 {offsets = [16, 0], sizes = [8, 128], strides = [1, 1]} : vector<32x128xbf16> to vector<8x128xbf16>
    %80 = vector.extract_strided_slice %76 {offsets = [24, 0], sizes = [8, 128], strides = [1, 1]} : vector<32x128xbf16> to vector<8x128xbf16>
    %81 = tpu.concatenate %77, %78, %79, %80 in 1 : vector<8x128xbf16>, vector<8x128xbf16>, vector<8x128xbf16>, vector<8x128xbf16> -> vector<8x512xbf16>
    %cst_39 = arith.constant dense<0.000000e+00> : vector<8x128xf32>
    %82 = tpu.matmul %81, %71, %cst_39 {dimension_numbers = #tpu.dot_dimension_numbers<[1], [0], [0], [1], [0, 0, 1, 1], [], []>} : vector<8x512xbf16>, vector<512x128xbf16>, vector<8x128xf32> -> vector<8x128xf32>
    %cst_40 = arith.constant dense<0.000000e+00> : vector<32x128xf32>
    %83 = tpu.matmul %70, %69, %cst_40 {dimension_numbers = #tpu.dot_dimension_numbers<[1], [0], [0], [1], [0, 0, 1, 1], [], []>} : vector<32x18xbf16>, vector<18x128xbf16>, vector<32x128xf32> -> vector<32x128xf32>
    %84 = arith.truncf %83 : vector<32x128xf32> to vector<32x128xbf16>
    %85 = vector.extract_strided_slice %84 {offsets = [0, 0], sizes = [8, 128], strides = [1, 1]} : vector<32x128xbf16> to vector<8x128xbf16>
    %86 = vector.extract_strided_slice %84 {offsets = [8, 0], sizes = [8, 128], strides = [1, 1]} : vector<32x128xbf16> to vector<8x128xbf16>
    %87 = vector.extract_strided_slice %84 {offsets = [16, 0], sizes = [8, 128], strides = [1, 1]} : vector<32x128xbf16> to vector<8x128xbf16>
    %88 = vector.extract_strided_slice %84 {offsets = [24, 0], sizes = [8, 128], strides = [1, 1]} : vector<32x128xbf16> to vector<8x128xbf16>
    %89 = tpu.concatenate %85, %86, %87, %88 in 1 : vector<8x128xbf16>, vector<8x128xbf16>, vector<8x128xbf16>, vector<8x128xbf16> -> vector<8x512xbf16>
    %cst_41 = arith.constant dense<0.000000e+00> : vector<8x128xf32>
    %90 = tpu.matmul %89, %71, %cst_41 {dimension_numbers = #tpu.dot_dimension_numbers<[1], [0], [0], [1], [0, 0, 1, 1], [], []>} : vector<8x512xbf16>, vector<512x128xbf16>, vector<8x128xf32> -> vector<8x128xf32>
    %cst_42 = arith.constant dense<0.000000e+00> : vector<128xf32>
    %91 = vector.multi_reduction <add>, %82, %cst_42 [0] : vector<8x128xf32> to vector<128xf32>
    %92 = vector.shape_cast %91 : vector<128xf32> to vector<1x128xf32>
    %93 = arith.mulf %82, %82 : vector<8x128xf32>
    %cst_43 = arith.constant dense<0.000000e+00> : vector<128xf32>
    %94 = vector.multi_reduction <add>, %93, %cst_43 [0] : vector<8x128xf32> to vector<128xf32>
    %95 = vector.shape_cast %94 : vector<128xf32> to vector<1x128xf32>
    %cst_44 = arith.constant dense<0.000000e+00> : vector<128xf32>
    %96 = vector.multi_reduction <add>, %90, %cst_44 [0] : vector<8x128xf32> to vector<128xf32>
    %97 = vector.shape_cast %96 : vector<128xf32> to vector<1x128xf32>
    %98 = arith.addf %92, %97 : vector<1x128xf32>
    %99 = arith.mulf %90, %90 : vector<8x128xf32>
    %cst_45 = arith.constant dense<0.000000e+00> : vector<128xf32>
    %100 = vector.multi_reduction <add>, %99, %cst_45 [0] : vector<8x128xf32> to vector<128xf32>
    %101 = vector.shape_cast %100 : vector<128xf32> to vector<1x128xf32>
    %102 = arith.addf %95, %101 : vector<1x128xf32>
    %103 = tpu.concatenate %98, %102 in 0 : vector<1x128xf32>, vector<1x128xf32> -> vector<2x128xf32>
    %cst_46 = arith.constant dense<0.000000e+00> : vector<2x128xf32>
    %104 = tpu.matmul %103, %72, %cst_46 {dimension_numbers = #tpu.dot_dimension_numbers<[1], [0], [0], [1], [0, 0, 1, 1], [], []>} : vector<2x128xf32>, vector<128x128xf32>, vector<2x128xf32> -> vector<2x128xf32>
    %cst_47 = arith.constant 1.280000e+02 : f32
    %105 = vector.broadcast %cst_47 : f32 to vector<2x128xf32>
    %106 = arith.divf %104, %105 : vector<2x128xf32>
    %107 = vector.extract_strided_slice %106 {offsets = [0, 0], sizes = [1, 128], strides = [1, 1]} : vector<2x128xf32> to vector<1x128xf32>
    %108 = vector.extract_strided_slice %106 {offsets = [1, 0], sizes = [1, 128], strides = [1, 1]} : vector<2x128xf32> to vector<1x128xf32>
    %109 = arith.mulf %107, %107 : vector<1x128xf32>
    %110 = arith.subf %108, %109 : vector<1x128xf32>
    %cst_48 = arith.constant 0.000000e+00 : f32
    %111 = vector.broadcast %cst_48 : f32 to vector<1x128xf32>
    %112 = arith.maximumf %110, %111 : vector<1x128xf32>
    %cst_49 = arith.constant 9.99999974E-6 : f32
    %113 = vector.broadcast %cst_49 : f32 to vector<1x128xf32>
    %114 = arith.addf %112, %113 : vector<1x128xf32>
    %115 = math.rsqrt %114 : vector<1x128xf32>
    %116 = arith.mulf %73, %115 : vector<1x128xf32>
    %117 = arith.mulf %107, %116 : vector<1x128xf32>
    %118 = arith.subf %74, %117 : vector<1x128xf32>
    %119 = vector.broadcast %116 : vector<1x128xf32> to vector<8x128xf32>
    %120 = arith.mulf %82, %119 : vector<8x128xf32>
    %121 = vector.broadcast %118 : vector<1x128xf32> to vector<8x128xf32>
    %122 = arith.addf %120, %121 : vector<8x128xf32>
    %cst_50 = arith.constant 0.000000e+00 : f32
    %123 = vector.broadcast %cst_50 : f32 to vector<8x128xf32>
    %124 = arith.maximumf %122, %123 : vector<8x128xf32>
    %125 = vector.broadcast %116 : vector<1x128xf32> to vector<8x128xf32>
    %126 = arith.mulf %90, %125 : vector<8x128xf32>
    %127 = vector.broadcast %118 : vector<1x128xf32> to vector<8x128xf32>
    %128 = arith.addf %126, %127 : vector<8x128xf32>
    %cst_51 = arith.constant 0.000000e+00 : f32
    %129 = vector.broadcast %cst_51 : f32 to vector<8x128xf32>
    %130 = arith.maximumf %128, %129 : vector<8x128xf32>
    %cst_52 = arith.constant 0.000000e+00 : bf16
    %131 = vector.broadcast %cst_52 : bf16 to vector<1x128xbf16>
    %132 = arith.truncf %124 : vector<8x128xf32> to vector<8x128xbf16>
    %133 = tpu.concatenate %131, %132, %131 in 0 : vector<1x128xbf16>, vector<8x128xbf16>, vector<1x128xbf16> -> vector<10x128xbf16>
    %134 = arith.truncf %130 : vector<8x128xf32> to vector<8x128xbf16>
    %135 = tpu.concatenate %131, %134, %131 in 0 : vector<1x128xbf16>, vector<8x128xbf16>, vector<1x128xbf16> -> vector<10x128xbf16>
    %c0_53 = arith.constant 0 : index
    %c0_54 = arith.constant 0 : index
    %136 = vector.load %arg11[%c0_53, %c0_54] : memref<16x10xbf16, #tpu.memory_space<vmem>>, vector<16x10xbf16>
    %c0_55 = arith.constant 0 : index
    %c0_56 = arith.constant 0 : index
    %137 = vector.load %arg12[%c0_55, %c0_56] : memref<512x128xbf16, #tpu.memory_space<vmem>>, vector<512x128xbf16>
    %c0_57 = arith.constant 0 : index
    %c0_58 = arith.constant 0 : index
    %138 = vector.load %arg13[%c0_57, %c0_58] : memref<128x128xf32, #tpu.memory_space<vmem>>, vector<128x128xf32>
    %c0_59 = arith.constant 0 : index
    %c0_60 = arith.constant 0 : index
    %139 = vector.load %arg14[%c0_59, %c0_60] : memref<1x128xf32, #tpu.memory_space<vmem>>, vector<1x128xf32>
    %c0_61 = arith.constant 0 : index
    %c0_62 = arith.constant 0 : index
    %140 = vector.load %arg15[%c0_61, %c0_62] : memref<1x128xf32, #tpu.memory_space<vmem>>, vector<1x128xf32>
    %cst_63 = arith.constant dense<0.000000e+00> : vector<16x128xf32>
    %141 = tpu.matmul %136, %133, %cst_63 {dimension_numbers = #tpu.dot_dimension_numbers<[1], [0], [0], [1], [0, 0, 1, 1], [], []>} : vector<16x10xbf16>, vector<10x128xbf16>, vector<16x128xf32> -> vector<16x128xf32>
    %142 = arith.truncf %141 : vector<16x128xf32> to vector<16x128xbf16>
    %143 = vector.extract_strided_slice %142 {offsets = [0, 0], sizes = [4, 128], strides = [1, 1]} : vector<16x128xbf16> to vector<4x128xbf16>
    %144 = vector.extract_strided_slice %142 {offsets = [4, 0], sizes = [4, 128], strides = [1, 1]} : vector<16x128xbf16> to vector<4x128xbf16>
    %145 = vector.extract_strided_slice %142 {offsets = [8, 0], sizes = [4, 128], strides = [1, 1]} : vector<16x128xbf16> to vector<4x128xbf16>
    %146 = vector.extract_strided_slice %142 {offsets = [12, 0], sizes = [4, 128], strides = [1, 1]} : vector<16x128xbf16> to vector<4x128xbf16>
    %147 = tpu.concatenate %143, %144, %145, %146 in 1 : vector<4x128xbf16>, vector<4x128xbf16>, vector<4x128xbf16>, vector<4x128xbf16> -> vector<4x512xbf16>
    %cst_64 = arith.constant dense<0.000000e+00> : vector<4x128xf32>
    %148 = tpu.matmul %147, %137, %cst_64 {dimension_numbers = #tpu.dot_dimension_numbers<[1], [0], [0], [1], [0, 0, 1, 1], [], []>} : vector<4x512xbf16>, vector<512x128xbf16>, vector<4x128xf32> -> vector<4x128xf32>
    %cst_65 = arith.constant dense<0.000000e+00> : vector<16x128xf32>
    %149 = tpu.matmul %136, %135, %cst_65 {dimension_numbers = #tpu.dot_dimension_numbers<[1], [0], [0], [1], [0, 0, 1, 1], [], []>} : vector<16x10xbf16>, vector<10x128xbf16>, vector<16x128xf32> -> vector<16x128xf32>
    %150 = arith.truncf %149 : vector<16x128xf32> to vector<16x128xbf16>
    %151 = vector.extract_strided_slice %150 {offsets = [0, 0], sizes = [4, 128], strides = [1, 1]} : vector<16x128xbf16> to vector<4x128xbf16>
    %152 = vector.extract_strided_slice %150 {offsets = [4, 0], sizes = [4, 128], strides = [1, 1]} : vector<16x128xbf16> to vector<4x128xbf16>
    %153 = vector.extract_strided_slice %150 {offsets = [8, 0], sizes = [4, 128], strides = [1, 1]} : vector<16x128xbf16> to vector<4x128xbf16>
    %154 = vector.extract_strided_slice %150 {offsets = [12, 0], sizes = [4, 128], strides = [1, 1]} : vector<16x128xbf16> to vector<4x128xbf16>
    %155 = tpu.concatenate %151, %152, %153, %154 in 1 : vector<4x128xbf16>, vector<4x128xbf16>, vector<4x128xbf16>, vector<4x128xbf16> -> vector<4x512xbf16>
    %cst_66 = arith.constant dense<0.000000e+00> : vector<4x128xf32>
    %156 = tpu.matmul %155, %137, %cst_66 {dimension_numbers = #tpu.dot_dimension_numbers<[1], [0], [0], [1], [0, 0, 1, 1], [], []>} : vector<4x512xbf16>, vector<512x128xbf16>, vector<4x128xf32> -> vector<4x128xf32>
    %cst_67 = arith.constant dense<0.000000e+00> : vector<128xf32>
    %157 = vector.multi_reduction <add>, %148, %cst_67 [0] : vector<4x128xf32> to vector<128xf32>
    %158 = vector.shape_cast %157 : vector<128xf32> to vector<1x128xf32>
    %159 = arith.mulf %148, %148 : vector<4x128xf32>
    %cst_68 = arith.constant dense<0.000000e+00> : vector<128xf32>
    %160 = vector.multi_reduction <add>, %159, %cst_68 [0] : vector<4x128xf32> to vector<128xf32>
    %161 = vector.shape_cast %160 : vector<128xf32> to vector<1x128xf32>
    %cst_69 = arith.constant dense<0.000000e+00> : vector<128xf32>
    %162 = vector.multi_reduction <add>, %156, %cst_69 [0] : vector<4x128xf32> to vector<128xf32>
    %163 = vector.shape_cast %162 : vector<128xf32> to vector<1x128xf32>
    %164 = arith.addf %158, %163 : vector<1x128xf32>
    %165 = arith.mulf %156, %156 : vector<4x128xf32>
    %cst_70 = arith.constant dense<0.000000e+00> : vector<128xf32>
    %166 = vector.multi_reduction <add>, %165, %cst_70 [0] : vector<4x128xf32> to vector<128xf32>
    %167 = vector.shape_cast %166 : vector<128xf32> to vector<1x128xf32>
    %168 = arith.addf %161, %167 : vector<1x128xf32>
    %169 = tpu.concatenate %164, %168 in 0 : vector<1x128xf32>, vector<1x128xf32> -> vector<2x128xf32>
    %cst_71 = arith.constant dense<0.000000e+00> : vector<2x128xf32>
    %170 = tpu.matmul %169, %138, %cst_71 {dimension_numbers = #tpu.dot_dimension_numbers<[1], [0], [0], [1], [0, 0, 1, 1], [], []>} : vector<2x128xf32>, vector<128x128xf32>, vector<2x128xf32> -> vector<2x128xf32>
    %cst_72 = arith.constant 3.200000e+01 : f32
    %171 = vector.broadcast %cst_72 : f32 to vector<2x128xf32>
    %172 = arith.divf %170, %171 : vector<2x128xf32>
    %173 = vector.extract_strided_slice %172 {offsets = [0, 0], sizes = [1, 128], strides = [1, 1]} : vector<2x128xf32> to vector<1x128xf32>
    %174 = vector.extract_strided_slice %172 {offsets = [1, 0], sizes = [1, 128], strides = [1, 1]} : vector<2x128xf32> to vector<1x128xf32>
    %175 = arith.mulf %173, %173 : vector<1x128xf32>
    %176 = arith.subf %174, %175 : vector<1x128xf32>
    %cst_73 = arith.constant 0.000000e+00 : f32
    %177 = vector.broadcast %cst_73 : f32 to vector<1x128xf32>
    %178 = arith.maximumf %176, %177 : vector<1x128xf32>
    %cst_74 = arith.constant 9.99999974E-6 : f32
    %179 = vector.broadcast %cst_74 : f32 to vector<1x128xf32>
    %180 = arith.addf %178, %179 : vector<1x128xf32>
    %181 = math.rsqrt %180 : vector<1x128xf32>
    %182 = arith.mulf %139, %181 : vector<1x128xf32>
    %183 = arith.mulf %173, %182 : vector<1x128xf32>
    %184 = arith.subf %140, %183 : vector<1x128xf32>
    %185 = vector.broadcast %182 : vector<1x128xf32> to vector<4x128xf32>
    %186 = arith.mulf %148, %185 : vector<4x128xf32>
    %187 = vector.broadcast %184 : vector<1x128xf32> to vector<4x128xf32>
    %188 = arith.addf %186, %187 : vector<4x128xf32>
    %cst_75 = arith.constant 0.000000e+00 : f32
    %189 = vector.broadcast %cst_75 : f32 to vector<4x128xf32>
    %190 = arith.maximumf %188, %189 : vector<4x128xf32>
    %191 = vector.broadcast %182 : vector<1x128xf32> to vector<4x128xf32>
    %192 = arith.mulf %156, %191 : vector<4x128xf32>
    %193 = vector.broadcast %184 : vector<1x128xf32> to vector<4x128xf32>
    %194 = arith.addf %192, %193 : vector<4x128xf32>
    %cst_76 = arith.constant 0.000000e+00 : f32
    %195 = vector.broadcast %cst_76 : f32 to vector<4x128xf32>
    %196 = arith.maximumf %194, %195 : vector<4x128xf32>
    %cst_77 = arith.constant 0.000000e+00 : bf16
    %197 = vector.broadcast %cst_77 : bf16 to vector<1x128xbf16>
    %198 = arith.truncf %190 : vector<4x128xf32> to vector<4x128xbf16>
    %199 = tpu.concatenate %197, %198, %197 in 0 : vector<1x128xbf16>, vector<4x128xbf16>, vector<1x128xbf16> -> vector<6x128xbf16>
    %200 = arith.truncf %196 : vector<4x128xf32> to vector<4x128xbf16>
    %201 = tpu.concatenate %197, %200, %197 in 0 : vector<1x128xbf16>, vector<4x128xbf16>, vector<1x128xbf16> -> vector<6x128xbf16>
    %c0_78 = arith.constant 0 : index
    %c0_79 = arith.constant 0 : index
    %202 = vector.load %arg16[%c0_78, %c0_79] : memref<8x6xbf16, #tpu.memory_space<vmem>>, vector<8x6xbf16>
    %c0_80 = arith.constant 0 : index
    %c0_81 = arith.constant 0 : index
    %203 = vector.load %arg17[%c0_80, %c0_81] : memref<512x128xbf16, #tpu.memory_space<vmem>>, vector<512x128xbf16>
    %c0_82 = arith.constant 0 : index
    %c0_83 = arith.constant 0 : index
    %204 = vector.load %arg18[%c0_82, %c0_83] : memref<128x128xf32, #tpu.memory_space<vmem>>, vector<128x128xf32>
    %c0_84 = arith.constant 0 : index
    %c0_85 = arith.constant 0 : index
    %205 = vector.load %arg19[%c0_84, %c0_85] : memref<1x128xf32, #tpu.memory_space<vmem>>, vector<1x128xf32>
    %c0_86 = arith.constant 0 : index
    %c0_87 = arith.constant 0 : index
    %206 = vector.load %arg20[%c0_86, %c0_87] : memref<1x128xf32, #tpu.memory_space<vmem>>, vector<1x128xf32>
    %cst_88 = arith.constant dense<0.000000e+00> : vector<8x128xf32>
    %207 = tpu.matmul %202, %199, %cst_88 {dimension_numbers = #tpu.dot_dimension_numbers<[1], [0], [0], [1], [0, 0, 1, 1], [], []>} : vector<8x6xbf16>, vector<6x128xbf16>, vector<8x128xf32> -> vector<8x128xf32>
    %208 = arith.truncf %207 : vector<8x128xf32> to vector<8x128xbf16>
    %209 = vector.extract_strided_slice %208 {offsets = [0, 0], sizes = [2, 128], strides = [1, 1]} : vector<8x128xbf16> to vector<2x128xbf16>
    %210 = vector.extract_strided_slice %208 {offsets = [2, 0], sizes = [2, 128], strides = [1, 1]} : vector<8x128xbf16> to vector<2x128xbf16>
    %211 = vector.extract_strided_slice %208 {offsets = [4, 0], sizes = [2, 128], strides = [1, 1]} : vector<8x128xbf16> to vector<2x128xbf16>
    %212 = vector.extract_strided_slice %208 {offsets = [6, 0], sizes = [2, 128], strides = [1, 1]} : vector<8x128xbf16> to vector<2x128xbf16>
    %213 = tpu.concatenate %209, %210, %211, %212 in 1 : vector<2x128xbf16>, vector<2x128xbf16>, vector<2x128xbf16>, vector<2x128xbf16> -> vector<2x512xbf16>
    %cst_89 = arith.constant dense<0.000000e+00> : vector<2x128xf32>
    %214 = tpu.matmul %213, %203, %cst_89 {dimension_numbers = #tpu.dot_dimension_numbers<[1], [0], [0], [1], [0, 0, 1, 1], [], []>} : vector<2x512xbf16>, vector<512x128xbf16>, vector<2x128xf32> -> vector<2x128xf32>
    %cst_90 = arith.constant dense<0.000000e+00> : vector<8x128xf32>
    %215 = tpu.matmul %202, %201, %cst_90 {dimension_numbers = #tpu.dot_dimension_numbers<[1], [0], [0], [1], [0, 0, 1, 1], [], []>} : vector<8x6xbf16>, vector<6x128xbf16>, vector<8x128xf32> -> vector<8x128xf32>
    %216 = arith.truncf %215 : vector<8x128xf32> to vector<8x128xbf16>
    %217 = vector.extract_strided_slice %216 {offsets = [0, 0], sizes = [2, 128], strides = [1, 1]} : vector<8x128xbf16> to vector<2x128xbf16>
    %218 = vector.extract_strided_slice %216 {offsets = [2, 0], sizes = [2, 128], strides = [1, 1]} : vector<8x128xbf16> to vector<2x128xbf16>
    %219 = vector.extract_strided_slice %216 {offsets = [4, 0], sizes = [2, 128], strides = [1, 1]} : vector<8x128xbf16> to vector<2x128xbf16>
    %220 = vector.extract_strided_slice %216 {offsets = [6, 0], sizes = [2, 128], strides = [1, 1]} : vector<8x128xbf16> to vector<2x128xbf16>
    %221 = tpu.concatenate %217, %218, %219, %220 in 1 : vector<2x128xbf16>, vector<2x128xbf16>, vector<2x128xbf16>, vector<2x128xbf16> -> vector<2x512xbf16>
    %cst_91 = arith.constant dense<0.000000e+00> : vector<2x128xf32>
    %222 = tpu.matmul %221, %203, %cst_91 {dimension_numbers = #tpu.dot_dimension_numbers<[1], [0], [0], [1], [0, 0, 1, 1], [], []>} : vector<2x512xbf16>, vector<512x128xbf16>, vector<2x128xf32> -> vector<2x128xf32>
    %cst_92 = arith.constant dense<0.000000e+00> : vector<128xf32>
    %223 = vector.multi_reduction <add>, %214, %cst_92 [0] : vector<2x128xf32> to vector<128xf32>
    %224 = vector.shape_cast %223 : vector<128xf32> to vector<1x128xf32>
    %225 = arith.mulf %214, %214 : vector<2x128xf32>
    %cst_93 = arith.constant dense<0.000000e+00> : vector<128xf32>
    %226 = vector.multi_reduction <add>, %225, %cst_93 [0] : vector<2x128xf32> to vector<128xf32>
    %227 = vector.shape_cast %226 : vector<128xf32> to vector<1x128xf32>
    %cst_94 = arith.constant dense<0.000000e+00> : vector<128xf32>
    %228 = vector.multi_reduction <add>, %222, %cst_94 [0] : vector<2x128xf32> to vector<128xf32>
    %229 = vector.shape_cast %228 : vector<128xf32> to vector<1x128xf32>
    %230 = arith.addf %224, %229 : vector<1x128xf32>
    %231 = arith.mulf %222, %222 : vector<2x128xf32>
    %cst_95 = arith.constant dense<0.000000e+00> : vector<128xf32>
    %232 = vector.multi_reduction <add>, %231, %cst_95 [0] : vector<2x128xf32> to vector<128xf32>
    %233 = vector.shape_cast %232 : vector<128xf32> to vector<1x128xf32>
    %234 = arith.addf %227, %233 : vector<1x128xf32>
    %235 = tpu.concatenate %230, %234 in 0 : vector<1x128xf32>, vector<1x128xf32> -> vector<2x128xf32>
    %cst_96 = arith.constant dense<0.000000e+00> : vector<2x128xf32>
    %236 = tpu.matmul %235, %204, %cst_96 {dimension_numbers = #tpu.dot_dimension_numbers<[1], [0], [0], [1], [0, 0, 1, 1], [], []>} : vector<2x128xf32>, vector<128x128xf32>, vector<2x128xf32> -> vector<2x128xf32>
    %cst_97 = arith.constant 8.000000e+00 : f32
    %237 = vector.broadcast %cst_97 : f32 to vector<2x128xf32>
    %238 = arith.divf %236, %237 : vector<2x128xf32>
    %239 = vector.extract_strided_slice %238 {offsets = [0, 0], sizes = [1, 128], strides = [1, 1]} : vector<2x128xf32> to vector<1x128xf32>
    %240 = vector.extract_strided_slice %238 {offsets = [1, 0], sizes = [1, 128], strides = [1, 1]} : vector<2x128xf32> to vector<1x128xf32>
    %241 = arith.mulf %239, %239 : vector<1x128xf32>
    %242 = arith.subf %240, %241 : vector<1x128xf32>
    %cst_98 = arith.constant 0.000000e+00 : f32
    %243 = vector.broadcast %cst_98 : f32 to vector<1x128xf32>
    %244 = arith.maximumf %242, %243 : vector<1x128xf32>
    %cst_99 = arith.constant 9.99999974E-6 : f32
    %245 = vector.broadcast %cst_99 : f32 to vector<1x128xf32>
    %246 = arith.addf %244, %245 : vector<1x128xf32>
    %247 = math.rsqrt %246 : vector<1x128xf32>
    %248 = arith.mulf %205, %247 : vector<1x128xf32>
    %249 = arith.mulf %239, %248 : vector<1x128xf32>
    %250 = arith.subf %206, %249 : vector<1x128xf32>
    %251 = vector.broadcast %248 : vector<1x128xf32> to vector<2x128xf32>
    %252 = arith.mulf %214, %251 : vector<2x128xf32>
    %253 = vector.broadcast %250 : vector<1x128xf32> to vector<2x128xf32>
    %254 = arith.addf %252, %253 : vector<2x128xf32>
    %cst_100 = arith.constant 0.000000e+00 : f32
    %255 = vector.broadcast %cst_100 : f32 to vector<2x128xf32>
    %256 = arith.maximumf %254, %255 : vector<2x128xf32>
    %257 = vector.broadcast %248 : vector<1x128xf32> to vector<2x128xf32>
    %258 = arith.mulf %222, %257 : vector<2x128xf32>
    %259 = vector.broadcast %250 : vector<1x128xf32> to vector<2x128xf32>
    %260 = arith.addf %258, %259 : vector<2x128xf32>
    %cst_101 = arith.constant 0.000000e+00 : f32
    %261 = vector.broadcast %cst_101 : f32 to vector<2x128xf32>
    %262 = arith.maximumf %260, %261 : vector<2x128xf32>
    %cst_102 = arith.constant 0.000000e+00 : bf16
    %263 = vector.broadcast %cst_102 : bf16 to vector<1x128xbf16>
    %264 = arith.truncf %256 : vector<2x128xf32> to vector<2x128xbf16>
    %265 = tpu.concatenate %263, %264, %263 in 0 : vector<1x128xbf16>, vector<2x128xbf16>, vector<1x128xbf16> -> vector<4x128xbf16>
    %266 = arith.truncf %262 : vector<2x128xf32> to vector<2x128xbf16>
    %267 = tpu.concatenate %263, %266, %263 in 0 : vector<1x128xbf16>, vector<2x128xbf16>, vector<1x128xbf16> -> vector<4x128xbf16>
    %c0_103 = arith.constant 0 : index
    %c0_104 = arith.constant 0 : index
    %268 = vector.load %arg21[%c0_103, %c0_104] : memref<256x128xbf16, #tpu.memory_space<vmem>>, vector<256x128xbf16>
    %c0_105 = arith.constant 0 : index
    %c0_106 = arith.constant 0 : index
    %269 = vector.load %arg22[%c0_105, %c0_106] : memref<256x128xbf16, #tpu.memory_space<vmem>>, vector<256x128xbf16>
    %270 = vector.extract_strided_slice %265 {offsets = [1, 0], sizes = [2, 128], strides = [1, 1]} : vector<4x128xbf16> to vector<2x128xbf16>
    %271 = vector.extract_strided_slice %265 {offsets = [0, 0], sizes = [2, 128], strides = [1, 1]} : vector<4x128xbf16> to vector<2x128xbf16>
    %272 = tpu.concatenate %270, %271 in 1 : vector<2x128xbf16>, vector<2x128xbf16> -> vector<2x256xbf16>
    %273 = vector.extract_strided_slice %265 {offsets = [1, 0], sizes = [2, 128], strides = [1, 1]} : vector<4x128xbf16> to vector<2x128xbf16>
    %274 = vector.extract_strided_slice %265 {offsets = [2, 0], sizes = [2, 128], strides = [1, 1]} : vector<4x128xbf16> to vector<2x128xbf16>
    %275 = tpu.concatenate %273, %274 in 1 : vector<2x128xbf16>, vector<2x128xbf16> -> vector<2x256xbf16>
    %cst_107 = arith.constant dense<0.000000e+00> : vector<2x128xf32>
    %276 = tpu.matmul %272, %268, %cst_107 {dimension_numbers = #tpu.dot_dimension_numbers<[1], [0], [0], [1], [0, 0, 1, 1], [], []>} : vector<2x256xbf16>, vector<256x128xbf16>, vector<2x128xf32> -> vector<2x128xf32>
    %cst_108 = arith.constant dense<0.000000e+00> : vector<2x128xf32>
    %277 = tpu.matmul %275, %269, %cst_108 {dimension_numbers = #tpu.dot_dimension_numbers<[1], [0], [0], [1], [0, 0, 1, 1], [], []>} : vector<2x256xbf16>, vector<256x128xbf16>, vector<2x128xf32> -> vector<2x128xf32>
    %278 = vector.extract_strided_slice %267 {offsets = [1, 0], sizes = [2, 128], strides = [1, 1]} : vector<4x128xbf16> to vector<2x128xbf16>
    %279 = vector.extract_strided_slice %267 {offsets = [0, 0], sizes = [2, 128], strides = [1, 1]} : vector<4x128xbf16> to vector<2x128xbf16>
    %280 = tpu.concatenate %278, %279 in 1 : vector<2x128xbf16>, vector<2x128xbf16> -> vector<2x256xbf16>
    %281 = vector.extract_strided_slice %267 {offsets = [1, 0], sizes = [2, 128], strides = [1, 1]} : vector<4x128xbf16> to vector<2x128xbf16>
    %282 = vector.extract_strided_slice %267 {offsets = [2, 0], sizes = [2, 128], strides = [1, 1]} : vector<4x128xbf16> to vector<2x128xbf16>
    %283 = tpu.concatenate %281, %282 in 1 : vector<2x128xbf16>, vector<2x128xbf16> -> vector<2x256xbf16>
    %cst_109 = arith.constant dense<0.000000e+00> : vector<2x128xf32>
    %284 = tpu.matmul %280, %268, %cst_109 {dimension_numbers = #tpu.dot_dimension_numbers<[1], [0], [0], [1], [0, 0, 1, 1], [], []>} : vector<2x256xbf16>, vector<256x128xbf16>, vector<2x128xf32> -> vector<2x128xf32>
    %cst_110 = arith.constant dense<0.000000e+00> : vector<2x128xf32>
    %285 = tpu.matmul %283, %269, %cst_110 {dimension_numbers = #tpu.dot_dimension_numbers<[1], [0], [0], [1], [0, 0, 1, 1], [], []>} : vector<2x256xbf16>, vector<256x128xbf16>, vector<2x128xf32> -> vector<2x128xf32>
    %c0_111 = arith.constant 0 : index
    %c0_112 = arith.constant 0 : index
    %286 = vector.load %arg23[%c0_111, %c0_112] : memref<4x4xbf16, #tpu.memory_space<vmem>>, vector<4x4xbf16>
    %c0_113 = arith.constant 0 : index
    %c0_114 = arith.constant 0 : index
    %287 = vector.load %arg24[%c0_113, %c0_114] : memref<128x128xf32, #tpu.memory_space<vmem>>, vector<128x128xf32>
    %c0_115 = arith.constant 0 : index
    %c0_116 = arith.constant 0 : index
    %288 = vector.load %arg25[%c0_115, %c0_116] : memref<1x128xf32, #tpu.memory_space<vmem>>, vector<1x128xf32>
    %c0_117 = arith.constant 0 : index
    %c0_118 = arith.constant 0 : index
    %289 = vector.load %arg26[%c0_117, %c0_118] : memref<1x128xf32, #tpu.memory_space<vmem>>, vector<1x128xf32>
    %cst_119 = arith.constant dense<0.000000e+00> : vector<128xf32>
    %290 = vector.multi_reduction <add>, %276, %cst_119 [0] : vector<2x128xf32> to vector<128xf32>
    %291 = vector.shape_cast %290 : vector<128xf32> to vector<1x128xf32>
    %292 = arith.mulf %276, %276 : vector<2x128xf32>
    %cst_120 = arith.constant dense<0.000000e+00> : vector<128xf32>
    %293 = vector.multi_reduction <add>, %292, %cst_120 [0] : vector<2x128xf32> to vector<128xf32>
    %294 = vector.shape_cast %293 : vector<128xf32> to vector<1x128xf32>
    %cst_121 = arith.constant dense<0.000000e+00> : vector<128xf32>
    %295 = vector.multi_reduction <add>, %284, %cst_121 [0] : vector<2x128xf32> to vector<128xf32>
    %296 = vector.shape_cast %295 : vector<128xf32> to vector<1x128xf32>
    %297 = arith.addf %291, %296 : vector<1x128xf32>
    %298 = arith.mulf %284, %284 : vector<2x128xf32>
    %cst_122 = arith.constant dense<0.000000e+00> : vector<128xf32>
    %299 = vector.multi_reduction <add>, %298, %cst_122 [0] : vector<2x128xf32> to vector<128xf32>
    %300 = vector.shape_cast %299 : vector<128xf32> to vector<1x128xf32>
    %301 = arith.addf %294, %300 : vector<1x128xf32>
    %cst_123 = arith.constant dense<0.000000e+00> : vector<128xf32>
    %302 = vector.multi_reduction <add>, %277, %cst_123 [0] : vector<2x128xf32> to vector<128xf32>
    %303 = vector.shape_cast %302 : vector<128xf32> to vector<1x128xf32>
    %304 = arith.addf %297, %303 : vector<1x128xf32>
    %305 = arith.mulf %277, %277 : vector<2x128xf32>
    %cst_124 = arith.constant dense<0.000000e+00> : vector<128xf32>
    %306 = vector.multi_reduction <add>, %305, %cst_124 [0] : vector<2x128xf32> to vector<128xf32>
    %307 = vector.shape_cast %306 : vector<128xf32> to vector<1x128xf32>
    %308 = arith.addf %301, %307 : vector<1x128xf32>
    %cst_125 = arith.constant dense<0.000000e+00> : vector<128xf32>
    %309 = vector.multi_reduction <add>, %285, %cst_125 [0] : vector<2x128xf32> to vector<128xf32>
    %310 = vector.shape_cast %309 : vector<128xf32> to vector<1x128xf32>
    %311 = arith.addf %304, %310 : vector<1x128xf32>
    %312 = arith.mulf %285, %285 : vector<2x128xf32>
    %cst_126 = arith.constant dense<0.000000e+00> : vector<128xf32>
    %313 = vector.multi_reduction <add>, %312, %cst_126 [0] : vector<2x128xf32> to vector<128xf32>
    %314 = vector.shape_cast %313 : vector<128xf32> to vector<1x128xf32>
    %315 = arith.addf %308, %314 : vector<1x128xf32>
    %316 = tpu.concatenate %311, %315 in 0 : vector<1x128xf32>, vector<1x128xf32> -> vector<2x128xf32>
    %cst_127 = arith.constant dense<0.000000e+00> : vector<2x128xf32>
    %317 = tpu.matmul %316, %287, %cst_127 {dimension_numbers = #tpu.dot_dimension_numbers<[1], [0], [0], [1], [0, 0, 1, 1], [], []>} : vector<2x128xf32>, vector<128x128xf32>, vector<2x128xf32> -> vector<2x128xf32>
    %cst_128 = arith.constant 3.200000e+01 : f32
    %318 = vector.broadcast %cst_128 : f32 to vector<2x128xf32>
    %319 = arith.divf %317, %318 : vector<2x128xf32>
    %320 = vector.extract_strided_slice %319 {offsets = [0, 0], sizes = [1, 128], strides = [1, 1]} : vector<2x128xf32> to vector<1x128xf32>
    %321 = vector.extract_strided_slice %319 {offsets = [1, 0], sizes = [1, 128], strides = [1, 1]} : vector<2x128xf32> to vector<1x128xf32>
    %322 = arith.mulf %320, %320 : vector<1x128xf32>
    %323 = arith.subf %321, %322 : vector<1x128xf32>
    %cst_129 = arith.constant 0.000000e+00 : f32
    %324 = vector.broadcast %cst_129 : f32 to vector<1x128xf32>
    %325 = arith.maximumf %323, %324 : vector<1x128xf32>
    %cst_130 = arith.constant 9.99999974E-6 : f32
    %326 = vector.broadcast %cst_130 : f32 to vector<1x128xf32>
    %327 = arith.addf %325, %326 : vector<1x128xf32>
    %328 = math.rsqrt %327 : vector<1x128xf32>
    %329 = arith.mulf %288, %328 : vector<1x128xf32>
    %330 = arith.mulf %320, %329 : vector<1x128xf32>
    %331 = arith.subf %289, %330 : vector<1x128xf32>
    %332 = vector.broadcast %329 : vector<1x128xf32> to vector<2x128xf32>
    %333 = arith.mulf %276, %332 : vector<2x128xf32>
    %334 = vector.broadcast %331 : vector<1x128xf32> to vector<2x128xf32>
    %335 = arith.addf %333, %334 : vector<2x128xf32>
    %cst_131 = arith.constant 0.000000e+00 : f32
    %336 = vector.broadcast %cst_131 : f32 to vector<2x128xf32>
    %337 = arith.maximumf %335, %336 : vector<2x128xf32>
    %338 = vector.broadcast %329 : vector<1x128xf32> to vector<2x128xf32>
    %339 = arith.mulf %284, %338 : vector<2x128xf32>
    %340 = vector.broadcast %331 : vector<1x128xf32> to vector<2x128xf32>
    %341 = arith.addf %339, %340 : vector<2x128xf32>
    %cst_132 = arith.constant 0.000000e+00 : f32
    %342 = vector.broadcast %cst_132 : f32 to vector<2x128xf32>
    %343 = arith.maximumf %341, %342 : vector<2x128xf32>
    %344 = vector.broadcast %329 : vector<1x128xf32> to vector<2x128xf32>
    %345 = arith.mulf %277, %344 : vector<2x128xf32>
    %346 = vector.broadcast %331 : vector<1x128xf32> to vector<2x128xf32>
    %347 = arith.addf %345, %346 : vector<2x128xf32>
    %cst_133 = arith.constant 0.000000e+00 : f32
    %348 = vector.broadcast %cst_133 : f32 to vector<2x128xf32>
    %349 = arith.maximumf %347, %348 : vector<2x128xf32>
    %350 = vector.broadcast %329 : vector<1x128xf32> to vector<2x128xf32>
    %351 = arith.mulf %285, %350 : vector<2x128xf32>
    %352 = vector.broadcast %331 : vector<1x128xf32> to vector<2x128xf32>
    %353 = arith.addf %351, %352 : vector<2x128xf32>
    %cst_134 = arith.constant 0.000000e+00 : f32
    %354 = vector.broadcast %cst_134 : f32 to vector<2x128xf32>
    %355 = arith.maximumf %353, %354 : vector<2x128xf32>
    %cst_135 = arith.constant 0.000000e+00 : bf16
    %356 = vector.broadcast %cst_135 : bf16 to vector<1x128xbf16>
    %357 = tpu.concatenate %337, %349 in 0 : vector<2x128xf32>, vector<2x128xf32> -> vector<4x128xf32>
    %358 = arith.truncf %357 : vector<4x128xf32> to vector<4x128xbf16>
    %cst_136 = arith.constant dense<0.000000e+00> : vector<4x128xf32>
    %359 = tpu.matmul %286, %358, %cst_136 {dimension_numbers = #tpu.dot_dimension_numbers<[1], [0], [0], [1], [0, 0, 1, 1], [], []>} : vector<4x4xbf16>, vector<4x128xbf16>, vector<4x128xf32> -> vector<4x128xf32>
    %360 = arith.truncf %359 : vector<4x128xf32> to vector<4x128xbf16>
    %361 = tpu.concatenate %356, %360, %356 in 0 : vector<1x128xbf16>, vector<4x128xbf16>, vector<1x128xbf16> -> vector<6x128xbf16>
    %362 = tpu.concatenate %343, %355 in 0 : vector<2x128xf32>, vector<2x128xf32> -> vector<4x128xf32>
    %363 = arith.truncf %362 : vector<4x128xf32> to vector<4x128xbf16>
    %cst_137 = arith.constant dense<0.000000e+00> : vector<4x128xf32>
    %364 = tpu.matmul %286, %363, %cst_137 {dimension_numbers = #tpu.dot_dimension_numbers<[1], [0], [0], [1], [0, 0, 1, 1], [], []>} : vector<4x4xbf16>, vector<4x128xbf16>, vector<4x128xf32> -> vector<4x128xf32>
    %365 = arith.truncf %364 : vector<4x128xf32> to vector<4x128xbf16>
    %366 = tpu.concatenate %356, %365, %356 in 0 : vector<1x128xbf16>, vector<4x128xbf16>, vector<1x128xbf16> -> vector<6x128xbf16>
    %c0_138 = arith.constant 0 : index
    %c0_139 = arith.constant 0 : index
    %367 = vector.load %arg27[%c0_138, %c0_139] : memref<256x128xbf16, #tpu.memory_space<vmem>>, vector<256x128xbf16>
    %c0_140 = arith.constant 0 : index
    %c0_141 = arith.constant 0 : index
    %368 = vector.load %arg28[%c0_140, %c0_141] : memref<256x128xbf16, #tpu.memory_space<vmem>>, vector<256x128xbf16>
    %369 = vector.extract_strided_slice %361 {offsets = [1, 0], sizes = [4, 128], strides = [1, 1]} : vector<6x128xbf16> to vector<4x128xbf16>
    %370 = vector.extract_strided_slice %361 {offsets = [0, 0], sizes = [4, 128], strides = [1, 1]} : vector<6x128xbf16> to vector<4x128xbf16>
    %371 = tpu.concatenate %369, %370 in 1 : vector<4x128xbf16>, vector<4x128xbf16> -> vector<4x256xbf16>
    %372 = vector.extract_strided_slice %361 {offsets = [1, 0], sizes = [4, 128], strides = [1, 1]} : vector<6x128xbf16> to vector<4x128xbf16>
    %373 = vector.extract_strided_slice %361 {offsets = [2, 0], sizes = [4, 128], strides = [1, 1]} : vector<6x128xbf16> to vector<4x128xbf16>
    %374 = tpu.concatenate %372, %373 in 1 : vector<4x128xbf16>, vector<4x128xbf16> -> vector<4x256xbf16>
    %cst_142 = arith.constant dense<0.000000e+00> : vector<4x128xf32>
    %375 = tpu.matmul %371, %367, %cst_142 {dimension_numbers = #tpu.dot_dimension_numbers<[1], [0], [0], [1], [0, 0, 1, 1], [], []>} : vector<4x256xbf16>, vector<256x128xbf16>, vector<4x128xf32> -> vector<4x128xf32>
    %cst_143 = arith.constant dense<0.000000e+00> : vector<4x128xf32>
    %376 = tpu.matmul %374, %368, %cst_143 {dimension_numbers = #tpu.dot_dimension_numbers<[1], [0], [0], [1], [0, 0, 1, 1], [], []>} : vector<4x256xbf16>, vector<256x128xbf16>, vector<4x128xf32> -> vector<4x128xf32>
    %377 = vector.extract_strided_slice %366 {offsets = [1, 0], sizes = [4, 128], strides = [1, 1]} : vector<6x128xbf16> to vector<4x128xbf16>
    %378 = vector.extract_strided_slice %366 {offsets = [0, 0], sizes = [4, 128], strides = [1, 1]} : vector<6x128xbf16> to vector<4x128xbf16>
    %379 = tpu.concatenate %377, %378 in 1 : vector<4x128xbf16>, vector<4x128xbf16> -> vector<4x256xbf16>
    %380 = vector.extract_strided_slice %366 {offsets = [1, 0], sizes = [4, 128], strides = [1, 1]} : vector<6x128xbf16> to vector<4x128xbf16>
    %381 = vector.extract_strided_slice %366 {offsets = [2, 0], sizes = [4, 128], strides = [1, 1]} : vector<6x128xbf16> to vector<4x128xbf16>
    %382 = tpu.concatenate %380, %381 in 1 : vector<4x128xbf16>, vector<4x128xbf16> -> vector<4x256xbf16>
    %cst_144 = arith.constant dense<0.000000e+00> : vector<4x128xf32>
    %383 = tpu.matmul %379, %367, %cst_144 {dimension_numbers = #tpu.dot_dimension_numbers<[1], [0], [0], [1], [0, 0, 1, 1], [], []>} : vector<4x256xbf16>, vector<256x128xbf16>, vector<4x128xf32> -> vector<4x128xf32>
    %cst_145 = arith.constant dense<0.000000e+00> : vector<4x128xf32>
    %384 = tpu.matmul %382, %368, %cst_145 {dimension_numbers = #tpu.dot_dimension_numbers<[1], [0], [0], [1], [0, 0, 1, 1], [], []>} : vector<4x256xbf16>, vector<256x128xbf16>, vector<4x128xf32> -> vector<4x128xf32>
    %c0_146 = arith.constant 0 : index
    %c0_147 = arith.constant 0 : index
    %385 = vector.load %arg29[%c0_146, %c0_147] : memref<8x8xbf16, #tpu.memory_space<vmem>>, vector<8x8xbf16>
    %c0_148 = arith.constant 0 : index
    %c0_149 = arith.constant 0 : index
    %386 = vector.load %arg30[%c0_148, %c0_149] : memref<128x128xf32, #tpu.memory_space<vmem>>, vector<128x128xf32>
    %c0_150 = arith.constant 0 : index
    %c0_151 = arith.constant 0 : index
    %387 = vector.load %arg31[%c0_150, %c0_151] : memref<1x128xf32, #tpu.memory_space<vmem>>, vector<1x128xf32>
    %c0_152 = arith.constant 0 : index
    %c0_153 = arith.constant 0 : index
    %388 = vector.load %arg32[%c0_152, %c0_153] : memref<1x128xf32, #tpu.memory_space<vmem>>, vector<1x128xf32>
    %cst_154 = arith.constant dense<0.000000e+00> : vector<128xf32>
    %389 = vector.multi_reduction <add>, %375, %cst_154 [0] : vector<4x128xf32> to vector<128xf32>
    %390 = vector.shape_cast %389 : vector<128xf32> to vector<1x128xf32>
    %391 = arith.mulf %375, %375 : vector<4x128xf32>
    %cst_155 = arith.constant dense<0.000000e+00> : vector<128xf32>
    %392 = vector.multi_reduction <add>, %391, %cst_155 [0] : vector<4x128xf32> to vector<128xf32>
    %393 = vector.shape_cast %392 : vector<128xf32> to vector<1x128xf32>
    %cst_156 = arith.constant dense<0.000000e+00> : vector<128xf32>
    %394 = vector.multi_reduction <add>, %383, %cst_156 [0] : vector<4x128xf32> to vector<128xf32>
    %395 = vector.shape_cast %394 : vector<128xf32> to vector<1x128xf32>
    %396 = arith.addf %390, %395 : vector<1x128xf32>
    %397 = arith.mulf %383, %383 : vector<4x128xf32>
    %cst_157 = arith.constant dense<0.000000e+00> : vector<128xf32>
    %398 = vector.multi_reduction <add>, %397, %cst_157 [0] : vector<4x128xf32> to vector<128xf32>
    %399 = vector.shape_cast %398 : vector<128xf32> to vector<1x128xf32>
    %400 = arith.addf %393, %399 : vector<1x128xf32>
    %cst_158 = arith.constant dense<0.000000e+00> : vector<128xf32>
    %401 = vector.multi_reduction <add>, %376, %cst_158 [0] : vector<4x128xf32> to vector<128xf32>
    %402 = vector.shape_cast %401 : vector<128xf32> to vector<1x128xf32>
    %403 = arith.addf %396, %402 : vector<1x128xf32>
    %404 = arith.mulf %376, %376 : vector<4x128xf32>
    %cst_159 = arith.constant dense<0.000000e+00> : vector<128xf32>
    %405 = vector.multi_reduction <add>, %404, %cst_159 [0] : vector<4x128xf32> to vector<128xf32>
    %406 = vector.shape_cast %405 : vector<128xf32> to vector<1x128xf32>
    %407 = arith.addf %400, %406 : vector<1x128xf32>
    %cst_160 = arith.constant dense<0.000000e+00> : vector<128xf32>
    %408 = vector.multi_reduction <add>, %384, %cst_160 [0] : vector<4x128xf32> to vector<128xf32>
    %409 = vector.shape_cast %408 : vector<128xf32> to vector<1x128xf32>
    %410 = arith.addf %403, %409 : vector<1x128xf32>
    %411 = arith.mulf %384, %384 : vector<4x128xf32>
    %cst_161 = arith.constant dense<0.000000e+00> : vector<128xf32>
    %412 = vector.multi_reduction <add>, %411, %cst_161 [0] : vector<4x128xf32> to vector<128xf32>
    %413 = vector.shape_cast %412 : vector<128xf32> to vector<1x128xf32>
    %414 = arith.addf %407, %413 : vector<1x128xf32>
    %415 = tpu.concatenate %410, %414 in 0 : vector<1x128xf32>, vector<1x128xf32> -> vector<2x128xf32>
    %cst_162 = arith.constant dense<0.000000e+00> : vector<2x128xf32>
    %416 = tpu.matmul %415, %386, %cst_162 {dimension_numbers = #tpu.dot_dimension_numbers<[1], [0], [0], [1], [0, 0, 1, 1], [], []>} : vector<2x128xf32>, vector<128x128xf32>, vector<2x128xf32> -> vector<2x128xf32>
    %cst_163 = arith.constant 1.280000e+02 : f32
    %417 = vector.broadcast %cst_163 : f32 to vector<2x128xf32>
    %418 = arith.divf %416, %417 : vector<2x128xf32>
    %419 = vector.extract_strided_slice %418 {offsets = [0, 0], sizes = [1, 128], strides = [1, 1]} : vector<2x128xf32> to vector<1x128xf32>
    %420 = vector.extract_strided_slice %418 {offsets = [1, 0], sizes = [1, 128], strides = [1, 1]} : vector<2x128xf32> to vector<1x128xf32>
    %421 = arith.mulf %419, %419 : vector<1x128xf32>
    %422 = arith.subf %420, %421 : vector<1x128xf32>
    %cst_164 = arith.constant 0.000000e+00 : f32
    %423 = vector.broadcast %cst_164 : f32 to vector<1x128xf32>
    %424 = arith.maximumf %422, %423 : vector<1x128xf32>
    %cst_165 = arith.constant 9.99999974E-6 : f32
    %425 = vector.broadcast %cst_165 : f32 to vector<1x128xf32>
    %426 = arith.addf %424, %425 : vector<1x128xf32>
    %427 = math.rsqrt %426 : vector<1x128xf32>
    %428 = arith.mulf %387, %427 : vector<1x128xf32>
    %429 = arith.mulf %419, %428 : vector<1x128xf32>
    %430 = arith.subf %388, %429 : vector<1x128xf32>
    %431 = vector.broadcast %428 : vector<1x128xf32> to vector<4x128xf32>
    %432 = arith.mulf %375, %431 : vector<4x128xf32>
    %433 = vector.broadcast %430 : vector<1x128xf32> to vector<4x128xf32>
    %434 = arith.addf %432, %433 : vector<4x128xf32>
    %cst_166 = arith.constant 0.000000e+00 : f32
    %435 = vector.broadcast %cst_166 : f32 to vector<4x128xf32>
    %436 = arith.maximumf %434, %435 : vector<4x128xf32>
    %437 = vector.broadcast %428 : vector<1x128xf32> to vector<4x128xf32>
    %438 = arith.mulf %383, %437 : vector<4x128xf32>
    %439 = vector.broadcast %430 : vector<1x128xf32> to vector<4x128xf32>
    %440 = arith.addf %438, %439 : vector<4x128xf32>
    %cst_167 = arith.constant 0.000000e+00 : f32
    %441 = vector.broadcast %cst_167 : f32 to vector<4x128xf32>
    %442 = arith.maximumf %440, %441 : vector<4x128xf32>
    %443 = vector.broadcast %428 : vector<1x128xf32> to vector<4x128xf32>
    %444 = arith.mulf %376, %443 : vector<4x128xf32>
    %445 = vector.broadcast %430 : vector<1x128xf32> to vector<4x128xf32>
    %446 = arith.addf %444, %445 : vector<4x128xf32>
    %cst_168 = arith.constant 0.000000e+00 : f32
    %447 = vector.broadcast %cst_168 : f32 to vector<4x128xf32>
    %448 = arith.maximumf %446, %447 : vector<4x128xf32>
    %449 = vector.broadcast %428 : vector<1x128xf32> to vector<4x128xf32>
    %450 = arith.mulf %384, %449 : vector<4x128xf32>
    %451 = vector.broadcast %430 : vector<1x128xf32> to vector<4x128xf32>
    %452 = arith.addf %450, %451 : vector<4x128xf32>
    %cst_169 = arith.constant 0.000000e+00 : f32
    %453 = vector.broadcast %cst_169 : f32 to vector<4x128xf32>
    %454 = arith.maximumf %452, %453 : vector<4x128xf32>
    %cst_170 = arith.constant 0.000000e+00 : bf16
    %455 = vector.broadcast %cst_170 : bf16 to vector<1x128xbf16>
    %456 = tpu.concatenate %436, %448 in 0 : vector<4x128xf32>, vector<4x128xf32> -> vector<8x128xf32>
    %457 = arith.truncf %456 : vector<8x128xf32> to vector<8x128xbf16>
    %cst_171 = arith.constant dense<0.000000e+00> : vector<8x128xf32>
    %458 = tpu.matmul %385, %457, %cst_171 {dimension_numbers = #tpu.dot_dimension_numbers<[1], [0], [0], [1], [0, 0, 1, 1], [], []>} : vector<8x8xbf16>, vector<8x128xbf16>, vector<8x128xf32> -> vector<8x128xf32>
    %459 = arith.truncf %458 : vector<8x128xf32> to vector<8x128xbf16>
    %460 = tpu.concatenate %455, %459, %455 in 0 : vector<1x128xbf16>, vector<8x128xbf16>, vector<1x128xbf16> -> vector<10x128xbf16>
    %461 = tpu.concatenate %442, %454 in 0 : vector<4x128xf32>, vector<4x128xf32> -> vector<8x128xf32>
    %462 = arith.truncf %461 : vector<8x128xf32> to vector<8x128xbf16>
    %cst_172 = arith.constant dense<0.000000e+00> : vector<8x128xf32>
    %463 = tpu.matmul %385, %462, %cst_172 {dimension_numbers = #tpu.dot_dimension_numbers<[1], [0], [0], [1], [0, 0, 1, 1], [], []>} : vector<8x8xbf16>, vector<8x128xbf16>, vector<8x128xf32> -> vector<8x128xf32>
    %464 = arith.truncf %463 : vector<8x128xf32> to vector<8x128xbf16>
    %465 = tpu.concatenate %455, %464, %455 in 0 : vector<1x128xbf16>, vector<8x128xbf16>, vector<1x128xbf16> -> vector<10x128xbf16>
    %c0_173 = arith.constant 0 : index
    %c0_174 = arith.constant 0 : index
    %466 = vector.load %arg33[%c0_173, %c0_174] : memref<256x128xbf16, #tpu.memory_space<vmem>>, vector<256x128xbf16>
    %c0_175 = arith.constant 0 : index
    %c0_176 = arith.constant 0 : index
    %467 = vector.load %arg34[%c0_175, %c0_176] : memref<256x128xbf16, #tpu.memory_space<vmem>>, vector<256x128xbf16>
    %468 = vector.extract_strided_slice %460 {offsets = [1, 0], sizes = [8, 128], strides = [1, 1]} : vector<10x128xbf16> to vector<8x128xbf16>
    %469 = vector.extract_strided_slice %460 {offsets = [0, 0], sizes = [8, 128], strides = [1, 1]} : vector<10x128xbf16> to vector<8x128xbf16>
    %470 = tpu.concatenate %468, %469 in 1 : vector<8x128xbf16>, vector<8x128xbf16> -> vector<8x256xbf16>
    %471 = vector.extract_strided_slice %460 {offsets = [1, 0], sizes = [8, 128], strides = [1, 1]} : vector<10x128xbf16> to vector<8x128xbf16>
    %472 = vector.extract_strided_slice %460 {offsets = [2, 0], sizes = [8, 128], strides = [1, 1]} : vector<10x128xbf16> to vector<8x128xbf16>
    %473 = tpu.concatenate %471, %472 in 1 : vector<8x128xbf16>, vector<8x128xbf16> -> vector<8x256xbf16>
    %cst_177 = arith.constant dense<0.000000e+00> : vector<8x128xf32>
    %474 = tpu.matmul %470, %466, %cst_177 {dimension_numbers = #tpu.dot_dimension_numbers<[1], [0], [0], [1], [0, 0, 1, 1], [], []>} : vector<8x256xbf16>, vector<256x128xbf16>, vector<8x128xf32> -> vector<8x128xf32>
    %cst_178 = arith.constant dense<0.000000e+00> : vector<8x128xf32>
    %475 = tpu.matmul %473, %467, %cst_178 {dimension_numbers = #tpu.dot_dimension_numbers<[1], [0], [0], [1], [0, 0, 1, 1], [], []>} : vector<8x256xbf16>, vector<256x128xbf16>, vector<8x128xf32> -> vector<8x128xf32>
    %476 = vector.extract_strided_slice %465 {offsets = [1, 0], sizes = [8, 128], strides = [1, 1]} : vector<10x128xbf16> to vector<8x128xbf16>
    %477 = vector.extract_strided_slice %465 {offsets = [0, 0], sizes = [8, 128], strides = [1, 1]} : vector<10x128xbf16> to vector<8x128xbf16>
    %478 = tpu.concatenate %476, %477 in 1 : vector<8x128xbf16>, vector<8x128xbf16> -> vector<8x256xbf16>
    %479 = vector.extract_strided_slice %465 {offsets = [1, 0], sizes = [8, 128], strides = [1, 1]} : vector<10x128xbf16> to vector<8x128xbf16>
    %480 = vector.extract_strided_slice %465 {offsets = [2, 0], sizes = [8, 128], strides = [1, 1]} : vector<10x128xbf16> to vector<8x128xbf16>
    %481 = tpu.concatenate %479, %480 in 1 : vector<8x128xbf16>, vector<8x128xbf16> -> vector<8x256xbf16>
    %cst_179 = arith.constant dense<0.000000e+00> : vector<8x128xf32>
    %482 = tpu.matmul %478, %466, %cst_179 {dimension_numbers = #tpu.dot_dimension_numbers<[1], [0], [0], [1], [0, 0, 1, 1], [], []>} : vector<8x256xbf16>, vector<256x128xbf16>, vector<8x128xf32> -> vector<8x128xf32>
    %cst_180 = arith.constant dense<0.000000e+00> : vector<8x128xf32>
    %483 = tpu.matmul %481, %467, %cst_180 {dimension_numbers = #tpu.dot_dimension_numbers<[1], [0], [0], [1], [0, 0, 1, 1], [], []>} : vector<8x256xbf16>, vector<256x128xbf16>, vector<8x128xf32> -> vector<8x128xf32>
    %c0_181 = arith.constant 0 : index
    %c0_182 = arith.constant 0 : index
    %484 = vector.load %arg35[%c0_181, %c0_182] : memref<16x16xbf16, #tpu.memory_space<vmem>>, vector<16x16xbf16>
    %c0_183 = arith.constant 0 : index
    %c0_184 = arith.constant 0 : index
    %485 = vector.load %arg36[%c0_183, %c0_184] : memref<128x128xf32, #tpu.memory_space<vmem>>, vector<128x128xf32>
    %c0_185 = arith.constant 0 : index
    %c0_186 = arith.constant 0 : index
    %486 = vector.load %arg37[%c0_185, %c0_186] : memref<1x128xf32, #tpu.memory_space<vmem>>, vector<1x128xf32>
    %c0_187 = arith.constant 0 : index
    %c0_188 = arith.constant 0 : index
    %487 = vector.load %arg38[%c0_187, %c0_188] : memref<1x128xf32, #tpu.memory_space<vmem>>, vector<1x128xf32>
    %cst_189 = arith.constant dense<0.000000e+00> : vector<128xf32>
    %488 = vector.multi_reduction <add>, %474, %cst_189 [0] : vector<8x128xf32> to vector<128xf32>
    %489 = vector.shape_cast %488 : vector<128xf32> to vector<1x128xf32>
    %490 = arith.mulf %474, %474 : vector<8x128xf32>
    %cst_190 = arith.constant dense<0.000000e+00> : vector<128xf32>
    %491 = vector.multi_reduction <add>, %490, %cst_190 [0] : vector<8x128xf32> to vector<128xf32>
    %492 = vector.shape_cast %491 : vector<128xf32> to vector<1x128xf32>
    %cst_191 = arith.constant dense<0.000000e+00> : vector<128xf32>
    %493 = vector.multi_reduction <add>, %482, %cst_191 [0] : vector<8x128xf32> to vector<128xf32>
    %494 = vector.shape_cast %493 : vector<128xf32> to vector<1x128xf32>
    %495 = arith.addf %489, %494 : vector<1x128xf32>
    %496 = arith.mulf %482, %482 : vector<8x128xf32>
    %cst_192 = arith.constant dense<0.000000e+00> : vector<128xf32>
    %497 = vector.multi_reduction <add>, %496, %cst_192 [0] : vector<8x128xf32> to vector<128xf32>
    %498 = vector.shape_cast %497 : vector<128xf32> to vector<1x128xf32>
    %499 = arith.addf %492, %498 : vector<1x128xf32>
    %cst_193 = arith.constant dense<0.000000e+00> : vector<128xf32>
    %500 = vector.multi_reduction <add>, %475, %cst_193 [0] : vector<8x128xf32> to vector<128xf32>
    %501 = vector.shape_cast %500 : vector<128xf32> to vector<1x128xf32>
    %502 = arith.addf %495, %501 : vector<1x128xf32>
    %503 = arith.mulf %475, %475 : vector<8x128xf32>
    %cst_194 = arith.constant dense<0.000000e+00> : vector<128xf32>
    %504 = vector.multi_reduction <add>, %503, %cst_194 [0] : vector<8x128xf32> to vector<128xf32>
    %505 = vector.shape_cast %504 : vector<128xf32> to vector<1x128xf32>
    %506 = arith.addf %499, %505 : vector<1x128xf32>
    %cst_195 = arith.constant dense<0.000000e+00> : vector<128xf32>
    %507 = vector.multi_reduction <add>, %483, %cst_195 [0] : vector<8x128xf32> to vector<128xf32>
    %508 = vector.shape_cast %507 : vector<128xf32> to vector<1x128xf32>
    %509 = arith.addf %502, %508 : vector<1x128xf32>
    %510 = arith.mulf %483, %483 : vector<8x128xf32>
    %cst_196 = arith.constant dense<0.000000e+00> : vector<128xf32>
    %511 = vector.multi_reduction <add>, %510, %cst_196 [0] : vector<8x128xf32> to vector<128xf32>
    %512 = vector.shape_cast %511 : vector<128xf32> to vector<1x128xf32>
    %513 = arith.addf %506, %512 : vector<1x128xf32>
    %514 = tpu.concatenate %509, %513 in 0 : vector<1x128xf32>, vector<1x128xf32> -> vector<2x128xf32>
    %cst_197 = arith.constant dense<0.000000e+00> : vector<2x128xf32>
    %515 = tpu.matmul %514, %485, %cst_197 {dimension_numbers = #tpu.dot_dimension_numbers<[1], [0], [0], [1], [0, 0, 1, 1], [], []>} : vector<2x128xf32>, vector<128x128xf32>, vector<2x128xf32> -> vector<2x128xf32>
    %cst_198 = arith.constant 5.120000e+02 : f32
    %516 = vector.broadcast %cst_198 : f32 to vector<2x128xf32>
    %517 = arith.divf %515, %516 : vector<2x128xf32>
    %518 = vector.extract_strided_slice %517 {offsets = [0, 0], sizes = [1, 128], strides = [1, 1]} : vector<2x128xf32> to vector<1x128xf32>
    %519 = vector.extract_strided_slice %517 {offsets = [1, 0], sizes = [1, 128], strides = [1, 1]} : vector<2x128xf32> to vector<1x128xf32>
    %520 = arith.mulf %518, %518 : vector<1x128xf32>
    %521 = arith.subf %519, %520 : vector<1x128xf32>
    %cst_199 = arith.constant 0.000000e+00 : f32
    %522 = vector.broadcast %cst_199 : f32 to vector<1x128xf32>
    %523 = arith.maximumf %521, %522 : vector<1x128xf32>
    %cst_200 = arith.constant 9.99999974E-6 : f32
    %524 = vector.broadcast %cst_200 : f32 to vector<1x128xf32>
    %525 = arith.addf %523, %524 : vector<1x128xf32>
    %526 = math.rsqrt %525 : vector<1x128xf32>
    %527 = arith.mulf %486, %526 : vector<1x128xf32>
    %528 = arith.mulf %518, %527 : vector<1x128xf32>
    %529 = arith.subf %487, %528 : vector<1x128xf32>
    %530 = vector.broadcast %527 : vector<1x128xf32> to vector<8x128xf32>
    %531 = arith.mulf %474, %530 : vector<8x128xf32>
    %532 = vector.broadcast %529 : vector<1x128xf32> to vector<8x128xf32>
    %533 = arith.addf %531, %532 : vector<8x128xf32>
    %cst_201 = arith.constant 0.000000e+00 : f32
    %534 = vector.broadcast %cst_201 : f32 to vector<8x128xf32>
    %535 = arith.maximumf %533, %534 : vector<8x128xf32>
    %536 = vector.broadcast %527 : vector<1x128xf32> to vector<8x128xf32>
    %537 = arith.mulf %482, %536 : vector<8x128xf32>
    %538 = vector.broadcast %529 : vector<1x128xf32> to vector<8x128xf32>
    %539 = arith.addf %537, %538 : vector<8x128xf32>
    %cst_202 = arith.constant 0.000000e+00 : f32
    %540 = vector.broadcast %cst_202 : f32 to vector<8x128xf32>
    %541 = arith.maximumf %539, %540 : vector<8x128xf32>
    %542 = vector.broadcast %527 : vector<1x128xf32> to vector<8x128xf32>
    %543 = arith.mulf %475, %542 : vector<8x128xf32>
    %544 = vector.broadcast %529 : vector<1x128xf32> to vector<8x128xf32>
    %545 = arith.addf %543, %544 : vector<8x128xf32>
    %cst_203 = arith.constant 0.000000e+00 : f32
    %546 = vector.broadcast %cst_203 : f32 to vector<8x128xf32>
    %547 = arith.maximumf %545, %546 : vector<8x128xf32>
    %548 = vector.broadcast %527 : vector<1x128xf32> to vector<8x128xf32>
    %549 = arith.mulf %483, %548 : vector<8x128xf32>
    %550 = vector.broadcast %529 : vector<1x128xf32> to vector<8x128xf32>
    %551 = arith.addf %549, %550 : vector<8x128xf32>
    %cst_204 = arith.constant 0.000000e+00 : f32
    %552 = vector.broadcast %cst_204 : f32 to vector<8x128xf32>
    %553 = arith.maximumf %551, %552 : vector<8x128xf32>
    %cst_205 = arith.constant 0.000000e+00 : bf16
    %554 = vector.broadcast %cst_205 : bf16 to vector<1x128xbf16>
    %555 = tpu.concatenate %535, %547 in 0 : vector<8x128xf32>, vector<8x128xf32> -> vector<16x128xf32>
    %556 = arith.truncf %555 : vector<16x128xf32> to vector<16x128xbf16>
    %cst_206 = arith.constant dense<0.000000e+00> : vector<16x128xf32>
    %557 = tpu.matmul %484, %556, %cst_206 {dimension_numbers = #tpu.dot_dimension_numbers<[1], [0], [0], [1], [0, 0, 1, 1], [], []>} : vector<16x16xbf16>, vector<16x128xbf16>, vector<16x128xf32> -> vector<16x128xf32>
    %558 = arith.truncf %557 : vector<16x128xf32> to vector<16x128xbf16>
    %559 = tpu.concatenate %554, %558, %554 in 0 : vector<1x128xbf16>, vector<16x128xbf16>, vector<1x128xbf16> -> vector<18x128xbf16>
    %560 = tpu.concatenate %541, %553 in 0 : vector<8x128xf32>, vector<8x128xf32> -> vector<16x128xf32>
    %561 = arith.truncf %560 : vector<16x128xf32> to vector<16x128xbf16>
    %cst_207 = arith.constant dense<0.000000e+00> : vector<16x128xf32>
    %562 = tpu.matmul %484, %561, %cst_207 {dimension_numbers = #tpu.dot_dimension_numbers<[1], [0], [0], [1], [0, 0, 1, 1], [], []>} : vector<16x16xbf16>, vector<16x128xbf16>, vector<16x128xf32> -> vector<16x128xf32>
    %563 = arith.truncf %562 : vector<16x128xf32> to vector<16x128xbf16>
    %564 = tpu.concatenate %554, %563, %554 in 0 : vector<1x128xbf16>, vector<16x128xbf16>, vector<1x128xbf16> -> vector<18x128xbf16>
    %c0_208 = arith.constant 0 : index
    %c0_209 = arith.constant 0 : index
    %565 = vector.load %arg39[%c0_208, %c0_209] : memref<256x96xbf16, #tpu.memory_space<vmem>>, vector<256x96xbf16>
    %c0_210 = arith.constant 0 : index
    %c0_211 = arith.constant 0 : index
    %566 = vector.load %arg40[%c0_210, %c0_211] : memref<256x96xbf16, #tpu.memory_space<vmem>>, vector<256x96xbf16>
    %567 = vector.extract_strided_slice %559 {offsets = [1, 0], sizes = [16, 128], strides = [1, 1]} : vector<18x128xbf16> to vector<16x128xbf16>
    %568 = vector.extract_strided_slice %559 {offsets = [0, 0], sizes = [16, 128], strides = [1, 1]} : vector<18x128xbf16> to vector<16x128xbf16>
    %569 = tpu.concatenate %567, %568 in 1 : vector<16x128xbf16>, vector<16x128xbf16> -> vector<16x256xbf16>
    %570 = vector.extract_strided_slice %559 {offsets = [1, 0], sizes = [16, 128], strides = [1, 1]} : vector<18x128xbf16> to vector<16x128xbf16>
    %571 = vector.extract_strided_slice %559 {offsets = [2, 0], sizes = [16, 128], strides = [1, 1]} : vector<18x128xbf16> to vector<16x128xbf16>
    %572 = tpu.concatenate %570, %571 in 1 : vector<16x128xbf16>, vector<16x128xbf16> -> vector<16x256xbf16>
    %cst_212 = arith.constant dense<0.000000e+00> : vector<16x96xf32>
    %573 = tpu.matmul %569, %565, %cst_212 {dimension_numbers = #tpu.dot_dimension_numbers<[1], [0], [0], [1], [0, 0, 1, 1], [], []>} : vector<16x256xbf16>, vector<256x96xbf16>, vector<16x96xf32> -> vector<16x96xf32>
    %cst_213 = arith.constant dense<0.000000e+00> : vector<16x96xf32>
    %574 = tpu.matmul %572, %566, %cst_213 {dimension_numbers = #tpu.dot_dimension_numbers<[1], [0], [0], [1], [0, 0, 1, 1], [], []>} : vector<16x256xbf16>, vector<256x96xbf16>, vector<16x96xf32> -> vector<16x96xf32>
    %575 = vector.extract_strided_slice %564 {offsets = [1, 0], sizes = [16, 128], strides = [1, 1]} : vector<18x128xbf16> to vector<16x128xbf16>
    %576 = vector.extract_strided_slice %564 {offsets = [0, 0], sizes = [16, 128], strides = [1, 1]} : vector<18x128xbf16> to vector<16x128xbf16>
    %577 = tpu.concatenate %575, %576 in 1 : vector<16x128xbf16>, vector<16x128xbf16> -> vector<16x256xbf16>
    %578 = vector.extract_strided_slice %564 {offsets = [1, 0], sizes = [16, 128], strides = [1, 1]} : vector<18x128xbf16> to vector<16x128xbf16>
    %579 = vector.extract_strided_slice %564 {offsets = [2, 0], sizes = [16, 128], strides = [1, 1]} : vector<18x128xbf16> to vector<16x128xbf16>
    %580 = tpu.concatenate %578, %579 in 1 : vector<16x128xbf16>, vector<16x128xbf16> -> vector<16x256xbf16>
    %cst_214 = arith.constant dense<0.000000e+00> : vector<16x96xf32>
    %581 = tpu.matmul %577, %565, %cst_214 {dimension_numbers = #tpu.dot_dimension_numbers<[1], [0], [0], [1], [0, 0, 1, 1], [], []>} : vector<16x256xbf16>, vector<256x96xbf16>, vector<16x96xf32> -> vector<16x96xf32>
    %cst_215 = arith.constant dense<0.000000e+00> : vector<16x96xf32>
    %582 = tpu.matmul %580, %566, %cst_215 {dimension_numbers = #tpu.dot_dimension_numbers<[1], [0], [0], [1], [0, 0, 1, 1], [], []>} : vector<16x256xbf16>, vector<256x96xbf16>, vector<16x96xf32> -> vector<16x96xf32>
    %c0_216 = arith.constant 0 : index
    %c0_217 = arith.constant 0 : index
    %583 = vector.load %arg41[%c0_216, %c0_217] : memref<1x96xf32, #tpu.memory_space<vmem>>, vector<1x96xf32>
    %584 = vector.broadcast %583 : vector<1x96xf32> to vector<16x96xf32>
    %585 = arith.addf %573, %584 : vector<16x96xf32>
    %586 = math.tanh %585 : vector<16x96xf32>
    %c0_218 = arith.constant 0 : index
    %c0_219 = arith.constant 0 : index
    %c0_220 = arith.constant 0 : index
    %587 = vector.load %arg42[%c0_218, %c0_219, %c0_220] : memref<4x16x96xf32, #tpu.memory_space<vmem>>, vector<1x16x96xf32>
    %588 = vector.shape_cast %587 : vector<1x16x96xf32> to vector<16x96xf32>
    %589 = vector.shape_cast %586 : vector<16x96xf32> to vector<1x16x96xf32>
    tpu.vector_store %arg42[%c0_218, %c0_219, %c0_220], %589 {strides = array<i32>} : memref<4x16x96xf32, #tpu.memory_space<vmem>>, vector<1x16x96xf32>,
    %590 = vector.broadcast %583 : vector<1x96xf32> to vector<16x96xf32>
    %591 = arith.addf %574, %590 : vector<16x96xf32>
    %592 = math.tanh %591 : vector<16x96xf32>
    %c1_221 = arith.constant 1 : index
    %c0_222 = arith.constant 0 : index
    %c0_223 = arith.constant 0 : index
    %593 = vector.load %arg42[%c1_221, %c0_222, %c0_223] : memref<4x16x96xf32, #tpu.memory_space<vmem>>, vector<1x16x96xf32>
    %594 = vector.shape_cast %593 : vector<1x16x96xf32> to vector<16x96xf32>
    %595 = vector.shape_cast %592 : vector<16x96xf32> to vector<1x16x96xf32>
    tpu.vector_store %arg42[%c1_221, %c0_222, %c0_223], %595 {strides = array<i32>} : memref<4x16x96xf32, #tpu.memory_space<vmem>>, vector<1x16x96xf32>,
    %596 = vector.broadcast %583 : vector<1x96xf32> to vector<16x96xf32>
    %597 = arith.addf %581, %596 : vector<16x96xf32>
    %598 = math.tanh %597 : vector<16x96xf32>
    %c2 = arith.constant 2 : index
    %c0_224 = arith.constant 0 : index
    %c0_225 = arith.constant 0 : index
    %599 = vector.load %arg42[%c2, %c0_224, %c0_225] : memref<4x16x96xf32, #tpu.memory_space<vmem>>, vector<1x16x96xf32>
    %600 = vector.shape_cast %599 : vector<1x16x96xf32> to vector<16x96xf32>
    %601 = vector.shape_cast %598 : vector<16x96xf32> to vector<1x16x96xf32>
    tpu.vector_store %arg42[%c2, %c0_224, %c0_225], %601 {strides = array<i32>} : memref<4x16x96xf32, #tpu.memory_space<vmem>>, vector<1x16x96xf32>,
    %602 = vector.broadcast %583 : vector<1x96xf32> to vector<16x96xf32>
    %603 = arith.addf %582, %602 : vector<16x96xf32>
    %604 = math.tanh %603 : vector<16x96xf32>
    %c3 = arith.constant 3 : index
    %c0_226 = arith.constant 0 : index
    %c0_227 = arith.constant 0 : index
    %605 = vector.load %arg42[%c3, %c0_226, %c0_227] : memref<4x16x96xf32, #tpu.memory_space<vmem>>, vector<1x16x96xf32>
    %606 = vector.shape_cast %605 : vector<1x16x96xf32> to vector<16x96xf32>
    %607 = vector.shape_cast %604 : vector<16x96xf32> to vector<1x16x96xf32>
    tpu.vector_store %arg42[%c3, %c0_226, %c0_227], %607 {strides = array<i32>} : memref<4x16x96xf32, #tpu.memory_space<vmem>>, vector<1x16x96xf32>,
    return
  }
}

</mosaic_0001>

<llo_original>
// kernel: fully_conv_network.1
$region0: #{fully_conv_network.1}
  #allocation0 [shape = 'u32[]', space=smem, size = 0x4, offset = 0x4, fixed_abs, tag = 'smem constant byte address 0x4 - core index']
  #allocation1 [shape = 'u32[144,128]{1,0:T(1,128)}', space=vmem, size = 0x12000, scoped, tag = 'internal scratch']
  %s0 = inlined_call_operand.smem [shape: u32[43], index: -1, kind: input, shape index: {}]
  %s1 = sld [smem:[%s0]]
  %s2 = scalar_lea.smem %s0, 1
  %s3 = sld [smem:[%s2]]
  %s4 = scalar_lea.smem %s0, 2
  %s5 = sld [smem:[%s4]]
  %s6 = scalar_lea.smem %s0, 3
  %s7 = sld [smem:[%s6]]
  %s8 = scalar_lea.smem %s0, 4
  %s9 = sld [smem:[%s8]]
  %s10 = scalar_lea.smem %s0, 5
  %s11 = sld [smem:[%s10]]
  %s12 = scalar_lea.smem %s0, 6
  %s13 = sld [smem:[%s12]]
  %s14 = scalar_lea.smem %s0, 7
  %s15 = sld [smem:[%s14]]
  %s16 = scalar_lea.smem %s0, 8
  %s17 = sld [smem:[%s16]]
  %s18 = scalar_lea.smem %s0, 9
  %s19 = sld [smem:[%s18]]
  %s20 = scalar_lea.smem %s0, 10
  %s21 = sld [smem:[%s20]]
  %s22 = scalar_lea.smem %s0, 11
  %s23 = sld [smem:[%s22]]
  %s24 = scalar_lea.smem %s0, 12
  %s25 = sld [smem:[%s24]]
  %s26 = scalar_lea.smem %s0, 13
  %s27 = sld [smem:[%s26]]
  %s28 = scalar_lea.smem %s0, 14
  %s29 = sld [smem:[%s28]]
  %s30 = scalar_lea.smem %s0, 15
  %s31 = sld [smem:[%s30]]
  %s32 = scalar_lea.smem %s0, 16
  %s33 = sld [smem:[%s32]]
  %s34 = scalar_lea.smem %s0, 17
  %s35 = sld [smem:[%s34]]
  %s36 = scalar_lea.smem %s0, 18
  %s37 = sld [smem:[%s36]]
  %s38 = scalar_lea.smem %s0, 19
  %s39 = sld [smem:[%s38]]
  %s40 = scalar_lea.smem %s0, 20
  %s41 = sld [smem:[%s40]]
  %s42 = scalar_lea.smem %s0, 21
  %s43 = sld [smem:[%s42]]
  %s44 = scalar_lea.smem %s0, 22
  %s45 = sld [smem:[%s44]]
  %s46 = scalar_lea.smem %s0, 23
  %s47 = sld [smem:[%s46]]
  %s48 = scalar_lea.smem %s0, 24
  %s49 = sld [smem:[%s48]]
  %s50 = scalar_lea.smem %s0, 25
  %s51 = sld [smem:[%s50]]
  %s52 = scalar_lea.smem %s0, 26
  %s53 = sld [smem:[%s52]]
  %s54 = scalar_lea.smem %s0, 27
  %s55 = sld [smem:[%s54]]
  %s56 = scalar_lea.smem %s0, 28
  %s57 = sld [smem:[%s56]]
  %s58 = scalar_lea.smem %s0, 29
  %s59 = sld [smem:[%s58]]
  %s60 = scalar_lea.smem %s0, 30
  %s61 = sld [smem:[%s60]]
  %s62 = scalar_lea.smem %s0, 31
  %s63 = sld [smem:[%s62]]
  %s64 = scalar_lea.smem %s0, 32
  %s65 = sld [smem:[%s64]]
  %s66 = scalar_lea.smem %s0, 33
  %s67 = sld [smem:[%s66]]
  %s68 = scalar_lea.smem %s0, 34
  %s69 = sld [smem:[%s68]]
  %s70 = scalar_lea.smem %s0, 35
  %s71 = sld [smem:[%s70]]
  %s72 = scalar_lea.smem %s0, 36
  %s73 = sld [smem:[%s72]]
  %s74 = scalar_lea.smem %s0, 37
  %s75 = sld [smem:[%s74]]
  %s76 = scalar_lea.smem %s0, 38
  %s77 = sld [smem:[%s76]]
  %s78 = scalar_lea.smem %s0, 39
  %s79 = sld [smem:[%s78]]
  %s80 = scalar_lea.smem %s0, 40
  %s81 = sld [smem:[%s80]]
  %s82 = scalar_lea.smem %s0, 41
  %s83 = sld [smem:[%s82]]
  %s84 = scalar_lea.smem %s0, 42
  %s85 = sld [smem:[%s84]]
  %s86 = sld [smem:[#allocation0]]
  $region286: #{fully_conv_network.1} parent=0
    _
  %s88 = ssub.s32 1, %s86
  %s89 = scalar_select 0, %s88, %s86
  $region1: #{fully_conv_network.1} parent=0
    #allocation2 [shape = 'u8[512]{0}', space=vmem, size = 0x400, scoped, tag = 'input window, operand 5, single buffered']
    #allocation3 [shape = 's32[1]{0}', space=sflag, size = 0x4, scoped, tag = 'scoped memory for fully_conv_network.1']
    #allocation4 [shape = 'u8[512]{0}', space=vmem, size = 0x400, scoped, tag = 'input window, operand 9, single buffered']
    #allocation5 [shape = 's32[1]{0}', space=sflag, size = 0x4, scoped, tag = 'scoped memory for fully_conv_network.1']
    #allocation6 [shape = 'u8[512]{0}', space=vmem, size = 0x400, scoped, tag = 'input window, operand 10, single buffered']
    #allocation7 [shape = 'u8[4096]{0}', space=vmem, size = 0x1000, scoped, tag = 'input window, operand 11, single buffered']
    #allocation8 [shape = 's32[1]{0}', space=sflag, size = 0x4, scoped, tag = 'scoped memory for fully_conv_network.1']
    #allocation9 [shape = 'u8[65536]{0}', space=vmem, size = 0x10000, scoped, tag = 'input window, operand 13, single buffered']
    #allocation10 [shape = 'u8[512]{0}', space=vmem, size = 0x400, scoped, tag = 'input window, operand 14, single buffered']
    #allocation11 [shape = 's32[1]{0}', space=sflag, size = 0x4, scoped, tag = 'scoped memory for fully_conv_network.1']
    #allocation12 [shape = 'u8[512]{0}', space=vmem, size = 0x400, scoped, tag = 'input window, operand 15, single buffered']
    #allocation13 [shape = 'u8[65536]{0}', space=vmem, size = 0x10000, scoped, tag = 'input window, operand 18, single buffered']
    #allocation14 [shape = 's32[1]{0}', space=sflag, size = 0x4, scoped, tag = 'scoped memory for fully_conv_network.1']
    #allocation15 [shape = 'u8[512]{0}', space=vmem, size = 0x400, scoped, tag = 'input window, operand 19, single buffered']
    #allocation16 [shape = 'u8[512]{0}', space=vmem, size = 0x400, scoped, tag = 'input window, operand 20, single buffered']
    #allocation17 [shape = 's32[1]{0}', space=sflag, size = 0x4, scoped, tag = 'scoped memory for fully_conv_network.1']
    #allocation18 [shape = 'u8[65536]{0}', space=vmem, size = 0x10000, scoped, tag = 'input window, operand 21, single buffered']
    #allocation19 [shape = 'u8[65536]{0}', space=vmem, size = 0x10000, scoped, tag = 'input window, operand 22, single buffered']
    #allocation20 [shape = 's32[1]{0}', space=sflag, size = 0x4, scoped, tag = 'scoped memory for fully_conv_network.1']
    #allocation21 [shape = 'u8[1024]{0}', space=vmem, size = 0x400, scoped, tag = 'input window, operand 23, single buffered']
    #allocation22 [shape = 'u8[65536]{0}', space=vmem, size = 0x10000, scoped, tag = 'input window, operand 24, single buffered']
    #allocation23 [shape = 's32[1]{0}', space=sflag, size = 0x4, scoped, tag = 'scoped memory for fully_conv_network.1']
    #allocation24 [shape = 'u8[512]{0}', space=vmem, size = 0x400, scoped, tag = 'input window, operand 25, single buffered']
    #allocation25 [shape = 'u8[512]{0}', space=vmem, size = 0x400, scoped, tag = 'input window, operand 26, single buffered']
    #allocation26 [shape = 's32[1]{0}', space=sflag, size = 0x4, scoped, tag = 'scoped memory for fully_conv_network.1']
    #allocation27 [shape = 'u8[65536]{0}', space=vmem, size = 0x10000, scoped, tag = 'input window, operand 27, single buffered']
    #allocation28 [shape = 'u8[65536]{0}', space=vmem, size = 0x10000, scoped, tag = 'input window, operand 28, single buffered']
    #allocation29 [shape = 's32[1]{0}', space=sflag, size = 0x4, scoped, tag = 'scoped memory for fully_conv_network.1']
    #allocation30 [shape = 'u8[2048]{0}', space=vmem, size = 0x800, scoped, tag = 'input window, operand 29, single buffered']
    #allocation31 [shape = 'u8[65536]{0}', space=vmem, size = 0x10000, scoped, tag = 'input window, operand 30, single buffered']
    #allocation32 [shape = 's32[1]{0}', space=sflag, size = 0x4, scoped, tag = 'scoped memory for fully_conv_network.1']
    #allocation33 [shape = 'u8[512]{0}', space=vmem, size = 0x400, scoped, tag = 'input window, operand 31, single buffered']
    #allocation34 [shape = 'u8[512]{0}', space=vmem, size = 0x400, scoped, tag = 'input window, operand 32, single buffered']
    #allocation35 [shape = 's32[1]{0}', space=sflag, size = 0x4, scoped, tag = 'scoped memory for fully_conv_network.1']
    #allocation36 [shape = 'u8[65536]{0}', space=vmem, size = 0x10000, scoped, tag = 'input window, operand 33, single buffered']
    #allocation37 [shape = 'u8[65536]{0}', space=vmem, size = 0x10000, scoped, tag = 'input window, operand 34, single buffered']
    #allocation38 [shape = 's32[1]{0}', space=sflag, size = 0x4, scoped, tag = 'scoped memory for fully_conv_network.1']
    #allocation39 [shape = 'u8[4096]{0}', space=vmem, size = 0x1000, scoped, tag = 'input window, operand 35, single buffered']
    #allocation40 [shape = 'u8[512]{0}', space=vmem, size = 0x400, scoped, tag = 'input window, operand 37, single buffered']
    #allocation41 [shape = 's32[1]{0}', space=sflag, size = 0x4, scoped, tag = 'scoped memory for fully_conv_network.1']
    #allocation42 [shape = 'u8[512]{0}', space=vmem, size = 0x400, scoped, tag = 'input window, operand 38, single buffered']
    %90 = vsyncpa [#allocation3], 0
    %91 = vsyncpa [#allocation5], 0
    %92 = vsyncpa [#allocation8], 0
    %93 = vsyncpa [#allocation11], 0
    %94 = vsyncpa [#allocation14], 0
    %95 = vsyncpa [#allocation17], 0
    %96 = vsyncpa [#allocation20], 0
    %97 = vsyncpa [#allocation23], 0
    %98 = vsyncpa [#allocation26], 0
    %99 = vsyncpa [#allocation29], 0
    %100 = vsyncpa [#allocation32], 0
    %101 = vsyncpa [#allocation35], 0
    %102 = vsyncpa [#allocation38], 0
    %103 = vsyncpa [#allocation41], 0
    // Predicated region
    $region2: #{fully_conv_network.1} parent=1 // pred_check
      _
    $region3: #{fully_conv_network.1} parent=1 // pred_check_branch
      %105 = sbr.rel (0) target = $region5
    $region4: #{fully_conv_network.1} parent=1 // pred_region
      _
    $region5: #{fully_conv_network.1} parent=1 // pred_fallthru
      _
    // Predicated region
    $region6: #{fully_conv_network.1} parent=1 // pred_check
      _
    $region7: #{fully_conv_network.1} parent=1 // pred_check_branch
      %107 = sbr.rel (0) target = $region9
    $region8: #{fully_conv_network.1} parent=1 // pred_region
      _
    $region9: #{fully_conv_network.1} parent=1 // pred_fallthru
      _
    // Predicated region
    $region10: #{fully_conv_network.1} parent=1 // pred_check
      _
    $region11: #{fully_conv_network.1} parent=1 // pred_check_branch
      %109 = sbr.rel (0) target = $region13
    $region12: #{fully_conv_network.1} parent=1 // pred_region
      _
    $region13: #{fully_conv_network.1} parent=1 // pred_fallthru
      _
    // Predicated region
    $region14: #{fully_conv_network.1} parent=1 // pred_check
      _
    $region15: #{fully_conv_network.1} parent=1 // pred_check_branch
      %111 = sbr.rel (0) target = $region17
    $region16: #{fully_conv_network.1} parent=1 // pred_region
      _
    $region17: #{fully_conv_network.1} parent=1 // pred_fallthru
      _
    // Predicated region
    $region18: #{fully_conv_network.1} parent=1 // pred_check
      _
    $region19: #{fully_conv_network.1} parent=1 // pred_check_branch
      %113 = sbr.rel (0) target = $region21
    $region20: #{fully_conv_network.1} parent=1 // pred_region
      _
    $region21: #{fully_conv_network.1} parent=1 // pred_fallthru
      _
    // Predicated region
    $region22: #{fully_conv_network.1} parent=1 // pred_check
      _
    $region23: #{fully_conv_network.1} parent=1 // pred_check_branch
      %115 = sbr.rel (0) target = $region25
    $region24: #{fully_conv_network.1} parent=1 // pred_region
      %s117 = ssub.s32 16, 16
      %118 = vsyncadd [#allocation3], %s117
      %s120 = sshll.u32 [#allocation2], 4
      %s121 = int_to_ptr.vmem [resolvable:$true] %s120
      %123 = dma.hbm_to_vmem [thread:$0]  %s11, 16, %s121, [#allocation3]
    $region25: #{fully_conv_network.1} parent=1 // pred_fallthru
      _
    // Predicated region
    $region26: #{fully_conv_network.1} parent=1 // pred_check
      _
    $region27: #{fully_conv_network.1} parent=1 // pred_check_branch
      %125 = sbr.rel (0) target = $region29
    $region28: #{fully_conv_network.1} parent=1 // pred_region
      _
    $region29: #{fully_conv_network.1} parent=1 // pred_fallthru
      _
    // Predicated region
    $region30: #{fully_conv_network.1} parent=1 // pred_check
      _
    $region31: #{fully_conv_network.1} parent=1 // pred_check_branch
      %127 = sbr.rel (0) target = $region33
    $region32: #{fully_conv_network.1} parent=1 // pred_region
      _
    $region33: #{fully_conv_network.1} parent=1 // pred_fallthru
      _
    // Predicated region
    $region34: #{fully_conv_network.1} parent=1 // pred_check
      _
    $region35: #{fully_conv_network.1} parent=1 // pred_check_branch
      %129 = sbr.rel (0) target = $region37
    $region36: #{fully_conv_network.1} parent=1 // pred_region
      _
    $region37: #{fully_conv_network.1} parent=1 // pred_fallthru
      _
    // Predicated region
    $region38: #{fully_conv_network.1} parent=1 // pred_check
      _
    $region39: #{fully_conv_network.1} parent=1 // pred_check_branch
      %131 = sbr.rel (0) target = $region41
    $region40: #{fully_conv_network.1} parent=1 // pred_region
      %s133 = ssub.s32 16, 16
      %134 = vsyncadd [#allocation5], %s133
      %s136 = sshll.u32 [#allocation4], 4
      %s137 = int_to_ptr.vmem [resolvable:$true] %s136
      %139 = dma.hbm_to_vmem [thread:$0]  %s19, 16, %s137, [#allocation5]
    $region41: #{fully_conv_network.1} parent=1 // pred_fallthru
      _
    // Predicated region
    $region42: #{fully_conv_network.1} parent=1 // pred_check
      _
    $region43: #{fully_conv_network.1} parent=1 // pred_check_branch
      %141 = sbr.rel (0) target = $region45
    $region44: #{fully_conv_network.1} parent=1 // pred_region
      %s143 = ssub.s32 16, 16
      %144 = vsyncadd [#allocation5], %s143
      %s146 = sshll.u32 [#allocation6], 4
      %s147 = int_to_ptr.vmem [resolvable:$true] %s146
      %149 = dma.hbm_to_vmem [thread:$0]  %s21, 16, %s147, [#allocation5]
    $region45: #{fully_conv_network.1} parent=1 // pred_fallthru
      _
    // Predicated region
    $region46: #{fully_conv_network.1} parent=1 // pred_check
      _
    $region47: #{fully_conv_network.1} parent=1 // pred_check_branch
      %151 = sbr.rel (0) target = $region49
    $region48: #{fully_conv_network.1} parent=1 // pred_region
      %s153 = ssub.s32 128, 128
      %154 = vsyncadd [#allocation8], %s153
      %s155 = sshll.u32 [#allocation7], 4
      %s156 = int_to_ptr.vmem [resolvable:$true] %s155
      %161 = dma.hbm_to_vmem [thread:$0]  %s23, 128, %s156, [#allocation8], 64, 64, 4
    $region49: #{fully_conv_network.1} parent=1 // pred_fallthru
      _
    // Predicated region
    $region50: #{fully_conv_network.1} parent=1 // pred_check
      _
    $region51: #{fully_conv_network.1} parent=1 // pred_check_branch
      %163 = sbr.rel (0) target = $region53
    $region52: #{fully_conv_network.1} parent=1 // pred_region
      _
    $region53: #{fully_conv_network.1} parent=1 // pred_fallthru
      _
    // Predicated region
    $region54: #{fully_conv_network.1} parent=1 // pred_check
      _
    $region55: #{fully_conv_network.1} parent=1 // pred_check_branch
      %165 = sbr.rel (0) target = $region57
    $region56: #{fully_conv_network.1} parent=1 // pred_region
      %s167 = ssub.s32 2048, 2048
      %168 = vsyncadd [#allocation8], %s167
      %s169 = sshll.u32 [#allocation9], 4
      %s170 = int_to_ptr.vmem [resolvable:$true] %s169
      %175 = dma.hbm_to_vmem [thread:$0]  %s27, 2048, %s170, [#allocation8], 128, 128, 8
    $region57: #{fully_conv_network.1} parent=1 // pred_fallthru
      _
    // Predicated region
    $region58: #{fully_conv_network.1} parent=1 // pred_check
      _
    $region59: #{fully_conv_network.1} parent=1 // pred_check_branch
      %177 = sbr.rel (0) target = $region61
    $region60: #{fully_conv_network.1} parent=1 // pred_region
      %s179 = ssub.s32 16, 16
      %180 = vsyncadd [#allocation11], %s179
      %s182 = sshll.u32 [#allocation10], 4
      %s183 = int_to_ptr.vmem [resolvable:$true] %s182
      %185 = dma.hbm_to_vmem [thread:$0]  %s29, 16, %s183, [#allocation11]
    $region61: #{fully_conv_network.1} parent=1 // pred_fallthru
      _
    // Predicated region
    $region62: #{fully_conv_network.1} parent=1 // pred_check
      _
    $region63: #{fully_conv_network.1} parent=1 // pred_check_branch
      %187 = sbr.rel (0) target = $region65
    $region64: #{fully_conv_network.1} parent=1 // pred_region
      %s189 = ssub.s32 16, 16
      %190 = vsyncadd [#allocation11], %s189
      %s192 = sshll.u32 [#allocation12], 4
      %s193 = int_to_ptr.vmem [resolvable:$true] %s192
      %195 = dma.hbm_to_vmem [thread:$0]  %s31, 16, %s193, [#allocation11]
    $region65: #{fully_conv_network.1} parent=1 // pred_fallthru
      _
    // Predicated region
    $region66: #{fully_conv_network.1} parent=1 // pred_check
      _
    $region67: #{fully_conv_network.1} parent=1 // pred_check_branch
      %197 = sbr.rel (0) target = $region69
    $region68: #{fully_conv_network.1} parent=1 // pred_region
      _
    $region69: #{fully_conv_network.1} parent=1 // pred_fallthru
      _
    // Predicated region
    $region70: #{fully_conv_network.1} parent=1 // pred_check
      _
    $region71: #{fully_conv_network.1} parent=1 // pred_check_branch
      %199 = sbr.rel (0) target = $region73
    $region72: #{fully_conv_network.1} parent=1 // pred_region
      _
    $region73: #{fully_conv_network.1} parent=1 // pred_fallthru
      _
    // Predicated region
    $region74: #{fully_conv_network.1} parent=1 // pred_check
      _
    $region75: #{fully_conv_network.1} parent=1 // pred_check_branch
      %201 = sbr.rel (0) target = $region77
    $region76: #{fully_conv_network.1} parent=1 // pred_region
      %s203 = ssub.s32 2048, 2048
      %204 = vsyncadd [#allocation14], %s203
      %s205 = sshll.u32 [#allocation13], 4
      %s206 = int_to_ptr.vmem [resolvable:$true] %s205
      %211 = dma.hbm_to_vmem [thread:$0]  %s37, 2048, %s206, [#allocation14], 128, 128, 8
    $region77: #{fully_conv_network.1} parent=1 // pred_fallthru
      _
    // Predicated region
    $region78: #{fully_conv_network.1} parent=1 // pred_check
      _
    $region79: #{fully_conv_network.1} parent=1 // pred_check_branch
      %213 = sbr.rel (0) target = $region81
    $region80: #{fully_conv_network.1} parent=1 // pred_region
      %s215 = ssub.s32 16, 16
      %216 = vsyncadd [#allocation14], %s215
      %s218 = sshll.u32 [#allocation15], 4
      %s219 = int_to_ptr.vmem [resolvable:$true] %s218
      %221 = dma.hbm_to_vmem [thread:$0]  %s39, 16, %s219, [#allocation14]
    $region81: #{fully_conv_network.1} parent=1 // pred_fallthru
      _
    // Predicated region
    $region82: #{fully_conv_network.1} parent=1 // pred_check
      _
    $region83: #{fully_conv_network.1} parent=1 // pred_check_branch
      %223 = sbr.rel (0) target = $region85
    $region84: #{fully_conv_network.1} parent=1 // pred_region
      %s225 = ssub.s32 16, 16
      %226 = vsyncadd [#allocation17], %s225
      %s228 = sshll.u32 [#allocation16], 4
      %s229 = int_to_ptr.vmem [resolvable:$true] %s228
      %231 = dma.hbm_to_vmem [thread:$0]  %s41, 16, %s229, [#allocation17]
    $region85: #{fully_conv_network.1} parent=1 // pred_fallthru
      _
    // Predicated region
    $region86: #{fully_conv_network.1} parent=1 // pred_check
      _
    $region87: #{fully_conv_network.1} parent=1 // pred_check_branch
      %233 = sbr.rel (0) target = $region89
    $region88: #{fully_conv_network.1} parent=1 // pred_region
      %s235 = ssub.s32 2048, 2048
      %236 = vsyncadd [#allocation17], %s235
      %s237 = sshll.u32 [#allocation18], 4
      %s238 = int_to_ptr.vmem [resolvable:$true] %s237
      %243 = dma.hbm_to_vmem [thread:$0]  %s43, 2048, %s238, [#allocation17], 64, 64, 4
    $region89: #{fully_conv_network.1} parent=1 // pred_fallthru
      _
    // Predicated region
    $region90: #{fully_conv_network.1} parent=1 // pred_check
      _
    $region91: #{fully_conv_network.1} parent=1 // pred_check_branch
      %245 = sbr.rel (0) target = $region93
    $region92: #{fully_conv_network.1} parent=1 // pred_region
      %s247 = ssub.s32 2048, 2048
      %248 = vsyncadd [#allocation20], %s247
      %s249 = sshll.u32 [#allocation19], 4
      %s250 = int_to_ptr.vmem [resolvable:$true] %s249
      %255 = dma.hbm_to_vmem [thread:$0]  %s45, 2048, %s250, [#allocation20], 64, 64, 4
    $region93: #{fully_conv_network.1} parent=1 // pred_fallthru
      _
    // Predicated region
    $region94: #{fully_conv_network.1} parent=1 // pred_check
      _
    $region95: #{fully_conv_network.1} parent=1 // pred_check_branch
      %257 = sbr.rel (0) target = $region97
    $region96: #{fully_conv_network.1} parent=1 // pred_region
      %s259 = ssub.s32 32, 32
      %260 = vsyncadd [#allocation20], %s259
      %s262 = sshll.u32 [#allocation21], 4
      %s263 = int_to_ptr.vmem [resolvable:$true] %s262
      %265 = dma.hbm_to_vmem [thread:$0]  %s47, 32, %s263, [#allocation20]
    $region97: #{fully_conv_network.1} parent=1 // pred_fallthru
      _
    // Predicated region
    $region98: #{fully_conv_network.1} parent=1 // pred_check
      _
    $region99: #{fully_conv_network.1} parent=1 // pred_check_branch
      %267 = sbr.rel (0) target = $region101
    $region100: #{fully_conv_network.1} parent=1 // pred_region
      %s269 = ssub.s32 2048, 2048
      %270 = vsyncadd [#allocation23], %s269
      %s271 = sshll.u32 [#allocation22], 4
      %s272 = int_to_ptr.vmem [resolvable:$true] %s271
      %277 = dma.hbm_to_vmem [thread:$0]  %s49, 2048, %s272, [#allocation23], 128, 128, 8
    $region101: #{fully_conv_network.1} parent=1 // pred_fallthru
      _
    // Predicated region
    $region102: #{fully_conv_network.1} parent=1 // pred_check
      _
    $region103: #{fully_conv_network.1} parent=1 // pred_check_branch
      %279 = sbr.rel (0) target = $region105
    $region104: #{fully_conv_network.1} parent=1 // pred_region
      %s281 = ssub.s32 16, 16
      %282 = vsyncadd [#allocation23], %s281
      %s284 = sshll.u32 [#allocation24], 4
      %s285 = int_to_ptr.vmem [resolvable:$true] %s284
      %287 = dma.hbm_to_vmem [thread:$0]  %s51, 16, %s285, [#allocation23]
    $region105: #{fully_conv_network.1} parent=1 // pred_fallthru
      _
    // Predicated region
    $region106: #{fully_conv_network.1} parent=1 // pred_check
      _
    $region107: #{fully_conv_network.1} parent=1 // pred_check_branch
      %289 = sbr.rel (0) target = $region109
    $region108: #{fully_conv_network.1} parent=1 // pred_region
      %s291 = ssub.s32 16, 16
      %292 = vsyncadd [#allocation26], %s291
      %s294 = sshll.u32 [#allocation25], 4
      %s295 = int_to_ptr.vmem [resolvable:$true] %s294
      %297 = dma.hbm_to_vmem [thread:$0]  %s53, 16, %s295, [#allocation26]
    $region109: #{fully_conv_network.1} parent=1 // pred_fallthru
      _
    // Predicated region
    $region110: #{fully_conv_network.1} parent=1 // pred_check
      _
    $region111: #{fully_conv_network.1} parent=1 // pred_check_branch
      %299 = sbr.rel (0) target = $region113
    $region112: #{fully_conv_network.1} parent=1 // pred_region
      %s301 = ssub.s32 2048, 2048
      %302 = vsyncadd [#allocation26], %s301
      %s303 = sshll.u32 [#allocation27], 4
      %s304 = int_to_ptr.vmem [resolvable:$true] %s303
      %309 = dma.hbm_to_vmem [thread:$0]  %s55, 2048, %s304, [#allocation26], 64, 64, 4
    $region113: #{fully_conv_network.1} parent=1 // pred_fallthru
      _
    // Predicated region
    $region114: #{fully_conv_network.1} parent=1 // pred_check
      _
    $region115: #{fully_conv_network.1} parent=1 // pred_check_branch
      %311 = sbr.rel (0) target = $region117
    $region116: #{fully_conv_network.1} parent=1 // pred_region
      %s313 = ssub.s32 2048, 2048
      %314 = vsyncadd [#allocation29], %s313
      %s315 = sshll.u32 [#allocation28], 4
      %s316 = int_to_ptr.vmem [resolvable:$true] %s315
      %321 = dma.hbm_to_vmem [thread:$0]  %s57, 2048, %s316, [#allocation29], 64, 64, 4
    $region117: #{fully_conv_network.1} parent=1 // pred_fallthru
      _
    // Predicated region
    $region118: #{fully_conv_network.1} parent=1 // pred_check
      _
    $region119: #{fully_conv_network.1} parent=1 // pred_check_branch
      %323 = sbr.rel (0) target = $region121
    $region120: #{fully_conv_network.1} parent=1 // pred_region
      %s325 = ssub.s32 64, 64
      %326 = vsyncadd [#allocation29], %s325
      %s328 = sshll.u32 [#allocation30], 4
      %s329 = int_to_ptr.vmem [resolvable:$true] %s328
      %331 = dma.hbm_to_vmem [thread:$0]  %s59, 64, %s329, [#allocation29]
    $region121: #{fully_conv_network.1} parent=1 // pred_fallthru
      _
    // Predicated region
    $region122: #{fully_conv_network.1} parent=1 // pred_check
      _
    $region123: #{fully_conv_network.1} parent=1 // pred_check_branch
      %333 = sbr.rel (0) target = $region125
    $region124: #{fully_conv_network.1} parent=1 // pred_region
      %s335 = ssub.s32 2048, 2048
      %336 = vsyncadd [#allocation32], %s335
      %s337 = sshll.u32 [#allocation31], 4
      %s338 = int_to_ptr.vmem [resolvable:$true] %s337
      %343 = dma.hbm_to_vmem [thread:$0]  %s61, 2048, %s338, [#allocation32], 128, 128, 8
    $region125: #{fully_conv_network.1} parent=1 // pred_fallthru
      _
    // Predicated region
    $region126: #{fully_conv_network.1} parent=1 // pred_check
      _
    $region127: #{fully_conv_network.1} parent=1 // pred_check_branch
      %345 = sbr.rel (0) target = $region129
    $region128: #{fully_conv_network.1} parent=1 // pred_region
      %s347 = ssub.s32 16, 16
      %348 = vsyncadd [#allocation32], %s347
      %s350 = sshll.u32 [#allocation33], 4
      %s351 = int_to_ptr.vmem [resolvable:$true] %s350
      %353 = dma.hbm_to_vmem [thread:$0]  %s63, 16, %s351, [#allocation32]
    $region129: #{fully_conv_network.1} parent=1 // pred_fallthru
      _
    // Predicated region
    $region130: #{fully_conv_network.1} parent=1 // pred_check
      _
    $region131: #{fully_conv_network.1} parent=1 // pred_check_branch
      %355 = sbr.rel (0) target = $region133
    $region132: #{fully_conv_network.1} parent=1 // pred_region
      %s357 = ssub.s32 16, 16
      %358 = vsyncadd [#allocation35], %s357
      %s360 = sshll.u32 [#allocation34], 4
      %s361 = int_to_ptr.vmem [resolvable:$true] %s360
      %363 = dma.hbm_to_vmem [thread:$0]  %s65, 16, %s361, [#allocation35]
    $region133: #{fully_conv_network.1} parent=1 // pred_fallthru
      _
    // Predicated region
    $region134: #{fully_conv_network.1} parent=1 // pred_check
      _
    $region135: #{fully_conv_network.1} parent=1 // pred_check_branch
      %365 = sbr.rel (0) target = $region137
    $region136: #{fully_conv_network.1} parent=1 // pred_region
      %s367 = ssub.s32 2048, 2048
      %368 = vsyncadd [#allocation35], %s367
      %s369 = sshll.u32 [#allocation36], 4
      %s370 = int_to_ptr.vmem [resolvable:$true] %s369
      %375 = dma.hbm_to_vmem [thread:$0]  %s67, 2048, %s370, [#allocation35], 64, 64, 4
    $region137: #{fully_conv_network.1} parent=1 // pred_fallthru
      _
    // Predicated region
    $region138: #{fully_conv_network.1} parent=1 // pred_check
      _
    $region139: #{fully_conv_network.1} parent=1 // pred_check_branch
      %377 = sbr.rel (0) target = $region141
    $region140: #{fully_conv_network.1} parent=1 // pred_region
      %s379 = ssub.s32 2048, 2048
      %380 = vsyncadd [#allocation38], %s379
      %s381 = sshll.u32 [#allocation37], 4
      %s382 = int_to_ptr.vmem [resolvable:$true] %s381
      %387 = dma.hbm_to_vmem [thread:$0]  %s69, 2048, %s382, [#allocation38], 64, 64, 4
    $region141: #{fully_conv_network.1} parent=1 // pred_fallthru
      _
    // Predicated region
    $region142: #{fully_conv_network.1} parent=1 // pred_check
      _
    $region143: #{fully_conv_network.1} parent=1 // pred_check_branch
      %389 = sbr.rel (0) target = $region145
    $region144: #{fully_conv_network.1} parent=1 // pred_region
      %s391 = ssub.s32 128, 128
      %392 = vsyncadd [#allocation38], %s391
      %s393 = sshll.u32 [#allocation39], 4
      %s394 = int_to_ptr.vmem [resolvable:$true] %s393
      %399 = dma.hbm_to_vmem [thread:$0]  %s71, 128, %s394, [#allocation38], 64, 64, 4
    $region145: #{fully_conv_network.1} parent=1 // pred_fallthru
      _
    // Predicated region
    $region146: #{fully_conv_network.1} parent=1 // pred_check
      _
    $region147: #{fully_conv_network.1} parent=1 // pred_check_branch
      %401 = sbr.rel (0) target = $region149
    $region148: #{fully_conv_network.1} parent=1 // pred_region
      _
    $region149: #{fully_conv_network.1} parent=1 // pred_fallthru
      _
    // Predicated region
    $region150: #{fully_conv_network.1} parent=1 // pred_check
      _
    $region151: #{fully_conv_network.1} parent=1 // pred_check_branch
      %403 = sbr.rel (0) target = $region153
    $region152: #{fully_conv_network.1} parent=1 // pred_region
      %s405 = ssub.s32 16, 16
      %406 = vsyncadd [#allocation41], %s405
      %s408 = sshll.u32 [#allocation40], 4
      %s409 = int_to_ptr.vmem [resolvable:$true] %s408
      %411 = dma.hbm_to_vmem [thread:$0]  %s75, 16, %s409, [#allocation41]
    $region153: #{fully_conv_network.1} parent=1 // pred_fallthru
      _
    // Predicated region
    $region154: #{fully_conv_network.1} parent=1 // pred_check
      _
    $region155: #{fully_conv_network.1} parent=1 // pred_check_branch
      %413 = sbr.rel (0) target = $region157
    $region156: #{fully_conv_network.1} parent=1 // pred_region
      %s415 = ssub.s32 16, 16
      %416 = vsyncadd [#allocation41], %s415
      %s418 = sshll.u32 [#allocation42], 4
      %s419 = int_to_ptr.vmem [resolvable:$true] %s418
      %421 = dma.hbm_to_vmem [thread:$0]  %s77, 16, %s419, [#allocation41]
    $region157: #{fully_conv_network.1} parent=1 // pred_fallthru
      _
    // Predicated region
    $region158: #{fully_conv_network.1} parent=1 // pred_check
      _
    $region159: #{fully_conv_network.1} parent=1 // pred_check_branch
      %423 = sbr.rel (0) target = $region161
    $region160: #{fully_conv_network.1} parent=1 // pred_region
      _
    $region161: #{fully_conv_network.1} parent=1 // pred_fallthru
      _
    // Predicated region
    $region162: #{fully_conv_network.1} parent=1 // pred_check
      _
    $region163: #{fully_conv_network.1} parent=1 // pred_check_branch
      %425 = sbr.rel (0) target = $region165
    $region164: #{fully_conv_network.1} parent=1 // pred_region
      _
    $region165: #{fully_conv_network.1} parent=1 // pred_fallthru
      _
    // Predicated region
    $region166: #{fully_conv_network.1} parent=1 // pred_check
      _
    $region167: #{fully_conv_network.1} parent=1 // pred_check_branch
      %427 = sbr.rel (0) target = $region169
    $region168: #{fully_conv_network.1} parent=1 // pred_region
      _
    $region169: #{fully_conv_network.1} parent=1 // pred_fallthru
      _
    // Predicated region
    $region170: #{fully_conv_network.1} parent=1 // pred_check
      _
    $region171: #{fully_conv_network.1} parent=1 // pred_check_branch
      %429 = sbr.rel (0) target = $region173
    $region172: #{fully_conv_network.1} parent=1 // pred_region
      %430 = dma.done [#allocation3], 16
    $region173: #{fully_conv_network.1} parent=1 // pred_fallthru
      _
    // Predicated region
    $region174: #{fully_conv_network.1} parent=1 // pred_check
      _
    $region175: #{fully_conv_network.1} parent=1 // pred_check_branch
      %432 = sbr.rel (0) target = $region177
    $region176: #{fully_conv_network.1} parent=1 // pred_region
      %433 = dma.done [#allocation5], 16
    $region177: #{fully_conv_network.1} parent=1 // pred_fallthru
      _
    // Predicated region
    $region178: #{fully_conv_network.1} parent=1 // pred_check
      _
    $region179: #{fully_conv_network.1} parent=1 // pred_check_branch
      %435 = sbr.rel (0) target = $region181
    $region180: #{fully_conv_network.1} parent=1 // pred_region
      %436 = dma.done [#allocation5], 16
    $region181: #{fully_conv_network.1} parent=1 // pred_fallthru
      _
    // Predicated region
    $region182: #{fully_conv_network.1} parent=1 // pred_check
      _
    $region183: #{fully_conv_network.1} parent=1 // pred_check_branch
      %438 = sbr.rel (0) target = $region185
    $region184: #{fully_conv_network.1} parent=1 // pred_region
      %439 = dma.done [#allocation8], 128
    $region185: #{fully_conv_network.1} parent=1 // pred_fallthru
      _
    // Predicated region
    $region186: #{fully_conv_network.1} parent=1 // pred_check
      _
    $region187: #{fully_conv_network.1} parent=1 // pred_check_branch
      %441 = sbr.rel (0) target = $region189
    $region188: #{fully_conv_network.1} parent=1 // pred_region
      %442 = dma.done [#allocation8], 2048
    $region189: #{fully_conv_network.1} parent=1 // pred_fallthru
      _
    // Predicated region
    $region190: #{fully_conv_network.1} parent=1 // pred_check
      _
    $region191: #{fully_conv_network.1} parent=1 // pred_check_branch
      %444 = sbr.rel (0) target = $region193
    $region192: #{fully_conv_network.1} parent=1 // pred_region
      %445 = dma.done [#allocation11], 16
    $region193: #{fully_conv_network.1} parent=1 // pred_fallthru
      _
    // Predicated region
    $region194: #{fully_conv_network.1} parent=1 // pred_check
      _
    $region195: #{fully_conv_network.1} parent=1 // pred_check_branch
      %447 = sbr.rel (0) target = $region197
    $region196: #{fully_conv_network.1} parent=1 // pred_region
      %448 = dma.done [#allocation11], 16
    $region197: #{fully_conv_network.1} parent=1 // pred_fallthru
      _
    // Predicated region
    $region198: #{fully_conv_network.1} parent=1 // pred_check
      _
    $region199: #{fully_conv_network.1} parent=1 // pred_check_branch
      %450 = sbr.rel (0) target = $region201
    $region200: #{fully_conv_network.1} parent=1 // pred_region
      %451 = dma.done [#allocation14], 2048
    $region201: #{fully_conv_network.1} parent=1 // pred_fallthru
      _
    // Predicated region
    $region202: #{fully_conv_network.1} parent=1 // pred_check
      _
    $region203: #{fully_conv_network.1} parent=1 // pred_check_branch
      %453 = sbr.rel (0) target = $region205
    $region204: #{fully_conv_network.1} parent=1 // pred_region
      %454 = dma.done [#allocation14], 16
    $region205: #{fully_conv_network.1} parent=1 // pred_fallthru
      _
    // Predicated region
    $region206: #{fully_conv_network.1} parent=1 // pred_check
      _
    $region207: #{fully_conv_network.1} parent=1 // pred_check_branch
      %456 = sbr.rel (0) target = $region209
    $region208: #{fully_conv_network.1} parent=1 // pred_region
      %457 = dma.done [#allocation17], 16
    $region209: #{fully_conv_network.1} parent=1 // pred_fallthru
      _
    // Predicated region
    $region210: #{fully_conv_network.1} parent=1 // pred_check
      _
    $region211: #{fully_conv_network.1} parent=1 // pred_check_branch
      %459 = sbr.rel (0) target = $region213
    $region212: #{fully_conv_network.1} parent=1 // pred_region
      %460 = dma.done [#allocation17], 2048
    $region213: #{fully_conv_network.1} parent=1 // pred_fallthru
      _
    // Predicated region
    $region214: #{fully_conv_network.1} parent=1 // pred_check
      _
    $region215: #{fully_conv_network.1} parent=1 // pred_check_branch
      %462 = sbr.rel (0) target = $region217
    $region216: #{fully_conv_network.1} parent=1 // pred_region
      %463 = dma.done [#allocation20], 2048
    $region217: #{fully_conv_network.1} parent=1 // pred_fallthru
      _
    // Predicated region
    $region218: #{fully_conv_network.1} parent=1 // pred_check
      _
    $region219: #{fully_conv_network.1} parent=1 // pred_check_branch
      %465 = sbr.rel (0) target = $region221
    $region220: #{fully_conv_network.1} parent=1 // pred_region
      %466 = dma.done [#allocation20], 32
    $region221: #{fully_conv_network.1} parent=1 // pred_fallthru
      _
    // Predicated region
    $region222: #{fully_conv_network.1} parent=1 // pred_check
      _
    $region223: #{fully_conv_network.1} parent=1 // pred_check_branch
      %468 = sbr.rel (0) target = $region225
    $region224: #{fully_conv_network.1} parent=1 // pred_region
      %469 = dma.done [#allocation23], 2048
    $region225: #{fully_conv_network.1} parent=1 // pred_fallthru
      _
    // Predicated region
    $region226: #{fully_conv_network.1} parent=1 // pred_check
      _
    $region227: #{fully_conv_network.1} parent=1 // pred_check_branch
      %471 = sbr.rel (0) target = $region229
    $region228: #{fully_conv_network.1} parent=1 // pred_region
      %472 = dma.done [#allocation23], 16
    $region229: #{fully_conv_network.1} parent=1 // pred_fallthru
      _
    // Predicated region
    $region230: #{fully_conv_network.1} parent=1 // pred_check
      _
    $region231: #{fully_conv_network.1} parent=1 // pred_check_branch
      %474 = sbr.rel (0) target = $region233
    $region232: #{fully_conv_network.1} parent=1 // pred_region
      %475 = dma.done [#allocation26], 16
    $region233: #{fully_conv_network.1} parent=1 // pred_fallthru
      _
    // Predicated region
    $region234: #{fully_conv_network.1} parent=1 // pred_check
      _
    $region235: #{fully_conv_network.1} parent=1 // pred_check_branch
      %477 = sbr.rel (0) target = $region237
    $region236: #{fully_conv_network.1} parent=1 // pred_region
      %478 = dma.done [#allocation26], 2048
    $region237: #{fully_conv_network.1} parent=1 // pred_fallthru
      _
    // Predicated region
    $region238: #{fully_conv_network.1} parent=1 // pred_check
      _
    $region239: #{fully_conv_network.1} parent=1 // pred_check_branch
      %480 = sbr.rel (0) target = $region241
    $region240: #{fully_conv_network.1} parent=1 // pred_region
      %481 = dma.done [#allocation29], 2048
    $region241: #{fully_conv_network.1} parent=1 // pred_fallthru
      _
    // Predicated region
    $region242: #{fully_conv_network.1} parent=1 // pred_check
      _
    $region243: #{fully_conv_network.1} parent=1 // pred_check_branch
      %483 = sbr.rel (0) target = $region245
    $region244: #{fully_conv_network.1} parent=1 // pred_region
      %484 = dma.done [#allocation29], 64
    $region245: #{fully_conv_network.1} parent=1 // pred_fallthru
      _
    // Predicated region
    $region246: #{fully_conv_network.1} parent=1 // pred_check
      _
    $region247: #{fully_conv_network.1} parent=1 // pred_check_branch
      %486 = sbr.rel (0) target = $region249
    $region248: #{fully_conv_network.1} parent=1 // pred_region
      %487 = dma.done [#allocation32], 2048
    $region249: #{fully_conv_network.1} parent=1 // pred_fallthru
      _
    // Predicated region
    $region250: #{fully_conv_network.1} parent=1 // pred_check
      _
    $region251: #{fully_conv_network.1} parent=1 // pred_check_branch
      %489 = sbr.rel (0) target = $region253
    $region252: #{fully_conv_network.1} parent=1 // pred_region
      %490 = dma.done [#allocation32], 16
    $region253: #{fully_conv_network.1} parent=1 // pred_fallthru
      _
    // Predicated region
    $region254: #{fully_conv_network.1} parent=1 // pred_check
      _
    $region255: #{fully_conv_network.1} parent=1 // pred_check_branch
      %492 = sbr.rel (0) target = $region257
    $region256: #{fully_conv_network.1} parent=1 // pred_region
      %493 = dma.done [#allocation35], 16
    $region257: #{fully_conv_network.1} parent=1 // pred_fallthru
      _
    // Predicated region
    $region258: #{fully_conv_network.1} parent=1 // pred_check
      _
    $region259: #{fully_conv_network.1} parent=1 // pred_check_branch
      %495 = sbr.rel (0) target = $region261
    $region260: #{fully_conv_network.1} parent=1 // pred_region
      %496 = dma.done [#allocation35], 2048
    $region261: #{fully_conv_network.1} parent=1 // pred_fallthru
      _
    // Predicated region
    $region262: #{fully_conv_network.1} parent=1 // pred_check
      _
    $region263: #{fully_conv_network.1} parent=1 // pred_check_branch
      %498 = sbr.rel (0) target = $region265
    $region264: #{fully_conv_network.1} parent=1 // pred_region
      %499 = dma.done [#allocation38], 2048
    $region265: #{fully_conv_network.1} parent=1 // pred_fallthru
      _
    // Predicated region
    $region266: #{fully_conv_network.1} parent=1 // pred_check
      _
    $region267: #{fully_conv_network.1} parent=1 // pred_check_branch
      %501 = sbr.rel (0) target = $region269
    $region268: #{fully_conv_network.1} parent=1 // pred_region
      %502 = dma.done [#allocation38], 128
    $region269: #{fully_conv_network.1} parent=1 // pred_fallthru
      _
    // Predicated region
    $region270: #{fully_conv_network.1} parent=1 // pred_check
      _
    $region271: #{fully_conv_network.1} parent=1 // pred_check_branch
      %504 = sbr.rel (0) target = $region273
    $region272: #{fully_conv_network.1} parent=1 // pred_region
      %505 = dma.done [#allocation41], 16
    $region273: #{fully_conv_network.1} parent=1 // pred_fallthru
      _
    // Predicated region
    $region274: #{fully_conv_network.1} parent=1 // pred_check
      _
    $region275: #{fully_conv_network.1} parent=1 // pred_check_branch
      %507 = sbr.rel (0) target = $region277
    $region276: #{fully_conv_network.1} parent=1 // pred_region
      %508 = dma.done [#allocation41], 16
    $region277: #{fully_conv_network.1} parent=1 // pred_fallthru
      _
    %v510 = vld [vmem:[%s1] sm:$0xf]
    %v511 = vld [vmem:[%s1 + $0x4] sm:$0xf]
    %v512 = vld [vmem:[%s1 + $0x8] sm:$0xf]
    %v513 = vld [vmem:[%s1 + $0xc] sm:$0xf]
    %v514 = vld [vmem:[%s1 + $0x10] sm:$0x1]
    %s515 = scalar_lea.vmem %s1, 20
    %v516 = vld [vmem:[%s515] sm:$0xf]
    %v517 = vld [vmem:[%s515 + $0x4] sm:$0xf]
    %v518 = vld [vmem:[%s515 + $0x8] sm:$0xf]
    %v519 = vld [vmem:[%s515 + $0xc] sm:$0xf]
    %v520 = vld [vmem:[%s515 + $0x10] sm:$0x1]
    %v521 = vld [vmem:[%s3] sm:$0xf]
    %v522 = vld [vmem:[%s3 + $0x4] sm:$0xf]
    %v523 = vld [vmem:[%s3 + $0x8] sm:$0xf]
    %v524 = vld [vmem:[%s3 + $0xc] sm:$0xf]
    %v525 = vld [vmem:[%s3 + $0x10] sm:$0xf]
    %v526 = vld [vmem:[%s3 + $0x14] sm:$0xf]
    %v527 = vld [vmem:[%s3 + $0x18] sm:$0xf]
    %v528 = vld [vmem:[%s3 + $0x1c] sm:$0xf]
    %v529 = vld [vmem:[%s5] sm:$0xf]
    %v530 = vld [vmem:[%s5 + $0x4] sm:$0xf]
    %v531 = vld [vmem:[%s5 + $0x8] sm:$0xf]
    %v532 = vld [vmem:[%s5 + $0xc] sm:$0xf]
    %v533 = vld [vmem:[%s5 + $0x10] sm:$0xf]
    %v534 = vld [vmem:[%s5 + $0x14] sm:$0xf]
    %v535 = vld [vmem:[%s5 + $0x18] sm:$0xf]
    %v536 = vld [vmem:[%s5 + $0x1c] sm:$0xf]
    %v537 = vld [vmem:[%s5 + $0x20] sm:$0xf]
    %v538 = vld [vmem:[%s5 + $0x24] sm:$0xf]
    %v539 = vld [vmem:[%s5 + $0x28] sm:$0xf]
    %v540 = vld [vmem:[%s5 + $0x2c] sm:$0xf]
    %v541 = vld [vmem:[%s5 + $0x30] sm:$0xf]
    %v542 = vld [vmem:[%s5 + $0x34] sm:$0xf]
    %v543 = vld [vmem:[%s5 + $0x38] sm:$0xf]
    %v544 = vld [vmem:[%s5 + $0x3c] sm:$0xf]
    %v545 = vld [vmem:[%s5 + $0x40] sm:$0xf]
    %v546 = vld [vmem:[%s5 + $0x44] sm:$0xf]
    %v547 = vld [vmem:[%s5 + $0x48] sm:$0xf]
    %v548 = vld [vmem:[%s5 + $0x4c] sm:$0xf]
    %v549 = vld [vmem:[%s5 + $0x50] sm:$0xf]
    %v550 = vld [vmem:[%s5 + $0x54] sm:$0xf]
    %v551 = vld [vmem:[%s5 + $0x58] sm:$0xf]
    %v552 = vld [vmem:[%s5 + $0x5c] sm:$0xf]
    %v553 = vld [vmem:[%s5 + $0x60] sm:$0xf]
    %v554 = vld [vmem:[%s5 + $0x64] sm:$0xf]
    %v555 = vld [vmem:[%s5 + $0x68] sm:$0xf]
    %v556 = vld [vmem:[%s5 + $0x6c] sm:$0xf]
    %v557 = vld [vmem:[%s5 + $0x70] sm:$0xf]
    %v558 = vld [vmem:[%s5 + $0x74] sm:$0xf]
    %v559 = vld [vmem:[%s5 + $0x78] sm:$0xf]
    %v560 = vld [vmem:[%s5 + $0x7c] sm:$0xf]
    %v561 = vld [vmem:[%s5 + $0x80] sm:$0xf]
    %v562 = vld [vmem:[%s5 + $0x84] sm:$0xf]
    %v563 = vld [vmem:[%s5 + $0x88] sm:$0xf]
    %v564 = vld [vmem:[%s5 + $0x8c] sm:$0xf]
    %v565 = vld [vmem:[%s5 + $0x90] sm:$0xf]
    %v566 = vld [vmem:[%s5 + $0x94] sm:$0xf]
    %v567 = vld [vmem:[%s5 + $0x98] sm:$0xf]
    %v568 = vld [vmem:[%s5 + $0x9c] sm:$0xf]
    %v569 = vld [vmem:[%s5 + $0xa0] sm:$0xf]
    %v570 = vld [vmem:[%s5 + $0xa4] sm:$0xf]
    %v571 = vld [vmem:[%s5 + $0xa8] sm:$0xf]
    %v572 = vld [vmem:[%s5 + $0xac] sm:$0xf]
    %v573 = vld [vmem:[%s5 + $0xb0] sm:$0xf]
    %v574 = vld [vmem:[%s5 + $0xb4] sm:$0xf]
    %v575 = vld [vmem:[%s5 + $0xb8] sm:$0xf]
    %v576 = vld [vmem:[%s5 + $0xbc] sm:$0xf]
    %v577 = vld [vmem:[%s7] sm:$0xff]
    %v578 = vld [vmem:[%s7 + $0x8] sm:$0xff]
    %v579 = vld [vmem:[%s7 + $0x10] sm:$0xff]
    %v580 = vld [vmem:[%s7 + $0x18] sm:$0xff]
    %v581 = vld [vmem:[%s7 + $0x20] sm:$0xff]
    %v582 = vld [vmem:[%s7 + $0x28] sm:$0xff]
    %v583 = vld [vmem:[%s7 + $0x30] sm:$0xff]
    %v584 = vld [vmem:[%s7 + $0x38] sm:$0xff]
    %v585 = vld [vmem:[%s7 + $0x40] sm:$0xff]
    %v586 = vld [vmem:[%s7 + $0x48] sm:$0xff]
    %v587 = vld [vmem:[%s7 + $0x50] sm:$0xff]
    %v588 = vld [vmem:[%s7 + $0x58] sm:$0xff]
    %v589 = vld [vmem:[%s7 + $0x60] sm:$0xff]
    %v590 = vld [vmem:[%s7 + $0x68] sm:$0xff]
    %v591 = vld [vmem:[%s7 + $0x70] sm:$0xff]
    %v592 = vld [vmem:[%s7 + $0x78] sm:$0xff]
    %v593 = vld [vmem:[%s9] sm:$0x1]
    %v594 = vld [vmem:[#allocation2] sm:$0x1]
    %v603 = vunpack.c.l.b16 %v521
    %v604 = vunpack.c.l.b16 %v522
    %v605 = vunpack.c.l.b16 %v523
    %v606 = vunpack.c.l.b16 %v524
    %v607 = vunpack.c.l.b16 %v525
    %v608 = vunpack.c.l.b16 %v526
    %v609 = vunpack.c.l.b16 %v527
    %v610 = vunpack.c.l.b16 %v528
    %v611 = vpack.c.b16 %v604, %v603
    %v612 = vpack.c.b16 %v606, %v605
    %v613 = vpack.c.b16 %v608, %v607
    %v614 = vpack.c.b16 %v610, %v609
    %v620 = vunpack.c.l.b16 %v510
    %v621 = vunpack.c.l.b16 %v511
    %v622 = vunpack.c.l.b16 %v512
    %v623 = vunpack.c.l.b16 %v513
    %v624 = vunpack.c.l.b16 %v514
    %v625 = vpack.c.b16 %v621, %v620
    %v626 = vpack.c.b16 %v623, %v622
    %v627 = vpack.c.b16 %v624, %v624
    %vm630 = vcmask 277504
    %v632 = vsel %vm630, %v611, 0
    %v635 = vsel %vm630, %v612, 0
    %v638 = vsel %vm630, %v613, 0
    %v641 = vsel %vm630, %v614, 0
    %vm643 = vcmask 1040384
    %v645 = vsel %vm643, %v627, 0
    %647 = vmatprep.subr.bf16.mxu0 0
    %648 = vmatpush1.bf16.msra.mxu0 %v625
    %649 = vmatprep.subr.bf16.mxu0 0
    %650 = vmatpush1.bf16.msra.mxu0 %v626
    %651 = vmatprep.subr.bf16.mxu0 0
    %652 = vmatpush1.bf16.msra.mxu0 %v645
    %653 = vmatprep.subr.bf16.mxu0 0
    %654 = vmatpush1.bf16.msra.mxu0 0
    %655 = vmatprep.subr.bf16.mxu0 0
    %656 = vmatpush1.bf16.msra.mxu0 0
    %657 = vmatprep.subr.bf16.mxu0 0
    %658 = vmatpush1.bf16.msra.mxu0 0
    %659 = vmatprep.subr.bf16.mxu0 0
    %660 = vmatpush1.bf16.msra.mxu0 0
    %661 = vmatprep.subr.bf16.mxu0 0
    %662 = vmatpush1.bf16.msra.mxu0 0
    %663 = vmatprep.subr.bf16.mxu0 0
    %664 = vmatpush1.bf16.msra.mxu0 0
    %665 = vmatprep.subr.bf16.mxu0 0
    %666 = vmatpush1.bf16.msra.mxu0 0
    %667 = vmatprep.subr.bf16.mxu0 0
    %668 = vmatpush1.bf16.msra.mxu0 0
    %669 = vmatprep.subr.bf16.mxu0 0
    %670 = vmatpush1.bf16.msra.mxu0 0
    %671 = vmatprep.subr.bf16.mxu0 0
    %672 = vmatpush1.bf16.msra.mxu0 0
    %673 = vmatprep.subr.bf16.mxu0 0
    %674 = vmatpush1.bf16.msra.mxu0 0
    %675 = vmatprep.subr.bf16.mxu0 0
    %676 = vmatpush1.bf16.msra.mxu0 0
    %677 = vmatprep.subr.bf16.mxu0 0
    %678 = vmatpush1.bf16.msra.mxu0 0
    %679 = vmatprep.mubr.bf16.mxu0 0
    %680 = vmatmul.mubr.bf16.gmra.mrb[0].mxu0 %v632
    %v681 = vpop.f32.mrb[0].mxu0
    %v682 = vadd.f32 0.0, %v681
    %v683 = vpop.f32.mrb[0].mxu0
    %v684 = vpop.f32.mrb[0].mxu0
    %v685 = vadd.f32 0.0, %v684
    %v686 = vpop.f32.mrb[0].mxu0
    %687 = vmatprep.mubr.bf16.mxu0 0
    %688 = vmatmul.mubr.bf16.gmra.mrb[0].mxu0 %v635
    %v689 = vpop.f32.mrb[0].mxu0
    %v690 = vadd.f32 0.0, %v689
    %v691 = vpop.f32.mrb[0].mxu0
    %v692 = vpop.f32.mrb[0].mxu0
    %v693 = vadd.f32 0.0, %v692
    %v694 = vpop.f32.mrb[0].mxu0
    %695 = vmatprep.mubr.bf16.mxu0 0
    %696 = vmatmul.mubr.bf16.gmra.mrb[0].mxu0 %v638
    %v697 = vpop.f32.mrb[0].mxu0
    %v698 = vadd.f32 0.0, %v697
    %v699 = vpop.f32.mrb[0].mxu0
    %v700 = vpop.f32.mrb[0].mxu0
    %v701 = vadd.f32 0.0, %v700
    %v702 = vpop.f32.mrb[0].mxu0
    %703 = vmatprep.mubr.bf16.mxu0 0
    %704 = vmatmul.mubr.bf16.gmra.mrb[0].mxu0 %v641
    %v705 = vpop.f32.mrb[0].mxu0
    %v706 = vadd.f32 0.0, %v705
    %v707 = vpop.f32.mrb[0].mxu0
    %v708 = vpop.f32.mrb[0].mxu0
    %v709 = vadd.f32 0.0, %v708
    %v710 = vpop.f32.mrb[0].mxu0
    %711 = vdwg.mxu0
    %v712 = vpack.c.bf16 %v685, %v682
    %v713 = vpack.c.bf16 %v693, %v690
    %v714 = vpack.c.bf16 %v701, %v698
    %v715 = vpack.c.bf16 %v709, %v706
    %717 = vrot.lane.b32.xlu0 %v713, 96
    %v718 = vpop.permute.xlu0 %717
    %720 = vrot.lane.b32.xlu0 %v714, 64
    %v721 = vpop.permute.xlu0 %720
    %723 = vrot.lane.b32.xlu0 %v715, 32
    %v724 = vpop.permute.xlu0 %723
    %vm725 = vcmask 785408
    %v728 = vsel %vm725, %v712, %v718
    %vm730 = vcmask 523264
    %v732 = vsel %vm730, %v718, %v721
    %vm734 = vcmask 261120
    %v736 = vsel %vm734, %v721, %v724
    %v786 = vunpack.c.l.b16 %v529
    %v787 = vunpack.c.l.b16 %v530
    %v788 = vunpack.c.l.b16 %v531
    %v789 = vunpack.c.l.b16 %v532
    %v790 = vunpack.c.l.b16 %v533
    %v791 = vunpack.c.l.b16 %v534
    %v792 = vunpack.c.l.b16 %v535
    %v793 = vunpack.c.l.b16 %v536
    %v794 = vunpack.c.l.b16 %v537
    %v795 = vunpack.c.l.b16 %v538
    %v796 = vunpack.c.l.b16 %v539
    %v797 = vunpack.c.l.b16 %v540
    %v798 = vunpack.c.l.b16 %v541
    %v799 = vunpack.c.l.b16 %v542
    %v800 = vunpack.c.l.b16 %v543
    %v801 = vunpack.c.l.b16 %v544
    %v802 = vunpack.c.l.b16 %v545
    %v803 = vunpack.c.l.b16 %v546
    %v804 = vunpack.c.l.b16 %v547
    %v805 = vunpack.c.l.b16 %v548
    %v806 = vunpack.c.l.b16 %v549
    %v807 = vunpack.c.l.b16 %v550
    %v808 = vunpack.c.l.b16 %v551
    %v809 = vunpack.c.l.b16 %v552
    %v810 = vunpack.c.l.b16 %v553
    %v811 = vunpack.c.l.b16 %v554
    %v812 = vunpack.c.l.b16 %v555
    %v813 = vunpack.c.l.b16 %v556
    %v814 = vunpack.c.l.b16 %v557
    %v815 = vunpack.c.l.b16 %v558
    %v816 = vunpack.c.l.b16 %v559
    %v817 = vunpack.c.l.b16 %v560
    %v818 = vunpack.c.l.b16 %v561
    %v819 = vunpack.c.l.b16 %v562
    %v820 = vunpack.c.l.b16 %v563
    %v821 = vunpack.c.l.b16 %v564
    %v822 = vunpack.c.l.b16 %v565
    %v823 = vunpack.c.l.b16 %v566
    %v824 = vunpack.c.l.b16 %v567
    %v825 = vunpack.c.l.b16 %v568
    %v826 = vunpack.c.l.b16 %v569
    %v827 = vunpack.c.l.b16 %v570
    %v828 = vunpack.c.l.b16 %v571
    %v829 = vunpack.c.l.b16 %v572
    %v830 = vunpack.c.l.b16 %v573
    %v831 = vunpack.c.l.b16 %v574
    %v832 = vunpack.c.l.b16 %v575
    %v833 = vunpack.c.l.b16 %v576
    %v834 = vpack.c.b16 %v787, %v786
    %v835 = vpack.c.b16 %v789, %v788
    %v836 = vpack.c.b16 %v791, %v790
    %v837 = vpack.c.b16 %v793, %v792
    %v838 = vpack.c.b16 %v795, %v794
    %v839 = vpack.c.b16 %v797, %v796
    %v840 = vpack.c.b16 %v799, %v798
    %v841 = vpack.c.b16 %v801, %v800
    %v842 = vpack.c.b16 %v803, %v802
    %v843 = vpack.c.b16 %v805, %v804
    %v844 = vpack.c.b16 %v807, %v806
    %v845 = vpack.c.b16 %v809, %v808
    %v846 = vpack.c.b16 %v811, %v810
    %v847 = vpack.c.b16 %v813, %v812
    %v848 = vpack.c.b16 %v815, %v814
    %v849 = vpack.c.b16 %v817, %v816
    %v850 = vpack.c.b16 %v819, %v818
    %v851 = vpack.c.b16 %v821, %v820
    %v852 = vpack.c.b16 %v823, %v822
    %v853 = vpack.c.b16 %v825, %v824
    %v854 = vpack.c.b16 %v827, %v826
    %v855 = vpack.c.b16 %v829, %v828
    %v856 = vpack.c.b16 %v831, %v830
    %v857 = vpack.c.b16 %v833, %v832
    %882 = vmatprep.subr.bf16.mxu0 0
    %883 = vmatpush1.bf16.msra.mxu0 %v834
    %884 = vmatprep.subr.bf16.mxu0 0
    %885 = vmatpush1.bf16.msra.mxu0 %v835
    %886 = vmatprep.subr.bf16.mxu0 0
    %887 = vmatpush1.bf16.msra.mxu0 %v836
    %888 = vmatprep.subr.bf16.mxu0 0
    %889 = vmatpush1.bf16.msra.mxu0 %v837
    %890 = vmatprep.subr.bf16.mxu0 0
    %891 = vmatpush1.bf16.msra.mxu0 %v838
    %892 = vmatprep.subr.bf16.mxu0 0
    %893 = vmatpush1.bf16.msra.mxu0 %v839
    %894 = vmatprep.subr.bf16.mxu0 0
    %895 = vmatpush1.bf16.msra.mxu0 %v840
    %896 = vmatprep.subr.bf16.mxu0 0
    %897 = vmatpush1.bf16.msra.mxu0 %v841
    %898 = vmatprep.subr.bf16.mxu0 0
    %899 = vmatpush1.bf16.msra.mxu0 %v842
    %900 = vmatprep.subr.bf16.mxu0 0
    %901 = vmatpush1.bf16.msra.mxu0 %v843
    %902 = vmatprep.subr.bf16.mxu0 0
    %903 = vmatpush1.bf16.msra.mxu0 %v844
    %904 = vmatprep.subr.bf16.mxu0 0
    %905 = vmatpush1.bf16.msra.mxu0 %v845
    %906 = vmatprep.subr.bf16.mxu0 0
    %907 = vmatpush1.bf16.msra.mxu0 %v846
    %908 = vmatprep.subr.bf16.mxu0 0
    %909 = vmatpush1.bf16.msra.mxu0 %v847
    %910 = vmatprep.subr.bf16.mxu0 0
    %911 = vmatpush1.bf16.msra.mxu0 %v848
    %912 = vmatprep.subr.bf16.mxu0 0
    %913 = vmatpush1.bf16.msra.mxu0 %v849
    %914 = vmatprep.mubr.bf16.mxu0 %v732
    %915 = vmatmul.mubr.bf16.gmra.mrb[0].mxu0 %v728
    %v916 = vpop.f32.mrb[0].mxu0
    %v917 = vadd.f32 0.0, %v916
    %v918 = vpop.f32.mrb[0].mxu0
    %v919 = vpop.f32.mrb[0].mxu0
    %v920 = vadd.f32 0.0, %v919
    %v921 = vpop.f32.mrb[0].mxu0
    %922 = vdwg.mxu0
    %923 = vmatprep.subr.bf16.mxu0 0
    %924 = vmatpush1.bf16.msra.mxu0 %v850
    %925 = vmatprep.subr.bf16.mxu0 0
    %926 = vmatpush1.bf16.msra.mxu0 %v851
    %927 = vmatprep.subr.bf16.mxu0 0
    %928 = vmatpush1.bf16.msra.mxu0 %v852
    %929 = vmatprep.subr.bf16.mxu0 0
    %930 = vmatpush1.bf16.msra.mxu0 %v853
    %931 = vmatprep.subr.bf16.mxu0 0
    %932 = vmatpush1.bf16.msra.mxu0 %v854
    %933 = vmatprep.subr.bf16.mxu0 0
    %934 = vmatpush1.bf16.msra.mxu0 %v855
    %935 = vmatprep.subr.bf16.mxu0 0
    %936 = vmatpush1.bf16.msra.mxu0 %v856
    %937 = vmatprep.subr.bf16.mxu0 0
    %938 = vmatpush1.bf16.msra.mxu0 %v857
    %939 = vmatprep.subr.bf16.mxu0 0
    %940 = vmatpush1.bf16.msra.mxu0 0
    %941 = vmatprep.subr.bf16.mxu0 0
    %942 = vmatpush1.bf16.msra.mxu0 0
    %943 = vmatprep.subr.bf16.mxu0 0
    %944 = vmatpush1.bf16.msra.mxu0 0
    %945 = vmatprep.subr.bf16.mxu0 0
    %946 = vmatpush1.bf16.msra.mxu0 0
    %947 = vmatprep.subr.bf16.mxu0 0
    %948 = vmatpush1.bf16.msra.mxu0 0
    %949 = vmatprep.subr.bf16.mxu0 0
    %950 = vmatpush1.bf16.msra.mxu0 0
    %951 = vmatprep.subr.bf16.mxu0 0
    %952 = vmatpush1.bf16.msra.mxu0 0
    %953 = vmatprep.subr.bf16.mxu0 0
    %954 = vmatpush1.bf16.msra.mxu0 0
    %955 = vmatprep.mubr.bf16.mxu0 0
    %956 = vmatmul.mubr.bf16.gmra.mrb[0].mxu0 %v736
    %v957 = vpop.f32.mrb[0].mxu0
    %v958 = vadd.f32 %v917, %v957
    %v959 = vpop.f32.mrb[0].mxu0
    %v960 = vpop.f32.mrb[0].mxu0
    %v961 = vadd.f32 %v920, %v960
    %v962 = vpop.f32.mrb[0].mxu0
    %963 = vdwg.mxu0
    %v969 = vunpack.c.l.b16 %v516
    %v970 = vunpack.c.l.b16 %v517
    %v971 = vunpack.c.l.b16 %v518
    %v972 = vunpack.c.l.b16 %v519
    %v973 = vunpack.c.l.b16 %v520
    %v974 = vpack.c.b16 %v970, %v969
    %v975 = vpack.c.b16 %v972, %v971
    %v976 = vpack.c.b16 %v973, %v973
    %v980 = vsel %vm643, %v976, 0
    %982 = vmatprep.subr.bf16.mxu0 0
    %983 = vmatpush1.bf16.msra.mxu0 %v974
    %984 = vmatprep.subr.bf16.mxu0 0
    %985 = vmatpush1.bf16.msra.mxu0 %v975
    %986 = vmatprep.subr.bf16.mxu0 0
    %987 = vmatpush1.bf16.msra.mxu0 %v980
    %988 = vmatprep.subr.bf16.mxu0 0
    %989 = vmatpush1.bf16.msra.mxu0 0
    %990 = vmatprep.subr.bf16.mxu0 0
    %991 = vmatpush1.bf16.msra.mxu0 0
    %992 = vmatprep.subr.bf16.mxu0 0
    %993 = vmatpush1.bf16.msra.mxu0 0
    %994 = vmatprep.subr.bf16.mxu0 0
    %995 = vmatpush1.bf16.msra.mxu0 0
    %996 = vmatprep.subr.bf16.mxu0 0
    %997 = vmatpush1.bf16.msra.mxu0 0
    %998 = vmatprep.subr.bf16.mxu0 0
    %999 = vmatpush1.bf16.msra.mxu0 0
    %1000 = vmatprep.subr.bf16.mxu0 0
    %1001 = vmatpush1.bf16.msra.mxu0 0
    %1002 = vmatprep.subr.bf16.mxu0 0
    %1003 = vmatpush1.bf16.msra.mxu0 0
    %1004 = vmatprep.subr.bf16.mxu0 0
    %1005 = vmatpush1.bf16.msra.mxu0 0
    %1006 = vmatprep.subr.bf16.mxu0 0
    %1007 = vmatpush1.bf16.msra.mxu0 0
    %1008 = vmatprep.subr.bf16.mxu0 0
    %1009 = vmatpush1.bf16.msra.mxu0 0
    %1010 = vmatprep.subr.bf16.mxu0 0
    %1011 = vmatpush1.bf16.msra.mxu0 0
    %1012 = vmatprep.subr.bf16.mxu0 0
    %1013 = vmatpush1.bf16.msra.mxu0 0
    %1014 = vmatprep.mubr.bf16.mxu0 0
    %1015 = vmatmul.mubr.bf16.gmra.mrb[0].mxu0 %v632
    %v1016 = vpop.f32.mrb[0].mxu0
    %v1017 = vadd.f32 0.0, %v1016
    %v1018 = vpop.f32.mrb[0].mxu0
    %v1019 = vpop.f32.mrb[0].mxu0
    %v1020 = vadd.f32 0.0, %v1019
    %v1021 = vpop.f32.mrb[0].mxu0
    %1022 = vmatprep.mubr.bf16.mxu0 0
    %1023 = vmatmul.mubr.bf16.gmra.mrb[0].mxu0 %v635
    %v1024 = vpop.f32.mrb[0].mxu0
    %v1025 = vadd.f32 0.0, %v1024
    %v1026 = vpop.f32.mrb[0].mxu0
    %v1027 = vpop.f32.mrb[0].mxu0
    %v1028 = vadd.f32 0.0, %v1027
    %v1029 = vpop.f32.mrb[0].mxu0
    %1030 = vmatprep.mubr.bf16.mxu0 0
    %1031 = vmatmul.mubr.bf16.gmra.mrb[0].mxu0 %v638
    %v1032 = vpop.f32.mrb[0].mxu0
    %v1033 = vadd.f32 0.0, %v1032
    %v1034 = vpop.f32.mrb[0].mxu0
    %v1035 = vpop.f32.mrb[0].mxu0
    %v1036 = vadd.f32 0.0, %v1035
    %v1037 = vpop.f32.mrb[0].mxu0
    %1038 = vmatprep.mubr.bf16.mxu0 0
    %1039 = vmatmul.mubr.bf16.gmra.mrb[0].mxu0 %v641
    %v1040 = vpop.f32.mrb[0].mxu0
    %v1041 = vadd.f32 0.0, %v1040
    %v1042 = vpop.f32.mrb[0].mxu0
    %v1043 = vpop.f32.mrb[0].mxu0
    %v1044 = vadd.f32 0.0, %v1043
    %v1045 = vpop.f32.mrb[0].mxu0
    %1046 = vdwg.mxu0
    %v1047 = vpack.c.bf16 %v1020, %v1017
    %v1048 = vpack.c.bf16 %v1028, %v1025
    %v1049 = vpack.c.bf16 %v1036, %v1033
    %v1050 = vpack.c.bf16 %v1044, %v1041
    %1052 = vrot.lane.b32.xlu0 %v1048, 96
    %v1053 = vpop.permute.xlu0 %1052
    %1055 = vrot.lane.b32.xlu0 %v1049, 64
    %v1056 = vpop.permute.xlu0 %1055
    %1058 = vrot.lane.b32.xlu0 %v1050, 32
    %v1059 = vpop.permute.xlu0 %1058
    %v1062 = vsel %vm725, %v1047, %v1053
    %v1065 = vsel %vm730, %v1053, %v1056
    %v1068 = vsel %vm734, %v1056, %v1059
    %1070 = vmatprep.subr.bf16.mxu0 0
    %1071 = vmatpush1.bf16.msra.mxu0 %v834
    %1072 = vmatprep.subr.bf16.mxu0 0
    %1073 = vmatpush1.bf16.msra.mxu0 %v835
    %1074 = vmatprep.subr.bf16.mxu0 0
    %1075 = vmatpush1.bf16.msra.mxu0 %v836
    %1076 = vmatprep.subr.bf16.mxu0 0
    %1077 = vmatpush1.bf16.msra.mxu0 %v837
    %1078 = vmatprep.subr.bf16.mxu0 0
    %1079 = vmatpush1.bf16.msra.mxu0 %v838
    %1080 = vmatprep.subr.bf16.mxu0 0
    %1081 = vmatpush1.bf16.msra.mxu0 %v839
    %1082 = vmatprep.subr.bf16.mxu0 0
    %1083 = vmatpush1.bf16.msra.mxu0 %v840
    %1084 = vmatprep.subr.bf16.mxu0 0
    %1085 = vmatpush1.bf16.msra.mxu0 %v841
    %1086 = vmatprep.subr.bf16.mxu0 0
    %1087 = vmatpush1.bf16.msra.mxu0 %v842
    %1088 = vmatprep.subr.bf16.mxu0 0
    %1089 = vmatpush1.bf16.msra.mxu0 %v843
    %1090 = vmatprep.subr.bf16.mxu0 0
    %1091 = vmatpush1.bf16.msra.mxu0 %v844
    %1092 = vmatprep.subr.bf16.mxu0 0
    %1093 = vmatpush1.bf16.msra.mxu0 %v845
    %1094 = vmatprep.subr.bf16.mxu0 0
    %1095 = vmatpush1.bf16.msra.mxu0 %v846
    %1096 = vmatprep.subr.bf16.mxu0 0
    %1097 = vmatpush1.bf16.msra.mxu0 %v847
    %1098 = vmatprep.subr.bf16.mxu0 0
    %1099 = vmatpush1.bf16.msra.mxu0 %v848
    %1100 = vmatprep.subr.bf16.mxu0 0
    %1101 = vmatpush1.bf16.msra.mxu0 %v849
    %1102 = vmatprep.mubr.bf16.mxu0 %v1065
    %1103 = vmatmul.mubr.bf16.gmra.mrb[0].mxu0 %v1062
    %v1104 = vpop.f32.mrb[0].mxu0
    %v1105 = vadd.f32 0.0, %v1104
    %v1106 = vpop.f32.mrb[0].mxu0
    %v1107 = vpop.f32.mrb[0].mxu0
    %v1108 = vadd.f32 0.0, %v1107
    %v1109 = vpop.f32.mrb[0].mxu0
    %1110 = vdwg.mxu0
    %1111 = vmatprep.subr.bf16.mxu0 0
    %1112 = vmatpush1.bf16.msra.mxu0 %v850
    %1113 = vmatprep.subr.bf16.mxu0 0
    %1114 = vmatpush1.bf16.msra.mxu0 %v851
    %1115 = vmatprep.subr.bf16.mxu0 0
    %1116 = vmatpush1.bf16.msra.mxu0 %v852
    %1117 = vmatprep.subr.bf16.mxu0 0
    %1118 = vmatpush1.bf16.msra.mxu0 %v853
    %1119 = vmatprep.subr.bf16.mxu0 0
    %1120 = vmatpush1.bf16.msra.mxu0 %v854
    %1121 = vmatprep.subr.bf16.mxu0 0
    %1122 = vmatpush1.bf16.msra.mxu0 %v855
    %1123 = vmatprep.subr.bf16.mxu0 0
    %1124 = vmatpush1.bf16.msra.mxu0 %v856
    %1125 = vmatprep.subr.bf16.mxu0 0
    %1126 = vmatpush1.bf16.msra.mxu0 %v857
    %1127 = vmatprep.subr.bf16.mxu0 0
    %1128 = vmatpush1.bf16.msra.mxu0 0
    %1129 = vmatprep.subr.bf16.mxu0 0
    %1130 = vmatpush1.bf16.msra.mxu0 0
    %1131 = vmatprep.subr.bf16.mxu0 0
    %1132 = vmatpush1.bf16.msra.mxu0 0
    %1133 = vmatprep.subr.bf16.mxu0 0
    %1134 = vmatpush1.bf16.msra.mxu0 0
    %1135 = vmatprep.subr.bf16.mxu0 0
    %1136 = vmatpush1.bf16.msra.mxu0 0
    %1137 = vmatprep.subr.bf16.mxu0 0
    %1138 = vmatpush1.bf16.msra.mxu0 0
    %1139 = vmatprep.subr.bf16.mxu0 0
    %1140 = vmatpush1.bf16.msra.mxu0 0
    %1141 = vmatprep.subr.bf16.mxu0 0
    %1142 = vmatpush1.bf16.msra.mxu0 0
    %1143 = vmatprep.mubr.bf16.mxu0 0
    %1144 = vmatmul.mubr.bf16.gmra.mrb[0].mxu0 %v1068
    %v1145 = vpop.f32.mrb[0].mxu0
    %v1146 = vadd.f32 %v1105, %v1145
    %v1147 = vpop.f32.mrb[0].mxu0
    %v1148 = vpop.f32.mrb[0].mxu0
    %v1149 = vadd.f32 %v1108, %v1148
    %v1150 = vpop.f32.mrb[0].mxu0
    %1151 = vdwg.mxu0
    %v1152 = vadd.f32 %v958, %v961
    %v1153 = vrot.slane %v1152, 4
    %v1154 = vadd.f32 %v1152, %v1153
    %v1155 = vrot.slane %v1154, 2
    %v1156 = vadd.f32 %v1154, %v1155
    %v1157 = vrot.slane %v1156, 1
    %v1158 = vadd.f32 %v1156, %v1157
    %v1159 = vmul.f32 %v958, %v958
    %v1160 = vmul.f32 %v961, %v961
    %v1161 = vadd.f32 %v1159, %v1160
    %v1162 = vrot.slane %v1161, 4
    %v1163 = vadd.f32 %v1161, %v1162
    %v1164 = vrot.slane %v1163, 2
    %v1165 = vadd.f32 %v1163, %v1164
    %v1166 = vrot.slane %v1165, 1
    %v1167 = vadd.f32 %v1165, %v1166
    %v1168 = vadd.f32 %v1146, %v1149
    %v1169 = vrot.slane %v1168, 4
    %v1170 = vadd.f32 %v1168, %v1169
    %v1171 = vrot.slane %v1170, 2
    %v1172 = vadd.f32 %v1170, %v1171
    %v1173 = vrot.slane %v1172, 1
    %v1174 = vadd.f32 %v1172, %v1173
    %v1175 = vadd.f32 %v1158, %v1174
    %v1176 = vmul.f32 %v1146, %v1146
    %v1177 = vmul.f32 %v1149, %v1149
    %v1178 = vadd.f32 %v1176, %v1177
    %v1179 = vrot.slane %v1178, 4
    %v1180 = vadd.f32 %v1178, %v1179
    %v1181 = vrot.slane %v1180, 2
    %v1182 = vadd.f32 %v1180, %v1181
    %v1183 = vrot.slane %v1182, 1
    %v1184 = vadd.f32 %v1182, %v1183
    %v1185 = vadd.f32 %v1167, %v1184
    %v1186 = vsel %vm643, %v1175, %v1185
    %1187 = vmatprep.subr.mxu0 0.0
    %1188 = vmatpush1.msra.mxu0 %v577
    %1189 = vmatprep.subr.mxu0 0.0
    %1190 = vmatpush1.msra.mxu0 %v578
    %1191 = vmatprep.subr.mxu0 0.0
    %1192 = vmatpush1.msra.mxu0 %v579
    %1193 = vmatprep.subr.mxu0 0.0
    %1194 = vmatpush1.msra.mxu0 %v580
    %1195 = vmatprep.subr.mxu0 0.0
    %1196 = vmatpush1.msra.mxu0 %v581
    %1197 = vmatprep.subr.mxu0 0.0
    %1198 = vmatpush1.msra.mxu0 %v582
    %1199 = vmatprep.subr.mxu0 0.0
    %1200 = vmatpush1.msra.mxu0 %v583
    %1201 = vmatprep.subr.mxu0 0.0
    %1202 = vmatpush1.msra.mxu0 %v584
    %1203 = vmatprep.subr.mxu0 0.0
    %1204 = vmatpush1.msra.mxu0 %v585
    %1205 = vmatprep.subr.mxu0 0.0
    %1206 = vmatpush1.msra.mxu0 %v586
    %1207 = vmatprep.subr.mxu0 0.0
    %1208 = vmatpush1.msra.mxu0 %v587
    %1209 = vmatprep.subr.mxu0 0.0
    %1210 = vmatpush1.msra.mxu0 %v588
    %1211 = vmatprep.subr.mxu0 0.0
    %1212 = vmatpush1.msra.mxu0 %v589
    %1213 = vmatprep.subr.mxu0 0.0
    %1214 = vmatpush1.msra.mxu0 %v590
    %1215 = vmatprep.subr.mxu0 0.0
    %1216 = vmatpush1.msra.mxu0 %v591
    %1217 = vmatprep.subr.mxu0 0.0
    %1218 = vmatpush1.msra.mxu0 %v592
    %1219 = vmatprep.subr.mxu0 0.0
    %1220 = vmatpush1.msra.mxu0 0.0
    %1221 = vmatprep.subr.mxu0 0.0
    %1222 = vmatpush1.msra.mxu0 0.0
    %1223 = vmatprep.subr.mxu0 0.0
    %1224 = vmatpush1.msra.mxu0 0.0
    %1225 = vmatprep.subr.mxu0 0.0
    %1226 = vmatpush1.msra.mxu0 0.0
    %1227 = vmatprep.subr.mxu0 0.0
    %1228 = vmatpush1.msra.mxu0 0.0
    %1229 = vmatprep.subr.mxu0 0.0
    %1230 = vmatpush1.msra.mxu0 0.0
    %1231 = vmatprep.subr.mxu0 0.0
    %1232 = vmatpush1.msra.mxu0 0.0
    %1233 = vmatprep.subr.mxu0 0.0
    %1234 = vmatpush1.msra.mxu0 0.0
    %1235 = vmatprep.subr.mxu0 0.0
    %1236 = vmatpush1.msra.mxu0 0.0
    %1237 = vmatprep.subr.mxu0 0.0
    %1238 = vmatpush1.msra.mxu0 0.0
    %1239 = vmatprep.subr.mxu0 0.0
    %1240 = vmatpush1.msra.mxu0 0.0
    %1241 = vmatprep.subr.mxu0 0.0
    %1242 = vmatpush1.msra.mxu0 0.0
    %1243 = vmatprep.subr.mxu0 0.0
    %1244 = vmatpush1.msra.mxu0 0.0
    %1245 = vmatprep.subr.mxu0 0.0
    %1246 = vmatpush1.msra.mxu0 0.0
    %1247 = vmatprep.subr.mxu0 0.0
    %1248 = vmatpush1.msra.mxu0 0.0
    %1249 = vmatprep.subr.mxu0 0.0
    %1250 = vmatpush1.msra.mxu0 0.0
    %1251 = vmatprep.mubr.f32.mxu0 0.0
    %1252 = vmatmul.mubr.f32.gmra.mrb[0].mxu0 %v1186
    %v1253 = vpop.f32.mrb[0].mxu0
    %v1254 = vadd.f32 0.0, %v1253
    %v1255 = vpop.f32.mrb[0].mxu0
    %1256 = vdwg.mxu0
    %v1257 = vrcp.pop 512.0
    %v1258 = vmul.f32 %v1254, %v1257
    %v1259 = vmul.f32 %v1258, %v1258
    %v1261 = vrot.slane %v1259, 7
    %v1263 = vsub.f32 %v1258, %v1261
    %v1264 = vmax.f32 %v1263, 0.0
    %v1265 = vadd.f32 %v1264, 1e-05
    %v1266 = vrsqrt.pop %v1265
    %v1269 = vunpack.c.l.s4 1966171168
    %v1270 = vunpack.c.0.s8 %v1269
    %v1271 = vlaneseq
    %v1272 = vshrl.u32 %v1271, 7
    %v1273 = vsub.s32 %v1270, %v1272
    %v1274 = vrot.slane %v1266, %v1273
    %v1275 = vcombine.high %v1274, %v1274
    %v1277 = vunpack.c.l.s4 1966171168
    %v1278 = vunpack.c.0.s8 %v1277
    %v1279 = vlaneseq
    %v1280 = vshrl.u32 %v1279, 7
    %v1281 = vsub.s32 %v1278, %v1280
    %v1282 = vrot.slane %v1275, %v1281
    %v1284 = vmul.f32 %v593, %v1282
    %v1285 = vmul.f32 %v1258, %v1284
    %v1286 = vsub.f32 %v594, %v1285
    %v1288 = vlaneseq
    %v1289 = vshrl.u32 %v1288, 7
    %v1290 = vsub.s32 0, %v1289
    %v1291 = vrot.slane %v1284, %v1290
    %v1293 = vmul.f32 %v958, %v1291
    %v1294 = vmul.f32 %v961, %v1291
    %v1296 = vlaneseq
    %v1297 = vshrl.u32 %v1296, 7
    %v1298 = vsub.s32 0, %v1297
    %v1299 = vrot.slane %v1286, %v1298
    %v1301 = vadd.f32 %v1293, %v1299
    %v1302 = vadd.f32 %v1294, %v1299
    %v1303 = vmax.f32 %v1301, 0.0
    %v1304 = vmax.f32 %v1302, 0.0
    %v1305 = vmul.f32 %v1146, %v1291
    %v1306 = vmul.f32 %v1149, %v1291
    %v1307 = vadd.f32 %v1305, %v1299
    %v1308 = vadd.f32 %v1306, %v1299
    %v1309 = vmax.f32 %v1307, 0.0
    %v1310 = vmax.f32 %v1308, 0.0
    %v1311 = vpack.c.bf16 %v1304, %v1303
    %v1313 = vshrl.u32 %v1311, 16
    %v1315 = vrot.slane %v1313, 7
    %v1316 = vshll.u32 %v1311, 16
    %v1318 = vor.u32 %v1315, %v1316
    %vm1321 = vcmask 1040384
    %vm1322 = vsmask.f32 256
    %vm1323 = vmand %vm1321, %vm1322
    %v1324 = vsel %vm1323, 0, %v1318
    %v1325 = vsel %vm1323, %v1315, 0
    %v1326 = vpack.c.bf16 %v1310, %v1309
    %v1328 = vshrl.u32 %v1326, 16
    %v1330 = vrot.slane %v1328, 7
    %v1331 = vshll.u32 %v1326, 16
    %v1333 = vor.u32 %v1330, %v1331
    %v1336 = vsel %vm1323, 0, %v1333
    %v1337 = vsel %vm1323, %v1330, 0
    %v1338 = vld [vmem:[%s13] sm:$0xf]
    %v1339 = vld [vmem:[%s13 + $0x4] sm:$0xf]
    %v1340 = vld [vmem:[%s13 + $0x8] sm:$0xf]
    %v1341 = vld [vmem:[%s13 + $0xc] sm:$0xf]
    %v1342 = vld [vmem:[%s15] sm:$0xf]
    %v1343 = vld [vmem:[%s15 + $0x4] sm:$0xf]
    %v1344 = vld [vmem:[%s15 + $0x8] sm:$0xf]
    %v1345 = vld [vmem:[%s15 + $0xc] sm:$0xf]
    %v1346 = vld [vmem:[%s15 + $0x10] sm:$0xf]
    %v1347 = vld [vmem:[%s15 + $0x14] sm:$0xf]
    %v1348 = vld [vmem:[%s15 + $0x18] sm:$0xf]
    %v1349 = vld [vmem:[%s15 + $0x1c] sm:$0xf]
    %v1350 = vld [vmem:[%s15 + $0x20] sm:$0xf]
    %v1351 = vld [vmem:[%s15 + $0x24] sm:$0xf]
    %v1352 = vld [vmem:[%s15 + $0x28] sm:$0xf]
    %v1353 = vld [vmem:[%s15 + $0x2c] sm:$0xf]
    %v1354 = vld [vmem:[%s15 + $0x30] sm:$0xf]
    %v1355 = vld [vmem:[%s15 + $0x34] sm:$0xf]
    %v1356 = vld [vmem:[%s15 + $0x38] sm:$0xf]
    %v1357 = vld [vmem:[%s15 + $0x3c] sm:$0xf]
    %v1358 = vld [vmem:[%s15 + $0x40] sm:$0xf]
    %v1359 = vld [vmem:[%s15 + $0x44] sm:$0xf]
    %v1360 = vld [vmem:[%s15 + $0x48] sm:$0xf]
    %v1361 = vld [vmem:[%s15 + $0x4c] sm:$0xf]
    %v1362 = vld [vmem:[%s15 + $0x50] sm:$0xf]
    %v1363 = vld [vmem:[%s15 + $0x54] sm:$0xf]
    %v1364 = vld [vmem:[%s15 + $0x58] sm:$0xf]
    %v1365 = vld [vmem:[%s15 + $0x5c] sm:$0xf]
    %v1366 = vld [vmem:[%s15 + $0x60] sm:$0xf]
    %v1367 = vld [vmem:[%s15 + $0x64] sm:$0xf]
    %v1368 = vld [vmem:[%s15 + $0x68] sm:$0xf]
    %v1369 = vld [vmem:[%s15 + $0x6c] sm:$0xf]
    %v1370 = vld [vmem:[%s15 + $0x70] sm:$0xf]
    %v1371 = vld [vmem:[%s15 + $0x74] sm:$0xf]
    %v1372 = vld [vmem:[%s15 + $0x78] sm:$0xf]
    %v1373 = vld [vmem:[%s15 + $0x7c] sm:$0xf]
    %v1374 = vld [vmem:[%s15 + $0x80] sm:$0xf]
    %v1375 = vld [vmem:[%s15 + $0x84] sm:$0xf]
    %v1376 = vld [vmem:[%s15 + $0x88] sm:$0xf]
    %v1377 = vld [vmem:[%s15 + $0x8c] sm:$0xf]
    %v1378 = vld [vmem:[%s15 + $0x90] sm:$0xf]
    %v1379 = vld [vmem:[%s15 + $0x94] sm:$0xf]
    %v1380 = vld [vmem:[%s15 + $0x98] sm:$0xf]
    %v1381 = vld [vmem:[%s15 + $0x9c] sm:$0xf]
    %v1382 = vld [vmem:[%s15 + $0xa0] sm:$0xf]
    %v1383 = vld [vmem:[%s15 + $0xa4] sm:$0xf]
    %v1384 = vld [vmem:[%s15 + $0xa8] sm:$0xf]
    %v1385 = vld [vmem:[%s15 + $0xac] sm:$0xf]
    %v1386 = vld [vmem:[%s15 + $0xb0] sm:$0xf]
    %v1387 = vld [vmem:[%s15 + $0xb4] sm:$0xf]
    %v1388 = vld [vmem:[%s15 + $0xb8] sm:$0xf]
    %v1389 = vld [vmem:[%s15 + $0xbc] sm:$0xf]
    %v1390 = vld [vmem:[%s15 + $0xc0] sm:$0xf]
    %v1391 = vld [vmem:[%s15 + $0xc4] sm:$0xf]
    %v1392 = vld [vmem:[%s15 + $0xc8] sm:$0xf]
    %v1393 = vld [vmem:[%s15 + $0xcc] sm:$0xf]
    %v1394 = vld [vmem:[%s15 + $0xd0] sm:$0xf]
    %v1395 = vld [vmem:[%s15 + $0xd4] sm:$0xf]
    %v1396 = vld [vmem:[%s15 + $0xd8] sm:$0xf]
    %v1397 = vld [vmem:[%s15 + $0xdc] sm:$0xf]
    %v1398 = vld [vmem:[%s15 + $0xe0] sm:$0xf]
    %v1399 = vld [vmem:[%s15 + $0xe4] sm:$0xf]
    %v1400 = vld [vmem:[%s15 + $0xe8] sm:$0xf]
    %v1401 = vld [vmem:[%s15 + $0xec] sm:$0xf]
    %v1402 = vld [vmem:[%s15 + $0xf0] sm:$0xf]
    %v1403 = vld [vmem:[%s15 + $0xf4] sm:$0xf]
    %v1404 = vld [vmem:[%s15 + $0xf8] sm:$0xf]
    %v1405 = vld [vmem:[%s15 + $0xfc] sm:$0xf]
    %v1406 = vld [vmem:[%s17] sm:$0xff]
    %v1407 = vld [vmem:[%s17 + $0x8] sm:$0xff]
    %v1408 = vld [vmem:[%s17 + $0x10] sm:$0xff]
    %v1409 = vld [vmem:[%s17 + $0x18] sm:$0xff]
    %v1410 = vld [vmem:[%s17 + $0x20] sm:$0xff]
    %v1411 = vld [vmem:[%s17 + $0x28] sm:$0xff]
    %v1412 = vld [vmem:[%s17 + $0x30] sm:$0xff]
    %v1413 = vld [vmem:[%s17 + $0x38] sm:$0xff]
    %v1414 = vld [vmem:[%s17 + $0x40] sm:$0xff]
    %v1415 = vld [vmem:[%s17 + $0x48] sm:$0xff]
    %v1416 = vld [vmem:[%s17 + $0x50] sm:$0xff]
    %v1417 = vld [vmem:[%s17 + $0x58] sm:$0xff]
    %v1418 = vld [vmem:[%s17 + $0x60] sm:$0xff]
    %v1419 = vld [vmem:[%s17 + $0x68] sm:$0xff]
    %v1420 = vld [vmem:[%s17 + $0x70] sm:$0xff]
    %v1421 = vld [vmem:[%s17 + $0x78] sm:$0xff]
    %v1422 = vld [vmem:[#allocation4] sm:$0x1]
    %v1423 = vld [vmem:[#allocation6] sm:$0x1]
    %v1428 = vunpack.c.l.b16 %v1338
    %v1429 = vunpack.c.l.b16 %v1339
    %v1430 = vunpack.c.l.b16 %v1340
    %v1431 = vunpack.c.l.b16 %v1341
    %v1432 = vpack.c.b16 %v1429, %v1428
    %v1433 = vpack.c.b16 %v1431, %v1430
    %vm1434 = vcmask 146432
    %v1436 = vsel %vm1434, %v1432, 0
    %v1439 = vsel %vm1434, %v1433, 0
    %v1442 = vsel %vm643, %v1325, 0
    %1444 = vmatprep.subr.bf16.mxu0 0
    %1445 = vmatpush1.bf16.msra.mxu0 %v1324
    %1446 = vmatprep.subr.bf16.mxu0 0
    %1447 = vmatpush1.bf16.msra.mxu0 %v1442
    %1448 = vmatprep.subr.bf16.mxu0 0
    %1449 = vmatpush1.bf16.msra.mxu0 0
    %1450 = vmatprep.subr.bf16.mxu0 0
    %1451 = vmatpush1.bf16.msra.mxu0 0
    %1452 = vmatprep.subr.bf16.mxu0 0
    %1453 = vmatpush1.bf16.msra.mxu0 0
    %1454 = vmatprep.subr.bf16.mxu0 0
    %1455 = vmatpush1.bf16.msra.mxu0 0
    %1456 = vmatprep.subr.bf16.mxu0 0
    %1457 = vmatpush1.bf16.msra.mxu0 0
    %1458 = vmatprep.subr.bf16.mxu0 0
    %1459 = vmatpush1.bf16.msra.mxu0 0
    %1460 = vmatprep.subr.bf16.mxu0 0
    %1461 = vmatpush1.bf16.msra.mxu0 0
    %1462 = vmatprep.subr.bf16.mxu0 0
    %1463 = vmatpush1.bf16.msra.mxu0 0
    %1464 = vmatprep.subr.bf16.mxu0 0
    %1465 = vmatpush1.bf16.msra.mxu0 0
    %1466 = vmatprep.subr.bf16.mxu0 0
    %1467 = vmatpush1.bf16.msra.mxu0 0
    %1468 = vmatprep.subr.bf16.mxu0 0
    %1469 = vmatpush1.bf16.msra.mxu0 0
    %1470 = vmatprep.subr.bf16.mxu0 0
    %1471 = vmatpush1.bf16.msra.mxu0 0
    %1472 = vmatprep.subr.bf16.mxu0 0
    %1473 = vmatpush1.bf16.msra.mxu0 0
    %1474 = vmatprep.subr.bf16.mxu0 0
    %1475 = vmatpush1.bf16.msra.mxu0 0
    %1476 = vmatprep.mubr.bf16.mxu0 0
    %1477 = vmatmul.mubr.bf16.gmra.mrb[0].mxu0 %v1436
    %v1478 = vpop.f32.mrb[0].mxu0
    %v1479 = vadd.f32 0.0, %v1478
    %v1480 = vpop.f32.mrb[0].mxu0
    %v1481 = vpop.f32.mrb[0].mxu0
    %v1482 = vadd.f32 0.0, %v1481
    %v1483 = vpop.f32.mrb[0].mxu0
    %1484 = vmatprep.mubr.bf16.mxu0 0
    %1485 = vmatmul.mubr.bf16.gmra.mrb[0].mxu0 %v1439
    %v1486 = vpop.f32.mrb[0].mxu0
    %v1487 = vadd.f32 0.0, %v1486
    %v1488 = vpop.f32.mrb[0].mxu0
    %v1489 = vpop.f32.mrb[0].mxu0
    %v1490 = vadd.f32 0.0, %v1489
    %v1491 = vpop.f32.mrb[0].mxu0
    %1492 = vdwg.mxu0
    %v1493 = vpack.c.bf16 %v1482, %v1479
    %v1494 = vpack.c.bf16 %v1490, %v1487
    %v1496 = vrot.slane %v1493, 4
    %v1499 = vrot.slane %v1494, 4
    %v1565 = vunpack.c.l.b16 %v1342
    %v1566 = vunpack.c.l.b16 %v1343
    %v1567 = vunpack.c.l.b16 %v1344
    %v1568 = vunpack.c.l.b16 %v1345
    %v1569 = vunpack.c.l.b16 %v1346
    %v1570 = vunpack.c.l.b16 %v1347
    %v1571 = vunpack.c.l.b16 %v1348
    %v1572 = vunpack.c.l.b16 %v1349
    %v1573 = vunpack.c.l.b16 %v1350
    %v1574 = vunpack.c.l.b16 %v1351
    %v1575 = vunpack.c.l.b16 %v1352
    %v1576 = vunpack.c.l.b16 %v1353
    %v1577 = vunpack.c.l.b16 %v1354
    %v1578 = vunpack.c.l.b16 %v1355
    %v1579 = vunpack.c.l.b16 %v1356
    %v1580 = vunpack.c.l.b16 %v1357
    %v1581 = vunpack.c.l.b16 %v1358
    %v1582 = vunpack.c.l.b16 %v1359
    %v1583 = vunpack.c.l.b16 %v1360
    %v1584 = vunpack.c.l.b16 %v1361
    %v1585 = vunpack.c.l.b16 %v1362
    %v1586 = vunpack.c.l.b16 %v1363
    %v1587 = vunpack.c.l.b16 %v1364
    %v1588 = vunpack.c.l.b16 %v1365
    %v1589 = vunpack.c.l.b16 %v1366
    %v1590 = vunpack.c.l.b16 %v1367
    %v1591 = vunpack.c.l.b16 %v1368
    %v1592 = vunpack.c.l.b16 %v1369
    %v1593 = vunpack.c.l.b16 %v1370
    %v1594 = vunpack.c.l.b16 %v1371
    %v1595 = vunpack.c.l.b16 %v1372
    %v1596 = vunpack.c.l.b16 %v1373
    %v1597 = vunpack.c.l.b16 %v1374
    %v1598 = vunpack.c.l.b16 %v1375
    %v1599 = vunpack.c.l.b16 %v1376
    %v1600 = vunpack.c.l.b16 %v1377
    %v1601 = vunpack.c.l.b16 %v1378
    %v1602 = vunpack.c.l.b16 %v1379
    %v1603 = vunpack.c.l.b16 %v1380
    %v1604 = vunpack.c.l.b16 %v1381
    %v1605 = vunpack.c.l.b16 %v1382
    %v1606 = vunpack.c.l.b16 %v1383
    %v1607 = vunpack.c.l.b16 %v1384
    %v1608 = vunpack.c.l.b16 %v1385
    %v1609 = vunpack.c.l.b16 %v1386
    %v1610 = vunpack.c.l.b16 %v1387
    %v1611 = vunpack.c.l.b16 %v1388
    %v1612 = vunpack.c.l.b16 %v1389
    %v1613 = vunpack.c.l.b16 %v1390
    %v1614 = vunpack.c.l.b16 %v1391
    %v1615 = vunpack.c.l.b16 %v1392
    %v1616 = vunpack.c.l.b16 %v1393
    %v1617 = vunpack.c.l.b16 %v1394
    %v1618 = vunpack.c.l.b16 %v1395
    %v1619 = vunpack.c.l.b16 %v1396
    %v1620 = vunpack.c.l.b16 %v1397
    %v1621 = vunpack.c.l.b16 %v1398
    %v1622 = vunpack.c.l.b16 %v1399
    %v1623 = vunpack.c.l.b16 %v1400
    %v1624 = vunpack.c.l.b16 %v1401
    %v1625 = vunpack.c.l.b16 %v1402
    %v1626 = vunpack.c.l.b16 %v1403
    %v1627 = vunpack.c.l.b16 %v1404
    %v1628 = vunpack.c.l.b16 %v1405
    %v1629 = vpack.c.b16 %v1566, %v1565
    %v1630 = vpack.c.b16 %v1568, %v1567
    %v1631 = vpack.c.b16 %v1570, %v1569
    %v1632 = vpack.c.b16 %v1572, %v1571
    %v1633 = vpack.c.b16 %v1574, %v1573
    %v1634 = vpack.c.b16 %v1576, %v1575
    %v1635 = vpack.c.b16 %v1578, %v1577
    %v1636 = vpack.c.b16 %v1580, %v1579
    %v1637 = vpack.c.b16 %v1582, %v1581
    %v1638 = vpack.c.b16 %v1584, %v1583
    %v1639 = vpack.c.b16 %v1586, %v1585
    %v1640 = vpack.c.b16 %v1588, %v1587
    %v1641 = vpack.c.b16 %v1590, %v1589
    %v1642 = vpack.c.b16 %v1592, %v1591
    %v1643 = vpack.c.b16 %v1594, %v1593
    %v1644 = vpack.c.b16 %v1596, %v1595
    %v1645 = vpack.c.b16 %v1598, %v1597
    %v1646 = vpack.c.b16 %v1600, %v1599
    %v1647 = vpack.c.b16 %v1602, %v1601
    %v1648 = vpack.c.b16 %v1604, %v1603
    %v1649 = vpack.c.b16 %v1606, %v1605
    %v1650 = vpack.c.b16 %v1608, %v1607
    %v1651 = vpack.c.b16 %v1610, %v1609
    %v1652 = vpack.c.b16 %v1612, %v1611
    %v1653 = vpack.c.b16 %v1614, %v1613
    %v1654 = vpack.c.b16 %v1616, %v1615
    %v1655 = vpack.c.b16 %v1618, %v1617
    %v1656 = vpack.c.b16 %v1620, %v1619
    %v1657 = vpack.c.b16 %v1622, %v1621
    %v1658 = vpack.c.b16 %v1624, %v1623
    %v1659 = vpack.c.b16 %v1626, %v1625
    %v1660 = vpack.c.b16 %v1628, %v1627
    %1693 = vmatprep.subr.bf16.mxu0 0
    %1694 = vmatpush1.bf16.msra.mxu0 %v1629
    %1695 = vmatprep.subr.bf16.mxu0 0
    %1696 = vmatpush1.bf16.msra.mxu0 %v1630
    %1697 = vmatprep.subr.bf16.mxu0 0
    %1698 = vmatpush1.bf16.msra.mxu0 %v1631
    %1699 = vmatprep.subr.bf16.mxu0 0
    %1700 = vmatpush1.bf16.msra.mxu0 %v1632
    %1701 = vmatprep.subr.bf16.mxu0 0
    %1702 = vmatpush1.bf16.msra.mxu0 %v1633
    %1703 = vmatprep.subr.bf16.mxu0 0
    %1704 = vmatpush1.bf16.msra.mxu0 %v1634
    %1705 = vmatprep.subr.bf16.mxu0 0
    %1706 = vmatpush1.bf16.msra.mxu0 %v1635
    %1707 = vmatprep.subr.bf16.mxu0 0
    %1708 = vmatpush1.bf16.msra.mxu0 %v1636
    %1709 = vmatprep.subr.bf16.mxu0 0
    %1710 = vmatpush1.bf16.msra.mxu0 %v1637
    %1711 = vmatprep.subr.bf16.mxu0 0
    %1712 = vmatpush1.bf16.msra.mxu0 %v1638
    %1713 = vmatprep.subr.bf16.mxu0 0
    %1714 = vmatpush1.bf16.msra.mxu0 %v1639
    %1715 = vmatprep.subr.bf16.mxu0 0
    %1716 = vmatpush1.bf16.msra.mxu0 %v1640
    %1717 = vmatprep.subr.bf16.mxu0 0
    %1718 = vmatpush1.bf16.msra.mxu0 %v1641
    %1719 = vmatprep.subr.bf16.mxu0 0
    %1720 = vmatpush1.bf16.msra.mxu0 %v1642
    %1721 = vmatprep.subr.bf16.mxu0 0
    %1722 = vmatpush1.bf16.msra.mxu0 %v1643
    %1723 = vmatprep.subr.bf16.mxu0 0
    %1724 = vmatpush1.bf16.msra.mxu0 %v1644
    %1725 = vmatprep.mubr.bf16.mxu0 %v1496
    %1726 = vmatmul.mubr.bf16.gmra.mrb[0].mxu0 %v1493
    %v1727 = vpop.f32.mrb[0].mxu0
    %v1728 = vadd.f32 0.0, %v1727
    %v1729 = vpop.f32.mrb[0].mxu0
    %v1730 = vpop.f32.mrb[0].mxu0
    %v1731 = vpop.f32.mrb[0].mxu0
    %1732 = vdwg.mxu0
    %1733 = vmatprep.subr.bf16.mxu0 0
    %1734 = vmatpush1.bf16.msra.mxu0 %v1645
    %1735 = vmatprep.subr.bf16.mxu0 0
    %1736 = vmatpush1.bf16.msra.mxu0 %v1646
    %1737 = vmatprep.subr.bf16.mxu0 0
    %1738 = vmatpush1.bf16.msra.mxu0 %v1647
    %1739 = vmatprep.subr.bf16.mxu0 0
    %1740 = vmatpush1.bf16.msra.mxu0 %v1648
    %1741 = vmatprep.subr.bf16.mxu0 0
    %1742 = vmatpush1.bf16.msra.mxu0 %v1649
    %1743 = vmatprep.subr.bf16.mxu0 0
    %1744 = vmatpush1.bf16.msra.mxu0 %v1650
    %1745 = vmatprep.subr.bf16.mxu0 0
    %1746 = vmatpush1.bf16.msra.mxu0 %v1651
    %1747 = vmatprep.subr.bf16.mxu0 0
    %1748 = vmatpush1.bf16.msra.mxu0 %v1652
    %1749 = vmatprep.subr.bf16.mxu0 0
    %1750 = vmatpush1.bf16.msra.mxu0 %v1653
    %1751 = vmatprep.subr.bf16.mxu0 0
    %1752 = vmatpush1.bf16.msra.mxu0 %v1654
    %1753 = vmatprep.subr.bf16.mxu0 0
    %1754 = vmatpush1.bf16.msra.mxu0 %v1655
    %1755 = vmatprep.subr.bf16.mxu0 0
    %1756 = vmatpush1.bf16.msra.mxu0 %v1656
    %1757 = vmatprep.subr.bf16.mxu0 0
    %1758 = vmatpush1.bf16.msra.mxu0 %v1657
    %1759 = vmatprep.subr.bf16.mxu0 0
    %1760 = vmatpush1.bf16.msra.mxu0 %v1658
    %1761 = vmatprep.subr.bf16.mxu0 0
    %1762 = vmatpush1.bf16.msra.mxu0 %v1659
    %1763 = vmatprep.subr.bf16.mxu0 0
    %1764 = vmatpush1.bf16.msra.mxu0 %v1660
    %1765 = vmatprep.mubr.bf16.mxu0 %v1499
    %1766 = vmatmul.mubr.bf16.gmra.mrb[0].mxu0 %v1494
    %v1767 = vpop.f32.mrb[0].mxu0
    %v1768 = vadd.f32 %v1728, %v1767
    %v1769 = vpop.f32.mrb[0].mxu0
    %v1770 = vpop.f32.mrb[0].mxu0
    %v1771 = vpop.f32.mrb[0].mxu0
    %1772 = vdwg.mxu0
    %v1774 = vsel %vm643, %v1337, 0
    %1776 = vmatprep.subr.bf16.mxu0 0
    %1777 = vmatpush1.bf16.msra.mxu0 %v1336
    %1778 = vmatprep.subr.bf16.mxu0 0
    %1779 = vmatpush1.bf16.msra.mxu0 %v1774
    %1780 = vmatprep.subr.bf16.mxu0 0
    %1781 = vmatpush1.bf16.msra.mxu0 0
    %1782 = vmatprep.subr.bf16.mxu0 0
    %1783 = vmatpush1.bf16.msra.mxu0 0
    %1784 = vmatprep.subr.bf16.mxu0 0
    %1785 = vmatpush1.bf16.msra.mxu0 0
    %1786 = vmatprep.subr.bf16.mxu0 0
    %1787 = vmatpush1.bf16.msra.mxu0 0
    %1788 = vmatprep.subr.bf16.mxu0 0
    %1789 = vmatpush1.bf16.msra.mxu0 0
    %1790 = vmatprep.subr.bf16.mxu0 0
    %1791 = vmatpush1.bf16.msra.mxu0 0
    %1792 = vmatprep.subr.bf16.mxu0 0
    %1793 = vmatpush1.bf16.msra.mxu0 0
    %1794 = vmatprep.subr.bf16.mxu0 0
    %1795 = vmatpush1.bf16.msra.mxu0 0
    %1796 = vmatprep.subr.bf16.mxu0 0
    %1797 = vmatpush1.bf16.msra.mxu0 0
    %1798 = vmatprep.subr.bf16.mxu0 0
    %1799 = vmatpush1.bf16.msra.mxu0 0
    %1800 = vmatprep.subr.bf16.mxu0 0
    %1801 = vmatpush1.bf16.msra.mxu0 0
    %1802 = vmatprep.subr.bf16.mxu0 0
    %1803 = vmatpush1.bf16.msra.mxu0 0
    %1804 = vmatprep.subr.bf16.mxu0 0
    %1805 = vmatpush1.bf16.msra.mxu0 0
    %1806 = vmatprep.subr.bf16.mxu0 0
    %1807 = vmatpush1.bf16.msra.mxu0 0
    %1808 = vmatprep.mubr.bf16.mxu0 0
    %1809 = vmatmul.mubr.bf16.gmra.mrb[0].mxu0 %v1436
    %v1810 = vpop.f32.mrb[0].mxu0
    %v1811 = vadd.f32 0.0, %v1810
    %v1812 = vpop.f32.mrb[0].mxu0
    %v1813 = vpop.f32.mrb[0].mxu0
    %v1814 = vadd.f32 0.0, %v1813
    %v1815 = vpop.f32.mrb[0].mxu0
    %1816 = vmatprep.mubr.bf16.mxu0 0
    %1817 = vmatmul.mubr.bf16.gmra.mrb[0].mxu0 %v1439
    %v1818 = vpop.f32.mrb[0].mxu0
    %v1819 = vadd.f32 0.0, %v1818
    %v1820 = vpop.f32.mrb[0].mxu0
    %v1821 = vpop.f32.mrb[0].mxu0
    %v1822 = vadd.f32 0.0, %v1821
    %v1823 = vpop.f32.mrb[0].mxu0
    %1824 = vdwg.mxu0
    %v1825 = vpack.c.bf16 %v1814, %v1811
    %v1826 = vpack.c.bf16 %v1822, %v1819
    %v1828 = vrot.slane %v1825, 4
    %v1831 = vrot.slane %v1826, 4
    %1833 = vmatprep.subr.bf16.mxu0 0
    %1834 = vmatpush1.bf16.msra.mxu0 %v1629
    %1835 = vmatprep.subr.bf16.mxu0 0
    %1836 = vmatpush1.bf16.msra.mxu0 %v1630
    %1837 = vmatprep.subr.bf16.mxu0 0
    %1838 = vmatpush1.bf16.msra.mxu0 %v1631
    %1839 = vmatprep.subr.bf16.mxu0 0
    %1840 = vmatpush1.bf16.msra.mxu0 %v1632
    %1841 = vmatprep.subr.bf16.mxu0 0
    %1842 = vmatpush1.bf16.msra.mxu0 %v1633
    %1843 = vmatprep.subr.bf16.mxu0 0
    %1844 = vmatpush1.bf16.msra.mxu0 %v1634
    %1845 = vmatprep.subr.bf16.mxu0 0
    %1846 = vmatpush1.bf16.msra.mxu0 %v1635
    %1847 = vmatprep.subr.bf16.mxu0 0
    %1848 = vmatpush1.bf16.msra.mxu0 %v1636
    %1849 = vmatprep.subr.bf16.mxu0 0
    %1850 = vmatpush1.bf16.msra.mxu0 %v1637
    %1851 = vmatprep.subr.bf16.mxu0 0
    %1852 = vmatpush1.bf16.msra.mxu0 %v1638
    %1853 = vmatprep.subr.bf16.mxu0 0
    %1854 = vmatpush1.bf16.msra.mxu0 %v1639
    %1855 = vmatprep.subr.bf16.mxu0 0
    %1856 = vmatpush1.bf16.msra.mxu0 %v1640
    %1857 = vmatprep.subr.bf16.mxu0 0
    %1858 = vmatpush1.bf16.msra.mxu0 %v1641
    %1859 = vmatprep.subr.bf16.mxu0 0
    %1860 = vmatpush1.bf16.msra.mxu0 %v1642
    %1861 = vmatprep.subr.bf16.mxu0 0
    %1862 = vmatpush1.bf16.msra.mxu0 %v1643
    %1863 = vmatprep.subr.bf16.mxu0 0
    %1864 = vmatpush1.bf16.msra.mxu0 %v1644
    %1865 = vmatprep.mubr.bf16.mxu0 %v1828
    %1866 = vmatmul.mubr.bf16.gmra.mrb[0].mxu0 %v1825
    %v1867 = vpop.f32.mrb[0].mxu0
    %v1868 = vadd.f32 0.0, %v1867
    %v1869 = vpop.f32.mrb[0].mxu0
    %v1870 = vpop.f32.mrb[0].mxu0
    %v1871 = vpop.f32.mrb[0].mxu0
    %1872 = vdwg.mxu0
    %1873 = vmatprep.subr.bf16.mxu0 0
    %1874 = vmatpush1.bf16.msra.mxu0 %v1645
    %1875 = vmatprep.subr.bf16.mxu0 0
    %1876 = vmatpush1.bf16.msra.mxu0 %v1646
    %1877 = vmatprep.subr.bf16.mxu0 0
    %1878 = vmatpush1.bf16.msra.mxu0 %v1647
    %1879 = vmatprep.subr.bf16.mxu0 0
    %1880 = vmatpush1.bf16.msra.mxu0 %v1648
    %1881 = vmatprep.subr.bf16.mxu0 0
    %1882 = vmatpush1.bf16.msra.mxu0 %v1649
    %1883 = vmatprep.subr.bf16.mxu0 0
    %1884 = vmatpush1.bf16.msra.mxu0 %v1650
    %1885 = vmatprep.subr.bf16.mxu0 0
    %1886 = vmatpush1.bf16.msra.mxu0 %v1651
    %1887 = vmatprep.subr.bf16.mxu0 0
    %1888 = vmatpush1.bf16.msra.mxu0 %v1652
    %1889 = vmatprep.subr.bf16.mxu0 0
    %1890 = vmatpush1.bf16.msra.mxu0 %v1653
    %1891 = vmatprep.subr.bf16.mxu0 0
    %1892 = vmatpush1.bf16.msra.mxu0 %v1654
    %1893 = vmatprep.subr.bf16.mxu0 0
    %1894 = vmatpush1.bf16.msra.mxu0 %v1655
    %1895 = vmatprep.subr.bf16.mxu0 0
    %1896 = vmatpush1.bf16.msra.mxu0 %v1656
    %1897 = vmatprep.subr.bf16.mxu0 0
    %1898 = vmatpush1.bf16.msra.mxu0 %v1657
    %1899 = vmatprep.subr.bf16.mxu0 0
    %1900 = vmatpush1.bf16.msra.mxu0 %v1658
    %1901 = vmatprep.subr.bf16.mxu0 0
    %1902 = vmatpush1.bf16.msra.mxu0 %v1659
    %1903 = vmatprep.subr.bf16.mxu0 0
    %1904 = vmatpush1.bf16.msra.mxu0 %v1660
    %1905 = vmatprep.mubr.bf16.mxu0 %v1831
    %1906 = vmatmul.mubr.bf16.gmra.mrb[0].mxu0 %v1826
    %v1907 = vpop.f32.mrb[0].mxu0
    %v1908 = vadd.f32 %v1868, %v1907
    %v1909 = vpop.f32.mrb[0].mxu0
    %v1910 = vpop.f32.mrb[0].mxu0
    %v1911 = vpop.f32.mrb[0].mxu0
    %1912 = vdwg.mxu0
    %v1913 = vrot.slane %v1768, 4
    %v1914 = vadd.f32 %v1768, %v1913
    %v1915 = vrot.slane %v1914, 2
    %v1916 = vadd.f32 %v1914, %v1915
    %v1917 = vrot.slane %v1916, 1
    %v1918 = vadd.f32 %v1916, %v1917
    %v1919 = vmul.f32 %v1768, %v1768
    %v1920 = vrot.slane %v1919, 4
    %v1921 = vadd.f32 %v1919, %v1920
    %v1922 = vrot.slane %v1921, 2
    %v1923 = vadd.f32 %v1921, %v1922
    %v1924 = vrot.slane %v1923, 1
    %v1925 = vadd.f32 %v1923, %v1924
    %v1926 = vrot.slane %v1908, 4
    %v1927 = vadd.f32 %v1908, %v1926
    %v1928 = vrot.slane %v1927, 2
    %v1929 = vadd.f32 %v1927, %v1928
    %v1930 = vrot.slane %v1929, 1
    %v1931 = vadd.f32 %v1929, %v1930
    %v1932 = vadd.f32 %v1918, %v1931
    %v1933 = vmul.f32 %v1908, %v1908
    %v1934 = vrot.slane %v1933, 4
    %v1935 = vadd.f32 %v1933, %v1934
    %v1936 = vrot.slane %v1935, 2
    %v1937 = vadd.f32 %v1935, %v1936
    %v1938 = vrot.slane %v1937, 1
    %v1939 = vadd.f32 %v1937, %v1938
    %v1940 = vadd.f32 %v1925, %v1939
    %v1941 = vsel %vm643, %v1932, %v1940
    %1942 = vmatprep.subr.mxu0 0.0
    %1943 = vmatpush1.msra.mxu0 %v1406
    %1944 = vmatprep.subr.mxu0 0.0
    %1945 = vmatpush1.msra.mxu0 %v1407
    %1946 = vmatprep.subr.mxu0 0.0
    %1947 = vmatpush1.msra.mxu0 %v1408
    %1948 = vmatprep.subr.mxu0 0.0
    %1949 = vmatpush1.msra.mxu0 %v1409
    %1950 = vmatprep.subr.mxu0 0.0
    %1951 = vmatpush1.msra.mxu0 %v1410
    %1952 = vmatprep.subr.mxu0 0.0
    %1953 = vmatpush1.msra.mxu0 %v1411
    %1954 = vmatprep.subr.mxu0 0.0
    %1955 = vmatpush1.msra.mxu0 %v1412
    %1956 = vmatprep.subr.mxu0 0.0
    %1957 = vmatpush1.msra.mxu0 %v1413
    %1958 = vmatprep.subr.mxu0 0.0
    %1959 = vmatpush1.msra.mxu0 %v1414
    %1960 = vmatprep.subr.mxu0 0.0
    %1961 = vmatpush1.msra.mxu0 %v1415
    %1962 = vmatprep.subr.mxu0 0.0
    %1963 = vmatpush1.msra.mxu0 %v1416
    %1964 = vmatprep.subr.mxu0 0.0
    %1965 = vmatpush1.msra.mxu0 %v1417
    %1966 = vmatprep.subr.mxu0 0.0
    %1967 = vmatpush1.msra.mxu0 %v1418
    %1968 = vmatprep.subr.mxu0 0.0
    %1969 = vmatpush1.msra.mxu0 %v1419
    %1970 = vmatprep.subr.mxu0 0.0
    %1971 = vmatpush1.msra.mxu0 %v1420
    %1972 = vmatprep.subr.mxu0 0.0
    %1973 = vmatpush1.msra.mxu0 %v1421
    %1974 = vmatprep.subr.mxu0 0.0
    %1975 = vmatpush1.msra.mxu0 0.0
    %1976 = vmatprep.subr.mxu0 0.0
    %1977 = vmatpush1.msra.mxu0 0.0
    %1978 = vmatprep.subr.mxu0 0.0
    %1979 = vmatpush1.msra.mxu0 0.0
    %1980 = vmatprep.subr.mxu0 0.0
    %1981 = vmatpush1.msra.mxu0 0.0
    %1982 = vmatprep.subr.mxu0 0.0
    %1983 = vmatpush1.msra.mxu0 0.0
    %1984 = vmatprep.subr.mxu0 0.0
    %1985 = vmatpush1.msra.mxu0 0.0
    %1986 = vmatprep.subr.mxu0 0.0
    %1987 = vmatpush1.msra.mxu0 0.0
    %1988 = vmatprep.subr.mxu0 0.0
    %1989 = vmatpush1.msra.mxu0 0.0
    %1990 = vmatprep.subr.mxu0 0.0
    %1991 = vmatpush1.msra.mxu0 0.0
    %1992 = vmatprep.subr.mxu0 0.0
    %1993 = vmatpush1.msra.mxu0 0.0
    %1994 = vmatprep.subr.mxu0 0.0
    %1995 = vmatpush1.msra.mxu0 0.0
    %1996 = vmatprep.subr.mxu0 0.0
    %1997 = vmatpush1.msra.mxu0 0.0
    %1998 = vmatprep.subr.mxu0 0.0
    %1999 = vmatpush1.msra.mxu0 0.0
    %2000 = vmatprep.subr.mxu0 0.0
    %2001 = vmatpush1.msra.mxu0 0.0
    %2002 = vmatprep.subr.mxu0 0.0
    %2003 = vmatpush1.msra.mxu0 0.0
    %2004 = vmatprep.subr.mxu0 0.0
    %2005 = vmatpush1.msra.mxu0 0.0
    %2006 = vmatprep.mubr.f32.mxu0 0.0
    %2007 = vmatmul.mubr.f32.gmra.mrb[0].mxu0 %v1941
    %v2008 = vpop.f32.mrb[0].mxu0
    %v2009 = vadd.f32 0.0, %v2008
    %v2010 = vpop.f32.mrb[0].mxu0
    %2011 = vdwg.mxu0
    %v2012 = vrcp.pop 128.0
    %v2013 = vmul.f32 %v2009, %v2012
    %v2014 = vmul.f32 %v2013, %v2013
    %v2016 = vrot.slane %v2014, 7
    %v2018 = vsub.f32 %v2013, %v2016
    %v2019 = vmax.f32 %v2018, 0.0
    %v2020 = vadd.f32 %v2019, 1e-05
    %v2021 = vrsqrt.pop %v2020
    %v2024 = vunpack.c.l.s4 1966171168
    %v2025 = vunpack.c.0.s8 %v2024
    %v2026 = vlaneseq
    %v2027 = vshrl.u32 %v2026, 7
    %v2028 = vsub.s32 %v2025, %v2027
    %v2029 = vrot.slane %v2021, %v2028
    %v2030 = vcombine.high %v2029, %v2029
    %v2032 = vunpack.c.l.s4 1966171168
    %v2033 = vunpack.c.0.s8 %v2032
    %v2034 = vlaneseq
    %v2035 = vshrl.u32 %v2034, 7
    %v2036 = vsub.s32 %v2033, %v2035
    %v2037 = vrot.slane %v2030, %v2036
    %v2039 = vmul.f32 %v1422, %v2037
    %v2040 = vmul.f32 %v2013, %v2039
    %v2041 = vsub.f32 %v1423, %v2040
    %v2043 = vlaneseq
    %v2044 = vshrl.u32 %v2043, 7
    %v2045 = vsub.s32 0, %v2044
    %v2046 = vrot.slane %v2039, %v2045
    %v2048 = vmul.f32 %v1768, %v2046
    %v2050 = vlaneseq
    %v2051 = vshrl.u32 %v2050, 7
    %v2052 = vsub.s32 0, %v2051
    %v2053 = vrot.slane %v2041, %v2052
    %v2055 = vadd.f32 %v2048, %v2053
    %v2056 = vmax.f32 %v2055, 0.0
    %v2057 = vmul.f32 %v1908, %v2046
    %v2058 = vadd.f32 %v2057, %v2053
    %v2059 = vmax.f32 %v2058, 0.0
    %v2060 = vpack.c.bf16 %v2056, %v2056
    %v2062 = vshrl.u32 %v2060, 16
    %v2064 = vrot.slane %v2062, 7
    %v2065 = vshll.u32 %v2060, 16
    %v2067 = vor.u32 %v2064, %v2065
    %v2069 = vsel %vm1323, 0, %v2067
    %vm2070 = vcmask 1044480
    %vm2071 = vsmask.f32 4352
    %vm2072 = vmand %vm2070, %vm2071
    %v2073 = vsel %vm2072, %v2069, 0
    %v2074 = vpack.c.bf16 %v2059, %v2059
    %v2076 = vshrl.u32 %v2074, 16
    %v2078 = vrot.slane %v2076, 7
    %v2079 = vshll.u32 %v2074, 16
    %v2081 = vor.u32 %v2078, %v2079
    %v2083 = vsel %vm1323, 0, %v2081
    %v2084 = vsel %vm2072, %v2083, 0
    %v2085 = vld [vmem:[#allocation7] sm:$0xf]
    %v2086 = vld [vmem:[#allocation7 + $0x4] sm:$0xf]
    %v2087 = vld [vmem:[%s25] sm:$0xf]
    %v2088 = vld [vmem:[%s25 + $0x4] sm:$0xf]
    %v2089 = vld [vmem:[%s25 + $0x8] sm:$0xf]
    %v2090 = vld [vmem:[%s25 + $0xc] sm:$0xf]
    %v2091 = vld [vmem:[%s25 + $0x10] sm:$0xf]
    %v2092 = vld [vmem:[%s25 + $0x14] sm:$0xf]
    %v2093 = vld [vmem:[%s25 + $0x18] sm:$0xf]
    %v2094 = vld [vmem:[%s25 + $0x1c] sm:$0xf]
    %v2095 = vld [vmem:[%s25 + $0x20] sm:$0xf]
    %v2096 = vld [vmem:[%s25 + $0x24] sm:$0xf]
    %v2097 = vld [vmem:[%s25 + $0x28] sm:$0xf]
    %v2098 = vld [vmem:[%s25 + $0x2c] sm:$0xf]
    %v2099 = vld [vmem:[%s25 + $0x30] sm:$0xf]
    %v2100 = vld [vmem:[%s25 + $0x34] sm:$0xf]
    %v2101 = vld [vmem:[%s25 + $0x38] sm:$0xf]
    %v2102 = vld [vmem:[%s25 + $0x3c] sm:$0xf]
    %v2103 = vld [vmem:[%s25 + $0x40] sm:$0xf]
    %v2104 = vld [vmem:[%s25 + $0x44] sm:$0xf]
    %v2105 = vld [vmem:[%s25 + $0x48] sm:$0xf]
    %v2106 = vld [vmem:[%s25 + $0x4c] sm:$0xf]
    %v2107 = vld [vmem:[%s25 + $0x50] sm:$0xf]
    %v2108 = vld [vmem:[%s25 + $0x54] sm:$0xf]
    %v2109 = vld [vmem:[%s25 + $0x58] sm:$0xf]
    %v2110 = vld [vmem:[%s25 + $0x5c] sm:$0xf]
    %v2111 = vld [vmem:[%s25 + $0x60] sm:$0xf]
    %v2112 = vld [vmem:[%s25 + $0x64] sm:$0xf]
    %v2113 = vld [vmem:[%s25 + $0x68] sm:$0xf]
    %v2114 = vld [vmem:[%s25 + $0x6c] sm:$0xf]
    %v2115 = vld [vmem:[%s25 + $0x70] sm:$0xf]
    %v2116 = vld [vmem:[%s25 + $0x74] sm:$0xf]
    %v2117 = vld [vmem:[%s25 + $0x78] sm:$0xf]
    %v2118 = vld [vmem:[%s25 + $0x7c] sm:$0xf]
    %v2119 = vld [vmem:[%s25 + $0x80] sm:$0xf]
    %v2120 = vld [vmem:[%s25 + $0x84] sm:$0xf]
    %v2121 = vld [vmem:[%s25 + $0x88] sm:$0xf]
    %v2122 = vld [vmem:[%s25 + $0x8c] sm:$0xf]
    %v2123 = vld [vmem:[%s25 + $0x90] sm:$0xf]
    %v2124 = vld [vmem:[%s25 + $0x94] sm:$0xf]
    %v2125 = vld [vmem:[%s25 + $0x98] sm:$0xf]
    %v2126 = vld [vmem:[%s25 + $0x9c] sm:$0xf]
    %v2127 = vld [vmem:[%s25 + $0xa0] sm:$0xf]
    %v2128 = vld [vmem:[%s25 + $0xa4] sm:$0xf]
    %v2129 = vld [vmem:[%s25 + $0xa8] sm:$0xf]
    %v2130 = vld [vmem:[%s25 + $0xac] sm:$0xf]
    %v2131 = vld [vmem:[%s25 + $0xb0] sm:$0xf]
    %v2132 = vld [vmem:[%s25 + $0xb4] sm:$0xf]
    %v2133 = vld [vmem:[%s25 + $0xb8] sm:$0xf]
    %v2134 = vld [vmem:[%s25 + $0xbc] sm:$0xf]
    %v2135 = vld [vmem:[%s25 + $0xc0] sm:$0xf]
    %v2136 = vld [vmem:[%s25 + $0xc4] sm:$0xf]
    %v2137 = vld [vmem:[%s25 + $0xc8] sm:$0xf]
    %v2138 = vld [vmem:[%s25 + $0xcc] sm:$0xf]
    %v2139 = vld [vmem:[%s25 + $0xd0] sm:$0xf]
    %v2140 = vld [vmem:[%s25 + $0xd4] sm:$0xf]
    %v2141 = vld [vmem:[%s25 + $0xd8] sm:$0xf]
    %v2142 = vld [vmem:[%s25 + $0xdc] sm:$0xf]
    %v2143 = vld [vmem:[%s25 + $0xe0] sm:$0xf]
    %v2144 = vld [vmem:[%s25 + $0xe4] sm:$0xf]
    %v2145 = vld [vmem:[%s25 + $0xe8] sm:$0xf]
    %v2146 = vld [vmem:[%s25 + $0xec] sm:$0xf]
    %v2147 = vld [vmem:[%s25 + $0xf0] sm:$0xf]
    %v2148 = vld [vmem:[%s25 + $0xf4] sm:$0xf]
    %v2149 = vld [vmem:[%s25 + $0xf8] sm:$0xf]
    %v2150 = vld [vmem:[%s25 + $0xfc] sm:$0xf]
    %v2151 = vld [vmem:[#allocation9] sm:$0xff]
    %v2152 = vld [vmem:[#allocation9 + $0x8] sm:$0xff]
    %v2153 = vld [vmem:[#allocation9 + $0x10] sm:$0xff]
    %v2154 = vld [vmem:[#allocation9 + $0x18] sm:$0xff]
    %v2155 = vld [vmem:[#allocation9 + $0x20] sm:$0xff]
    %v2156 = vld [vmem:[#allocation9 + $0x28] sm:$0xff]
    %v2157 = vld [vmem:[#allocation9 + $0x30] sm:$0xff]
    %v2158 = vld [vmem:[#allocation9 + $0x38] sm:$0xff]
    %v2159 = vld [vmem:[#allocation9 + $0x40] sm:$0xff]
    %v2160 = vld [vmem:[#allocation9 + $0x48] sm:$0xff]
    %v2161 = vld [vmem:[#allocation9 + $0x50] sm:$0xff]
    %v2162 = vld [vmem:[#allocation9 + $0x58] sm:$0xff]
    %v2163 = vld [vmem:[#allocation9 + $0x60] sm:$0xff]
    %v2164 = vld [vmem:[#allocation9 + $0x68] sm:$0xff]
    %v2165 = vld [vmem:[#allocation9 + $0x70] sm:$0xff]
    %v2166 = vld [vmem:[#allocation9 + $0x78] sm:$0xff]
    %v2167 = vld [vmem:[#allocation10] sm:$0x1]
    %v2168 = vld [vmem:[#allocation12] sm:$0x1]
    %v2171 = vunpack.c.l.b16 %v2085
    %v2172 = vunpack.c.l.b16 %v2086
    %v2173 = vpack.c.b16 %v2172, %v2171
    %vm2174 = vcmask 80896
    %v2176 = vsel %vm2174, %v2173, 0
    %vm2178 = vcmask 1044480
    %v2180 = vsel %vm2178, %v2073, 0
    %2182 = vmatprep.subr.bf16.mxu0 0
    %2183 = vmatpush1.bf16.msra.mxu0 %v2180
    %2184 = vmatprep.subr.bf16.mxu0 0
    %2185 = vmatpush1.bf16.msra.mxu0 0
    %2186 = vmatprep.subr.bf16.mxu0 0
    %2187 = vmatpush1.bf16.msra.mxu0 0
    %2188 = vmatprep.subr.bf16.mxu0 0
    %2189 = vmatpush1.bf16.msra.mxu0 0
    %2190 = vmatprep.subr.bf16.mxu0 0
    %2191 = vmatpush1.bf16.msra.mxu0 0
    %2192 = vmatprep.subr.bf16.mxu0 0
    %2193 = vmatpush1.bf16.msra.mxu0 0
    %2194 = vmatprep.subr.bf16.mxu0 0
    %2195 = vmatpush1.bf16.msra.mxu0 0
    %2196 = vmatprep.subr.bf16.mxu0 0
    %2197 = vmatpush1.bf16.msra.mxu0 0
    %2198 = vmatprep.subr.bf16.mxu0 0
    %2199 = vmatpush1.bf16.msra.mxu0 0
    %2200 = vmatprep.subr.bf16.mxu0 0
    %2201 = vmatpush1.bf16.msra.mxu0 0
    %2202 = vmatprep.subr.bf16.mxu0 0
    %2203 = vmatpush1.bf16.msra.mxu0 0
    %2204 = vmatprep.subr.bf16.mxu0 0
    %2205 = vmatpush1.bf16.msra.mxu0 0
    %2206 = vmatprep.subr.bf16.mxu0 0
    %2207 = vmatpush1.bf16.msra.mxu0 0
    %2208 = vmatprep.subr.bf16.mxu0 0
    %2209 = vmatpush1.bf16.msra.mxu0 0
    %2210 = vmatprep.subr.bf16.mxu0 0
    %2211 = vmatpush1.bf16.msra.mxu0 0
    %2212 = vmatprep.subr.bf16.mxu0 0
    %2213 = vmatpush1.bf16.msra.mxu0 0
    %2214 = vmatprep.mubr.bf16.mxu0 0
    %2215 = vmatmul.mubr.bf16.gmra.mrb[0].mxu0 %v2176
    %v2216 = vpop.f32.mrb[0].mxu0
    %v2217 = vadd.f32 0.0, %v2216
    %v2218 = vpop.f32.mrb[0].mxu0
    %v2219 = vpop.f32.mrb[0].mxu0
    %v2220 = vadd.f32 0.0, %v2219
    %v2221 = vpop.f32.mrb[0].mxu0
    %2222 = vdwg.mxu0
    %v2223 = vpack.c.bf16 %v2220, %v2217
    %v2225 = vrot.slane %v2223, 2
    %v2227 = vrot.slane %v2223, 4
    %v2229 = vrot.slane %v2223, 6
    %v2295 = vunpack.c.l.b16 %v2087
    %v2296 = vunpack.c.l.b16 %v2088
    %v2297 = vunpack.c.l.b16 %v2089
    %v2298 = vunpack.c.l.b16 %v2090
    %v2299 = vunpack.c.l.b16 %v2091
    %v2300 = vunpack.c.l.b16 %v2092
    %v2301 = vunpack.c.l.b16 %v2093
    %v2302 = vunpack.c.l.b16 %v2094
    %v2303 = vunpack.c.l.b16 %v2095
    %v2304 = vunpack.c.l.b16 %v2096
    %v2305 = vunpack.c.l.b16 %v2097
    %v2306 = vunpack.c.l.b16 %v2098
    %v2307 = vunpack.c.l.b16 %v2099
    %v2308 = vunpack.c.l.b16 %v2100
    %v2309 = vunpack.c.l.b16 %v2101
    %v2310 = vunpack.c.l.b16 %v2102
    %v2311 = vunpack.c.l.b16 %v2103
    %v2312 = vunpack.c.l.b16 %v2104
    %v2313 = vunpack.c.l.b16 %v2105
    %v2314 = vunpack.c.l.b16 %v2106
    %v2315 = vunpack.c.l.b16 %v2107
    %v2316 = vunpack.c.l.b16 %v2108
    %v2317 = vunpack.c.l.b16 %v2109
    %v2318 = vunpack.c.l.b16 %v2110
    %v2319 = vunpack.c.l.b16 %v2111
    %v2320 = vunpack.c.l.b16 %v2112
    %v2321 = vunpack.c.l.b16 %v2113
    %v2322 = vunpack.c.l.b16 %v2114
    %v2323 = vunpack.c.l.b16 %v2115
    %v2324 = vunpack.c.l.b16 %v2116
    %v2325 = vunpack.c.l.b16 %v2117
    %v2326 = vunpack.c.l.b16 %v2118
    %v2327 = vunpack.c.l.b16 %v2119
    %v2328 = vunpack.c.l.b16 %v2120
    %v2329 = vunpack.c.l.b16 %v2121
    %v2330 = vunpack.c.l.b16 %v2122
    %v2331 = vunpack.c.l.b16 %v2123
    %v2332 = vunpack.c.l.b16 %v2124
    %v2333 = vunpack.c.l.b16 %v2125
    %v2334 = vunpack.c.l.b16 %v2126
    %v2335 = vunpack.c.l.b16 %v2127
    %v2336 = vunpack.c.l.b16 %v2128
    %v2337 = vunpack.c.l.b16 %v2129
    %v2338 = vunpack.c.l.b16 %v2130
    %v2339 = vunpack.c.l.b16 %v2131
    %v2340 = vunpack.c.l.b16 %v2132
    %v2341 = vunpack.c.l.b16 %v2133
    %v2342 = vunpack.c.l.b16 %v2134
    %v2343 = vunpack.c.l.b16 %v2135
    %v2344 = vunpack.c.l.b16 %v2136
    %v2345 = vunpack.c.l.b16 %v2137
    %v2346 = vunpack.c.l.b16 %v2138
    %v2347 = vunpack.c.l.b16 %v2139
    %v2348 = vunpack.c.l.b16 %v2140
    %v2349 = vunpack.c.l.b16 %v2141
    %v2350 = vunpack.c.l.b16 %v2142
    %v2351 = vunpack.c.l.b16 %v2143
    %v2352 = vunpack.c.l.b16 %v2144
    %v2353 = vunpack.c.l.b16 %v2145
    %v2354 = vunpack.c.l.b16 %v2146
    %v2355 = vunpack.c.l.b16 %v2147
    %v2356 = vunpack.c.l.b16 %v2148
    %v2357 = vunpack.c.l.b16 %v2149
    %v2358 = vunpack.c.l.b16 %v2150
    %v2359 = vpack.c.b16 %v2296, %v2295
    %v2360 = vpack.c.b16 %v2298, %v2297
    %v2361 = vpack.c.b16 %v2300, %v2299
    %v2362 = vpack.c.b16 %v2302, %v2301
    %v2363 = vpack.c.b16 %v2304, %v2303
    %v2364 = vpack.c.b16 %v2306, %v2305
    %v2365 = vpack.c.b16 %v2308, %v2307
    %v2366 = vpack.c.b16 %v2310, %v2309
    %v2367 = vpack.c.b16 %v2312, %v2311
    %v2368 = vpack.c.b16 %v2314, %v2313
    %v2369 = vpack.c.b16 %v2316, %v2315
    %v2370 = vpack.c.b16 %v2318, %v2317
    %v2371 = vpack.c.b16 %v2320, %v2319
    %v2372 = vpack.c.b16 %v2322, %v2321
    %v2373 = vpack.c.b16 %v2324, %v2323
    %v2374 = vpack.c.b16 %v2326, %v2325
    %v2375 = vpack.c.b16 %v2328, %v2327
    %v2376 = vpack.c.b16 %v2330, %v2329
    %v2377 = vpack.c.b16 %v2332, %v2331
    %v2378 = vpack.c.b16 %v2334, %v2333
    %v2379 = vpack.c.b16 %v2336, %v2335
    %v2380 = vpack.c.b16 %v2338, %v2337
    %v2381 = vpack.c.b16 %v2340, %v2339
    %v2382 = vpack.c.b16 %v2342, %v2341
    %v2383 = vpack.c.b16 %v2344, %v2343
    %v2384 = vpack.c.b16 %v2346, %v2345
    %v2385 = vpack.c.b16 %v2348, %v2347
    %v2386 = vpack.c.b16 %v2350, %v2349
    %v2387 = vpack.c.b16 %v2352, %v2351
    %v2388 = vpack.c.b16 %v2354, %v2353
    %v2389 = vpack.c.b16 %v2356, %v2355
    %v2390 = vpack.c.b16 %v2358, %v2357
    %2423 = vmatprep.subr.bf16.mxu0 0
    %2424 = vmatpush1.bf16.msra.mxu0 %v2359
    %2425 = vmatprep.subr.bf16.mxu0 0
    %2426 = vmatpush1.bf16.msra.mxu0 %v2360
    %2427 = vmatprep.subr.bf16.mxu0 0
    %2428 = vmatpush1.bf16.msra.mxu0 %v2361
    %2429 = vmatprep.subr.bf16.mxu0 0
    %2430 = vmatpush1.bf16.msra.mxu0 %v2362
    %2431 = vmatprep.subr.bf16.mxu0 0
    %2432 = vmatpush1.bf16.msra.mxu0 %v2363
    %2433 = vmatprep.subr.bf16.mxu0 0
    %2434 = vmatpush1.bf16.msra.mxu0 %v2364
    %2435 = vmatprep.subr.bf16.mxu0 0
    %2436 = vmatpush1.bf16.msra.mxu0 %v2365
    %2437 = vmatprep.subr.bf16.mxu0 0
    %2438 = vmatpush1.bf16.msra.mxu0 %v2366
    %2439 = vmatprep.subr.bf16.mxu0 0
    %2440 = vmatpush1.bf16.msra.mxu0 %v2367
    %2441 = vmatprep.subr.bf16.mxu0 0
    %2442 = vmatpush1.bf16.msra.mxu0 %v2368
    %2443 = vmatprep.subr.bf16.mxu0 0
    %2444 = vmatpush1.bf16.msra.mxu0 %v2369
    %2445 = vmatprep.subr.bf16.mxu0 0
    %2446 = vmatpush1.bf16.msra.mxu0 %v2370
    %2447 = vmatprep.subr.bf16.mxu0 0
    %2448 = vmatpush1.bf16.msra.mxu0 %v2371
    %2449 = vmatprep.subr.bf16.mxu0 0
    %2450 = vmatpush1.bf16.msra.mxu0 %v2372
    %2451 = vmatprep.subr.bf16.mxu0 0
    %2452 = vmatpush1.bf16.msra.mxu0 %v2373
    %2453 = vmatprep.subr.bf16.mxu0 0
    %2454 = vmatpush1.bf16.msra.mxu0 %v2374
    %2455 = vmatprep.mubr.bf16.mxu0 %v2225
    %2456 = vmatmul.mubr.bf16.gmra.mrb[0].mxu0 %v2223
    %v2457 = vpop.f32.mrb[0].mxu0
    %v2458 = vadd.f32 0.0, %v2457
    %v2459 = vpop.f32.mrb[0].mxu0
    %v2460 = vpop.f32.mrb[0].mxu0
    %v2461 = vpop.f32.mrb[0].mxu0
    %2462 = vdwg.mxu0
    %2463 = vmatprep.subr.bf16.mxu0 0
    %2464 = vmatpush1.bf16.msra.mxu0 %v2375
    %2465 = vmatprep.subr.bf16.mxu0 0
    %2466 = vmatpush1.bf16.msra.mxu0 %v2376
    %2467 = vmatprep.subr.bf16.mxu0 0
    %2468 = vmatpush1.bf16.msra.mxu0 %v2377
    %2469 = vmatprep.subr.bf16.mxu0 0
    %2470 = vmatpush1.bf16.msra.mxu0 %v2378
    %2471 = vmatprep.subr.bf16.mxu0 0
    %2472 = vmatpush1.bf16.msra.mxu0 %v2379
    %2473 = vmatprep.subr.bf16.mxu0 0
    %2474 = vmatpush1.bf16.msra.mxu0 %v2380
    %2475 = vmatprep.subr.bf16.mxu0 0
    %2476 = vmatpush1.bf16.msra.mxu0 %v2381
    %2477 = vmatprep.subr.bf16.mxu0 0
    %2478 = vmatpush1.bf16.msra.mxu0 %v2382
    %2479 = vmatprep.subr.bf16.mxu0 0
    %2480 = vmatpush1.bf16.msra.mxu0 %v2383
    %2481 = vmatprep.subr.bf16.mxu0 0
    %2482 = vmatpush1.bf16.msra.mxu0 %v2384
    %2483 = vmatprep.subr.bf16.mxu0 0
    %2484 = vmatpush1.bf16.msra.mxu0 %v2385
    %2485 = vmatprep.subr.bf16.mxu0 0
    %2486 = vmatpush1.bf16.msra.mxu0 %v2386
    %2487 = vmatprep.subr.bf16.mxu0 0
    %2488 = vmatpush1.bf16.msra.mxu0 %v2387
    %2489 = vmatprep.subr.bf16.mxu0 0
    %2490 = vmatpush1.bf16.msra.mxu0 %v2388
    %2491 = vmatprep.subr.bf16.mxu0 0
    %2492 = vmatpush1.bf16.msra.mxu0 %v2389
    %2493 = vmatprep.subr.bf16.mxu0 0
    %2494 = vmatpush1.bf16.msra.mxu0 %v2390
    %2495 = vmatprep.mubr.bf16.mxu0 %v2229
    %2496 = vmatmul.mubr.bf16.gmra.mrb[0].mxu0 %v2227
    %v2497 = vpop.f32.mrb[0].mxu0
    %v2498 = vadd.f32 %v2458, %v2497
    %v2499 = vpop.f32.mrb[0].mxu0
    %v2500 = vpop.f32.mrb[0].mxu0
    %v2501 = vpop.f32.mrb[0].mxu0
    %2502 = vdwg.mxu0
    %v2504 = vsel %vm2178, %v2084, 0
    %2506 = vmatprep.subr.bf16.mxu0 0
    %2507 = vmatpush1.bf16.msra.mxu0 %v2504
    %2508 = vmatprep.subr.bf16.mxu0 0
    %2509 = vmatpush1.bf16.msra.mxu0 0
    %2510 = vmatprep.subr.bf16.mxu0 0
    %2511 = vmatpush1.bf16.msra.mxu0 0
    %2512 = vmatprep.subr.bf16.mxu0 0
    %2513 = vmatpush1.bf16.msra.mxu0 0
    %2514 = vmatprep.subr.bf16.mxu0 0
    %2515 = vmatpush1.bf16.msra.mxu0 0
    %2516 = vmatprep.subr.bf16.mxu0 0
    %2517 = vmatpush1.bf16.msra.mxu0 0
    %2518 = vmatprep.subr.bf16.mxu0 0
    %2519 = vmatpush1.bf16.msra.mxu0 0
    %2520 = vmatprep.subr.bf16.mxu0 0
    %2521 = vmatpush1.bf16.msra.mxu0 0
    %2522 = vmatprep.subr.bf16.mxu0 0
    %2523 = vmatpush1.bf16.msra.mxu0 0
    %2524 = vmatprep.subr.bf16.mxu0 0
    %2525 = vmatpush1.bf16.msra.mxu0 0
    %2526 = vmatprep.subr.bf16.mxu0 0
    %2527 = vmatpush1.bf16.msra.mxu0 0
    %2528 = vmatprep.subr.bf16.mxu0 0
    %2529 = vmatpush1.bf16.msra.mxu0 0
    %2530 = vmatprep.subr.bf16.mxu0 0
    %2531 = vmatpush1.bf16.msra.mxu0 0
    %2532 = vmatprep.subr.bf16.mxu0 0
    %2533 = vmatpush1.bf16.msra.mxu0 0
    %2534 = vmatprep.subr.bf16.mxu0 0
    %2535 = vmatpush1.bf16.msra.mxu0 0
    %2536 = vmatprep.subr.bf16.mxu0 0
    %2537 = vmatpush1.bf16.msra.mxu0 0
    %2538 = vmatprep.mubr.bf16.mxu0 0
    %2539 = vmatmul.mubr.bf16.gmra.mrb[0].mxu0 %v2176
    %v2540 = vpop.f32.mrb[0].mxu0
    %v2541 = vadd.f32 0.0, %v2540
    %v2542 = vpop.f32.mrb[0].mxu0
    %v2543 = vpop.f32.mrb[0].mxu0
    %v2544 = vadd.f32 0.0, %v2543
    %v2545 = vpop.f32.mrb[0].mxu0
    %2546 = vdwg.mxu0
    %v2547 = vpack.c.bf16 %v2544, %v2541
    %v2549 = vrot.slane %v2547, 2
    %v2551 = vrot.slane %v2547, 4
    %v2553 = vrot.slane %v2547, 6
    %2555 = vmatprep.subr.bf16.mxu0 0
    %2556 = vmatpush1.bf16.msra.mxu0 %v2359
    %2557 = vmatprep.subr.bf16.mxu0 0
    %2558 = vmatpush1.bf16.msra.mxu0 %v2360
    %2559 = vmatprep.subr.bf16.mxu0 0
    %2560 = vmatpush1.bf16.msra.mxu0 %v2361
    %2561 = vmatprep.subr.bf16.mxu0 0
    %2562 = vmatpush1.bf16.msra.mxu0 %v2362
    %2563 = vmatprep.subr.bf16.mxu0 0
    %2564 = vmatpush1.bf16.msra.mxu0 %v2363
    %2565 = vmatprep.subr.bf16.mxu0 0
    %2566 = vmatpush1.bf16.msra.mxu0 %v2364
    %2567 = vmatprep.subr.bf16.mxu0 0
    %2568 = vmatpush1.bf16.msra.mxu0 %v2365
    %2569 = vmatprep.subr.bf16.mxu0 0
    %2570 = vmatpush1.bf16.msra.mxu0 %v2366
    %2571 = vmatprep.subr.bf16.mxu0 0
    %2572 = vmatpush1.bf16.msra.mxu0 %v2367
    %2573 = vmatprep.subr.bf16.mxu0 0
    %2574 = vmatpush1.bf16.msra.mxu0 %v2368
    %2575 = vmatprep.subr.bf16.mxu0 0
    %2576 = vmatpush1.bf16.msra.mxu0 %v2369
    %2577 = vmatprep.subr.bf16.mxu0 0
    %2578 = vmatpush1.bf16.msra.mxu0 %v2370
    %2579 = vmatprep.subr.bf16.mxu0 0
    %2580 = vmatpush1.bf16.msra.mxu0 %v2371
    %2581 = vmatprep.subr.bf16.mxu0 0
    %2582 = vmatpush1.bf16.msra.mxu0 %v2372
    %2583 = vmatprep.subr.bf16.mxu0 0
    %2584 = vmatpush1.bf16.msra.mxu0 %v2373
    %2585 = vmatprep.subr.bf16.mxu0 0
    %2586 = vmatpush1.bf16.msra.mxu0 %v2374
    %2587 = vmatprep.mubr.bf16.mxu0 %v2549
    %2588 = vmatmul.mubr.bf16.gmra.mrb[0].mxu0 %v2547
    %v2589 = vpop.f32.mrb[0].mxu0
    %v2590 = vadd.f32 0.0, %v2589
    %v2591 = vpop.f32.mrb[0].mxu0
    %v2592 = vpop.f32.mrb[0].mxu0
    %v2593 = vpop.f32.mrb[0].mxu0
    %2594 = vdwg.mxu0
    %2595 = vmatprep.subr.bf16.mxu0 0
    %2596 = vmatpush1.bf16.msra.mxu0 %v2375
    %2597 = vmatprep.subr.bf16.mxu0 0
    %2598 = vmatpush1.bf16.msra.mxu0 %v2376
    %2599 = vmatprep.subr.bf16.mxu0 0
    %2600 = vmatpush1.bf16.msra.mxu0 %v2377
    %2601 = vmatprep.subr.bf16.mxu0 0
    %2602 = vmatpush1.bf16.msra.mxu0 %v2378
    %2603 = vmatprep.subr.bf16.mxu0 0
    %2604 = vmatpush1.bf16.msra.mxu0 %v2379
    %2605 = vmatprep.subr.bf16.mxu0 0
    %2606 = vmatpush1.bf16.msra.mxu0 %v2380
    %2607 = vmatprep.subr.bf16.mxu0 0
    %2608 = vmatpush1.bf16.msra.mxu0 %v2381
    %2609 = vmatprep.subr.bf16.mxu0 0
    %2610 = vmatpush1.bf16.msra.mxu0 %v2382
    %2611 = vmatprep.subr.bf16.mxu0 0
    %2612 = vmatpush1.bf16.msra.mxu0 %v2383
    %2613 = vmatprep.subr.bf16.mxu0 0
    %2614 = vmatpush1.bf16.msra.mxu0 %v2384
    %2615 = vmatprep.subr.bf16.mxu0 0
    %2616 = vmatpush1.bf16.msra.mxu0 %v2385
    %2617 = vmatprep.subr.bf16.mxu0 0
    %2618 = vmatpush1.bf16.msra.mxu0 %v2386
    %2619 = vmatprep.subr.bf16.mxu0 0
    %2620 = vmatpush1.bf16.msra.mxu0 %v2387
    %2621 = vmatprep.subr.bf16.mxu0 0
    %2622 = vmatpush1.bf16.msra.mxu0 %v2388
    %2623 = vmatprep.subr.bf16.mxu0 0
    %2624 = vmatpush1.bf16.msra.mxu0 %v2389
    %2625 = vmatprep.subr.bf16.mxu0 0
    %2626 = vmatpush1.bf16.msra.mxu0 %v2390
    %2627 = vmatprep.mubr.bf16.mxu0 %v2553
    %2628 = vmatmul.mubr.bf16.gmra.mrb[0].mxu0 %v2551
    %v2629 = vpop.f32.mrb[0].mxu0
    %v2630 = vadd.f32 %v2590, %v2629
    %v2631 = vpop.f32.mrb[0].mxu0
    %v2632 = vpop.f32.mrb[0].mxu0
    %v2633 = vpop.f32.mrb[0].mxu0
    %2634 = vdwg.mxu0
    %vm2635 = vcmask 1043456
    %v2636 = vsel %vm2635, %v2498, 0.0
    %v2637 = vrot.slane %v2636, 4
    %v2638 = vadd.f32 %v2636, %v2637
    %v2639 = vrot.slane %v2638, 2
    %v2640 = vadd.f32 %v2638, %v2639
    %v2641 = vrot.slane %v2640, 1
    %v2642 = vadd.f32 %v2640, %v2641
    %v2643 = vmul.f32 %v2498, %v2498
    %v2644 = vsel %vm2635, %v2643, 0.0
    %v2645 = vrot.slane %v2644, 4
    %v2646 = vadd.f32 %v2644, %v2645
    %v2647 = vrot.slane %v2646, 2
    %v2648 = vadd.f32 %v2646, %v2647
    %v2649 = vrot.slane %v2648, 1
    %v2650 = vadd.f32 %v2648, %v2649
    %v2651 = vsel %vm2635, %v2630, 0.0
    %v2652 = vrot.slane %v2651, 4
    %v2653 = vadd.f32 %v2651, %v2652
    %v2654 = vrot.slane %v2653, 2
    %v2655 = vadd.f32 %v2653, %v2654
    %v2656 = vrot.slane %v2655, 1
    %v2657 = vadd.f32 %v2655, %v2656
    %v2658 = vadd.f32 %v2642, %v2657
    %v2659 = vmul.f32 %v2630, %v2630
    %v2660 = vsel %vm2635, %v2659, 0.0
    %v2661 = vrot.slane %v2660, 4
    %v2662 = vadd.f32 %v2660, %v2661
    %v2663 = vrot.slane %v2662, 2
    %v2664 = vadd.f32 %v2662, %v2663
    %v2665 = vrot.slane %v2664, 1
    %v2666 = vadd.f32 %v2664, %v2665
    %v2667 = vadd.f32 %v2650, %v2666
    %v2668 = vsel %vm643, %v2658, %v2667
    %2669 = vmatprep.subr.mxu0 0.0
    %2670 = vmatpush1.msra.mxu0 %v2151
    %2671 = vmatprep.subr.mxu0 0.0
    %2672 = vmatpush1.msra.mxu0 %v2152
    %2673 = vmatprep.subr.mxu0 0.0
    %2674 = vmatpush1.msra.mxu0 %v2153
    %2675 = vmatprep.subr.mxu0 0.0
    %2676 = vmatpush1.msra.mxu0 %v2154
    %2677 = vmatprep.subr.mxu0 0.0
    %2678 = vmatpush1.msra.mxu0 %v2155
    %2679 = vmatprep.subr.mxu0 0.0
    %2680 = vmatpush1.msra.mxu0 %v2156
    %2681 = vmatprep.subr.mxu0 0.0
    %2682 = vmatpush1.msra.mxu0 %v2157
    %2683 = vmatprep.subr.mxu0 0.0
    %2684 = vmatpush1.msra.mxu0 %v2158
    %2685 = vmatprep.subr.mxu0 0.0
    %2686 = vmatpush1.msra.mxu0 %v2159
    %2687 = vmatprep.subr.mxu0 0.0
    %2688 = vmatpush1.msra.mxu0 %v2160
    %2689 = vmatprep.subr.mxu0 0.0
    %2690 = vmatpush1.msra.mxu0 %v2161
    %2691 = vmatprep.subr.mxu0 0.0
    %2692 = vmatpush1.msra.mxu0 %v2162
    %2693 = vmatprep.subr.mxu0 0.0
    %2694 = vmatpush1.msra.mxu0 %v2163
    %2695 = vmatprep.subr.mxu0 0.0
    %2696 = vmatpush1.msra.mxu0 %v2164
    %2697 = vmatprep.subr.mxu0 0.0
    %2698 = vmatpush1.msra.mxu0 %v2165
    %2699 = vmatprep.subr.mxu0 0.0
    %2700 = vmatpush1.msra.mxu0 %v2166
    %2701 = vmatprep.subr.mxu0 0.0
    %2702 = vmatpush1.msra.mxu0 0.0
    %2703 = vmatprep.subr.mxu0 0.0
    %2704 = vmatpush1.msra.mxu0 0.0
    %2705 = vmatprep.subr.mxu0 0.0
    %2706 = vmatpush1.msra.mxu0 0.0
    %2707 = vmatprep.subr.mxu0 0.0
    %2708 = vmatpush1.msra.mxu0 0.0
    %2709 = vmatprep.subr.mxu0 0.0
    %2710 = vmatpush1.msra.mxu0 0.0
    %2711 = vmatprep.subr.mxu0 0.0
    %2712 = vmatpush1.msra.mxu0 0.0
    %2713 = vmatprep.subr.mxu0 0.0
    %2714 = vmatpush1.msra.mxu0 0.0
    %2715 = vmatprep.subr.mxu0 0.0
    %2716 = vmatpush1.msra.mxu0 0.0
    %2717 = vmatprep.subr.mxu0 0.0
    %2718 = vmatpush1.msra.mxu0 0.0
    %2719 = vmatprep.subr.mxu0 0.0
    %2720 = vmatpush1.msra.mxu0 0.0
    %2721 = vmatprep.subr.mxu0 0.0
    %2722 = vmatpush1.msra.mxu0 0.0
    %2723 = vmatprep.subr.mxu0 0.0
    %2724 = vmatpush1.msra.mxu0 0.0
    %2725 = vmatprep.subr.mxu0 0.0
    %2726 = vmatpush1.msra.mxu0 0.0
    %2727 = vmatprep.subr.mxu0 0.0
    %2728 = vmatpush1.msra.mxu0 0.0
    %2729 = vmatprep.subr.mxu0 0.0
    %2730 = vmatpush1.msra.mxu0 0.0
    %2731 = vmatprep.subr.mxu0 0.0
    %2732 = vmatpush1.msra.mxu0 0.0
    %2733 = vmatprep.mubr.f32.mxu0 0.0
    %2734 = vmatmul.mubr.f32.gmra.mrb[0].mxu0 %v2668
    %v2735 = vpop.f32.mrb[0].mxu0
    %v2736 = vadd.f32 0.0, %v2735
    %v2737 = vpop.f32.mrb[0].mxu0
    %2738 = vdwg.mxu0
    %v2739 = vrcp.pop 32.0
    %v2740 = vmul.f32 %v2736, %v2739
    %v2741 = vmul.f32 %v2740, %v2740
    %v2743 = vrot.slane %v2741, 7
    %v2745 = vsub.f32 %v2740, %v2743
    %v2746 = vmax.f32 %v2745, 0.0
    %v2747 = vadd.f32 %v2746, 1e-05
    %v2748 = vrsqrt.pop %v2747
    %v2751 = vunpack.c.l.s4 1966171168
    %v2752 = vunpack.c.0.s8 %v2751
    %v2753 = vlaneseq
    %v2754 = vshrl.u32 %v2753, 7
    %v2755 = vsub.s32 %v2752, %v2754
    %v2756 = vrot.slane %v2748, %v2755
    %v2757 = vcombine.high %v2756, %v2756
    %v2759 = vunpack.c.l.s4 1966171168
    %v2760 = vunpack.c.0.s8 %v2759
    %v2761 = vlaneseq
    %v2762 = vshrl.u32 %v2761, 7
    %v2763 = vsub.s32 %v2760, %v2762
    %v2764 = vrot.slane %v2757, %v2763
    %v2766 = vmul.f32 %v2167, %v2764
    %v2767 = vmul.f32 %v2740, %v2766
    %v2768 = vsub.f32 %v2168, %v2767
    %v2770 = vlaneseq
    %v2771 = vshrl.u32 %v2770, 7
    %v2772 = vsub.s32 0, %v2771
    %v2773 = vrot.slane %v2766, %v2772
    %v2775 = vmul.f32 %v2498, %v2773
    %v2777 = vlaneseq
    %v2778 = vshrl.u32 %v2777, 7
    %v2779 = vsub.s32 0, %v2778
    %v2780 = vrot.slane %v2768, %v2779
    %v2782 = vadd.f32 %v2775, %v2780
    %v2783 = vmax.f32 %v2782, 0.0
    %v2784 = vmul.f32 %v2630, %v2773
    %v2785 = vadd.f32 %v2784, %v2780
    %v2786 = vmax.f32 %v2785, 0.0
    %v2787 = vpack.c.bf16 %v2783, %v2783
    %v2789 = vshrl.u32 %v2787, 16
    %v2791 = vrot.slane %v2789, 7
    %v2792 = vshll.u32 %v2787, 16
    %v2794 = vor.u32 %v2791, %v2792
    %v2796 = vsel %vm1323, 0, %v2794
    %vm2797 = vcmask 1042432
    %vm2798 = vsmask.f32 2304
    %vm2799 = vmand %vm2797, %vm2798
    %v2800 = vsel %vm2799, %v2796, 0
    %v2801 = vpack.c.bf16 %v2786, %v2786
    %v2803 = vshrl.u32 %v2801, 16
    %v2805 = vrot.slane %v2803, 7
    %v2806 = vshll.u32 %v2801, 16
    %v2808 = vor.u32 %v2805, %v2806
    %v2810 = vsel %vm1323, 0, %v2808
    %v2811 = vsel %vm2799, %v2810, 0
    %v2812 = vld [vmem:[%s33] sm:$0xf]
    %v2813 = vld [vmem:[%s35] sm:$0xf]
    %v2814 = vld [vmem:[%s35 + $0x4] sm:$0xf]
    %v2815 = vld [vmem:[%s35 + $0x8] sm:$0xf]
    %v2816 = vld [vmem:[%s35 + $0xc] sm:$0xf]
    %v2817 = vld [vmem:[%s35 + $0x10] sm:$0xf]
    %v2818 = vld [vmem:[%s35 + $0x14] sm:$0xf]
    %v2819 = vld [vmem:[%s35 + $0x18] sm:$0xf]
    %v2820 = vld [vmem:[%s35 + $0x1c] sm:$0xf]
    %v2821 = vld [vmem:[%s35 + $0x20] sm:$0xf]
    %v2822 = vld [vmem:[%s35 + $0x24] sm:$0xf]
    %v2823 = vld [vmem:[%s35 + $0x28] sm:$0xf]
    %v2824 = vld [vmem:[%s35 + $0x2c] sm:$0xf]
    %v2825 = vld [vmem:[%s35 + $0x30] sm:$0xf]
    %v2826 = vld [vmem:[%s35 + $0x34] sm:$0xf]
    %v2827 = vld [vmem:[%s35 + $0x38] sm:$0xf]
    %v2828 = vld [vmem:[%s35 + $0x3c] sm:$0xf]
    %v2829 = vld [vmem:[%s35 + $0x40] sm:$0xf]
    %v2830 = vld [vmem:[%s35 + $0x44] sm:$0xf]
    %v2831 = vld [vmem:[%s35 + $0x48] sm:$0xf]
    %v2832 = vld [vmem:[%s35 + $0x4c] sm:$0xf]
    %v2833 = vld [vmem:[%s35 + $0x50] sm:$0xf]
    %v2834 = vld [vmem:[%s35 + $0x54] sm:$0xf]
    %v2835 = vld [vmem:[%s35 + $0x58] sm:$0xf]
    %v2836 = vld [vmem:[%s35 + $0x5c] sm:$0xf]
    %v2837 = vld [vmem:[%s35 + $0x60] sm:$0xf]
    %v2838 = vld [vmem:[%s35 + $0x64] sm:$0xf]
    %v2839 = vld [vmem:[%s35 + $0x68] sm:$0xf]
    %v2840 = vld [vmem:[%s35 + $0x6c] sm:$0xf]
    %v2841 = vld [vmem:[%s35 + $0x70] sm:$0xf]
    %v2842 = vld [vmem:[%s35 + $0x74] sm:$0xf]
    %v2843 = vld [vmem:[%s35 + $0x78] sm:$0xf]
    %v2844 = vld [vmem:[%s35 + $0x7c] sm:$0xf]
    %v2845 = vld [vmem:[%s35 + $0x80] sm:$0xf]
    %v2846 = vld [vmem:[%s35 + $0x84] sm:$0xf]
    %v2847 = vld [vmem:[%s35 + $0x88] sm:$0xf]
    %v2848 = vld [vmem:[%s35 + $0x8c] sm:$0xf]
    %v2849 = vld [vmem:[%s35 + $0x90] sm:$0xf]
    %v2850 = vld [vmem:[%s35 + $0x94] sm:$0xf]
    %v2851 = vld [vmem:[%s35 + $0x98] sm:$0xf]
    %v2852 = vld [vmem:[%s35 + $0x9c] sm:$0xf]
    %v2853 = vld [vmem:[%s35 + $0xa0] sm:$0xf]
    %v2854 = vld [vmem:[%s35 + $0xa4] sm:$0xf]
    %v2855 = vld [vmem:[%s35 + $0xa8] sm:$0xf]
    %v2856 = vld [vmem:[%s35 + $0xac] sm:$0xf]
    %v2857 = vld [vmem:[%s35 + $0xb0] sm:$0xf]
    %v2858 = vld [vmem:[%s35 + $0xb4] sm:$0xf]
    %v2859 = vld [vmem:[%s35 + $0xb8] sm:$0xf]
    %v2860 = vld [vmem:[%s35 + $0xbc] sm:$0xf]
    %v2861 = vld [vmem:[%s35 + $0xc0] sm:$0xf]
    %v2862 = vld [vmem:[%s35 + $0xc4] sm:$0xf]
    %v2863 = vld [vmem:[%s35 + $0xc8] sm:$0xf]
    %v2864 = vld [vmem:[%s35 + $0xcc] sm:$0xf]
    %v2865 = vld [vmem:[%s35 + $0xd0] sm:$0xf]
    %v2866 = vld [vmem:[%s35 + $0xd4] sm:$0xf]
    %v2867 = vld [vmem:[%s35 + $0xd8] sm:$0xf]
    %v2868 = vld [vmem:[%s35 + $0xdc] sm:$0xf]
    %v2869 = vld [vmem:[%s35 + $0xe0] sm:$0xf]
    %v2870 = vld [vmem:[%s35 + $0xe4] sm:$0xf]
    %v2871 = vld [vmem:[%s35 + $0xe8] sm:$0xf]
    %v2872 = vld [vmem:[%s35 + $0xec] sm:$0xf]
    %v2873 = vld [vmem:[%s35 + $0xf0] sm:$0xf]
    %v2874 = vld [vmem:[%s35 + $0xf4] sm:$0xf]
    %v2875 = vld [vmem:[%s35 + $0xf8] sm:$0xf]
    %v2876 = vld [vmem:[%s35 + $0xfc] sm:$0xf]
    %v2877 = vld [vmem:[#allocation13] sm:$0xff]
    %v2878 = vld [vmem:[#allocation13 + $0x8] sm:$0xff]
    %v2879 = vld [vmem:[#allocation13 + $0x10] sm:$0xff]
    %v2880 = vld [vmem:[#allocation13 + $0x18] sm:$0xff]
    %v2881 = vld [vmem:[#allocation13 + $0x20] sm:$0xff]
    %v2882 = vld [vmem:[#allocation13 + $0x28] sm:$0xff]
    %v2883 = vld [vmem:[#allocation13 + $0x30] sm:$0xff]
    %v2884 = vld [vmem:[#allocation13 + $0x38] sm:$0xff]
    %v2885 = vld [vmem:[#allocation13 + $0x40] sm:$0xff]
    %v2886 = vld [vmem:[#allocation13 + $0x48] sm:$0xff]
    %v2887 = vld [vmem:[#allocation13 + $0x50] sm:$0xff]
    %v2888 = vld [vmem:[#allocation13 + $0x58] sm:$0xff]
    %v2889 = vld [vmem:[#allocation13 + $0x60] sm:$0xff]
    %v2890 = vld [vmem:[#allocation13 + $0x68] sm:$0xff]
    %v2891 = vld [vmem:[#allocation13 + $0x70] sm:$0xff]
    %v2892 = vld [vmem:[#allocation13 + $0x78] sm:$0xff]
    %v2893 = vld [vmem:[#allocation15] sm:$0x1]
    %v2894 = vld [vmem:[#allocation16] sm:$0x1]
    %vm2895 = vcmask 48128
    %v2897 = vsel %vm2895, %v2812, 0
    %vm2899 = vcmask 1042432
    %v2901 = vsel %vm2899, %v2800, 0
    %2903 = vmatprep.subr.bf16.mxu0 0
    %2904 = vmatpush1.bf16.msra.mxu0 %v2901
    %2905 = vmatprep.subr.bf16.mxu0 0
    %2906 = vmatpush1.bf16.msra.mxu0 0
    %2907 = vmatprep.subr.bf16.mxu0 0
    %2908 = vmatpush1.bf16.msra.mxu0 0
    %2909 = vmatprep.subr.bf16.mxu0 0
    %2910 = vmatpush1.bf16.msra.mxu0 0
    %2911 = vmatprep.subr.bf16.mxu0 0
    %2912 = vmatpush1.bf16.msra.mxu0 0
    %2913 = vmatprep.subr.bf16.mxu0 0
    %2914 = vmatpush1.bf16.msra.mxu0 0
    %2915 = vmatprep.subr.bf16.mxu0 0
    %2916 = vmatpush1.bf16.msra.mxu0 0
    %2917 = vmatprep.subr.bf16.mxu0 0
    %2918 = vmatpush1.bf16.msra.mxu0 0
    %2919 = vmatprep.subr.bf16.mxu0 0
    %2920 = vmatpush1.bf16.msra.mxu0 0
    %2921 = vmatprep.subr.bf16.mxu0 0
    %2922 = vmatpush1.bf16.msra.mxu0 0
    %2923 = vmatprep.subr.bf16.mxu0 0
    %2924 = vmatpush1.bf16.msra.mxu0 0
    %2925 = vmatprep.subr.bf16.mxu0 0
    %2926 = vmatpush1.bf16.msra.mxu0 0
    %2927 = vmatprep.subr.bf16.mxu0 0
    %2928 = vmatpush1.bf16.msra.mxu0 0
    %2929 = vmatprep.subr.bf16.mxu0 0
    %2930 = vmatpush1.bf16.msra.mxu0 0
    %2931 = vmatprep.subr.bf16.mxu0 0
    %2932 = vmatpush1.bf16.msra.mxu0 0
    %2933 = vmatprep.subr.bf16.mxu0 0
    %2934 = vmatpush1.bf16.msra.mxu0 0
    %2935 = vmatprep.mubr.bf16.mxu0 0
    %2936 = vmatmul.mubr.bf16.gmra.mrb[0].mxu0 %v2897
    %v2937 = vpop.f32.mrb[0].mxu0
    %v2938 = vadd.f32 0.0, %v2937
    %v2939 = vpop.f32.mrb[0].mxu0
    %v2940 = vpop.f32.mrb[0].mxu0
    %v2941 = vpop.f32.mrb[0].mxu0
    %2942 = vdwg.mxu0
    %v2943 = vpack.c.bf16 %v2938, %v2938
    %v2945 = vrot.slane %v2943, 1
    %v2947 = vrot.slane %v2943, 2
    %v2949 = vrot.slane %v2943, 3
    %v3015 = vunpack.c.l.b16 %v2813
    %v3016 = vunpack.c.l.b16 %v2814
    %v3017 = vunpack.c.l.b16 %v2815
    %v3018 = vunpack.c.l.b16 %v2816
    %v3019 = vunpack.c.l.b16 %v2817
    %v3020 = vunpack.c.l.b16 %v2818
    %v3021 = vunpack.c.l.b16 %v2819
    %v3022 = vunpack.c.l.b16 %v2820
    %v3023 = vunpack.c.l.b16 %v2821
    %v3024 = vunpack.c.l.b16 %v2822
    %v3025 = vunpack.c.l.b16 %v2823
    %v3026 = vunpack.c.l.b16 %v2824
    %v3027 = vunpack.c.l.b16 %v2825
    %v3028 = vunpack.c.l.b16 %v2826
    %v3029 = vunpack.c.l.b16 %v2827
    %v3030 = vunpack.c.l.b16 %v2828
    %v3031 = vunpack.c.l.b16 %v2829
    %v3032 = vunpack.c.l.b16 %v2830
    %v3033 = vunpack.c.l.b16 %v2831
    %v3034 = vunpack.c.l.b16 %v2832
    %v3035 = vunpack.c.l.b16 %v2833
    %v3036 = vunpack.c.l.b16 %v2834
    %v3037 = vunpack.c.l.b16 %v2835
    %v3038 = vunpack.c.l.b16 %v2836
    %v3039 = vunpack.c.l.b16 %v2837
    %v3040 = vunpack.c.l.b16 %v2838
    %v3041 = vunpack.c.l.b16 %v2839
    %v3042 = vunpack.c.l.b16 %v2840
    %v3043 = vunpack.c.l.b16 %v2841
    %v3044 = vunpack.c.l.b16 %v2842
    %v3045 = vunpack.c.l.b16 %v2843
    %v3046 = vunpack.c.l.b16 %v2844
    %v3047 = vunpack.c.l.b16 %v2845
    %v3048 = vunpack.c.l.b16 %v2846
    %v3049 = vunpack.c.l.b16 %v2847
    %v3050 = vunpack.c.l.b16 %v2848
    %v3051 = vunpack.c.l.b16 %v2849
    %v3052 = vunpack.c.l.b16 %v2850
    %v3053 = vunpack.c.l.b16 %v2851
    %v3054 = vunpack.c.l.b16 %v2852
    %v3055 = vunpack.c.l.b16 %v2853
    %v3056 = vunpack.c.l.b16 %v2854
    %v3057 = vunpack.c.l.b16 %v2855
    %v3058 = vunpack.c.l.b16 %v2856
    %v3059 = vunpack.c.l.b16 %v2857
    %v3060 = vunpack.c.l.b16 %v2858
    %v3061 = vunpack.c.l.b16 %v2859
    %v3062 = vunpack.c.l.b16 %v2860
    %v3063 = vunpack.c.l.b16 %v2861
    %v3064 = vunpack.c.l.b16 %v2862
    %v3065 = vunpack.c.l.b16 %v2863
    %v3066 = vunpack.c.l.b16 %v2864
    %v3067 = vunpack.c.l.b16 %v2865
    %v3068 = vunpack.c.l.b16 %v2866
    %v3069 = vunpack.c.l.b16 %v2867
    %v3070 = vunpack.c.l.b16 %v2868
    %v3071 = vunpack.c.l.b16 %v2869
    %v3072 = vunpack.c.l.b16 %v2870
    %v3073 = vunpack.c.l.b16 %v2871
    %v3074 = vunpack.c.l.b16 %v2872
    %v3075 = vunpack.c.l.b16 %v2873
    %v3076 = vunpack.c.l.b16 %v2874
    %v3077 = vunpack.c.l.b16 %v2875
    %v3078 = vunpack.c.l.b16 %v2876
    %v3079 = vpack.c.b16 %v3016, %v3015
    %v3080 = vpack.c.b16 %v3018, %v3017
    %v3081 = vpack.c.b16 %v3020, %v3019
    %v3082 = vpack.c.b16 %v3022, %v3021
    %v3083 = vpack.c.b16 %v3024, %v3023
    %v3084 = vpack.c.b16 %v3026, %v3025
    %v3085 = vpack.c.b16 %v3028, %v3027
    %v3086 = vpack.c.b16 %v3030, %v3029
    %v3087 = vpack.c.b16 %v3032, %v3031
    %v3088 = vpack.c.b16 %v3034, %v3033
    %v3089 = vpack.c.b16 %v3036, %v3035
    %v3090 = vpack.c.b16 %v3038, %v3037
    %v3091 = vpack.c.b16 %v3040, %v3039
    %v3092 = vpack.c.b16 %v3042, %v3041
    %v3093 = vpack.c.b16 %v3044, %v3043
    %v3094 = vpack.c.b16 %v3046, %v3045
    %v3095 = vpack.c.b16 %v3048, %v3047
    %v3096 = vpack.c.b16 %v3050, %v3049
    %v3097 = vpack.c.b16 %v3052, %v3051
    %v3098 = vpack.c.b16 %v3054, %v3053
    %v3099 = vpack.c.b16 %v3056, %v3055
    %v3100 = vpack.c.b16 %v3058, %v3057
    %v3101 = vpack.c.b16 %v3060, %v3059
    %v3102 = vpack.c.b16 %v3062, %v3061
    %v3103 = vpack.c.b16 %v3064, %v3063
    %v3104 = vpack.c.b16 %v3066, %v3065
    %v3105 = vpack.c.b16 %v3068, %v3067
    %v3106 = vpack.c.b16 %v3070, %v3069
    %v3107 = vpack.c.b16 %v3072, %v3071
    %v3108 = vpack.c.b16 %v3074, %v3073
    %v3109 = vpack.c.b16 %v3076, %v3075
    %v3110 = vpack.c.b16 %v3078, %v3077
    %3143 = vmatprep.subr.bf16.mxu0 0
    %3144 = vmatpush1.bf16.msra.mxu0 %v3079
    %3145 = vmatprep.subr.bf16.mxu0 0
    %3146 = vmatpush1.bf16.msra.mxu0 %v3080
    %3147 = vmatprep.subr.bf16.mxu0 0
    %3148 = vmatpush1.bf16.msra.mxu0 %v3081
    %3149 = vmatprep.subr.bf16.mxu0 0
    %3150 = vmatpush1.bf16.msra.mxu0 %v3082
    %3151 = vmatprep.subr.bf16.mxu0 0
    %3152 = vmatpush1.bf16.msra.mxu0 %v3083
    %3153 = vmatprep.subr.bf16.mxu0 0
    %3154 = vmatpush1.bf16.msra.mxu0 %v3084
    %3155 = vmatprep.subr.bf16.mxu0 0
    %3156 = vmatpush1.bf16.msra.mxu0 %v3085
    %3157 = vmatprep.subr.bf16.mxu0 0
    %3158 = vmatpush1.bf16.msra.mxu0 %v3086
    %3159 = vmatprep.subr.bf16.mxu0 0
    %3160 = vmatpush1.bf16.msra.mxu0 %v3087
    %3161 = vmatprep.subr.bf16.mxu0 0
    %3162 = vmatpush1.bf16.msra.mxu0 %v3088
    %3163 = vmatprep.subr.bf16.mxu0 0
    %3164 = vmatpush1.bf16.msra.mxu0 %v3089
    %3165 = vmatprep.subr.bf16.mxu0 0
    %3166 = vmatpush1.bf16.msra.mxu0 %v3090
    %3167 = vmatprep.subr.bf16.mxu0 0
    %3168 = vmatpush1.bf16.msra.mxu0 %v3091
    %3169 = vmatprep.subr.bf16.mxu0 0
    %3170 = vmatpush1.bf16.msra.mxu0 %v3092
    %3171 = vmatprep.subr.bf16.mxu0 0
    %3172 = vmatpush1.bf16.msra.mxu0 %v3093
    %3173 = vmatprep.subr.bf16.mxu0 0
    %3174 = vmatpush1.bf16.msra.mxu0 %v3094
    %3175 = vmatprep.mubr.bf16.mxu0 %v2945
    %3176 = vmatmul.mubr.bf16.gmra.mrb[0].mxu0 %v2943
    %v3177 = vpop.f32.mrb[0].mxu0
    %v3178 = vadd.f32 0.0, %v3177
    %v3179 = vpop.f32.mrb[0].mxu0
    %v3180 = vpop.f32.mrb[0].mxu0
    %v3181 = vpop.f32.mrb[0].mxu0
    %3182 = vdwg.mxu0
    %3183 = vmatprep.subr.bf16.mxu0 0
    %3184 = vmatpush1.bf16.msra.mxu0 %v3095
    %3185 = vmatprep.subr.bf16.mxu0 0
    %3186 = vmatpush1.bf16.msra.mxu0 %v3096
    %3187 = vmatprep.subr.bf16.mxu0 0
    %3188 = vmatpush1.bf16.msra.mxu0 %v3097
    %3189 = vmatprep.subr.bf16.mxu0 0
    %3190 = vmatpush1.bf16.msra.mxu0 %v3098
    %3191 = vmatprep.subr.bf16.mxu0 0
    %3192 = vmatpush1.bf16.msra.mxu0 %v3099
    %3193 = vmatprep.subr.bf16.mxu0 0
    %3194 = vmatpush1.bf16.msra.mxu0 %v3100
    %3195 = vmatprep.subr.bf16.mxu0 0
    %3196 = vmatpush1.bf16.msra.mxu0 %v3101
    %3197 = vmatprep.subr.bf16.mxu0 0
    %3198 = vmatpush1.bf16.msra.mxu0 %v3102
    %3199 = vmatprep.subr.bf16.mxu0 0
    %3200 = vmatpush1.bf16.msra.mxu0 %v3103
    %3201 = vmatprep.subr.bf16.mxu0 0
    %3202 = vmatpush1.bf16.msra.mxu0 %v3104
    %3203 = vmatprep.subr.bf16.mxu0 0
    %3204 = vmatpush1.bf16.msra.mxu0 %v3105
    %3205 = vmatprep.subr.bf16.mxu0 0
    %3206 = vmatpush1.bf16.msra.mxu0 %v3106
    %3207 = vmatprep.subr.bf16.mxu0 0
    %3208 = vmatpush1.bf16.msra.mxu0 %v3107
    %3209 = vmatprep.subr.bf16.mxu0 0
    %3210 = vmatpush1.bf16.msra.mxu0 %v3108
    %3211 = vmatprep.subr.bf16.mxu0 0
    %3212 = vmatpush1.bf16.msra.mxu0 %v3109
    %3213 = vmatprep.subr.bf16.mxu0 0
    %3214 = vmatpush1.bf16.msra.mxu0 %v3110
    %3215 = vmatprep.mubr.bf16.mxu0 %v2949
    %3216 = vmatmul.mubr.bf16.gmra.mrb[0].mxu0 %v2947
    %v3217 = vpop.f32.mrb[0].mxu0
    %v3218 = vadd.f32 %v3178, %v3217
    %v3219 = vpop.f32.mrb[0].mxu0
    %v3220 = vpop.f32.mrb[0].mxu0
    %v3221 = vpop.f32.mrb[0].mxu0
    %3222 = vdwg.mxu0
    %v3224 = vsel %vm2899, %v2811, 0
    %3226 = vmatprep.subr.bf16.mxu0 0
    %3227 = vmatpush1.bf16.msra.mxu0 %v3224
    %3228 = vmatprep.subr.bf16.mxu0 0
    %3229 = vmatpush1.bf16.msra.mxu0 0
    %3230 = vmatprep.subr.bf16.mxu0 0
    %3231 = vmatpush1.bf16.msra.mxu0 0
    %3232 = vmatprep.subr.bf16.mxu0 0
    %3233 = vmatpush1.bf16.msra.mxu0 0
    %3234 = vmatprep.subr.bf16.mxu0 0
    %3235 = vmatpush1.bf16.msra.mxu0 0
    %3236 = vmatprep.subr.bf16.mxu0 0
    %3237 = vmatpush1.bf16.msra.mxu0 0
    %3238 = vmatprep.subr.bf16.mxu0 0
    %3239 = vmatpush1.bf16.msra.mxu0 0
    %3240 = vmatprep.subr.bf16.mxu0 0
    %3241 = vmatpush1.bf16.msra.mxu0 0
    %3242 = vmatprep.subr.bf16.mxu0 0
    %3243 = vmatpush1.bf16.msra.mxu0 0
    %3244 = vmatprep.subr.bf16.mxu0 0
    %3245 = vmatpush1.bf16.msra.mxu0 0
    %3246 = vmatprep.subr.bf16.mxu0 0
    %3247 = vmatpush1.bf16.msra.mxu0 0
    %3248 = vmatprep.subr.bf16.mxu0 0
    %3249 = vmatpush1.bf16.msra.mxu0 0
    %3250 = vmatprep.subr.bf16.mxu0 0
    %3251 = vmatpush1.bf16.msra.mxu0 0
    %3252 = vmatprep.subr.bf16.mxu0 0
    %3253 = vmatpush1.bf16.msra.mxu0 0
    %3254 = vmatprep.subr.bf16.mxu0 0
    %3255 = vmatpush1.bf16.msra.mxu0 0
    %3256 = vmatprep.subr.bf16.mxu0 0
    %3257 = vmatpush1.bf16.msra.mxu0 0
    %3258 = vmatprep.mubr.bf16.mxu0 0
    %3259 = vmatmul.mubr.bf16.gmra.mrb[0].mxu0 %v2897
    %v3260 = vpop.f32.mrb[0].mxu0
    %v3261 = vadd.f32 0.0, %v3260
    %v3262 = vpop.f32.mrb[0].mxu0
    %v3263 = vpop.f32.mrb[0].mxu0
    %v3264 = vpop.f32.mrb[0].mxu0
    %3265 = vdwg.mxu0
    %v3266 = vpack.c.bf16 %v3261, %v3261
    %v3268 = vrot.slane %v3266, 1
    %v3270 = vrot.slane %v3266, 2
    %v3272 = vrot.slane %v3266, 3
    %3274 = vmatprep.subr.bf16.mxu0 0
    %3275 = vmatpush1.bf16.msra.mxu0 %v3079
    %3276 = vmatprep.subr.bf16.mxu0 0
    %3277 = vmatpush1.bf16.msra.mxu0 %v3080
    %3278 = vmatprep.subr.bf16.mxu0 0
    %3279 = vmatpush1.bf16.msra.mxu0 %v3081
    %3280 = vmatprep.subr.bf16.mxu0 0
    %3281 = vmatpush1.bf16.msra.mxu0 %v3082
    %3282 = vmatprep.subr.bf16.mxu0 0
    %3283 = vmatpush1.bf16.msra.mxu0 %v3083
    %3284 = vmatprep.subr.bf16.mxu0 0
    %3285 = vmatpush1.bf16.msra.mxu0 %v3084
    %3286 = vmatprep.subr.bf16.mxu0 0
    %3287 = vmatpush1.bf16.msra.mxu0 %v3085
    %3288 = vmatprep.subr.bf16.mxu0 0
    %3289 = vmatpush1.bf16.msra.mxu0 %v3086
    %3290 = vmatprep.subr.bf16.mxu0 0
    %3291 = vmatpush1.bf16.msra.mxu0 %v3087
    %3292 = vmatprep.subr.bf16.mxu0 0
    %3293 = vmatpush1.bf16.msra.mxu0 %v3088
    %3294 = vmatprep.subr.bf16.mxu0 0
    %3295 = vmatpush1.bf16.msra.mxu0 %v3089
    %3296 = vmatprep.subr.bf16.mxu0 0
    %3297 = vmatpush1.bf16.msra.mxu0 %v3090
    %3298 = vmatprep.subr.bf16.mxu0 0
    %3299 = vmatpush1.bf16.msra.mxu0 %v3091
    %3300 = vmatprep.subr.bf16.mxu0 0
    %3301 = vmatpush1.bf16.msra.mxu0 %v3092
    %3302 = vmatprep.subr.bf16.mxu0 0
    %3303 = vmatpush1.bf16.msra.mxu0 %v3093
    %3304 = vmatprep.subr.bf16.mxu0 0
    %3305 = vmatpush1.bf16.msra.mxu0 %v3094
    %3306 = vmatprep.mubr.bf16.mxu0 %v3268
    %3307 = vmatmul.mubr.bf16.gmra.mrb[0].mxu0 %v3266
    %v3308 = vpop.f32.mrb[0].mxu0
    %v3309 = vadd.f32 0.0, %v3308
    %v3310 = vpop.f32.mrb[0].mxu0
    %v3311 = vpop.f32.mrb[0].mxu0
    %v3312 = vpop.f32.mrb[0].mxu0
    %3313 = vdwg.mxu0
    %3314 = vmatprep.subr.bf16.mxu0 0
    %3315 = vmatpush1.bf16.msra.mxu0 %v3095
    %3316 = vmatprep.subr.bf16.mxu0 0
    %3317 = vmatpush1.bf16.msra.mxu0 %v3096
    %3318 = vmatprep.subr.bf16.mxu0 0
    %3319 = vmatpush1.bf16.msra.mxu0 %v3097
    %3320 = vmatprep.subr.bf16.mxu0 0
    %3321 = vmatpush1.bf16.msra.mxu0 %v3098
    %3322 = vmatprep.subr.bf16.mxu0 0
    %3323 = vmatpush1.bf16.msra.mxu0 %v3099
    %3324 = vmatprep.subr.bf16.mxu0 0
    %3325 = vmatpush1.bf16.msra.mxu0 %v3100
    %3326 = vmatprep.subr.bf16.mxu0 0
    %3327 = vmatpush1.bf16.msra.mxu0 %v3101
    %3328 = vmatprep.subr.bf16.mxu0 0
    %3329 = vmatpush1.bf16.msra.mxu0 %v3102
    %3330 = vmatprep.subr.bf16.mxu0 0
    %3331 = vmatpush1.bf16.msra.mxu0 %v3103
    %3332 = vmatprep.subr.bf16.mxu0 0
    %3333 = vmatpush1.bf16.msra.mxu0 %v3104
    %3334 = vmatprep.subr.bf16.mxu0 0
    %3335 = vmatpush1.bf16.msra.mxu0 %v3105
    %3336 = vmatprep.subr.bf16.mxu0 0
    %3337 = vmatpush1.bf16.msra.mxu0 %v3106
    %3338 = vmatprep.subr.bf16.mxu0 0
    %3339 = vmatpush1.bf16.msra.mxu0 %v3107
    %3340 = vmatprep.subr.bf16.mxu0 0
    %3341 = vmatpush1.bf16.msra.mxu0 %v3108
    %3342 = vmatprep.subr.bf16.mxu0 0
    %3343 = vmatpush1.bf16.msra.mxu0 %v3109
    %3344 = vmatprep.subr.bf16.mxu0 0
    %3345 = vmatpush1.bf16.msra.mxu0 %v3110
    %3346 = vmatprep.mubr.bf16.mxu0 %v3272
    %3347 = vmatmul.mubr.bf16.gmra.mrb[0].mxu0 %v3270
    %v3348 = vpop.f32.mrb[0].mxu0
    %v3349 = vadd.f32 %v3309, %v3348
    %v3350 = vpop.f32.mrb[0].mxu0
    %v3351 = vpop.f32.mrb[0].mxu0
    %v3352 = vpop.f32.mrb[0].mxu0
    %3353 = vdwg.mxu0
    %vm3354 = vcmask 1041408
    %v3355 = vsel %vm3354, %v3218, 0.0
    %v3356 = vrot.slane %v3355, 4
    %v3357 = vadd.f32 %v3355, %v3356
    %v3358 = vrot.slane %v3357, 2
    %v3359 = vadd.f32 %v3357, %v3358
    %v3360 = vrot.slane %v3359, 1
    %v3361 = vadd.f32 %v3359, %v3360
    %v3362 = vmul.f32 %v3218, %v3218
    %v3363 = vsel %vm3354, %v3362, 0.0
    %v3364 = vrot.slane %v3363, 4
    %v3365 = vadd.f32 %v3363, %v3364
    %v3366 = vrot.slane %v3365, 2
    %v3367 = vadd.f32 %v3365, %v3366
    %v3368 = vrot.slane %v3367, 1
    %v3369 = vadd.f32 %v3367, %v3368
    %v3370 = vsel %vm3354, %v3349, 0.0
    %v3371 = vrot.slane %v3370, 4
    %v3372 = vadd.f32 %v3370, %v3371
    %v3373 = vrot.slane %v3372, 2
    %v3374 = vadd.f32 %v3372, %v3373
    %v3375 = vrot.slane %v3374, 1
    %v3376 = vadd.f32 %v3374, %v3375
    %v3377 = vadd.f32 %v3361, %v3376
    %v3378 = vmul.f32 %v3349, %v3349
    %v3379 = vsel %vm3354, %v3378, 0.0
    %v3380 = vrot.slane %v3379, 4
    %v3381 = vadd.f32 %v3379, %v3380
    %v3382 = vrot.slane %v3381, 2
    %v3383 = vadd.f32 %v3381, %v3382
    %v3384 = vrot.slane %v3383, 1
    %v3385 = vadd.f32 %v3383, %v3384
    %v3386 = vadd.f32 %v3369, %v3385
    %v3387 = vsel %vm643, %v3377, %v3386
    %3388 = vmatprep.subr.mxu0 0.0
    %3389 = vmatpush1.msra.mxu0 %v2877
    %3390 = vmatprep.subr.mxu0 0.0
    %3391 = vmatpush1.msra.mxu0 %v2878
    %3392 = vmatprep.subr.mxu0 0.0
    %3393 = vmatpush1.msra.mxu0 %v2879
    %3394 = vmatprep.subr.mxu0 0.0
    %3395 = vmatpush1.msra.mxu0 %v2880
    %3396 = vmatprep.subr.mxu0 0.0
    %3397 = vmatpush1.msra.mxu0 %v2881
    %3398 = vmatprep.subr.mxu0 0.0
    %3399 = vmatpush1.msra.mxu0 %v2882
    %3400 = vmatprep.subr.mxu0 0.0
    %3401 = vmatpush1.msra.mxu0 %v2883
    %3402 = vmatprep.subr.mxu0 0.0
    %3403 = vmatpush1.msra.mxu0 %v2884
    %3404 = vmatprep.subr.mxu0 0.0
    %3405 = vmatpush1.msra.mxu0 %v2885
    %3406 = vmatprep.subr.mxu0 0.0
    %3407 = vmatpush1.msra.mxu0 %v2886
    %3408 = vmatprep.subr.mxu0 0.0
    %3409 = vmatpush1.msra.mxu0 %v2887
    %3410 = vmatprep.subr.mxu0 0.0
    %3411 = vmatpush1.msra.mxu0 %v2888
    %3412 = vmatprep.subr.mxu0 0.0
    %3413 = vmatpush1.msra.mxu0 %v2889
    %3414 = vmatprep.subr.mxu0 0.0
    %3415 = vmatpush1.msra.mxu0 %v2890
    %3416 = vmatprep.subr.mxu0 0.0
    %3417 = vmatpush1.msra.mxu0 %v2891
    %3418 = vmatprep.subr.mxu0 0.0
    %3419 = vmatpush1.msra.mxu0 %v2892
    %3420 = vmatprep.subr.mxu0 0.0
    %3421 = vmatpush1.msra.mxu0 0.0
    %3422 = vmatprep.subr.mxu0 0.0
    %3423 = vmatpush1.msra.mxu0 0.0
    %3424 = vmatprep.subr.mxu0 0.0
    %3425 = vmatpush1.msra.mxu0 0.0
    %3426 = vmatprep.subr.mxu0 0.0
    %3427 = vmatpush1.msra.mxu0 0.0
    %3428 = vmatprep.subr.mxu0 0.0
    %3429 = vmatpush1.msra.mxu0 0.0
    %3430 = vmatprep.subr.mxu0 0.0
    %3431 = vmatpush1.msra.mxu0 0.0
    %3432 = vmatprep.subr.mxu0 0.0
    %3433 = vmatpush1.msra.mxu0 0.0
    %3434 = vmatprep.subr.mxu0 0.0
    %3435 = vmatpush1.msra.mxu0 0.0
    %3436 = vmatprep.subr.mxu0 0.0
    %3437 = vmatpush1.msra.mxu0 0.0
    %3438 = vmatprep.subr.mxu0 0.0
    %3439 = vmatpush1.msra.mxu0 0.0
    %3440 = vmatprep.subr.mxu0 0.0
    %3441 = vmatpush1.msra.mxu0 0.0
    %3442 = vmatprep.subr.mxu0 0.0
    %3443 = vmatpush1.msra.mxu0 0.0
    %3444 = vmatprep.subr.mxu0 0.0
    %3445 = vmatpush1.msra.mxu0 0.0
    %3446 = vmatprep.subr.mxu0 0.0
    %3447 = vmatpush1.msra.mxu0 0.0
    %3448 = vmatprep.subr.mxu0 0.0
    %3449 = vmatpush1.msra.mxu0 0.0
    %3450 = vmatprep.subr.mxu0 0.0
    %3451 = vmatpush1.msra.mxu0 0.0
    %3452 = vmatprep.mubr.f32.mxu0 0.0
    %3453 = vmatmul.mubr.f32.gmra.mrb[0].mxu0 %v3387
    %v3454 = vpop.f32.mrb[0].mxu0
    %v3455 = vadd.f32 0.0, %v3454
    %v3456 = vpop.f32.mrb[0].mxu0
    %3457 = vdwg.mxu0
    %v3458 = vrcp.pop 8.0
    %v3459 = vmul.f32 %v3455, %v3458
    %v3460 = vmul.f32 %v3459, %v3459
    %v3462 = vrot.slane %v3460, 7
    %v3464 = vsub.f32 %v3459, %v3462
    %v3465 = vmax.f32 %v3464, 0.0
    %v3466 = vadd.f32 %v3465, 1e-05
    %v3467 = vrsqrt.pop %v3466
    %v3470 = vunpack.c.l.s4 1966171168
    %v3471 = vunpack.c.0.s8 %v3470
    %v3472 = vlaneseq
    %v3473 = vshrl.u32 %v3472, 7
    %v3474 = vsub.s32 %v3471, %v3473
    %v3475 = vrot.slane %v3467, %v3474
    %v3476 = vcombine.high %v3475, %v3475
    %v3478 = vunpack.c.l.s4 1966171168
    %v3479 = vunpack.c.0.s8 %v3478
    %v3480 = vlaneseq
    %v3481 = vshrl.u32 %v3480, 7
    %v3482 = vsub.s32 %v3479, %v3481
    %v3483 = vrot.slane %v3476, %v3482
    %v3485 = vmul.f32 %v2893, %v3483
    %v3486 = vmul.f32 %v3459, %v3485
    %v3487 = vsub.f32 %v2894, %v3486
    %v3489 = vlaneseq
    %v3490 = vshrl.u32 %v3489, 7
    %v3491 = vsub.s32 0, %v3490
    %v3492 = vrot.slane %v3485, %v3491
    %v3494 = vmul.f32 %v3218, %v3492
    %v3496 = vlaneseq
    %v3497 = vshrl.u32 %v3496, 7
    %v3498 = vsub.s32 0, %v3497
    %v3499 = vrot.slane %v3487, %v3498
    %v3501 = vadd.f32 %v3494, %v3499
    %v3502 = vmax.f32 %v3501, 0.0
    %v3503 = vmul.f32 %v3349, %v3492
    %v3504 = vadd.f32 %v3503, %v3499
    %v3505 = vmax.f32 %v3504, 0.0
    %v3506 = vpack.c.bf16 %v3502, %v3502
    %v3508 = vshrl.u32 %v3506, 16
    %v3510 = vrot.slane %v3508, 7
    %v3511 = vshll.u32 %v3506, 16
    %v3513 = vor.u32 %v3510, %v3511
    %v3515 = vsel %vm1323, 0, %v3513
    %vm3516 = vcmask 1041408
    %vm3517 = vsmask.f32 1280
    %vm3518 = vmand %vm3516, %vm3517
    %v3519 = vsel %vm3518, %v3515, 0
    %v3520 = vpack.c.bf16 %v3505, %v3505
    %v3522 = vshrl.u32 %v3520, 16
    %v3524 = vrot.slane %v3522, 7
    %v3525 = vshll.u32 %v3520, 16
    %v3527 = vor.u32 %v3524, %v3525
    %v3529 = vsel %vm1323, 0, %v3527
    %v3530 = vsel %vm3518, %v3529, 0
    %v3531 = vld [vmem:[#allocation18] sm:$0xf]
    %v3532 = vld [vmem:[#allocation18 + $0x4] sm:$0xf]
    %v3533 = vld [vmem:[#allocation18 + $0x8] sm:$0xf]
    %v3534 = vld [vmem:[#allocation18 + $0xc] sm:$0xf]
    %v3535 = vld [vmem:[#allocation18 + $0x10] sm:$0xf]
    %v3536 = vld [vmem:[#allocation18 + $0x14] sm:$0xf]
    %v3537 = vld [vmem:[#allocation18 + $0x18] sm:$0xf]
    %v3538 = vld [vmem:[#allocation18 + $0x1c] sm:$0xf]
    %v3539 = vld [vmem:[#allocation18 + $0x20] sm:$0xf]
    %v3540 = vld [vmem:[#allocation18 + $0x24] sm:$0xf]
    %v3541 = vld [vmem:[#allocation18 + $0x28] sm:$0xf]
    %v3542 = vld [vmem:[#allocation18 + $0x2c] sm:$0xf]
    %v3543 = vld [vmem:[#allocation18 + $0x30] sm:$0xf]
    %v3544 = vld [vmem:[#allocation18 + $0x34] sm:$0xf]
    %v3545 = vld [vmem:[#allocation18 + $0x38] sm:$0xf]
    %v3546 = vld [vmem:[#allocation18 + $0x3c] sm:$0xf]
    %v3547 = vld [vmem:[#allocation18 + $0x40] sm:$0xf]
    %v3548 = vld [vmem:[#allocation18 + $0x44] sm:$0xf]
    %v3549 = vld [vmem:[#allocation18 + $0x48] sm:$0xf]
    %v3550 = vld [vmem:[#allocation18 + $0x4c] sm:$0xf]
    %v3551 = vld [vmem:[#allocation18 + $0x50] sm:$0xf]
    %v3552 = vld [vmem:[#allocation18 + $0x54] sm:$0xf]
    %v3553 = vld [vmem:[#allocation18 + $0x58] sm:$0xf]
    %v3554 = vld [vmem:[#allocation18 + $0x5c] sm:$0xf]
    %v3555 = vld [vmem:[#allocation18 + $0x60] sm:$0xf]
    %v3556 = vld [vmem:[#allocation18 + $0x64] sm:$0xf]
    %v3557 = vld [vmem:[#allocation18 + $0x68] sm:$0xf]
    %v3558 = vld [vmem:[#allocation18 + $0x6c] sm:$0xf]
    %v3559 = vld [vmem:[#allocation18 + $0x70] sm:$0xf]
    %v3560 = vld [vmem:[#allocation18 + $0x74] sm:$0xf]
    %v3561 = vld [vmem:[#allocation18 + $0x78] sm:$0xf]
    %v3562 = vld [vmem:[#allocation18 + $0x7c] sm:$0xf]
    %v3563 = vld [vmem:[#allocation19] sm:$0xf]
    %v3564 = vld [vmem:[#allocation19 + $0x4] sm:$0xf]
    %v3565 = vld [vmem:[#allocation19 + $0x8] sm:$0xf]
    %v3566 = vld [vmem:[#allocation19 + $0xc] sm:$0xf]
    %v3567 = vld [vmem:[#allocation19 + $0x10] sm:$0xf]
    %v3568 = vld [vmem:[#allocation19 + $0x14] sm:$0xf]
    %v3569 = vld [vmem:[#allocation19 + $0x18] sm:$0xf]
    %v3570 = vld [vmem:[#allocation19 + $0x1c] sm:$0xf]
    %v3571 = vld [vmem:[#allocation19 + $0x20] sm:$0xf]
    %v3572 = vld [vmem:[#allocation19 + $0x24] sm:$0xf]
    %v3573 = vld [vmem:[#allocation19 + $0x28] sm:$0xf]
    %v3574 = vld [vmem:[#allocation19 + $0x2c] sm:$0xf]
    %v3575 = vld [vmem:[#allocation19 + $0x30] sm:$0xf]
    %v3576 = vld [vmem:[#allocation19 + $0x34] sm:$0xf]
    %v3577 = vld [vmem:[#allocation19 + $0x38] sm:$0xf]
    %v3578 = vld [vmem:[#allocation19 + $0x3c] sm:$0xf]
    %v3579 = vld [vmem:[#allocation19 + $0x40] sm:$0xf]
    %v3580 = vld [vmem:[#allocation19 + $0x44] sm:$0xf]
    %v3581 = vld [vmem:[#allocation19 + $0x48] sm:$0xf]
    %v3582 = vld [vmem:[#allocation19 + $0x4c] sm:$0xf]
    %v3583 = vld [vmem:[#allocation19 + $0x50] sm:$0xf]
    %v3584 = vld [vmem:[#allocation19 + $0x54] sm:$0xf]
    %v3585 = vld [vmem:[#allocation19 + $0x58] sm:$0xf]
    %v3586 = vld [vmem:[#allocation19 + $0x5c] sm:$0xf]
    %v3587 = vld [vmem:[#allocation19 + $0x60] sm:$0xf]
    %v3588 = vld [vmem:[#allocation19 + $0x64] sm:$0xf]
    %v3589 = vld [vmem:[#allocation19 + $0x68] sm:$0xf]
    %v3590 = vld [vmem:[#allocation19 + $0x6c] sm:$0xf]
    %v3591 = vld [vmem:[#allocation19 + $0x70] sm:$0xf]
    %v3592 = vld [vmem:[#allocation19 + $0x74] sm:$0xf]
    %v3593 = vld [vmem:[#allocation19 + $0x78] sm:$0xf]
    %v3594 = vld [vmem:[#allocation19 + $0x7c] sm:$0xf]
    %v3596 = vshrl.u32 %v3519, 16
    %v3598 = vrot.slane %v3596, 7
    %v3599 = vshll.u32 %v3519, 16
    %v3601 = vor.u32 %v3598, %v3599
    %v3602 = vrot.slane %v3599, 1
    %v3603 = vor.u32 %v3596, %v3602
    %v3605 = vshrl.u32 %v3601, 16
    %v3607 = vshll.u32 %v3601, 16
    %v3609 = vrot.slane %v3607, 1
    %v3610 = vor.u32 %v3605, %v3609
    %v3645 = vunpack.c.l.b16 %v3531
    %v3646 = vunpack.c.l.b16 %v3532
    %v3647 = vunpack.c.l.b16 %v3533
    %v3648 = vunpack.c.l.b16 %v3534
    %v3649 = vunpack.c.l.b16 %v3535
    %v3650 = vunpack.c.l.b16 %v3536
    %v3651 = vunpack.c.l.b16 %v3537
    %v3652 = vunpack.c.l.b16 %v3538
    %v3653 = vunpack.c.l.b16 %v3539
    %v3654 = vunpack.c.l.b16 %v3540
    %v3655 = vunpack.c.l.b16 %v3541
    %v3656 = vunpack.c.l.b16 %v3542
    %v3657 = vunpack.c.l.b16 %v3543
    %v3658 = vunpack.c.l.b16 %v3544
    %v3659 = vunpack.c.l.b16 %v3545
    %v3660 = vunpack.c.l.b16 %v3546
    %v3661 = vunpack.c.l.b16 %v3547
    %v3662 = vunpack.c.l.b16 %v3548
    %v3663 = vunpack.c.l.b16 %v3549
    %v3664 = vunpack.c.l.b16 %v3550
    %v3665 = vunpack.c.l.b16 %v3551
    %v3666 = vunpack.c.l.b16 %v3552
    %v3667 = vunpack.c.l.b16 %v3553
    %v3668 = vunpack.c.l.b16 %v3554
    %v3669 = vunpack.c.l.b16 %v3555
    %v3670 = vunpack.c.l.b16 %v3556
    %v3671 = vunpack.c.l.b16 %v3557
    %v3672 = vunpack.c.l.b16 %v3558
    %v3673 = vunpack.c.l.b16 %v3559
    %v3674 = vunpack.c.l.b16 %v3560
    %v3675 = vunpack.c.l.b16 %v3561
    %v3676 = vunpack.c.l.b16 %v3562
    %v3677 = vpack.c.b16 %v3646, %v3645
    %v3678 = vpack.c.b16 %v3648, %v3647
    %v3679 = vpack.c.b16 %v3650, %v3649
    %v3680 = vpack.c.b16 %v3652, %v3651
    %v3681 = vpack.c.b16 %v3654, %v3653
    %v3682 = vpack.c.b16 %v3656, %v3655
    %v3683 = vpack.c.b16 %v3658, %v3657
    %v3684 = vpack.c.b16 %v3660, %v3659
    %v3685 = vpack.c.b16 %v3662, %v3661
    %v3686 = vpack.c.b16 %v3664, %v3663
    %v3687 = vpack.c.b16 %v3666, %v3665
    %v3688 = vpack.c.b16 %v3668, %v3667
    %v3689 = vpack.c.b16 %v3670, %v3669
    %v3690 = vpack.c.b16 %v3672, %v3671
    %v3691 = vpack.c.b16 %v3674, %v3673
    %v3692 = vpack.c.b16 %v3676, %v3675
    %3709 = vmatprep.subr.bf16.mxu0 0
    %3710 = vmatpush1.bf16.msra.mxu0 %v3677
    %3711 = vmatprep.subr.bf16.mxu0 0
    %3712 = vmatpush1.bf16.msra.mxu0 %v3678
    %3713 = vmatprep.subr.bf16.mxu0 0
    %3714 = vmatpush1.bf16.msra.mxu0 %v3679
    %3715 = vmatprep.subr.bf16.mxu0 0
    %3716 = vmatpush1.bf16.msra.mxu0 %v3680
    %3717 = vmatprep.subr.bf16.mxu0 0
    %3718 = vmatpush1.bf16.msra.mxu0 %v3681
    %3719 = vmatprep.subr.bf16.mxu0 0
    %3720 = vmatpush1.bf16.msra.mxu0 %v3682
    %3721 = vmatprep.subr.bf16.mxu0 0
    %3722 = vmatpush1.bf16.msra.mxu0 %v3683
    %3723 = vmatprep.subr.bf16.mxu0 0
    %3724 = vmatpush1.bf16.msra.mxu0 %v3684
    %3725 = vmatprep.subr.bf16.mxu0 0
    %3726 = vmatpush1.bf16.msra.mxu0 %v3685
    %3727 = vmatprep.subr.bf16.mxu0 0
    %3728 = vmatpush1.bf16.msra.mxu0 %v3686
    %3729 = vmatprep.subr.bf16.mxu0 0
    %3730 = vmatpush1.bf16.msra.mxu0 %v3687
    %3731 = vmatprep.subr.bf16.mxu0 0
    %3732 = vmatpush1.bf16.msra.mxu0 %v3688
    %3733 = vmatprep.subr.bf16.mxu0 0
    %3734 = vmatpush1.bf16.msra.mxu0 %v3689
    %3735 = vmatprep.subr.bf16.mxu0 0
    %3736 = vmatpush1.bf16.msra.mxu0 %v3690
    %3737 = vmatprep.subr.bf16.mxu0 0
    %3738 = vmatpush1.bf16.msra.mxu0 %v3691
    %3739 = vmatprep.subr.bf16.mxu0 0
    %3740 = vmatpush1.bf16.msra.mxu0 %v3692
    %3741 = vmatprep.mubr.bf16.mxu0 %v3610
    %3742 = vmatmul.mubr.bf16.gmra.mrb[0].mxu0 %v3603
    %v3743 = vpop.f32.mrb[0].mxu0
    %v3744 = vadd.f32 0.0, %v3743
    %v3745 = vpop.f32.mrb[0].mxu0
    %v3746 = vpop.f32.mrb[0].mxu0
    %v3747 = vpop.f32.mrb[0].mxu0
    %3748 = vdwg.mxu0
    %v3750 = vshrl.u32 %v3603, 16
    %v3752 = vshll.u32 %v3603, 16
    %v3754 = vrot.slane %v3752, 1
    %v3755 = vor.u32 %v3750, %v3754
    %v3789 = vunpack.c.l.b16 %v3563
    %v3790 = vunpack.c.l.b16 %v3564
    %v3791 = vunpack.c.l.b16 %v3565
    %v3792 = vunpack.c.l.b16 %v3566
    %v3793 = vunpack.c.l.b16 %v3567
    %v3794 = vunpack.c.l.b16 %v3568
    %v3795 = vunpack.c.l.b16 %v3569
    %v3796 = vunpack.c.l.b16 %v3570
    %v3797 = vunpack.c.l.b16 %v3571
    %v3798 = vunpack.c.l.b16 %v3572
    %v3799 = vunpack.c.l.b16 %v3573
    %v3800 = vunpack.c.l.b16 %v3574
    %v3801 = vunpack.c.l.b16 %v3575
    %v3802 = vunpack.c.l.b16 %v3576
    %v3803 = vunpack.c.l.b16 %v3577
    %v3804 = vunpack.c.l.b16 %v3578
    %v3805 = vunpack.c.l.b16 %v3579
    %v3806 = vunpack.c.l.b16 %v3580
    %v3807 = vunpack.c.l.b16 %v3581
    %v3808 = vunpack.c.l.b16 %v3582
    %v3809 = vunpack.c.l.b16 %v3583
    %v3810 = vunpack.c.l.b16 %v3584
    %v3811 = vunpack.c.l.b16 %v3585
    %v3812 = vunpack.c.l.b16 %v3586
    %v3813 = vunpack.c.l.b16 %v3587
    %v3814 = vunpack.c.l.b16 %v3588
    %v3815 = vunpack.c.l.b16 %v3589
    %v3816 = vunpack.c.l.b16 %v3590
    %v3817 = vunpack.c.l.b16 %v3591
    %v3818 = vunpack.c.l.b16 %v3592
    %v3819 = vunpack.c.l.b16 %v3593
    %v3820 = vunpack.c.l.b16 %v3594
    %v3821 = vpack.c.b16 %v3790, %v3789
    %v3822 = vpack.c.b16 %v3792, %v3791
    %v3823 = vpack.c.b16 %v3794, %v3793
    %v3824 = vpack.c.b16 %v3796, %v3795
    %v3825 = vpack.c.b16 %v3798, %v3797
    %v3826 = vpack.c.b16 %v3800, %v3799
    %v3827 = vpack.c.b16 %v3802, %v3801
    %v3828 = vpack.c.b16 %v3804, %v3803
    %v3829 = vpack.c.b16 %v3806, %v3805
    %v3830 = vpack.c.b16 %v3808, %v3807
    %v3831 = vpack.c.b16 %v3810, %v3809
    %v3832 = vpack.c.b16 %v3812, %v3811
    %v3833 = vpack.c.b16 %v3814, %v3813
    %v3834 = vpack.c.b16 %v3816, %v3815
    %v3835 = vpack.c.b16 %v3818, %v3817
    %v3836 = vpack.c.b16 %v3820, %v3819
    %3853 = vmatprep.subr.bf16.mxu0 0
    %3854 = vmatpush1.bf16.msra.mxu0 %v3821
    %3855 = vmatprep.subr.bf16.mxu0 0
    %3856 = vmatpush1.bf16.msra.mxu0 %v3822
    %3857 = vmatprep.subr.bf16.mxu0 0
    %3858 = vmatpush1.bf16.msra.mxu0 %v3823
    %3859 = vmatprep.subr.bf16.mxu0 0
    %3860 = vmatpush1.bf16.msra.mxu0 %v3824
    %3861 = vmatprep.subr.bf16.mxu0 0
    %3862 = vmatpush1.bf16.msra.mxu0 %v3825
    %3863 = vmatprep.subr.bf16.mxu0 0
    %3864 = vmatpush1.bf16.msra.mxu0 %v3826
    %3865 = vmatprep.subr.bf16.mxu0 0
    %3866 = vmatpush1.bf16.msra.mxu0 %v3827
    %3867 = vmatprep.subr.bf16.mxu0 0
    %3868 = vmatpush1.bf16.msra.mxu0 %v3828
    %3869 = vmatprep.subr.bf16.mxu0 0
    %3870 = vmatpush1.bf16.msra.mxu0 %v3829
    %3871 = vmatprep.subr.bf16.mxu0 0
    %3872 = vmatpush1.bf16.msra.mxu0 %v3830
    %3873 = vmatprep.subr.bf16.mxu0 0
    %3874 = vmatpush1.bf16.msra.mxu0 %v3831
    %3875 = vmatprep.subr.bf16.mxu0 0
    %3876 = vmatpush1.bf16.msra.mxu0 %v3832
    %3877 = vmatprep.subr.bf16.mxu0 0
    %3878 = vmatpush1.bf16.msra.mxu0 %v3833
    %3879 = vmatprep.subr.bf16.mxu0 0
    %3880 = vmatpush1.bf16.msra.mxu0 %v3834
    %3881 = vmatprep.subr.bf16.mxu0 0
    %3882 = vmatpush1.bf16.msra.mxu0 %v3835
    %3883 = vmatprep.subr.bf16.mxu0 0
    %3884 = vmatpush1.bf16.msra.mxu0 %v3836
    %3885 = vmatprep.mubr.bf16.mxu0 %v3755
    %3886 = vmatmul.mubr.bf16.gmra.mrb[0].mxu0 %v3603
    %v3887 = vpop.f32.mrb[0].mxu0
    %v3888 = vadd.f32 0.0, %v3887
    %v3889 = vpop.f32.mrb[0].mxu0
    %v3890 = vpop.f32.mrb[0].mxu0
    %v3891 = vpop.f32.mrb[0].mxu0
    %3892 = vdwg.mxu0
    %v3894 = vshrl.u32 %v3530, 16
    %v3896 = vrot.slane %v3894, 7
    %v3897 = vshll.u32 %v3530, 16
    %v3899 = vor.u32 %v3896, %v3897
    %v3900 = vrot.slane %v3897, 1
    %v3901 = vor.u32 %v3894, %v3900
    %v3903 = vshrl.u32 %v3899, 16
    %v3905 = vshll.u32 %v3899, 16
    %v3907 = vrot.slane %v3905, 1
    %v3908 = vor.u32 %v3903, %v3907
    %3911 = vmatprep.subr.bf16.mxu0 0
    %3912 = vmatpush1.bf16.msra.mxu0 %v3677
    %3913 = vmatprep.subr.bf16.mxu0 0
    %3914 = vmatpush1.bf16.msra.mxu0 %v3678
    %3915 = vmatprep.subr.bf16.mxu0 0
    %3916 = vmatpush1.bf16.msra.mxu0 %v3679
    %3917 = vmatprep.subr.bf16.mxu0 0
    %3918 = vmatpush1.bf16.msra.mxu0 %v3680
    %3919 = vmatprep.subr.bf16.mxu0 0
    %3920 = vmatpush1.bf16.msra.mxu0 %v3681
    %3921 = vmatprep.subr.bf16.mxu0 0
    %3922 = vmatpush1.bf16.msra.mxu0 %v3682
    %3923 = vmatprep.subr.bf16.mxu0 0
    %3924 = vmatpush1.bf16.msra.mxu0 %v3683
    %3925 = vmatprep.subr.bf16.mxu0 0
    %3926 = vmatpush1.bf16.msra.mxu0 %v3684
    %3927 = vmatprep.subr.bf16.mxu0 0
    %3928 = vmatpush1.bf16.msra.mxu0 %v3685
    %3929 = vmatprep.subr.bf16.mxu0 0
    %3930 = vmatpush1.bf16.msra.mxu0 %v3686
    %3931 = vmatprep.subr.bf16.mxu0 0
    %3932 = vmatpush1.bf16.msra.mxu0 %v3687
    %3933 = vmatprep.subr.bf16.mxu0 0
    %3934 = vmatpush1.bf16.msra.mxu0 %v3688
    %3935 = vmatprep.subr.bf16.mxu0 0
    %3936 = vmatpush1.bf16.msra.mxu0 %v3689
    %3937 = vmatprep.subr.bf16.mxu0 0
    %3938 = vmatpush1.bf16.msra.mxu0 %v3690
    %3939 = vmatprep.subr.bf16.mxu0 0
    %3940 = vmatpush1.bf16.msra.mxu0 %v3691
    %3941 = vmatprep.subr.bf16.mxu0 0
    %3942 = vmatpush1.bf16.msra.mxu0 %v3692
    %3943 = vmatprep.mubr.bf16.mxu0 %v3908
    %3944 = vmatmul.mubr.bf16.gmra.mrb[0].mxu0 %v3901
    %v3945 = vpop.f32.mrb[0].mxu0
    %v3946 = vadd.f32 0.0, %v3945
    %v3947 = vpop.f32.mrb[0].mxu0
    %v3948 = vpop.f32.mrb[0].mxu0
    %v3949 = vpop.f32.mrb[0].mxu0
    %3950 = vdwg.mxu0
    %v3952 = vshrl.u32 %v3901, 16
    %v3954 = vshll.u32 %v3901, 16
    %v3956 = vrot.slane %v3954, 1
    %v3957 = vor.u32 %v3952, %v3956
    %3959 = vmatprep.subr.bf16.mxu0 0
    %3960 = vmatpush1.bf16.msra.mxu0 %v3821
    %3961 = vmatprep.subr.bf16.mxu0 0
    %3962 = vmatpush1.bf16.msra.mxu0 %v3822
    %3963 = vmatprep.subr.bf16.mxu0 0
    %3964 = vmatpush1.bf16.msra.mxu0 %v3823
    %3965 = vmatprep.subr.bf16.mxu0 0
    %3966 = vmatpush1.bf16.msra.mxu0 %v3824
    %3967 = vmatprep.subr.bf16.mxu0 0
    %3968 = vmatpush1.bf16.msra.mxu0 %v3825
    %3969 = vmatprep.subr.bf16.mxu0 0
    %3970 = vmatpush1.bf16.msra.mxu0 %v3826
    %3971 = vmatprep.subr.bf16.mxu0 0
    %3972 = vmatpush1.bf16.msra.mxu0 %v3827
    %3973 = vmatprep.subr.bf16.mxu0 0
    %3974 = vmatpush1.bf16.msra.mxu0 %v3828
    %3975 = vmatprep.subr.bf16.mxu0 0
    %3976 = vmatpush1.bf16.msra.mxu0 %v3829
    %3977 = vmatprep.subr.bf16.mxu0 0
    %3978 = vmatpush1.bf16.msra.mxu0 %v3830
    %3979 = vmatprep.subr.bf16.mxu0 0
    %3980 = vmatpush1.bf16.msra.mxu0 %v3831
    %3981 = vmatprep.subr.bf16.mxu0 0
    %3982 = vmatpush1.bf16.msra.mxu0 %v3832
    %3983 = vmatprep.subr.bf16.mxu0 0
    %3984 = vmatpush1.bf16.msra.mxu0 %v3833
    %3985 = vmatprep.subr.bf16.mxu0 0
    %3986 = vmatpush1.bf16.msra.mxu0 %v3834
    %3987 = vmatprep.subr.bf16.mxu0 0
    %3988 = vmatpush1.bf16.msra.mxu0 %v3835
    %3989 = vmatprep.subr.bf16.mxu0 0
    %3990 = vmatpush1.bf16.msra.mxu0 %v3836
    %3991 = vmatprep.mubr.bf16.mxu0 %v3957
    %3992 = vmatmul.mubr.bf16.gmra.mrb[0].mxu0 %v3901
    %v3993 = vpop.f32.mrb[0].mxu0
    %v3994 = vadd.f32 0.0, %v3993
    %v3995 = vpop.f32.mrb[0].mxu0
    %v3996 = vpop.f32.mrb[0].mxu0
    %v3997 = vpop.f32.mrb[0].mxu0
    %3998 = vdwg.mxu0
    %v3999 = vld [vmem:[#allocation21] sm:$0x3]
    %v4000 = vld [vmem:[#allocation22] sm:$0xff]
    %v4001 = vld [vmem:[#allocation22 + $0x8] sm:$0xff]
    %v4002 = vld [vmem:[#allocation22 + $0x10] sm:$0xff]
    %v4003 = vld [vmem:[#allocation22 + $0x18] sm:$0xff]
    %v4004 = vld [vmem:[#allocation22 + $0x20] sm:$0xff]
    %v4005 = vld [vmem:[#allocation22 + $0x28] sm:$0xff]
    %v4006 = vld [vmem:[#allocation22 + $0x30] sm:$0xff]
    %v4007 = vld [vmem:[#allocation22 + $0x38] sm:$0xff]
    %v4008 = vld [vmem:[#allocation22 + $0x40] sm:$0xff]
    %v4009 = vld [vmem:[#allocation22 + $0x48] sm:$0xff]
    %v4010 = vld [vmem:[#allocation22 + $0x50] sm:$0xff]
    %v4011 = vld [vmem:[#allocation22 + $0x58] sm:$0xff]
    %v4012 = vld [vmem:[#allocation22 + $0x60] sm:$0xff]
    %v4013 = vld [vmem:[#allocation22 + $0x68] sm:$0xff]
    %v4014 = vld [vmem:[#allocation22 + $0x70] sm:$0xff]
    %v4015 = vld [vmem:[#allocation22 + $0x78] sm:$0xff]
    %v4016 = vld [vmem:[#allocation24] sm:$0x1]
    %v4017 = vld [vmem:[#allocation25] sm:$0x1]
    %v4018 = vsel %vm3354, %v3744, 0.0
    %v4019 = vrot.slane %v4018, 4
    %v4020 = vadd.f32 %v4018, %v4019
    %v4021 = vrot.slane %v4020, 2
    %v4022 = vadd.f32 %v4020, %v4021
    %v4023 = vrot.slane %v4022, 1
    %v4024 = vadd.f32 %v4022, %v4023
    %v4025 = vmul.f32 %v3744, %v3744
    %v4026 = vsel %vm3354, %v4025, 0.0
    %v4027 = vrot.slane %v4026, 4
    %v4028 = vadd.f32 %v4026, %v4027
    %v4029 = vrot.slane %v4028, 2
    %v4030 = vadd.f32 %v4028, %v4029
    %v4031 = vrot.slane %v4030, 1
    %v4032 = vadd.f32 %v4030, %v4031
    %v4033 = vsel %vm3354, %v3946, 0.0
    %v4034 = vrot.slane %v4033, 4
    %v4035 = vadd.f32 %v4033, %v4034
    %v4036 = vrot.slane %v4035, 2
    %v4037 = vadd.f32 %v4035, %v4036
    %v4038 = vrot.slane %v4037, 1
    %v4039 = vadd.f32 %v4037, %v4038
    %v4040 = vadd.f32 %v4024, %v4039
    %v4041 = vmul.f32 %v3946, %v3946
    %v4042 = vsel %vm3354, %v4041, 0.0
    %v4043 = vrot.slane %v4042, 4
    %v4044 = vadd.f32 %v4042, %v4043
    %v4045 = vrot.slane %v4044, 2
    %v4046 = vadd.f32 %v4044, %v4045
    %v4047 = vrot.slane %v4046, 1
    %v4048 = vadd.f32 %v4046, %v4047
    %v4049 = vadd.f32 %v4032, %v4048
    %v4050 = vsel %vm3354, %v3888, 0.0
    %v4051 = vrot.slane %v4050, 4
    %v4052 = vadd.f32 %v4050, %v4051
    %v4053 = vrot.slane %v4052, 2
    %v4054 = vadd.f32 %v4052, %v4053
    %v4055 = vrot.slane %v4054, 1
    %v4056 = vadd.f32 %v4054, %v4055
    %v4057 = vadd.f32 %v4040, %v4056
    %v4058 = vmul.f32 %v3888, %v3888
    %v4059 = vsel %vm3354, %v4058, 0.0
    %v4060 = vrot.slane %v4059, 4
    %v4061 = vadd.f32 %v4059, %v4060
    %v4062 = vrot.slane %v4061, 2
    %v4063 = vadd.f32 %v4061, %v4062
    %v4064 = vrot.slane %v4063, 1
    %v4065 = vadd.f32 %v4063, %v4064
    %v4066 = vadd.f32 %v4049, %v4065
    %v4067 = vsel %vm3354, %v3994, 0.0
    %v4068 = vrot.slane %v4067, 4
    %v4069 = vadd.f32 %v4067, %v4068
    %v4070 = vrot.slane %v4069, 2
    %v4071 = vadd.f32 %v4069, %v4070
    %v4072 = vrot.slane %v4071, 1
    %v4073 = vadd.f32 %v4071, %v4072
    %v4074 = vadd.f32 %v4057, %v4073
    %v4075 = vmul.f32 %v3994, %v3994
    %v4076 = vsel %vm3354, %v4075, 0.0
    %v4077 = vrot.slane %v4076, 4
    %v4078 = vadd.f32 %v4076, %v4077
    %v4079 = vrot.slane %v4078, 2
    %v4080 = vadd.f32 %v4078, %v4079
    %v4081 = vrot.slane %v4080, 1
    %v4082 = vadd.f32 %v4080, %v4081
    %v4083 = vadd.f32 %v4066, %v4082
    %v4084 = vsel %vm643, %v4074, %v4083
    %4085 = vmatprep.subr.mxu0 0.0
    %4086 = vmatpush1.msra.mxu0 %v4000
    %4087 = vmatprep.subr.mxu0 0.0
    %4088 = vmatpush1.msra.mxu0 %v4001
    %4089 = vmatprep.subr.mxu0 0.0
    %4090 = vmatpush1.msra.mxu0 %v4002
    %4091 = vmatprep.subr.mxu0 0.0
    %4092 = vmatpush1.msra.mxu0 %v4003
    %4093 = vmatprep.subr.mxu0 0.0
    %4094 = vmatpush1.msra.mxu0 %v4004
    %4095 = vmatprep.subr.mxu0 0.0
    %4096 = vmatpush1.msra.mxu0 %v4005
    %4097 = vmatprep.subr.mxu0 0.0
    %4098 = vmatpush1.msra.mxu0 %v4006
    %4099 = vmatprep.subr.mxu0 0.0
    %4100 = vmatpush1.msra.mxu0 %v4007
    %4101 = vmatprep.subr.mxu0 0.0
    %4102 = vmatpush1.msra.mxu0 %v4008
    %4103 = vmatprep.subr.mxu0 0.0
    %4104 = vmatpush1.msra.mxu0 %v4009
    %4105 = vmatprep.subr.mxu0 0.0
    %4106 = vmatpush1.msra.mxu0 %v4010
    %4107 = vmatprep.subr.mxu0 0.0
    %4108 = vmatpush1.msra.mxu0 %v4011
    %4109 = vmatprep.subr.mxu0 0.0
    %4110 = vmatpush1.msra.mxu0 %v4012
    %4111 = vmatprep.subr.mxu0 0.0
    %4112 = vmatpush1.msra.mxu0 %v4013
    %4113 = vmatprep.subr.mxu0 0.0
    %4114 = vmatpush1.msra.mxu0 %v4014
    %4115 = vmatprep.subr.mxu0 0.0
    %4116 = vmatpush1.msra.mxu0 %v4015
    %4117 = vmatprep.subr.mxu0 0.0
    %4118 = vmatpush1.msra.mxu0 0.0
    %4119 = vmatprep.subr.mxu0 0.0
    %4120 = vmatpush1.msra.mxu0 0.0
    %4121 = vmatprep.subr.mxu0 0.0
    %4122 = vmatpush1.msra.mxu0 0.0
    %4123 = vmatprep.subr.mxu0 0.0
    %4124 = vmatpush1.msra.mxu0 0.0
    %4125 = vmatprep.subr.mxu0 0.0
    %4126 = vmatpush1.msra.mxu0 0.0
    %4127 = vmatprep.subr.mxu0 0.0
    %4128 = vmatpush1.msra.mxu0 0.0
    %4129 = vmatprep.subr.mxu0 0.0
    %4130 = vmatpush1.msra.mxu0 0.0
    %4131 = vmatprep.subr.mxu0 0.0
    %4132 = vmatpush1.msra.mxu0 0.0
    %4133 = vmatprep.subr.mxu0 0.0
    %4134 = vmatpush1.msra.mxu0 0.0
    %4135 = vmatprep.subr.mxu0 0.0
    %4136 = vmatpush1.msra.mxu0 0.0
    %4137 = vmatprep.subr.mxu0 0.0
    %4138 = vmatpush1.msra.mxu0 0.0
    %4139 = vmatprep.subr.mxu0 0.0
    %4140 = vmatpush1.msra.mxu0 0.0
    %4141 = vmatprep.subr.mxu0 0.0
    %4142 = vmatpush1.msra.mxu0 0.0
    %4143 = vmatprep.subr.mxu0 0.0
    %4144 = vmatpush1.msra.mxu0 0.0
    %4145 = vmatprep.subr.mxu0 0.0
    %4146 = vmatpush1.msra.mxu0 0.0
    %4147 = vmatprep.subr.mxu0 0.0
    %4148 = vmatpush1.msra.mxu0 0.0
    %4149 = vmatprep.mubr.f32.mxu0 0.0
    %4150 = vmatmul.mubr.f32.gmra.mrb[0].mxu0 %v4084
    %v4151 = vpop.f32.mrb[0].mxu0
    %v4152 = vadd.f32 0.0, %v4151
    %v4153 = vpop.f32.mrb[0].mxu0
    %4154 = vdwg.mxu0
    %v4155 = vmul.f32 %v4152, %v2739
    %v4156 = vmul.f32 %v4155, %v4155
    %v4158 = vrot.slane %v4156, 7
    %v4160 = vsub.f32 %v4155, %v4158
    %v4161 = vmax.f32 %v4160, 0.0
    %v4162 = vadd.f32 %v4161, 1e-05
    %v4163 = vrsqrt.pop %v4162
    %v4166 = vunpack.c.l.s4 1966171168
    %v4167 = vunpack.c.0.s8 %v4166
    %v4168 = vlaneseq
    %v4169 = vshrl.u32 %v4168, 7
    %v4170 = vsub.s32 %v4167, %v4169
    %v4171 = vrot.slane %v4163, %v4170
    %v4172 = vcombine.high %v4171, %v4171
    %v4174 = vunpack.c.l.s4 1966171168
    %v4175 = vunpack.c.0.s8 %v4174
    %v4176 = vlaneseq
    %v4177 = vshrl.u32 %v4176, 7
    %v4178 = vsub.s32 %v4175, %v4177
    %v4179 = vrot.slane %v4172, %v4178
    %v4181 = vmul.f32 %v4016, %v4179
    %v4182 = vmul.f32 %v4155, %v4181
    %v4183 = vsub.f32 %v4017, %v4182
    %v4185 = vlaneseq
    %v4186 = vshrl.u32 %v4185, 7
    %v4187 = vsub.s32 0, %v4186
    %v4188 = vrot.slane %v4181, %v4187
    %v4190 = vmul.f32 %v3744, %v4188
    %v4192 = vlaneseq
    %v4193 = vshrl.u32 %v4192, 7
    %v4194 = vsub.s32 0, %v4193
    %v4195 = vrot.slane %v4183, %v4194
    %v4197 = vadd.f32 %v4190, %v4195
    %v4198 = vmax.f32 %v4197, 0.0
    %v4199 = vmul.f32 %v3946, %v4188
    %v4200 = vadd.f32 %v4199, %v4195
    %v4201 = vmax.f32 %v4200, 0.0
    %v4202 = vmul.f32 %v3888, %v4188
    %v4203 = vadd.f32 %v4202, %v4195
    %v4204 = vmax.f32 %v4203, 0.0
    %v4205 = vmul.f32 %v3994, %v4188
    %v4206 = vadd.f32 %v4205, %v4195
    %v4207 = vmax.f32 %v4206, 0.0
    %v4209 = vrot.slane %v4204, 6
    %v4211 = vsel %vm3354, %v4198, %v4209
    %v4212 = vpack.c.bf16 %v4211, %v4211
    %vm4213 = vcmask 31744
    %v4215 = vsel %vm4213, %v3999, 0
    %v4218 = vsel %vm3354, %v4212, 0
    %4220 = vmatprep.subr.bf16.mxu0 0
    %4221 = vmatpush1.bf16.msra.mxu0 %v4218
    %4222 = vmatprep.subr.bf16.mxu0 0
    %4223 = vmatpush1.bf16.msra.mxu0 0
    %4224 = vmatprep.subr.bf16.mxu0 0
    %4225 = vmatpush1.bf16.msra.mxu0 0
    %4226 = vmatprep.subr.bf16.mxu0 0
    %4227 = vmatpush1.bf16.msra.mxu0 0
    %4228 = vmatprep.subr.bf16.mxu0 0
    %4229 = vmatpush1.bf16.msra.mxu0 0
    %4230 = vmatprep.subr.bf16.mxu0 0
    %4231 = vmatpush1.bf16.msra.mxu0 0
    %4232 = vmatprep.subr.bf16.mxu0 0
    %4233 = vmatpush1.bf16.msra.mxu0 0
    %4234 = vmatprep.subr.bf16.mxu0 0
    %4235 = vmatpush1.bf16.msra.mxu0 0
    %4236 = vmatprep.subr.bf16.mxu0 0
    %4237 = vmatpush1.bf16.msra.mxu0 0
    %4238 = vmatprep.subr.bf16.mxu0 0
    %4239 = vmatpush1.bf16.msra.mxu0 0
    %4240 = vmatprep.subr.bf16.mxu0 0
    %4241 = vmatpush1.bf16.msra.mxu0 0
    %4242 = vmatprep.subr.bf16.mxu0 0
    %4243 = vmatpush1.bf16.msra.mxu0 0
    %4244 = vmatprep.subr.bf16.mxu0 0
    %4245 = vmatpush1.bf16.msra.mxu0 0
    %4246 = vmatprep.subr.bf16.mxu0 0
    %4247 = vmatpush1.bf16.msra.mxu0 0
    %4248 = vmatprep.subr.bf16.mxu0 0
    %4249 = vmatpush1.bf16.msra.mxu0 0
    %4250 = vmatprep.subr.bf16.mxu0 0
    %4251 = vmatpush1.bf16.msra.mxu0 0
    %4252 = vmatprep.mubr.bf16.mxu0 0
    %4253 = vmatmul.mubr.bf16.gmra.mrb[0].mxu0 %v4215
    %v4254 = vpop.f32.mrb[0].mxu0
    %v4255 = vadd.f32 0.0, %v4254
    %v4256 = vpop.f32.mrb[0].mxu0
    %v4257 = vpop.f32.mrb[0].mxu0
    %v4258 = vpop.f32.mrb[0].mxu0
    %4259 = vdwg.mxu0
    %v4260 = vpack.c.bf16 %v4255, %v4255
    %v4262 = vshrl.u32 %v4260, 16
    %v4264 = vrot.slane %v4262, 7
    %v4265 = vshll.u32 %v4260, 16
    %v4267 = vor.u32 %v4264, %v4265
    %v4269 = vsel %vm1323, 0, %v4267
    %v4270 = vsel %vm2799, %v4269, 0
    %v4272 = vrot.slane %v4207, 6
    %v4274 = vsel %vm3354, %v4201, %v4272
    %v4275 = vpack.c.bf16 %v4274, %v4274
    %v4277 = vsel %vm3354, %v4275, 0
    %4279 = vmatprep.subr.bf16.mxu0 0
    %4280 = vmatpush1.bf16.msra.mxu0 %v4277
    %4281 = vmatprep.subr.bf16.mxu0 0
    %4282 = vmatpush1.bf16.msra.mxu0 0
    %4283 = vmatprep.subr.bf16.mxu0 0
    %4284 = vmatpush1.bf16.msra.mxu0 0
    %4285 = vmatprep.subr.bf16.mxu0 0
    %4286 = vmatpush1.bf16.msra.mxu0 0
    %4287 = vmatprep.subr.bf16.mxu0 0
    %4288 = vmatpush1.bf16.msra.mxu0 0
    %4289 = vmatprep.subr.bf16.mxu0 0
    %4290 = vmatpush1.bf16.msra.mxu0 0
    %4291 = vmatprep.subr.bf16.mxu0 0
    %4292 = vmatpush1.bf16.msra.mxu0 0
    %4293 = vmatprep.subr.bf16.mxu0 0
    %4294 = vmatpush1.bf16.msra.mxu0 0
    %4295 = vmatprep.subr.bf16.mxu0 0
    %4296 = vmatpush1.bf16.msra.mxu0 0
    %4297 = vmatprep.subr.bf16.mxu0 0
    %4298 = vmatpush1.bf16.msra.mxu0 0
    %4299 = vmatprep.subr.bf16.mxu0 0
    %4300 = vmatpush1.bf16.msra.mxu0 0
    %4301 = vmatprep.subr.bf16.mxu0 0
    %4302 = vmatpush1.bf16.msra.mxu0 0
    %4303 = vmatprep.subr.bf16.mxu0 0
    %4304 = vmatpush1.bf16.msra.mxu0 0
    %4305 = vmatprep.subr.bf16.mxu0 0
    %4306 = vmatpush1.bf16.msra.mxu0 0
    %4307 = vmatprep.subr.bf16.mxu0 0
    %4308 = vmatpush1.bf16.msra.mxu0 0
    %4309 = vmatprep.subr.bf16.mxu0 0
    %4310 = vmatpush1.bf16.msra.mxu0 0
    %4311 = vmatprep.mubr.bf16.mxu0 0
    %4312 = vmatmul.mubr.bf16.gmra.mrb[0].mxu0 %v4215
    %v4313 = vpop.f32.mrb[0].mxu0
    %v4314 = vadd.f32 0.0, %v4313
    %v4315 = vpop.f32.mrb[0].mxu0
    %v4316 = vpop.f32.mrb[0].mxu0
    %v4317 = vpop.f32.mrb[0].mxu0
    %4318 = vdwg.mxu0
    %v4319 = vpack.c.bf16 %v4314, %v4314
    %v4321 = vshrl.u32 %v4319, 16
    %v4323 = vrot.slane %v4321, 7
    %v4324 = vshll.u32 %v4319, 16
    %v4326 = vor.u32 %v4323, %v4324
    %v4328 = vsel %vm1323, 0, %v4326
    %v4329 = vsel %vm2799, %v4328, 0
    %v4330 = vld [vmem:[#allocation27] sm:$0xf]
    %v4331 = vld [vmem:[#allocation27 + $0x4] sm:$0xf]
    %v4332 = vld [vmem:[#allocation27 + $0x8] sm:$0xf]
    %v4333 = vld [vmem:[#allocation27 + $0xc] sm:$0xf]
    %v4334 = vld [vmem:[#allocation27 + $0x10] sm:$0xf]
    %v4335 = vld [vmem:[#allocation27 + $0x14] sm:$0xf]
    %v4336 = vld [vmem:[#allocation27 + $0x18] sm:$0xf]
    %v4337 = vld [vmem:[#allocation27 + $0x1c] sm:$0xf]
    %v4338 = vld [vmem:[#allocation27 + $0x20] sm:$0xf]
    %v4339 = vld [vmem:[#allocation27 + $0x24] sm:$0xf]
    %v4340 = vld [vmem:[#allocation27 + $0x28] sm:$0xf]
    %v4341 = vld [vmem:[#allocation27 + $0x2c] sm:$0xf]
    %v4342 = vld [vmem:[#allocation27 + $0x30] sm:$0xf]
    %v4343 = vld [vmem:[#allocation27 + $0x34] sm:$0xf]
    %v4344 = vld [vmem:[#allocation27 + $0x38] sm:$0xf]
    %v4345 = vld [vmem:[#allocation27 + $0x3c] sm:$0xf]
    %v4346 = vld [vmem:[#allocation27 + $0x40] sm:$0xf]
    %v4347 = vld [vmem:[#allocation27 + $0x44] sm:$0xf]
    %v4348 = vld [vmem:[#allocation27 + $0x48] sm:$0xf]
    %v4349 = vld [vmem:[#allocation27 + $0x4c] sm:$0xf]
    %v4350 = vld [vmem:[#allocation27 + $0x50] sm:$0xf]
    %v4351 = vld [vmem:[#allocation27 + $0x54] sm:$0xf]
    %v4352 = vld [vmem:[#allocation27 + $0x58] sm:$0xf]
    %v4353 = vld [vmem:[#allocation27 + $0x5c] sm:$0xf]
    %v4354 = vld [vmem:[#allocation27 + $0x60] sm:$0xf]
    %v4355 = vld [vmem:[#allocation27 + $0x64] sm:$0xf]
    %v4356 = vld [vmem:[#allocation27 + $0x68] sm:$0xf]
    %v4357 = vld [vmem:[#allocation27 + $0x6c] sm:$0xf]
    %v4358 = vld [vmem:[#allocation27 + $0x70] sm:$0xf]
    %v4359 = vld [vmem:[#allocation27 + $0x74] sm:$0xf]
    %v4360 = vld [vmem:[#allocation27 + $0x78] sm:$0xf]
    %v4361 = vld [vmem:[#allocation27 + $0x7c] sm:$0xf]
    %v4362 = vld [vmem:[#allocation28] sm:$0xf]
    %v4363 = vld [vmem:[#allocation28 + $0x4] sm:$0xf]
    %v4364 = vld [vmem:[#allocation28 + $0x8] sm:$0xf]
    %v4365 = vld [vmem:[#allocation28 + $0xc] sm:$0xf]
    %v4366 = vld [vmem:[#allocation28 + $0x10] sm:$0xf]
    %v4367 = vld [vmem:[#allocation28 + $0x14] sm:$0xf]
    %v4368 = vld [vmem:[#allocation28 + $0x18] sm:$0xf]
    %v4369 = vld [vmem:[#allocation28 + $0x1c] sm:$0xf]
    %v4370 = vld [vmem:[#allocation28 + $0x20] sm:$0xf]
    %v4371 = vld [vmem:[#allocation28 + $0x24] sm:$0xf]
    %v4372 = vld [vmem:[#allocation28 + $0x28] sm:$0xf]
    %v4373 = vld [vmem:[#allocation28 + $0x2c] sm:$0xf]
    %v4374 = vld [vmem:[#allocation28 + $0x30] sm:$0xf]
    %v4375 = vld [vmem:[#allocation28 + $0x34] sm:$0xf]
    %v4376 = vld [vmem:[#allocation28 + $0x38] sm:$0xf]
    %v4377 = vld [vmem:[#allocation28 + $0x3c] sm:$0xf]
    %v4378 = vld [vmem:[#allocation28 + $0x40] sm:$0xf]
    %v4379 = vld [vmem:[#allocation28 + $0x44] sm:$0xf]
    %v4380 = vld [vmem:[#allocation28 + $0x48] sm:$0xf]
    %v4381 = vld [vmem:[#allocation28 + $0x4c] sm:$0xf]
    %v4382 = vld [vmem:[#allocation28 + $0x50] sm:$0xf]
    %v4383 = vld [vmem:[#allocation28 + $0x54] sm:$0xf]
    %v4384 = vld [vmem:[#allocation28 + $0x58] sm:$0xf]
    %v4385 = vld [vmem:[#allocation28 + $0x5c] sm:$0xf]
    %v4386 = vld [vmem:[#allocation28 + $0x60] sm:$0xf]
    %v4387 = vld [vmem:[#allocation28 + $0x64] sm:$0xf]
    %v4388 = vld [vmem:[#allocation28 + $0x68] sm:$0xf]
    %v4389 = vld [vmem:[#allocation28 + $0x6c] sm:$0xf]
    %v4390 = vld [vmem:[#allocation28 + $0x70] sm:$0xf]
    %v4391 = vld [vmem:[#allocation28 + $0x74] sm:$0xf]
    %v4392 = vld [vmem:[#allocation28 + $0x78] sm:$0xf]
    %v4393 = vld [vmem:[#allocation28 + $0x7c] sm:$0xf]
    %v4395 = vshrl.u32 %v4270, 16
    %v4397 = vrot.slane %v4395, 7
    %v4398 = vshll.u32 %v4270, 16
    %v4400 = vor.u32 %v4397, %v4398
    %v4401 = vrot.slane %v4398, 1
    %v4402 = vor.u32 %v4395, %v4401
    %v4404 = vshrl.u32 %v4400, 16
    %v4406 = vshll.u32 %v4400, 16
    %v4408 = vrot.slane %v4406, 1
    %v4409 = vor.u32 %v4404, %v4408
    %v4444 = vunpack.c.l.b16 %v4330
    %v4445 = vunpack.c.l.b16 %v4331
    %v4446 = vunpack.c.l.b16 %v4332
    %v4447 = vunpack.c.l.b16 %v4333
    %v4448 = vunpack.c.l.b16 %v4334
    %v4449 = vunpack.c.l.b16 %v4335
    %v4450 = vunpack.c.l.b16 %v4336
    %v4451 = vunpack.c.l.b16 %v4337
    %v4452 = vunpack.c.l.b16 %v4338
    %v4453 = vunpack.c.l.b16 %v4339
    %v4454 = vunpack.c.l.b16 %v4340
    %v4455 = vunpack.c.l.b16 %v4341
    %v4456 = vunpack.c.l.b16 %v4342
    %v4457 = vunpack.c.l.b16 %v4343
    %v4458 = vunpack.c.l.b16 %v4344
    %v4459 = vunpack.c.l.b16 %v4345
    %v4460 = vunpack.c.l.b16 %v4346
    %v4461 = vunpack.c.l.b16 %v4347
    %v4462 = vunpack.c.l.b16 %v4348
    %v4463 = vunpack.c.l.b16 %v4349
    %v4464 = vunpack.c.l.b16 %v4350
    %v4465 = vunpack.c.l.b16 %v4351
    %v4466 = vunpack.c.l.b16 %v4352
    %v4467 = vunpack.c.l.b16 %v4353
    %v4468 = vunpack.c.l.b16 %v4354
    %v4469 = vunpack.c.l.b16 %v4355
    %v4470 = vunpack.c.l.b16 %v4356
    %v4471 = vunpack.c.l.b16 %v4357
    %v4472 = vunpack.c.l.b16 %v4358
    %v4473 = vunpack.c.l.b16 %v4359
    %v4474 = vunpack.c.l.b16 %v4360
    %v4475 = vunpack.c.l.b16 %v4361
    %v4476 = vpack.c.b16 %v4445, %v4444
    %v4477 = vpack.c.b16 %v4447, %v4446
    %v4478 = vpack.c.b16 %v4449, %v4448
    %v4479 = vpack.c.b16 %v4451, %v4450
    %v4480 = vpack.c.b16 %v4453, %v4452
    %v4481 = vpack.c.b16 %v4455, %v4454
    %v4482 = vpack.c.b16 %v4457, %v4456
    %v4483 = vpack.c.b16 %v4459, %v4458
    %v4484 = vpack.c.b16 %v4461, %v4460
    %v4485 = vpack.c.b16 %v4463, %v4462
    %v4486 = vpack.c.b16 %v4465, %v4464
    %v4487 = vpack.c.b16 %v4467, %v4466
    %v4488 = vpack.c.b16 %v4469, %v4468
    %v4489 = vpack.c.b16 %v4471, %v4470
    %v4490 = vpack.c.b16 %v4473, %v4472
    %v4491 = vpack.c.b16 %v4475, %v4474
    %4508 = vmatprep.subr.bf16.mxu0 0
    %4509 = vmatpush1.bf16.msra.mxu0 %v4476
    %4510 = vmatprep.subr.bf16.mxu0 0
    %4511 = vmatpush1.bf16.msra.mxu0 %v4477
    %4512 = vmatprep.subr.bf16.mxu0 0
    %4513 = vmatpush1.bf16.msra.mxu0 %v4478
    %4514 = vmatprep.subr.bf16.mxu0 0
    %4515 = vmatpush1.bf16.msra.mxu0 %v4479
    %4516 = vmatprep.subr.bf16.mxu0 0
    %4517 = vmatpush1.bf16.msra.mxu0 %v4480
    %4518 = vmatprep.subr.bf16.mxu0 0
    %4519 = vmatpush1.bf16.msra.mxu0 %v4481
    %4520 = vmatprep.subr.bf16.mxu0 0
    %4521 = vmatpush1.bf16.msra.mxu0 %v4482
    %4522 = vmatprep.subr.bf16.mxu0 0
    %4523 = vmatpush1.bf16.msra.mxu0 %v4483
    %4524 = vmatprep.subr.bf16.mxu0 0
    %4525 = vmatpush1.bf16.msra.mxu0 %v4484
    %4526 = vmatprep.subr.bf16.mxu0 0
    %4527 = vmatpush1.bf16.msra.mxu0 %v4485
    %4528 = vmatprep.subr.bf16.mxu0 0
    %4529 = vmatpush1.bf16.msra.mxu0 %v4486
    %4530 = vmatprep.subr.bf16.mxu0 0
    %4531 = vmatpush1.bf16.msra.mxu0 %v4487
    %4532 = vmatprep.subr.bf16.mxu0 0
    %4533 = vmatpush1.bf16.msra.mxu0 %v4488
    %4534 = vmatprep.subr.bf16.mxu0 0
    %4535 = vmatpush1.bf16.msra.mxu0 %v4489
    %4536 = vmatprep.subr.bf16.mxu0 0
    %4537 = vmatpush1.bf16.msra.mxu0 %v4490
    %4538 = vmatprep.subr.bf16.mxu0 0
    %4539 = vmatpush1.bf16.msra.mxu0 %v4491
    %4540 = vmatprep.mubr.bf16.mxu0 %v4409
    %4541 = vmatmul.mubr.bf16.gmra.mrb[0].mxu0 %v4402
    %v4542 = vpop.f32.mrb[0].mxu0
    %v4543 = vadd.f32 0.0, %v4542
    %v4544 = vpop.f32.mrb[0].mxu0
    %v4545 = vpop.f32.mrb[0].mxu0
    %v4546 = vpop.f32.mrb[0].mxu0
    %4547 = vdwg.mxu0
    %v4549 = vshrl.u32 %v4402, 16
    %v4551 = vshll.u32 %v4402, 16
    %v4553 = vrot.slane %v4551, 1
    %v4554 = vor.u32 %v4549, %v4553
    %v4588 = vunpack.c.l.b16 %v4362
    %v4589 = vunpack.c.l.b16 %v4363
    %v4590 = vunpack.c.l.b16 %v4364
    %v4591 = vunpack.c.l.b16 %v4365
    %v4592 = vunpack.c.l.b16 %v4366
    %v4593 = vunpack.c.l.b16 %v4367
    %v4594 = vunpack.c.l.b16 %v4368
    %v4595 = vunpack.c.l.b16 %v4369
    %v4596 = vunpack.c.l.b16 %v4370
    %v4597 = vunpack.c.l.b16 %v4371
    %v4598 = vunpack.c.l.b16 %v4372
    %v4599 = vunpack.c.l.b16 %v4373
    %v4600 = vunpack.c.l.b16 %v4374
    %v4601 = vunpack.c.l.b16 %v4375
    %v4602 = vunpack.c.l.b16 %v4376
    %v4603 = vunpack.c.l.b16 %v4377
    %v4604 = vunpack.c.l.b16 %v4378
    %v4605 = vunpack.c.l.b16 %v4379
    %v4606 = vunpack.c.l.b16 %v4380
    %v4607 = vunpack.c.l.b16 %v4381
    %v4608 = vunpack.c.l.b16 %v4382
    %v4609 = vunpack.c.l.b16 %v4383
    %v4610 = vunpack.c.l.b16 %v4384
    %v4611 = vunpack.c.l.b16 %v4385
    %v4612 = vunpack.c.l.b16 %v4386
    %v4613 = vunpack.c.l.b16 %v4387
    %v4614 = vunpack.c.l.b16 %v4388
    %v4615 = vunpack.c.l.b16 %v4389
    %v4616 = vunpack.c.l.b16 %v4390
    %v4617 = vunpack.c.l.b16 %v4391
    %v4618 = vunpack.c.l.b16 %v4392
    %v4619 = vunpack.c.l.b16 %v4393
    %v4620 = vpack.c.b16 %v4589, %v4588
    %v4621 = vpack.c.b16 %v4591, %v4590
    %v4622 = vpack.c.b16 %v4593, %v4592
    %v4623 = vpack.c.b16 %v4595, %v4594
    %v4624 = vpack.c.b16 %v4597, %v4596
    %v4625 = vpack.c.b16 %v4599, %v4598
    %v4626 = vpack.c.b16 %v4601, %v4600
    %v4627 = vpack.c.b16 %v4603, %v4602
    %v4628 = vpack.c.b16 %v4605, %v4604
    %v4629 = vpack.c.b16 %v4607, %v4606
    %v4630 = vpack.c.b16 %v4609, %v4608
    %v4631 = vpack.c.b16 %v4611, %v4610
    %v4632 = vpack.c.b16 %v4613, %v4612
    %v4633 = vpack.c.b16 %v4615, %v4614
    %v4634 = vpack.c.b16 %v4617, %v4616
    %v4635 = vpack.c.b16 %v4619, %v4618
    %4652 = vmatprep.subr.bf16.mxu0 0
    %4653 = vmatpush1.bf16.msra.mxu0 %v4620
    %4654 = vmatprep.subr.bf16.mxu0 0
    %4655 = vmatpush1.bf16.msra.mxu0 %v4621
    %4656 = vmatprep.subr.bf16.mxu0 0
    %4657 = vmatpush1.bf16.msra.mxu0 %v4622
    %4658 = vmatprep.subr.bf16.mxu0 0
    %4659 = vmatpush1.bf16.msra.mxu0 %v4623
    %4660 = vmatprep.subr.bf16.mxu0 0
    %4661 = vmatpush1.bf16.msra.mxu0 %v4624
    %4662 = vmatprep.subr.bf16.mxu0 0
    %4663 = vmatpush1.bf16.msra.mxu0 %v4625
    %4664 = vmatprep.subr.bf16.mxu0 0
    %4665 = vmatpush1.bf16.msra.mxu0 %v4626
    %4666 = vmatprep.subr.bf16.mxu0 0
    %4667 = vmatpush1.bf16.msra.mxu0 %v4627
    %4668 = vmatprep.subr.bf16.mxu0 0
    %4669 = vmatpush1.bf16.msra.mxu0 %v4628
    %4670 = vmatprep.subr.bf16.mxu0 0
    %4671 = vmatpush1.bf16.msra.mxu0 %v4629
    %4672 = vmatprep.subr.bf16.mxu0 0
    %4673 = vmatpush1.bf16.msra.mxu0 %v4630
    %4674 = vmatprep.subr.bf16.mxu0 0
    %4675 = vmatpush1.bf16.msra.mxu0 %v4631
    %4676 = vmatprep.subr.bf16.mxu0 0
    %4677 = vmatpush1.bf16.msra.mxu0 %v4632
    %4678 = vmatprep.subr.bf16.mxu0 0
    %4679 = vmatpush1.bf16.msra.mxu0 %v4633
    %4680 = vmatprep.subr.bf16.mxu0 0
    %4681 = vmatpush1.bf16.msra.mxu0 %v4634
    %4682 = vmatprep.subr.bf16.mxu0 0
    %4683 = vmatpush1.bf16.msra.mxu0 %v4635
    %4684 = vmatprep.mubr.bf16.mxu0 %v4554
    %4685 = vmatmul.mubr.bf16.gmra.mrb[0].mxu0 %v4402
    %v4686 = vpop.f32.mrb[0].mxu0
    %v4687 = vadd.f32 0.0, %v4686
    %v4688 = vpop.f32.mrb[0].mxu0
    %v4689 = vpop.f32.mrb[0].mxu0
    %v4690 = vpop.f32.mrb[0].mxu0
    %4691 = vdwg.mxu0
    %v4693 = vshrl.u32 %v4329, 16
    %v4695 = vrot.slane %v4693, 7
    %v4696 = vshll.u32 %v4329, 16
    %v4698 = vor.u32 %v4695, %v4696
    %v4699 = vrot.slane %v4696, 1
    %v4700 = vor.u32 %v4693, %v4699
    %v4702 = vshrl.u32 %v4698, 16
    %v4704 = vshll.u32 %v4698, 16
    %v4706 = vrot.slane %v4704, 1
    %v4707 = vor.u32 %v4702, %v4706
    %4710 = vmatprep.subr.bf16.mxu0 0
    %4711 = vmatpush1.bf16.msra.mxu0 %v4476
    %4712 = vmatprep.subr.bf16.mxu0 0
    %4713 = vmatpush1.bf16.msra.mxu0 %v4477
    %4714 = vmatprep.subr.bf16.mxu0 0
    %4715 = vmatpush1.bf16.msra.mxu0 %v4478
    %4716 = vmatprep.subr.bf16.mxu0 0
    %4717 = vmatpush1.bf16.msra.mxu0 %v4479
    %4718 = vmatprep.subr.bf16.mxu0 0
    %4719 = vmatpush1.bf16.msra.mxu0 %v4480
    %4720 = vmatprep.subr.bf16.mxu0 0
    %4721 = vmatpush1.bf16.msra.mxu0 %v4481
    %4722 = vmatprep.subr.bf16.mxu0 0
    %4723 = vmatpush1.bf16.msra.mxu0 %v4482
    %4724 = vmatprep.subr.bf16.mxu0 0
    %4725 = vmatpush1.bf16.msra.mxu0 %v4483
    %4726 = vmatprep.subr.bf16.mxu0 0
    %4727 = vmatpush1.bf16.msra.mxu0 %v4484
    %4728 = vmatprep.subr.bf16.mxu0 0
    %4729 = vmatpush1.bf16.msra.mxu0 %v4485
    %4730 = vmatprep.subr.bf16.mxu0 0
    %4731 = vmatpush1.bf16.msra.mxu0 %v4486
    %4732 = vmatprep.subr.bf16.mxu0 0
    %4733 = vmatpush1.bf16.msra.mxu0 %v4487
    %4734 = vmatprep.subr.bf16.mxu0 0
    %4735 = vmatpush1.bf16.msra.mxu0 %v4488
    %4736 = vmatprep.subr.bf16.mxu0 0
    %4737 = vmatpush1.bf16.msra.mxu0 %v4489
    %4738 = vmatprep.subr.bf16.mxu0 0
    %4739 = vmatpush1.bf16.msra.mxu0 %v4490
    %4740 = vmatprep.subr.bf16.mxu0 0
    %4741 = vmatpush1.bf16.msra.mxu0 %v4491
    %4742 = vmatprep.mubr.bf16.mxu0 %v4707
    %4743 = vmatmul.mubr.bf16.gmra.mrb[0].mxu0 %v4700
    %v4744 = vpop.f32.mrb[0].mxu0
    %v4745 = vadd.f32 0.0, %v4744
    %v4746 = vpop.f32.mrb[0].mxu0
    %v4747 = vpop.f32.mrb[0].mxu0
    %v4748 = vpop.f32.mrb[0].mxu0
    %4749 = vdwg.mxu0
    %v4751 = vshrl.u32 %v4700, 16
    %v4753 = vshll.u32 %v4700, 16
    %v4755 = vrot.slane %v4753, 1
    %v4756 = vor.u32 %v4751, %v4755
    %4758 = vmatprep.subr.bf16.mxu0 0
    %4759 = vmatpush1.bf16.msra.mxu0 %v4620
    %4760 = vmatprep.subr.bf16.mxu0 0
    %4761 = vmatpush1.bf16.msra.mxu0 %v4621
    %4762 = vmatprep.subr.bf16.mxu0 0
    %4763 = vmatpush1.bf16.msra.mxu0 %v4622
    %4764 = vmatprep.subr.bf16.mxu0 0
    %4765 = vmatpush1.bf16.msra.mxu0 %v4623
    %4766 = vmatprep.subr.bf16.mxu0 0
    %4767 = vmatpush1.bf16.msra.mxu0 %v4624
    %4768 = vmatprep.subr.bf16.mxu0 0
    %4769 = vmatpush1.bf16.msra.mxu0 %v4625
    %4770 = vmatprep.subr.bf16.mxu0 0
    %4771 = vmatpush1.bf16.msra.mxu0 %v4626
    %4772 = vmatprep.subr.bf16.mxu0 0
    %4773 = vmatpush1.bf16.msra.mxu0 %v4627
    %4774 = vmatprep.subr.bf16.mxu0 0
    %4775 = vmatpush1.bf16.msra.mxu0 %v4628
    %4776 = vmatprep.subr.bf16.mxu0 0
    %4777 = vmatpush1.bf16.msra.mxu0 %v4629
    %4778 = vmatprep.subr.bf16.mxu0 0
    %4779 = vmatpush1.bf16.msra.mxu0 %v4630
    %4780 = vmatprep.subr.bf16.mxu0 0
    %4781 = vmatpush1.bf16.msra.mxu0 %v4631
    %4782 = vmatprep.subr.bf16.mxu0 0
    %4783 = vmatpush1.bf16.msra.mxu0 %v4632
    %4784 = vmatprep.subr.bf16.mxu0 0
    %4785 = vmatpush1.bf16.msra.mxu0 %v4633
    %4786 = vmatprep.subr.bf16.mxu0 0
    %4787 = vmatpush1.bf16.msra.mxu0 %v4634
    %4788 = vmatprep.subr.bf16.mxu0 0
    %4789 = vmatpush1.bf16.msra.mxu0 %v4635
    %4790 = vmatprep.mubr.bf16.mxu0 %v4756
    %4791 = vmatmul.mubr.bf16.gmra.mrb[0].mxu0 %v4700
    %v4792 = vpop.f32.mrb[0].mxu0
    %v4793 = vadd.f32 0.0, %v4792
    %v4794 = vpop.f32.mrb[0].mxu0
    %v4795 = vpop.f32.mrb[0].mxu0
    %v4796 = vpop.f32.mrb[0].mxu0
    %4797 = vdwg.mxu0
    %v4798 = vld [vmem:[#allocation30] sm:$0xf]
    %v4799 = vld [vmem:[#allocation31] sm:$0xff]
    %v4800 = vld [vmem:[#allocation31 + $0x8] sm:$0xff]
    %v4801 = vld [vmem:[#allocation31 + $0x10] sm:$0xff]
    %v4802 = vld [vmem:[#allocation31 + $0x18] sm:$0xff]
    %v4803 = vld [vmem:[#allocation31 + $0x20] sm:$0xff]
    %v4804 = vld [vmem:[#allocation31 + $0x28] sm:$0xff]
    %v4805 = vld [vmem:[#allocation31 + $0x30] sm:$0xff]
    %v4806 = vld [vmem:[#allocation31 + $0x38] sm:$0xff]
    %v4807 = vld [vmem:[#allocation31 + $0x40] sm:$0xff]
    %v4808 = vld [vmem:[#allocation31 + $0x48] sm:$0xff]
    %v4809 = vld [vmem:[#allocation31 + $0x50] sm:$0xff]
    %v4810 = vld [vmem:[#allocation31 + $0x58] sm:$0xff]
    %v4811 = vld [vmem:[#allocation31 + $0x60] sm:$0xff]
    %v4812 = vld [vmem:[#allocation31 + $0x68] sm:$0xff]
    %v4813 = vld [vmem:[#allocation31 + $0x70] sm:$0xff]
    %v4814 = vld [vmem:[#allocation31 + $0x78] sm:$0xff]
    %v4815 = vld [vmem:[#allocation33] sm:$0x1]
    %v4816 = vld [vmem:[#allocation34] sm:$0x1]
    %v4817 = vsel %vm2635, %v4543, 0.0
    %v4818 = vrot.slane %v4817, 4
    %v4819 = vadd.f32 %v4817, %v4818
    %v4820 = vrot.slane %v4819, 2
    %v4821 = vadd.f32 %v4819, %v4820
    %v4822 = vrot.slane %v4821, 1
    %v4823 = vadd.f32 %v4821, %v4822
    %v4824 = vmul.f32 %v4543, %v4543
    %v4825 = vsel %vm2635, %v4824, 0.0
    %v4826 = vrot.slane %v4825, 4
    %v4827 = vadd.f32 %v4825, %v4826
    %v4828 = vrot.slane %v4827, 2
    %v4829 = vadd.f32 %v4827, %v4828
    %v4830 = vrot.slane %v4829, 1
    %v4831 = vadd.f32 %v4829, %v4830
    %v4832 = vsel %vm2635, %v4745, 0.0
    %v4833 = vrot.slane %v4832, 4
    %v4834 = vadd.f32 %v4832, %v4833
    %v4835 = vrot.slane %v4834, 2
    %v4836 = vadd.f32 %v4834, %v4835
    %v4837 = vrot.slane %v4836, 1
    %v4838 = vadd.f32 %v4836, %v4837
    %v4839 = vadd.f32 %v4823, %v4838
    %v4840 = vmul.f32 %v4745, %v4745
    %v4841 = vsel %vm2635, %v4840, 0.0
    %v4842 = vrot.slane %v4841, 4
    %v4843 = vadd.f32 %v4841, %v4842
    %v4844 = vrot.slane %v4843, 2
    %v4845 = vadd.f32 %v4843, %v4844
    %v4846 = vrot.slane %v4845, 1
    %v4847 = vadd.f32 %v4845, %v4846
    %v4848 = vadd.f32 %v4831, %v4847
    %v4849 = vsel %vm2635, %v4687, 0.0
    %v4850 = vrot.slane %v4849, 4
    %v4851 = vadd.f32 %v4849, %v4850
    %v4852 = vrot.slane %v4851, 2
    %v4853 = vadd.f32 %v4851, %v4852
    %v4854 = vrot.slane %v4853, 1
    %v4855 = vadd.f32 %v4853, %v4854
    %v4856 = vadd.f32 %v4839, %v4855
    %v4857 = vmul.f32 %v4687, %v4687
    %v4858 = vsel %vm2635, %v4857, 0.0
    %v4859 = vrot.slane %v4858, 4
    %v4860 = vadd.f32 %v4858, %v4859
    %v4861 = vrot.slane %v4860, 2
    %v4862 = vadd.f32 %v4860, %v4861
    %v4863 = vrot.slane %v4862, 1
    %v4864 = vadd.f32 %v4862, %v4863
    %v4865 = vadd.f32 %v4848, %v4864
    %v4866 = vsel %vm2635, %v4793, 0.0
    %v4867 = vrot.slane %v4866, 4
    %v4868 = vadd.f32 %v4866, %v4867
    %v4869 = vrot.slane %v4868, 2
    %v4870 = vadd.f32 %v4868, %v4869
    %v4871 = vrot.slane %v4870, 1
    %v4872 = vadd.f32 %v4870, %v4871
    %v4873 = vadd.f32 %v4856, %v4872
    %v4874 = vmul.f32 %v4793, %v4793
    %v4875 = vsel %vm2635, %v4874, 0.0
    %v4876 = vrot.slane %v4875, 4
    %v4877 = vadd.f32 %v4875, %v4876
    %v4878 = vrot.slane %v4877, 2
    %v4879 = vadd.f32 %v4877, %v4878
    %v4880 = vrot.slane %v4879, 1
    %v4881 = vadd.f32 %v4879, %v4880
    %v4882 = vadd.f32 %v4865, %v4881
    %v4883 = vsel %vm643, %v4873, %v4882
    %4884 = vmatprep.subr.mxu0 0.0
    %4885 = vmatpush1.msra.mxu0 %v4799
    %4886 = vmatprep.subr.mxu0 0.0
    %4887 = vmatpush1.msra.mxu0 %v4800
    %4888 = vmatprep.subr.mxu0 0.0
    %4889 = vmatpush1.msra.mxu0 %v4801
    %4890 = vmatprep.subr.mxu0 0.0
    %4891 = vmatpush1.msra.mxu0 %v4802
    %4892 = vmatprep.subr.mxu0 0.0
    %4893 = vmatpush1.msra.mxu0 %v4803
    %4894 = vmatprep.subr.mxu0 0.0
    %4895 = vmatpush1.msra.mxu0 %v4804
    %4896 = vmatprep.subr.mxu0 0.0
    %4897 = vmatpush1.msra.mxu0 %v4805
    %4898 = vmatprep.subr.mxu0 0.0
    %4899 = vmatpush1.msra.mxu0 %v4806
    %4900 = vmatprep.subr.mxu0 0.0
    %4901 = vmatpush1.msra.mxu0 %v4807
    %4902 = vmatprep.subr.mxu0 0.0
    %4903 = vmatpush1.msra.mxu0 %v4808
    %4904 = vmatprep.subr.mxu0 0.0
    %4905 = vmatpush1.msra.mxu0 %v4809
    %4906 = vmatprep.subr.mxu0 0.0
    %4907 = vmatpush1.msra.mxu0 %v4810
    %4908 = vmatprep.subr.mxu0 0.0
    %4909 = vmatpush1.msra.mxu0 %v4811
    %4910 = vmatprep.subr.mxu0 0.0
    %4911 = vmatpush1.msra.mxu0 %v4812
    %4912 = vmatprep.subr.mxu0 0.0
    %4913 = vmatpush1.msra.mxu0 %v4813
    %4914 = vmatprep.subr.mxu0 0.0
    %4915 = vmatpush1.msra.mxu0 %v4814
    %4916 = vmatprep.subr.mxu0 0.0
    %4917 = vmatpush1.msra.mxu0 0.0
    %4918 = vmatprep.subr.mxu0 0.0
    %4919 = vmatpush1.msra.mxu0 0.0
    %4920 = vmatprep.subr.mxu0 0.0
    %4921 = vmatpush1.msra.mxu0 0.0
    %4922 = vmatprep.subr.mxu0 0.0
    %4923 = vmatpush1.msra.mxu0 0.0
    %4924 = vmatprep.subr.mxu0 0.0
    %4925 = vmatpush1.msra.mxu0 0.0
    %4926 = vmatprep.subr.mxu0 0.0
    %4927 = vmatpush1.msra.mxu0 0.0
    %4928 = vmatprep.subr.mxu0 0.0
    %4929 = vmatpush1.msra.mxu0 0.0
    %4930 = vmatprep.subr.mxu0 0.0
    %4931 = vmatpush1.msra.mxu0 0.0
    %4932 = vmatprep.subr.mxu0 0.0
    %4933 = vmatpush1.msra.mxu0 0.0
    %4934 = vmatprep.subr.mxu0 0.0
    %4935 = vmatpush1.msra.mxu0 0.0
    %4936 = vmatprep.subr.mxu0 0.0
    %4937 = vmatpush1.msra.mxu0 0.0
    %4938 = vmatprep.subr.mxu0 0.0
    %4939 = vmatpush1.msra.mxu0 0.0
    %4940 = vmatprep.subr.mxu0 0.0
    %4941 = vmatpush1.msra.mxu0 0.0
    %4942 = vmatprep.subr.mxu0 0.0
    %4943 = vmatpush1.msra.mxu0 0.0
    %4944 = vmatprep.subr.mxu0 0.0
    %4945 = vmatpush1.msra.mxu0 0.0
    %4946 = vmatprep.subr.mxu0 0.0
    %4947 = vmatpush1.msra.mxu0 0.0
    %4948 = vmatprep.mubr.f32.mxu0 0.0
    %4949 = vmatmul.mubr.f32.gmra.mrb[0].mxu0 %v4883
    %v4950 = vpop.f32.mrb[0].mxu0
    %v4951 = vadd.f32 0.0, %v4950
    %v4952 = vpop.f32.mrb[0].mxu0
    %4953 = vdwg.mxu0
    %v4954 = vmul.f32 %v4951, %v2012
    %v4955 = vmul.f32 %v4954, %v4954
    %v4957 = vrot.slane %v4955, 7
    %v4959 = vsub.f32 %v4954, %v4957
    %v4960 = vmax.f32 %v4959, 0.0
    %v4961 = vadd.f32 %v4960, 1e-05
    %v4962 = vrsqrt.pop %v4961
    %v4965 = vunpack.c.l.s4 1966171168
    %v4966 = vunpack.c.0.s8 %v4965
    %v4967 = vlaneseq
    %v4968 = vshrl.u32 %v4967, 7
    %v4969 = vsub.s32 %v4966, %v4968
    %v4970 = vrot.slane %v4962, %v4969
    %v4971 = vcombine.high %v4970, %v4970
    %v4973 = vunpack.c.l.s4 1966171168
    %v4974 = vunpack.c.0.s8 %v4973
    %v4975 = vlaneseq
    %v4976 = vshrl.u32 %v4975, 7
    %v4977 = vsub.s32 %v4974, %v4976
    %v4978 = vrot.slane %v4971, %v4977
    %v4980 = vmul.f32 %v4815, %v4978
    %v4981 = vmul.f32 %v4954, %v4980
    %v4982 = vsub.f32 %v4816, %v4981
    %v4984 = vlaneseq
    %v4985 = vshrl.u32 %v4984, 7
    %v4986 = vsub.s32 0, %v4985
    %v4987 = vrot.slane %v4980, %v4986
    %v4989 = vmul.f32 %v4543, %v4987
    %v4991 = vlaneseq
    %v4992 = vshrl.u32 %v4991, 7
    %v4993 = vsub.s32 0, %v4992
    %v4994 = vrot.slane %v4982, %v4993
    %v4996 = vadd.f32 %v4989, %v4994
    %v4997 = vmax.f32 %v4996, 0.0
    %v4998 = vmul.f32 %v4745, %v4987
    %v4999 = vadd.f32 %v4998, %v4994
    %v5000 = vmax.f32 %v4999, 0.0
    %v5001 = vmul.f32 %v4687, %v4987
    %v5002 = vadd.f32 %v5001, %v4994
    %v5003 = vmax.f32 %v5002, 0.0
    %v5004 = vmul.f32 %v4793, %v4987
    %v5005 = vadd.f32 %v5004, %v4994
    %v5006 = vmax.f32 %v5005, 0.0
    %v5008 = vrot.slane %v5003, 4
    %v5010 = vsel %vm2635, %v4997, %v5008
    %v5011 = vpack.c.bf16 %v5010, %v5010
    %vm5012 = vcmask 64512
    %v5014 = vsel %vm5012, %v4798, 0
    %v5017 = vsel %vm2635, %v5011, 0
    %5019 = vmatprep.subr.bf16.mxu0 0
    %5020 = vmatpush1.bf16.msra.mxu0 %v5017
    %5021 = vmatprep.subr.bf16.mxu0 0
    %5022 = vmatpush1.bf16.msra.mxu0 0
    %5023 = vmatprep.subr.bf16.mxu0 0
    %5024 = vmatpush1.bf16.msra.mxu0 0
    %5025 = vmatprep.subr.bf16.mxu0 0
    %5026 = vmatpush1.bf16.msra.mxu0 0
    %5027 = vmatprep.subr.bf16.mxu0 0
    %5028 = vmatpush1.bf16.msra.mxu0 0
    %5029 = vmatprep.subr.bf16.mxu0 0
    %5030 = vmatpush1.bf16.msra.mxu0 0
    %5031 = vmatprep.subr.bf16.mxu0 0
    %5032 = vmatpush1.bf16.msra.mxu0 0
    %5033 = vmatprep.subr.bf16.mxu0 0
    %5034 = vmatpush1.bf16.msra.mxu0 0
    %5035 = vmatprep.subr.bf16.mxu0 0
    %5036 = vmatpush1.bf16.msra.mxu0 0
    %5037 = vmatprep.subr.bf16.mxu0 0
    %5038 = vmatpush1.bf16.msra.mxu0 0
    %5039 = vmatprep.subr.bf16.mxu0 0
    %5040 = vmatpush1.bf16.msra.mxu0 0
    %5041 = vmatprep.subr.bf16.mxu0 0
    %5042 = vmatpush1.bf16.msra.mxu0 0
    %5043 = vmatprep.subr.bf16.mxu0 0
    %5044 = vmatpush1.bf16.msra.mxu0 0
    %5045 = vmatprep.subr.bf16.mxu0 0
    %5046 = vmatpush1.bf16.msra.mxu0 0
    %5047 = vmatprep.subr.bf16.mxu0 0
    %5048 = vmatpush1.bf16.msra.mxu0 0
    %5049 = vmatprep.subr.bf16.mxu0 0
    %5050 = vmatpush1.bf16.msra.mxu0 0
    %5051 = vmatprep.mubr.bf16.mxu0 0
    %5052 = vmatmul.mubr.bf16.gmra.mrb[0].mxu0 %v5014
    %v5053 = vpop.f32.mrb[0].mxu0
    %v5054 = vadd.f32 0.0, %v5053
    %v5055 = vpop.f32.mrb[0].mxu0
    %v5056 = vpop.f32.mrb[0].mxu0
    %v5057 = vpop.f32.mrb[0].mxu0
    %5058 = vdwg.mxu0
    %v5059 = vpack.c.bf16 %v5054, %v5054
    %v5061 = vshrl.u32 %v5059, 16
    %v5063 = vrot.slane %v5061, 7
    %v5064 = vshll.u32 %v5059, 16
    %v5066 = vor.u32 %v5063, %v5064
    %v5068 = vsel %vm1323, 0, %v5066
    %v5069 = vsel %vm2072, %v5068, 0
    %v5071 = vrot.slane %v5006, 4
    %v5073 = vsel %vm2635, %v5000, %v5071
    %v5074 = vpack.c.bf16 %v5073, %v5073
    %v5076 = vsel %vm2635, %v5074, 0
    %5078 = vmatprep.subr.bf16.mxu0 0
    %5079 = vmatpush1.bf16.msra.mxu0 %v5076
    %5080 = vmatprep.subr.bf16.mxu0 0
    %5081 = vmatpush1.bf16.msra.mxu0 0
    %5082 = vmatprep.subr.bf16.mxu0 0
    %5083 = vmatpush1.bf16.msra.mxu0 0
    %5084 = vmatprep.subr.bf16.mxu0 0
    %5085 = vmatpush1.bf16.msra.mxu0 0
    %5086 = vmatprep.subr.bf16.mxu0 0
    %5087 = vmatpush1.bf16.msra.mxu0 0
    %5088 = vmatprep.subr.bf16.mxu0 0
    %5089 = vmatpush1.bf16.msra.mxu0 0
    %5090 = vmatprep.subr.bf16.mxu0 0
    %5091 = vmatpush1.bf16.msra.mxu0 0
    %5092 = vmatprep.subr.bf16.mxu0 0
    %5093 = vmatpush1.bf16.msra.mxu0 0
    %5094 = vmatprep.subr.bf16.mxu0 0
    %5095 = vmatpush1.bf16.msra.mxu0 0
    %5096 = vmatprep.subr.bf16.mxu0 0
    %5097 = vmatpush1.bf16.msra.mxu0 0
    %5098 = vmatprep.subr.bf16.mxu0 0
    %5099 = vmatpush1.bf16.msra.mxu0 0
    %5100 = vmatprep.subr.bf16.mxu0 0
    %5101 = vmatpush1.bf16.msra.mxu0 0
    %5102 = vmatprep.subr.bf16.mxu0 0
    %5103 = vmatpush1.bf16.msra.mxu0 0
    %5104 = vmatprep.subr.bf16.mxu0 0
    %5105 = vmatpush1.bf16.msra.mxu0 0
    %5106 = vmatprep.subr.bf16.mxu0 0
    %5107 = vmatpush1.bf16.msra.mxu0 0
    %5108 = vmatprep.subr.bf16.mxu0 0
    %5109 = vmatpush1.bf16.msra.mxu0 0
    %5110 = vmatprep.mubr.bf16.mxu0 0
    %5111 = vmatmul.mubr.bf16.gmra.mrb[0].mxu0 %v5014
    %v5112 = vpop.f32.mrb[0].mxu0
    %v5113 = vadd.f32 0.0, %v5112
    %v5114 = vpop.f32.mrb[0].mxu0
    %v5115 = vpop.f32.mrb[0].mxu0
    %v5116 = vpop.f32.mrb[0].mxu0
    %5117 = vdwg.mxu0
    %v5118 = vpack.c.bf16 %v5113, %v5113
    %v5120 = vshrl.u32 %v5118, 16
    %v5122 = vrot.slane %v5120, 7
    %v5123 = vshll.u32 %v5118, 16
    %v5125 = vor.u32 %v5122, %v5123
    %v5127 = vsel %vm1323, 0, %v5125
    %v5128 = vsel %vm2072, %v5127, 0
    %v5129 = vld [vmem:[#allocation36] sm:$0xf]
    %v5130 = vld [vmem:[#allocation36 + $0x4] sm:$0xf]
    %v5131 = vld [vmem:[#allocation36 + $0x8] sm:$0xf]
    %v5132 = vld [vmem:[#allocation36 + $0xc] sm:$0xf]
    %v5133 = vld [vmem:[#allocation36 + $0x10] sm:$0xf]
    %v5134 = vld [vmem:[#allocation36 + $0x14] sm:$0xf]
    %v5135 = vld [vmem:[#allocation36 + $0x18] sm:$0xf]
    %v5136 = vld [vmem:[#allocation36 + $0x1c] sm:$0xf]
    %v5137 = vld [vmem:[#allocation36 + $0x20] sm:$0xf]
    %v5138 = vld [vmem:[#allocation36 + $0x24] sm:$0xf]
    %v5139 = vld [vmem:[#allocation36 + $0x28] sm:$0xf]
    %v5140 = vld [vmem:[#allocation36 + $0x2c] sm:$0xf]
    %v5141 = vld [vmem:[#allocation36 + $0x30] sm:$0xf]
    %v5142 = vld [vmem:[#allocation36 + $0x34] sm:$0xf]
    %v5143 = vld [vmem:[#allocation36 + $0x38] sm:$0xf]
    %v5144 = vld [vmem:[#allocation36 + $0x3c] sm:$0xf]
    %v5145 = vld [vmem:[#allocation36 + $0x40] sm:$0xf]
    %v5146 = vld [vmem:[#allocation36 + $0x44] sm:$0xf]
    %v5147 = vld [vmem:[#allocation36 + $0x48] sm:$0xf]
    %v5148 = vld [vmem:[#allocation36 + $0x4c] sm:$0xf]
    %v5149 = vld [vmem:[#allocation36 + $0x50] sm:$0xf]
    %v5150 = vld [vmem:[#allocation36 + $0x54] sm:$0xf]
    %v5151 = vld [vmem:[#allocation36 + $0x58] sm:$0xf]
    %v5152 = vld [vmem:[#allocation36 + $0x5c] sm:$0xf]
    %v5153 = vld [vmem:[#allocation36 + $0x60] sm:$0xf]
    %v5154 = vld [vmem:[#allocation36 + $0x64] sm:$0xf]
    %v5155 = vld [vmem:[#allocation36 + $0x68] sm:$0xf]
    %v5156 = vld [vmem:[#allocation36 + $0x6c] sm:$0xf]
    %v5157 = vld [vmem:[#allocation36 + $0x70] sm:$0xf]
    %v5158 = vld [vmem:[#allocation36 + $0x74] sm:$0xf]
    %v5159 = vld [vmem:[#allocation36 + $0x78] sm:$0xf]
    %v5160 = vld [vmem:[#allocation36 + $0x7c] sm:$0xf]
    %v5161 = vld [vmem:[#allocation37] sm:$0xf]
    %v5162 = vld [vmem:[#allocation37 + $0x4] sm:$0xf]
    %v5163 = vld [vmem:[#allocation37 + $0x8] sm:$0xf]
    %v5164 = vld [vmem:[#allocation37 + $0xc] sm:$0xf]
    %v5165 = vld [vmem:[#allocation37 + $0x10] sm:$0xf]
    %v5166 = vld [vmem:[#allocation37 + $0x14] sm:$0xf]
    %v5167 = vld [vmem:[#allocation37 + $0x18] sm:$0xf]
    %v5168 = vld [vmem:[#allocation37 + $0x1c] sm:$0xf]
    %v5169 = vld [vmem:[#allocation37 + $0x20] sm:$0xf]
    %v5170 = vld [vmem:[#allocation37 + $0x24] sm:$0xf]
    %v5171 = vld [vmem:[#allocation37 + $0x28] sm:$0xf]
    %v5172 = vld [vmem:[#allocation37 + $0x2c] sm:$0xf]
    %v5173 = vld [vmem:[#allocation37 + $0x30] sm:$0xf]
    %v5174 = vld [vmem:[#allocation37 + $0x34] sm:$0xf]
    %v5175 = vld [vmem:[#allocation37 + $0x38] sm:$0xf]
    %v5176 = vld [vmem:[#allocation37 + $0x3c] sm:$0xf]
    %v5177 = vld [vmem:[#allocation37 + $0x40] sm:$0xf]
    %v5178 = vld [vmem:[#allocation37 + $0x44] sm:$0xf]
    %v5179 = vld [vmem:[#allocation37 + $0x48] sm:$0xf]
    %v5180 = vld [vmem:[#allocation37 + $0x4c] sm:$0xf]
    %v5181 = vld [vmem:[#allocation37 + $0x50] sm:$0xf]
    %v5182 = vld [vmem:[#allocation37 + $0x54] sm:$0xf]
    %v5183 = vld [vmem:[#allocation37 + $0x58] sm:$0xf]
    %v5184 = vld [vmem:[#allocation37 + $0x5c] sm:$0xf]
    %v5185 = vld [vmem:[#allocation37 + $0x60] sm:$0xf]
    %v5186 = vld [vmem:[#allocation37 + $0x64] sm:$0xf]
    %v5187 = vld [vmem:[#allocation37 + $0x68] sm:$0xf]
    %v5188 = vld [vmem:[#allocation37 + $0x6c] sm:$0xf]
    %v5189 = vld [vmem:[#allocation37 + $0x70] sm:$0xf]
    %v5190 = vld [vmem:[#allocation37 + $0x74] sm:$0xf]
    %v5191 = vld [vmem:[#allocation37 + $0x78] sm:$0xf]
    %v5192 = vld [vmem:[#allocation37 + $0x7c] sm:$0xf]
    %v5194 = vshrl.u32 %v5069, 16
    %v5196 = vrot.slane %v5194, 7
    %v5197 = vshll.u32 %v5069, 16
    %v5199 = vor.u32 %v5196, %v5197
    %v5200 = vrot.slane %v5197, 1
    %v5201 = vor.u32 %v5194, %v5200
    %v5203 = vshrl.u32 %v5199, 16
    %v5205 = vshll.u32 %v5199, 16
    %v5207 = vrot.slane %v5205, 1
    %v5208 = vor.u32 %v5203, %v5207
    %v5243 = vunpack.c.l.b16 %v5129
    %v5244 = vunpack.c.l.b16 %v5130
    %v5245 = vunpack.c.l.b16 %v5131
    %v5246 = vunpack.c.l.b16 %v5132
    %v5247 = vunpack.c.l.b16 %v5133
    %v5248 = vunpack.c.l.b16 %v5134
    %v5249 = vunpack.c.l.b16 %v5135
    %v5250 = vunpack.c.l.b16 %v5136
    %v5251 = vunpack.c.l.b16 %v5137
    %v5252 = vunpack.c.l.b16 %v5138
    %v5253 = vunpack.c.l.b16 %v5139
    %v5254 = vunpack.c.l.b16 %v5140
    %v5255 = vunpack.c.l.b16 %v5141
    %v5256 = vunpack.c.l.b16 %v5142
    %v5257 = vunpack.c.l.b16 %v5143
    %v5258 = vunpack.c.l.b16 %v5144
    %v5259 = vunpack.c.l.b16 %v5145
    %v5260 = vunpack.c.l.b16 %v5146
    %v5261 = vunpack.c.l.b16 %v5147
    %v5262 = vunpack.c.l.b16 %v5148
    %v5263 = vunpack.c.l.b16 %v5149
    %v5264 = vunpack.c.l.b16 %v5150
    %v5265 = vunpack.c.l.b16 %v5151
    %v5266 = vunpack.c.l.b16 %v5152
    %v5267 = vunpack.c.l.b16 %v5153
    %v5268 = vunpack.c.l.b16 %v5154
    %v5269 = vunpack.c.l.b16 %v5155
    %v5270 = vunpack.c.l.b16 %v5156
    %v5271 = vunpack.c.l.b16 %v5157
    %v5272 = vunpack.c.l.b16 %v5158
    %v5273 = vunpack.c.l.b16 %v5159
    %v5274 = vunpack.c.l.b16 %v5160
    %v5275 = vpack.c.b16 %v5244, %v5243
    %v5276 = vpack.c.b16 %v5246, %v5245
    %v5277 = vpack.c.b16 %v5248, %v5247
    %v5278 = vpack.c.b16 %v5250, %v5249
    %v5279 = vpack.c.b16 %v5252, %v5251
    %v5280 = vpack.c.b16 %v5254, %v5253
    %v5281 = vpack.c.b16 %v5256, %v5255
    %v5282 = vpack.c.b16 %v5258, %v5257
    %v5283 = vpack.c.b16 %v5260, %v5259
    %v5284 = vpack.c.b16 %v5262, %v5261
    %v5285 = vpack.c.b16 %v5264, %v5263
    %v5286 = vpack.c.b16 %v5266, %v5265
    %v5287 = vpack.c.b16 %v5268, %v5267
    %v5288 = vpack.c.b16 %v5270, %v5269
    %v5289 = vpack.c.b16 %v5272, %v5271
    %v5290 = vpack.c.b16 %v5274, %v5273
    %5307 = vmatprep.subr.bf16.mxu0 0
    %5308 = vmatpush1.bf16.msra.mxu0 %v5275
    %5309 = vmatprep.subr.bf16.mxu0 0
    %5310 = vmatpush1.bf16.msra.mxu0 %v5276
    %5311 = vmatprep.subr.bf16.mxu0 0
    %5312 = vmatpush1.bf16.msra.mxu0 %v5277
    %5313 = vmatprep.subr.bf16.mxu0 0
    %5314 = vmatpush1.bf16.msra.mxu0 %v5278
    %5315 = vmatprep.subr.bf16.mxu0 0
    %5316 = vmatpush1.bf16.msra.mxu0 %v5279
    %5317 = vmatprep.subr.bf16.mxu0 0
    %5318 = vmatpush1.bf16.msra.mxu0 %v5280
    %5319 = vmatprep.subr.bf16.mxu0 0
    %5320 = vmatpush1.bf16.msra.mxu0 %v5281
    %5321 = vmatprep.subr.bf16.mxu0 0
    %5322 = vmatpush1.bf16.msra.mxu0 %v5282
    %5323 = vmatprep.subr.bf16.mxu0 0
    %5324 = vmatpush1.bf16.msra.mxu0 %v5283
    %5325 = vmatprep.subr.bf16.mxu0 0
    %5326 = vmatpush1.bf16.msra.mxu0 %v5284
    %5327 = vmatprep.subr.bf16.mxu0 0
    %5328 = vmatpush1.bf16.msra.mxu0 %v5285
    %5329 = vmatprep.subr.bf16.mxu0 0
    %5330 = vmatpush1.bf16.msra.mxu0 %v5286
    %5331 = vmatprep.subr.bf16.mxu0 0
    %5332 = vmatpush1.bf16.msra.mxu0 %v5287
    %5333 = vmatprep.subr.bf16.mxu0 0
    %5334 = vmatpush1.bf16.msra.mxu0 %v5288
    %5335 = vmatprep.subr.bf16.mxu0 0
    %5336 = vmatpush1.bf16.msra.mxu0 %v5289
    %5337 = vmatprep.subr.bf16.mxu0 0
    %5338 = vmatpush1.bf16.msra.mxu0 %v5290
    %5339 = vmatprep.mubr.bf16.mxu0 %v5208
    %5340 = vmatmul.mubr.bf16.gmra.mrb[0].mxu0 %v5201
    %v5341 = vpop.f32.mrb[0].mxu0
    %v5342 = vadd.f32 0.0, %v5341
    %v5343 = vpop.f32.mrb[0].mxu0
    %v5344 = vpop.f32.mrb[0].mxu0
    %v5345 = vpop.f32.mrb[0].mxu0
    %5346 = vdwg.mxu0
    %v5348 = vshrl.u32 %v5201, 16
    %v5350 = vshll.u32 %v5201, 16
    %v5352 = vrot.slane %v5350, 1
    %v5353 = vor.u32 %v5348, %v5352
    %v5387 = vunpack.c.l.b16 %v5161
    %v5388 = vunpack.c.l.b16 %v5162
    %v5389 = vunpack.c.l.b16 %v5163
    %v5390 = vunpack.c.l.b16 %v5164
    %v5391 = vunpack.c.l.b16 %v5165
    %v5392 = vunpack.c.l.b16 %v5166
    %v5393 = vunpack.c.l.b16 %v5167
    %v5394 = vunpack.c.l.b16 %v5168
    %v5395 = vunpack.c.l.b16 %v5169
    %v5396 = vunpack.c.l.b16 %v5170
    %v5397 = vunpack.c.l.b16 %v5171
    %v5398 = vunpack.c.l.b16 %v5172
    %v5399 = vunpack.c.l.b16 %v5173
    %v5400 = vunpack.c.l.b16 %v5174
    %v5401 = vunpack.c.l.b16 %v5175
    %v5402 = vunpack.c.l.b16 %v5176
    %v5403 = vunpack.c.l.b16 %v5177
    %v5404 = vunpack.c.l.b16 %v5178
    %v5405 = vunpack.c.l.b16 %v5179
    %v5406 = vunpack.c.l.b16 %v5180
    %v5407 = vunpack.c.l.b16 %v5181
    %v5408 = vunpack.c.l.b16 %v5182
    %v5409 = vunpack.c.l.b16 %v5183
    %v5410 = vunpack.c.l.b16 %v5184
    %v5411 = vunpack.c.l.b16 %v5185
    %v5412 = vunpack.c.l.b16 %v5186
    %v5413 = vunpack.c.l.b16 %v5187
    %v5414 = vunpack.c.l.b16 %v5188
    %v5415 = vunpack.c.l.b16 %v5189
    %v5416 = vunpack.c.l.b16 %v5190
    %v5417 = vunpack.c.l.b16 %v5191
    %v5418 = vunpack.c.l.b16 %v5192
    %v5419 = vpack.c.b16 %v5388, %v5387
    %v5420 = vpack.c.b16 %v5390, %v5389
    %v5421 = vpack.c.b16 %v5392, %v5391
    %v5422 = vpack.c.b16 %v5394, %v5393
    %v5423 = vpack.c.b16 %v5396, %v5395
    %v5424 = vpack.c.b16 %v5398, %v5397
    %v5425 = vpack.c.b16 %v5400, %v5399
    %v5426 = vpack.c.b16 %v5402, %v5401
    %v5427 = vpack.c.b16 %v5404, %v5403
    %v5428 = vpack.c.b16 %v5406, %v5405
    %v5429 = vpack.c.b16 %v5408, %v5407
    %v5430 = vpack.c.b16 %v5410, %v5409
    %v5431 = vpack.c.b16 %v5412, %v5411
    %v5432 = vpack.c.b16 %v5414, %v5413
    %v5433 = vpack.c.b16 %v5416, %v5415
    %v5434 = vpack.c.b16 %v5418, %v5417
    %5451 = vmatprep.subr.bf16.mxu0 0
    %5452 = vmatpush1.bf16.msra.mxu0 %v5419
    %5453 = vmatprep.subr.bf16.mxu0 0
    %5454 = vmatpush1.bf16.msra.mxu0 %v5420
    %5455 = vmatprep.subr.bf16.mxu0 0
    %5456 = vmatpush1.bf16.msra.mxu0 %v5421
    %5457 = vmatprep.subr.bf16.mxu0 0
    %5458 = vmatpush1.bf16.msra.mxu0 %v5422
    %5459 = vmatprep.subr.bf16.mxu0 0
    %5460 = vmatpush1.bf16.msra.mxu0 %v5423
    %5461 = vmatprep.subr.bf16.mxu0 0
    %5462 = vmatpush1.bf16.msra.mxu0 %v5424
    %5463 = vmatprep.subr.bf16.mxu0 0
    %5464 = vmatpush1.bf16.msra.mxu0 %v5425
    %5465 = vmatprep.subr.bf16.mxu0 0
    %5466 = vmatpush1.bf16.msra.mxu0 %v5426
    %5467 = vmatprep.subr.bf16.mxu0 0
    %5468 = vmatpush1.bf16.msra.mxu0 %v5427
    %5469 = vmatprep.subr.bf16.mxu0 0
    %5470 = vmatpush1.bf16.msra.mxu0 %v5428
    %5471 = vmatprep.subr.bf16.mxu0 0
    %5472 = vmatpush1.bf16.msra.mxu0 %v5429
    %5473 = vmatprep.subr.bf16.mxu0 0
    %5474 = vmatpush1.bf16.msra.mxu0 %v5430
    %5475 = vmatprep.subr.bf16.mxu0 0
    %5476 = vmatpush1.bf16.msra.mxu0 %v5431
    %5477 = vmatprep.subr.bf16.mxu0 0
    %5478 = vmatpush1.bf16.msra.mxu0 %v5432
    %5479 = vmatprep.subr.bf16.mxu0 0
    %5480 = vmatpush1.bf16.msra.mxu0 %v5433
    %5481 = vmatprep.subr.bf16.mxu0 0
    %5482 = vmatpush1.bf16.msra.mxu0 %v5434
    %5483 = vmatprep.mubr.bf16.mxu0 %v5353
    %5484 = vmatmul.mubr.bf16.gmra.mrb[0].mxu0 %v5201
    %v5485 = vpop.f32.mrb[0].mxu0
    %v5486 = vadd.f32 0.0, %v5485
    %v5487 = vpop.f32.mrb[0].mxu0
    %v5488 = vpop.f32.mrb[0].mxu0
    %v5489 = vpop.f32.mrb[0].mxu0
    %5490 = vdwg.mxu0
    %v5492 = vshrl.u32 %v5128, 16
    %v5494 = vrot.slane %v5492, 7
    %v5495 = vshll.u32 %v5128, 16
    %v5497 = vor.u32 %v5494, %v5495
    %v5498 = vrot.slane %v5495, 1
    %v5499 = vor.u32 %v5492, %v5498
    %v5501 = vshrl.u32 %v5497, 16
    %v5503 = vshll.u32 %v5497, 16
    %v5505 = vrot.slane %v5503, 1
    %v5506 = vor.u32 %v5501, %v5505
    %5509 = vmatprep.subr.bf16.mxu0 0
    %5510 = vmatpush1.bf16.msra.mxu0 %v5275
    %5511 = vmatprep.subr.bf16.mxu0 0
    %5512 = vmatpush1.bf16.msra.mxu0 %v5276
    %5513 = vmatprep.subr.bf16.mxu0 0
    %5514 = vmatpush1.bf16.msra.mxu0 %v5277
    %5515 = vmatprep.subr.bf16.mxu0 0
    %5516 = vmatpush1.bf16.msra.mxu0 %v5278
    %5517 = vmatprep.subr.bf16.mxu0 0
    %5518 = vmatpush1.bf16.msra.mxu0 %v5279
    %5519 = vmatprep.subr.bf16.mxu0 0
    %5520 = vmatpush1.bf16.msra.mxu0 %v5280
    %5521 = vmatprep.subr.bf16.mxu0 0
    %5522 = vmatpush1.bf16.msra.mxu0 %v5281
    %5523 = vmatprep.subr.bf16.mxu0 0
    %5524 = vmatpush1.bf16.msra.mxu0 %v5282
    %5525 = vmatprep.subr.bf16.mxu0 0
    %5526 = vmatpush1.bf16.msra.mxu0 %v5283
    %5527 = vmatprep.subr.bf16.mxu0 0
    %5528 = vmatpush1.bf16.msra.mxu0 %v5284
    %5529 = vmatprep.subr.bf16.mxu0 0
    %5530 = vmatpush1.bf16.msra.mxu0 %v5285
    %5531 = vmatprep.subr.bf16.mxu0 0
    %5532 = vmatpush1.bf16.msra.mxu0 %v5286
    %5533 = vmatprep.subr.bf16.mxu0 0
    %5534 = vmatpush1.bf16.msra.mxu0 %v5287
    %5535 = vmatprep.subr.bf16.mxu0 0
    %5536 = vmatpush1.bf16.msra.mxu0 %v5288
    %5537 = vmatprep.subr.bf16.mxu0 0
    %5538 = vmatpush1.bf16.msra.mxu0 %v5289
    %5539 = vmatprep.subr.bf16.mxu0 0
    %5540 = vmatpush1.bf16.msra.mxu0 %v5290
    %5541 = vmatprep.mubr.bf16.mxu0 %v5506
    %5542 = vmatmul.mubr.bf16.gmra.mrb[0].mxu0 %v5499
    %v5543 = vpop.f32.mrb[0].mxu0
    %v5544 = vadd.f32 0.0, %v5543
    %v5545 = vpop.f32.mrb[0].mxu0
    %v5546 = vpop.f32.mrb[0].mxu0
    %v5547 = vpop.f32.mrb[0].mxu0
    %5548 = vdwg.mxu0
    %v5550 = vshrl.u32 %v5499, 16
    %v5552 = vshll.u32 %v5499, 16
    %v5554 = vrot.slane %v5552, 1
    %v5555 = vor.u32 %v5550, %v5554
    %5557 = vmatprep.subr.bf16.mxu0 0
    %5558 = vmatpush1.bf16.msra.mxu0 %v5419
    %5559 = vmatprep.subr.bf16.mxu0 0
    %5560 = vmatpush1.bf16.msra.mxu0 %v5420
    %5561 = vmatprep.subr.bf16.mxu0 0
    %5562 = vmatpush1.bf16.msra.mxu0 %v5421
    %5563 = vmatprep.subr.bf16.mxu0 0
    %5564 = vmatpush1.bf16.msra.mxu0 %v5422
    %5565 = vmatprep.subr.bf16.mxu0 0
    %5566 = vmatpush1.bf16.msra.mxu0 %v5423
    %5567 = vmatprep.subr.bf16.mxu0 0
    %5568 = vmatpush1.bf16.msra.mxu0 %v5424
    %5569 = vmatprep.subr.bf16.mxu0 0
    %5570 = vmatpush1.bf16.msra.mxu0 %v5425
    %5571 = vmatprep.subr.bf16.mxu0 0
    %5572 = vmatpush1.bf16.msra.mxu0 %v5426
    %5573 = vmatprep.subr.bf16.mxu0 0
    %5574 = vmatpush1.bf16.msra.mxu0 %v5427
    %5575 = vmatprep.subr.bf16.mxu0 0
    %5576 = vmatpush1.bf16.msra.mxu0 %v5428
    %5577 = vmatprep.subr.bf16.mxu0 0
    %5578 = vmatpush1.bf16.msra.mxu0 %v5429
    %5579 = vmatprep.subr.bf16.mxu0 0
    %5580 = vmatpush1.bf16.msra.mxu0 %v5430
    %5581 = vmatprep.subr.bf16.mxu0 0
    %5582 = vmatpush1.bf16.msra.mxu0 %v5431
    %5583 = vmatprep.subr.bf16.mxu0 0
    %5584 = vmatpush1.bf16.msra.mxu0 %v5432
    %5585 = vmatprep.subr.bf16.mxu0 0
    %5586 = vmatpush1.bf16.msra.mxu0 %v5433
    %5587 = vmatprep.subr.bf16.mxu0 0
    %5588 = vmatpush1.bf16.msra.mxu0 %v5434
    %5589 = vmatprep.mubr.bf16.mxu0 %v5555
    %5590 = vmatmul.mubr.bf16.gmra.mrb[0].mxu0 %v5499
    %v5591 = vpop.f32.mrb[0].mxu0
    %v5592 = vadd.f32 0.0, %v5591
    %v5593 = vpop.f32.mrb[0].mxu0
    %v5594 = vpop.f32.mrb[0].mxu0
    %v5595 = vpop.f32.mrb[0].mxu0
    %5596 = vdwg.mxu0
    %v5597 = vld [vmem:[#allocation39] sm:$0xf]
    %v5598 = vld [vmem:[#allocation39 + $0x4] sm:$0xf]
    %v5599 = vld [vmem:[%s73] sm:$0xff]
    %v5600 = vld [vmem:[%s73 + $0x8] sm:$0xff]
    %v5601 = vld [vmem:[%s73 + $0x10] sm:$0xff]
    %v5602 = vld [vmem:[%s73 + $0x18] sm:$0xff]
    %v5603 = vld [vmem:[%s73 + $0x20] sm:$0xff]
    %v5604 = vld [vmem:[%s73 + $0x28] sm:$0xff]
    %v5605 = vld [vmem:[%s73 + $0x30] sm:$0xff]
    %v5606 = vld [vmem:[%s73 + $0x38] sm:$0xff]
    %v5607 = vld [vmem:[%s73 + $0x40] sm:$0xff]
    %v5608 = vld [vmem:[%s73 + $0x48] sm:$0xff]
    %v5609 = vld [vmem:[%s73 + $0x50] sm:$0xff]
    %v5610 = vld [vmem:[%s73 + $0x58] sm:$0xff]
    %v5611 = vld [vmem:[%s73 + $0x60] sm:$0xff]
    %v5612 = vld [vmem:[%s73 + $0x68] sm:$0xff]
    %v5613 = vld [vmem:[%s73 + $0x70] sm:$0xff]
    %v5614 = vld [vmem:[%s73 + $0x78] sm:$0xff]
    %v5615 = vld [vmem:[#allocation40] sm:$0x1]
    %v5616 = vld [vmem:[#allocation42] sm:$0x1]
    %v5617 = vrot.slane %v5342, 4
    %v5618 = vadd.f32 %v5342, %v5617
    %v5619 = vrot.slane %v5618, 2
    %v5620 = vadd.f32 %v5618, %v5619
    %v5621 = vrot.slane %v5620, 1
    %v5622 = vadd.f32 %v5620, %v5621
    %v5623 = vmul.f32 %v5342, %v5342
    %v5624 = vrot.slane %v5623, 4
    %v5625 = vadd.f32 %v5623, %v5624
    %v5626 = vrot.slane %v5625, 2
    %v5627 = vadd.f32 %v5625, %v5626
    %v5628 = vrot.slane %v5627, 1
    %v5629 = vadd.f32 %v5627, %v5628
    %v5630 = vrot.slane %v5544, 4
    %v5631 = vadd.f32 %v5544, %v5630
    %v5632 = vrot.slane %v5631, 2
    %v5633 = vadd.f32 %v5631, %v5632
    %v5634 = vrot.slane %v5633, 1
    %v5635 = vadd.f32 %v5633, %v5634
    %v5636 = vadd.f32 %v5622, %v5635
    %v5637 = vmul.f32 %v5544, %v5544
    %v5638 = vrot.slane %v5637, 4
    %v5639 = vadd.f32 %v5637, %v5638
    %v5640 = vrot.slane %v5639, 2
    %v5641 = vadd.f32 %v5639, %v5640
    %v5642 = vrot.slane %v5641, 1
    %v5643 = vadd.f32 %v5641, %v5642
    %v5644 = vadd.f32 %v5629, %v5643
    %v5645 = vrot.slane %v5486, 4
    %v5646 = vadd.f32 %v5486, %v5645
    %v5647 = vrot.slane %v5646, 2
    %v5648 = vadd.f32 %v5646, %v5647
    %v5649 = vrot.slane %v5648, 1
    %v5650 = vadd.f32 %v5648, %v5649
    %v5651 = vadd.f32 %v5636, %v5650
    %v5652 = vmul.f32 %v5486, %v5486
    %v5653 = vrot.slane %v5652, 4
    %v5654 = vadd.f32 %v5652, %v5653
    %v5655 = vrot.slane %v5654, 2
    %v5656 = vadd.f32 %v5654, %v5655
    %v5657 = vrot.slane %v5656, 1
    %v5658 = vadd.f32 %v5656, %v5657
    %v5659 = vadd.f32 %v5644, %v5658
    %v5660 = vrot.slane %v5592, 4
    %v5661 = vadd.f32 %v5592, %v5660
    %v5662 = vrot.slane %v5661, 2
    %v5663 = vadd.f32 %v5661, %v5662
    %v5664 = vrot.slane %v5663, 1
    %v5665 = vadd.f32 %v5663, %v5664
    %v5666 = vadd.f32 %v5651, %v5665
    %v5667 = vmul.f32 %v5592, %v5592
    %v5668 = vrot.slane %v5667, 4
    %v5669 = vadd.f32 %v5667, %v5668
    %v5670 = vrot.slane %v5669, 2
    %v5671 = vadd.f32 %v5669, %v5670
    %v5672 = vrot.slane %v5671, 1
    %v5673 = vadd.f32 %v5671, %v5672
    %v5674 = vadd.f32 %v5659, %v5673
    %v5675 = vsel %vm643, %v5666, %v5674
    %5676 = vmatprep.subr.mxu0 0.0
    %5677 = vmatpush1.msra.mxu0 %v5599
    %5678 = vmatprep.subr.mxu0 0.0
    %5679 = vmatpush1.msra.mxu0 %v5600
    %5680 = vmatprep.subr.mxu0 0.0
    %5681 = vmatpush1.msra.mxu0 %v5601
    %5682 = vmatprep.subr.mxu0 0.0
    %5683 = vmatpush1.msra.mxu0 %v5602
    %5684 = vmatprep.subr.mxu0 0.0
    %5685 = vmatpush1.msra.mxu0 %v5603
    %5686 = vmatprep.subr.mxu0 0.0
    %5687 = vmatpush1.msra.mxu0 %v5604
    %5688 = vmatprep.subr.mxu0 0.0
    %5689 = vmatpush1.msra.mxu0 %v5605
    %5690 = vmatprep.subr.mxu0 0.0
    %5691 = vmatpush1.msra.mxu0 %v5606
    %5692 = vmatprep.subr.mxu0 0.0
    %5693 = vmatpush1.msra.mxu0 %v5607
    %5694 = vmatprep.subr.mxu0 0.0
    %5695 = vmatpush1.msra.mxu0 %v5608
    %5696 = vmatprep.subr.mxu0 0.0
    %5697 = vmatpush1.msra.mxu0 %v5609
    %5698 = vmatprep.subr.mxu0 0.0
    %5699 = vmatpush1.msra.mxu0 %v5610
    %5700 = vmatprep.subr.mxu0 0.0
    %5701 = vmatpush1.msra.mxu0 %v5611
    %5702 = vmatprep.subr.mxu0 0.0
    %5703 = vmatpush1.msra.mxu0 %v5612
    %5704 = vmatprep.subr.mxu0 0.0
    %5705 = vmatpush1.msra.mxu0 %v5613
    %5706 = vmatprep.subr.mxu0 0.0
    %5707 = vmatpush1.msra.mxu0 %v5614
    %5708 = vmatprep.subr.mxu0 0.0
    %5709 = vmatpush1.msra.mxu0 0.0
    %5710 = vmatprep.subr.mxu0 0.0
    %5711 = vmatpush1.msra.mxu0 0.0
    %5712 = vmatprep.subr.mxu0 0.0
    %5713 = vmatpush1.msra.mxu0 0.0
    %5714 = vmatprep.subr.mxu0 0.0
    %5715 = vmatpush1.msra.mxu0 0.0
    %5716 = vmatprep.subr.mxu0 0.0
    %5717 = vmatpush1.msra.mxu0 0.0
    %5718 = vmatprep.subr.mxu0 0.0
    %5719 = vmatpush1.msra.mxu0 0.0
    %5720 = vmatprep.subr.mxu0 0.0
    %5721 = vmatpush1.msra.mxu0 0.0
    %5722 = vmatprep.subr.mxu0 0.0
    %5723 = vmatpush1.msra.mxu0 0.0
    %5724 = vmatprep.subr.mxu0 0.0
    %5725 = vmatpush1.msra.mxu0 0.0
    %5726 = vmatprep.subr.mxu0 0.0
    %5727 = vmatpush1.msra.mxu0 0.0
    %5728 = vmatprep.subr.mxu0 0.0
    %5729 = vmatpush1.msra.mxu0 0.0
    %5730 = vmatprep.subr.mxu0 0.0
    %5731 = vmatpush1.msra.mxu0 0.0
    %5732 = vmatprep.subr.mxu0 0.0
    %5733 = vmatpush1.msra.mxu0 0.0
    %5734 = vmatprep.subr.mxu0 0.0
    %5735 = vmatpush1.msra.mxu0 0.0
    %5736 = vmatprep.subr.mxu0 0.0
    %5737 = vmatpush1.msra.mxu0 0.0
    %5738 = vmatprep.subr.mxu0 0.0
    %5739 = vmatpush1.msra.mxu0 0.0
    %5740 = vmatprep.mubr.f32.mxu0 0.0
    %5741 = vmatmul.mubr.f32.gmra.mrb[0].mxu0 %v5675
    %v5742 = vpop.f32.mrb[0].mxu0
    %v5743 = vadd.f32 0.0, %v5742
    %v5744 = vpop.f32.mrb[0].mxu0
    %5745 = vdwg.mxu0
    %v5746 = vmul.f32 %v5743, %v1257
    %v5747 = vmul.f32 %v5746, %v5746
    %v5749 = vrot.slane %v5747, 7
    %v5751 = vsub.f32 %v5746, %v5749
    %v5752 = vmax.f32 %v5751, 0.0
    %v5753 = vadd.f32 %v5752, 1e-05
    %v5754 = vrsqrt.pop %v5753
    %v5757 = vunpack.c.l.s4 1966171168
    %v5758 = vunpack.c.0.s8 %v5757
    %v5759 = vlaneseq
    %v5760 = vshrl.u32 %v5759, 7
    %v5761 = vsub.s32 %v5758, %v5760
    %v5762 = vrot.slane %v5754, %v5761
    %v5763 = vcombine.high %v5762, %v5762
    %v5765 = vunpack.c.l.s4 1966171168
    %v5766 = vunpack.c.0.s8 %v5765
    %v5767 = vlaneseq
    %v5768 = vshrl.u32 %v5767, 7
    %v5769 = vsub.s32 %v5766, %v5768
    %v5770 = vrot.slane %v5763, %v5769
    %v5772 = vmul.f32 %v5615, %v5770
    %v5773 = vmul.f32 %v5746, %v5772
    %v5774 = vsub.f32 %v5616, %v5773
    %v5776 = vlaneseq
    %v5777 = vshrl.u32 %v5776, 7
    %v5778 = vsub.s32 0, %v5777
    %v5779 = vrot.slane %v5772, %v5778
    %v5781 = vmul.f32 %v5342, %v5779
    %v5783 = vlaneseq
    %v5784 = vshrl.u32 %v5783, 7
    %v5785 = vsub.s32 0, %v5784
    %v5786 = vrot.slane %v5774, %v5785
    %v5788 = vadd.f32 %v5781, %v5786
    %v5789 = vmax.f32 %v5788, 0.0
    %v5790 = vmul.f32 %v5544, %v5779
    %v5791 = vadd.f32 %v5790, %v5786
    %v5792 = vmax.f32 %v5791, 0.0
    %v5793 = vmul.f32 %v5486, %v5779
    %v5794 = vadd.f32 %v5793, %v5786
    %v5795 = vmax.f32 %v5794, 0.0
    %v5796 = vmul.f32 %v5592, %v5779
    %v5797 = vadd.f32 %v5796, %v5786
    %v5798 = vmax.f32 %v5797, 0.0
    %v5799 = vpack.c.bf16 %v5795, %v5789
    %v5802 = vunpack.c.l.b16 %v5597
    %v5803 = vunpack.c.l.b16 %v5598
    %v5804 = vpack.c.b16 %v5803, %v5802
    %vm5805 = vcmask 130048
    %v5807 = vsel %vm5805, %v5804, 0
    %5809 = vmatprep.subr.bf16.mxu0 0
    %5810 = vmatpush1.bf16.msra.mxu0 %v5799
    %5811 = vmatprep.subr.bf16.mxu0 0
    %5812 = vmatpush1.bf16.msra.mxu0 0
    %5813 = vmatprep.subr.bf16.mxu0 0
    %5814 = vmatpush1.bf16.msra.mxu0 0
    %5815 = vmatprep.subr.bf16.mxu0 0
    %5816 = vmatpush1.bf16.msra.mxu0 0
    %5817 = vmatprep.subr.bf16.mxu0 0
    %5818 = vmatpush1.bf16.msra.mxu0 0
    %5819 = vmatprep.subr.bf16.mxu0 0
    %5820 = vmatpush1.bf16.msra.mxu0 0
    %5821 = vmatprep.subr.bf16.mxu0 0
    %5822 = vmatpush1.bf16.msra.mxu0 0
    %5823 = vmatprep.subr.bf16.mxu0 0
    %5824 = vmatpush1.bf16.msra.mxu0 0
    %5825 = vmatprep.subr.bf16.mxu0 0
    %5826 = vmatpush1.bf16.msra.mxu0 0
    %5827 = vmatprep.subr.bf16.mxu0 0
    %5828 = vmatpush1.bf16.msra.mxu0 0
    %5829 = vmatprep.subr.bf16.mxu0 0
    %5830 = vmatpush1.bf16.msra.mxu0 0
    %5831 = vmatprep.subr.bf16.mxu0 0
    %5832 = vmatpush1.bf16.msra.mxu0 0
    %5833 = vmatprep.subr.bf16.mxu0 0
    %5834 = vmatpush1.bf16.msra.mxu0 0
    %5835 = vmatprep.subr.bf16.mxu0 0
    %5836 = vmatpush1.bf16.msra.mxu0 0
    %5837 = vmatprep.subr.bf16.mxu0 0
    %5838 = vmatpush1.bf16.msra.mxu0 0
    %5839 = vmatprep.subr.bf16.mxu0 0
    %5840 = vmatpush1.bf16.msra.mxu0 0
    %5841 = vmatprep.mubr.bf16.mxu0 0
    %5842 = vmatmul.mubr.bf16.gmra.mrb[0].mxu0 %v5807
    %v5843 = vpop.f32.mrb[0].mxu0
    %v5844 = vadd.f32 0.0, %v5843
    %v5845 = vpop.f32.mrb[0].mxu0
    %v5846 = vpop.f32.mrb[0].mxu0
    %v5847 = vadd.f32 0.0, %v5846
    %v5848 = vpop.f32.mrb[0].mxu0
    %5849 = vdwg.mxu0
    %v5850 = vpack.c.bf16 %v5847, %v5844
    %v5852 = vshrl.u32 %v5850, 16
    %v5854 = vrot.slane %v5852, 7
    %v5855 = vshll.u32 %v5850, 16
    %v5857 = vor.u32 %v5854, %v5855
    %v5860 = vsel %vm1323, 0, %v5857
    %v5861 = vsel %vm1323, %v5854, 0
    %v5862 = vpack.c.bf16 %v5798, %v5792
    %5863 = vmatprep.subr.bf16.mxu0 0
    %5864 = vmatpush1.bf16.msra.mxu0 %v5862
    %5865 = vmatprep.subr.bf16.mxu0 0
    %5866 = vmatpush1.bf16.msra.mxu0 0
    %5867 = vmatprep.subr.bf16.mxu0 0
    %5868 = vmatpush1.bf16.msra.mxu0 0
    %5869 = vmatprep.subr.bf16.mxu0 0
    %5870 = vmatpush1.bf16.msra.mxu0 0
    %5871 = vmatprep.subr.bf16.mxu0 0
    %5872 = vmatpush1.bf16.msra.mxu0 0
    %5873 = vmatprep.subr.bf16.mxu0 0
    %5874 = vmatpush1.bf16.msra.mxu0 0
    %5875 = vmatprep.subr.bf16.mxu0 0
    %5876 = vmatpush1.bf16.msra.mxu0 0
    %5877 = vmatprep.subr.bf16.mxu0 0
    %5878 = vmatpush1.bf16.msra.mxu0 0
    %5879 = vmatprep.subr.bf16.mxu0 0
    %5880 = vmatpush1.bf16.msra.mxu0 0
    %5881 = vmatprep.subr.bf16.mxu0 0
    %5882 = vmatpush1.bf16.msra.mxu0 0
    %5883 = vmatprep.subr.bf16.mxu0 0
    %5884 = vmatpush1.bf16.msra.mxu0 0
    %5885 = vmatprep.subr.bf16.mxu0 0
    %5886 = vmatpush1.bf16.msra.mxu0 0
    %5887 = vmatprep.subr.bf16.mxu0 0
    %5888 = vmatpush1.bf16.msra.mxu0 0
    %5889 = vmatprep.subr.bf16.mxu0 0
    %5890 = vmatpush1.bf16.msra.mxu0 0
    %5891 = vmatprep.subr.bf16.mxu0 0
    %5892 = vmatpush1.bf16.msra.mxu0 0
    %5893 = vmatprep.subr.bf16.mxu0 0
    %5894 = vmatpush1.bf16.msra.mxu0 0
    %5895 = vmatprep.mubr.bf16.mxu0 0
    %5896 = vmatmul.mubr.bf16.gmra.mrb[0].mxu0 %v5807
    %v5897 = vpop.f32.mrb[0].mxu0
    %v5898 = vadd.f32 0.0, %v5897
    %v5899 = vpop.f32.mrb[0].mxu0
    %v5900 = vpop.f32.mrb[0].mxu0
    %v5901 = vadd.f32 0.0, %v5900
    %v5902 = vpop.f32.mrb[0].mxu0
    %5903 = vdwg.mxu0
    %v5904 = vpack.c.bf16 %v5901, %v5898
    %v5906 = vshrl.u32 %v5904, 16
    %v5908 = vrot.slane %v5906, 7
    %v5909 = vshll.u32 %v5904, 16
    %v5911 = vor.u32 %v5908, %v5909
    %v5914 = vsel %vm1323, 0, %v5911
    %v5915 = vsel %vm1323, %v5908, 0
    %v5916 = vld [vmem:[%s79] sm:$0xf]
    %v5917 = vld [vmem:[%s79 + $0x4] sm:$0xf]
    %v5918 = vld [vmem:[%s79 + $0x8] sm:$0xf]
    %v5919 = vld [vmem:[%s79 + $0xc] sm:$0xf]
    %v5920 = vld [vmem:[%s79 + $0x10] sm:$0xf]
    %v5921 = vld [vmem:[%s79 + $0x14] sm:$0xf]
    %v5922 = vld [vmem:[%s79 + $0x18] sm:$0xf]
    %v5923 = vld [vmem:[%s79 + $0x1c] sm:$0xf]
    %v5924 = vld [vmem:[%s79 + $0x20] sm:$0xf]
    %v5925 = vld [vmem:[%s79 + $0x24] sm:$0xf]
    %v5926 = vld [vmem:[%s79 + $0x28] sm:$0xf]
    %v5927 = vld [vmem:[%s79 + $0x2c] sm:$0xf]
    %v5928 = vld [vmem:[%s79 + $0x30] sm:$0xf]
    %v5929 = vld [vmem:[%s79 + $0x34] sm:$0xf]
    %v5930 = vld [vmem:[%s79 + $0x38] sm:$0xf]
    %v5931 = vld [vmem:[%s79 + $0x3c] sm:$0xf]
    %v5932 = vld [vmem:[%s79 + $0x40] sm:$0xf]
    %v5933 = vld [vmem:[%s79 + $0x44] sm:$0xf]
    %v5934 = vld [vmem:[%s79 + $0x48] sm:$0xf]
    %v5935 = vld [vmem:[%s79 + $0x4c] sm:$0xf]
    %v5936 = vld [vmem:[%s79 + $0x50] sm:$0xf]
    %v5937 = vld [vmem:[%s79 + $0x54] sm:$0xf]
    %v5938 = vld [vmem:[%s79 + $0x58] sm:$0xf]
    %v5939 = vld [vmem:[%s79 + $0x5c] sm:$0xf]
    %v5940 = vld [vmem:[%s79 + $0x60] sm:$0xf]
    %v5941 = vld [vmem:[%s79 + $0x64] sm:$0xf]
    %v5942 = vld [vmem:[%s79 + $0x68] sm:$0xf]
    %v5943 = vld [vmem:[%s79 + $0x6c] sm:$0xf]
    %v5944 = vld [vmem:[%s79 + $0x70] sm:$0xf]
    %v5945 = vld [vmem:[%s79 + $0x74] sm:$0xf]
    %v5946 = vld [vmem:[%s79 + $0x78] sm:$0xf]
    %v5947 = vld [vmem:[%s79 + $0x7c] sm:$0xf]
    %v5948 = vld [vmem:[%s81] sm:$0xf]
    %v5949 = vld [vmem:[%s81 + $0x4] sm:$0xf]
    %v5950 = vld [vmem:[%s81 + $0x8] sm:$0xf]
    %v5951 = vld [vmem:[%s81 + $0xc] sm:$0xf]
    %v5952 = vld [vmem:[%s81 + $0x10] sm:$0xf]
    %v5953 = vld [vmem:[%s81 + $0x14] sm:$0xf]
    %v5954 = vld [vmem:[%s81 + $0x18] sm:$0xf]
    %v5955 = vld [vmem:[%s81 + $0x1c] sm:$0xf]
    %v5956 = vld [vmem:[%s81 + $0x20] sm:$0xf]
    %v5957 = vld [vmem:[%s81 + $0x24] sm:$0xf]
    %v5958 = vld [vmem:[%s81 + $0x28] sm:$0xf]
    %v5959 = vld [vmem:[%s81 + $0x2c] sm:$0xf]
    %v5960 = vld [vmem:[%s81 + $0x30] sm:$0xf]
    %v5961 = vld [vmem:[%s81 + $0x34] sm:$0xf]
    %v5962 = vld [vmem:[%s81 + $0x38] sm:$0xf]
    %v5963 = vld [vmem:[%s81 + $0x3c] sm:$0xf]
    %v5964 = vld [vmem:[%s81 + $0x40] sm:$0xf]
    %v5965 = vld [vmem:[%s81 + $0x44] sm:$0xf]
    %v5966 = vld [vmem:[%s81 + $0x48] sm:$0xf]
    %v5967 = vld [vmem:[%s81 + $0x4c] sm:$0xf]
    %v5968 = vld [vmem:[%s81 + $0x50] sm:$0xf]
    %v5969 = vld [vmem:[%s81 + $0x54] sm:$0xf]
    %v5970 = vld [vmem:[%s81 + $0x58] sm:$0xf]
    %v5971 = vld [vmem:[%s81 + $0x5c] sm:$0xf]
    %v5972 = vld [vmem:[%s81 + $0x60] sm:$0xf]
    %v5973 = vld [vmem:[%s81 + $0x64] sm:$0xf]
    %v5974 = vld [vmem:[%s81 + $0x68] sm:$0xf]
    %v5975 = vld [vmem:[%s81 + $0x6c] sm:$0xf]
    %v5976 = vld [vmem:[%s81 + $0x70] sm:$0xf]
    %v5977 = vld [vmem:[%s81 + $0x74] sm:$0xf]
    %v5978 = vld [vmem:[%s81 + $0x78] sm:$0xf]
    %v5979 = vld [vmem:[%s81 + $0x7c] sm:$0xf]
    %v5981 = vshrl.u32 %v5860, 16
    %v5983 = vrot.slane %v5981, 7
    %v5984 = vshll.u32 %v5860, 16
    %v5986 = vor.u32 %v5983, %v5984
    %vm5987 = vsmask.f32 7424
    %v5988 = vrot.slane %v5984, 1
    %v5989 = vor.u32 %v5981, %v5988
    %v5991 = vshll.u32 %v5861, 16
    %v5993 = vrot.slane %v5991, 1
    %v5994 = vsel %vm5987, %v5989, %v5993
    %v5995 = vshrl.u32 %v5861, 16
    %v5998 = vshrl.u32 %v5914, 16
    %v6000 = vrot.slane %v5998, 7
    %v6001 = vshll.u32 %v5914, 16
    %v6003 = vor.u32 %v6000, %v6001
    %v6004 = vrot.slane %v6001, 1
    %v6005 = vor.u32 %v5998, %v6004
    %v6007 = vshll.u32 %v5915, 16
    %v6009 = vrot.slane %v6007, 1
    %v6010 = vsel %vm5987, %v6005, %v6009
    %v6011 = vshrl.u32 %v5915, 16
    %v6013 = vld [vmem:[%s83] sm:$0x1]
    %v6015 = vlaneseq
    %v6016 = vshrl.u32 %v6015, 7
    %v6017 = vsub.s32 0, %v6016
    %v6018 = vrot.slane %v6013, %v6017
    %v6021 = vshrl.u32 %v5986, 16
    %v6023 = vshll.u32 %v5986, 16
    %v6025 = vrot.slane %v6023, 1
    %v6026 = vor.u32 %v6021, %v6025
    %v6028 = vshll.u32 %v5983, 16
    %v6030 = vrot.slane %v6028, 1
    %v6031 = vsel %vm5987, %v6026, %v6030
    %v6066 = vunpack.c.l.b16 %v5916
    %v6067 = vunpack.c.l.b16 %v5917
    %v6068 = vunpack.c.l.b16 %v5918
    %v6069 = vunpack.c.l.b16 %v5919
    %v6070 = vunpack.c.l.b16 %v5920
    %v6071 = vunpack.c.l.b16 %v5921
    %v6072 = vunpack.c.l.b16 %v5922
    %v6073 = vunpack.c.l.b16 %v5923
    %v6074 = vunpack.c.l.b16 %v5924
    %v6075 = vunpack.c.l.b16 %v5925
    %v6076 = vunpack.c.l.b16 %v5926
    %v6077 = vunpack.c.l.b16 %v5927
    %v6078 = vunpack.c.l.b16 %v5928
    %v6079 = vunpack.c.l.b16 %v5929
    %v6080 = vunpack.c.l.b16 %v5930
    %v6081 = vunpack.c.l.b16 %v5931
    %v6082 = vunpack.c.l.b16 %v5932
    %v6083 = vunpack.c.l.b16 %v5933
    %v6084 = vunpack.c.l.b16 %v5934
    %v6085 = vunpack.c.l.b16 %v5935
    %v6086 = vunpack.c.l.b16 %v5936
    %v6087 = vunpack.c.l.b16 %v5937
    %v6088 = vunpack.c.l.b16 %v5938
    %v6089 = vunpack.c.l.b16 %v5939
    %v6090 = vunpack.c.l.b16 %v5940
    %v6091 = vunpack.c.l.b16 %v5941
    %v6092 = vunpack.c.l.b16 %v5942
    %v6093 = vunpack.c.l.b16 %v5943
    %v6094 = vunpack.c.l.b16 %v5944
    %v6095 = vunpack.c.l.b16 %v5945
    %v6096 = vunpack.c.l.b16 %v5946
    %v6097 = vunpack.c.l.b16 %v5947
    %v6098 = vpack.c.b16 %v6067, %v6066
    %v6099 = vpack.c.b16 %v6069, %v6068
    %v6100 = vpack.c.b16 %v6071, %v6070
    %v6101 = vpack.c.b16 %v6073, %v6072
    %v6102 = vpack.c.b16 %v6075, %v6074
    %v6103 = vpack.c.b16 %v6077, %v6076
    %v6104 = vpack.c.b16 %v6079, %v6078
    %v6105 = vpack.c.b16 %v6081, %v6080
    %v6106 = vpack.c.b16 %v6083, %v6082
    %v6107 = vpack.c.b16 %v6085, %v6084
    %v6108 = vpack.c.b16 %v6087, %v6086
    %v6109 = vpack.c.b16 %v6089, %v6088
    %v6110 = vpack.c.b16 %v6091, %v6090
    %v6111 = vpack.c.b16 %v6093, %v6092
    %v6112 = vpack.c.b16 %v6095, %v6094
    %v6113 = vpack.c.b16 %v6097, %v6096
    %6130 = vmatprep.subr.bf16.mxu0 0
    %6131 = vmatpush1.bf16.msra.mxu0 %v6098
    %6132 = vmatprep.subr.bf16.mxu0 0
    %6133 = vmatpush1.bf16.msra.mxu0 %v6099
    %6134 = vmatprep.subr.bf16.mxu0 0
    %6135 = vmatpush1.bf16.msra.mxu0 %v6100
    %6136 = vmatprep.subr.bf16.mxu0 0
    %6137 = vmatpush1.bf16.msra.mxu0 %v6101
    %6138 = vmatprep.subr.bf16.mxu0 0
    %6139 = vmatpush1.bf16.msra.mxu0 %v6102
    %6140 = vmatprep.subr.bf16.mxu0 0
    %6141 = vmatpush1.bf16.msra.mxu0 %v6103
    %6142 = vmatprep.subr.bf16.mxu0 0
    %6143 = vmatpush1.bf16.msra.mxu0 %v6104
    %6144 = vmatprep.subr.bf16.mxu0 0
    %6145 = vmatpush1.bf16.msra.mxu0 %v6105
    %6146 = vmatprep.subr.bf16.mxu0 0
    %6147 = vmatpush1.bf16.msra.mxu0 %v6106
    %6148 = vmatprep.subr.bf16.mxu0 0
    %6149 = vmatpush1.bf16.msra.mxu0 %v6107
    %6150 = vmatprep.subr.bf16.mxu0 0
    %6151 = vmatpush1.bf16.msra.mxu0 %v6108
    %6152 = vmatprep.subr.bf16.mxu0 0
    %6153 = vmatpush1.bf16.msra.mxu0 %v6109
    %6154 = vmatprep.subr.bf16.mxu0 0
    %6155 = vmatpush1.bf16.msra.mxu0 %v6110
    %6156 = vmatprep.subr.bf16.mxu0 0
    %6157 = vmatpush1.bf16.msra.mxu0 %v6111
    %6158 = vmatprep.subr.bf16.mxu0 0
    %6159 = vmatpush1.bf16.msra.mxu0 %v6112
    %6160 = vmatprep.subr.bf16.mxu0 0
    %6161 = vmatpush1.bf16.msra.mxu0 %v6113
    %6162 = vmatprep.mubr.bf16.mxu0 %v6031
    %6163 = vmatmul.mubr.bf16.gmra.mrb[0].mxu0 %v5994
    %v6164 = vpop.f32.mrb[0].mxu0
    %v6165 = vadd.f32 %v6018, %v6164
    %v6166 = vpop.f32.mrb[0].mxu0
    %v6167 = vpop.f32.mrb[0].mxu0
    %v6168 = vadd.f32 %v6018, %v6167
    %v6169 = vpop.f32.mrb[0].mxu0
    %6170 = vdwg.mxu0
    %v6171 = vtanh.pop %v6165
    %v6172 = vtanh.pop %v6168
    %6173 = vst.msk [vmem:[%s85] sm:$0xff] %vm725, %v6171
    %6174 = vst.msk [vmem:[%s85 + $0x8] sm:$0xff] %vm725, %v6172
    %v6176 = vshrl.u32 %v5994, 16
    %v6178 = vshll.u32 %v5994, 16
    %v6180 = vrot.slane %v6178, 1
    %v6181 = vor.u32 %v6176, %v6180
    %v6183 = vshll.u32 %v5995, 16
    %v6185 = vrot.slane %v6183, 1
    %v6186 = vsel %vm5987, %v6181, %v6185
    %v6220 = vunpack.c.l.b16 %v5948
    %v6221 = vunpack.c.l.b16 %v5949
    %v6222 = vunpack.c.l.b16 %v5950
    %v6223 = vunpack.c.l.b16 %v5951
    %v6224 = vunpack.c.l.b16 %v5952
    %v6225 = vunpack.c.l.b16 %v5953
    %v6226 = vunpack.c.l.b16 %v5954
    %v6227 = vunpack.c.l.b16 %v5955
    %v6228 = vunpack.c.l.b16 %v5956
    %v6229 = vunpack.c.l.b16 %v5957
    %v6230 = vunpack.c.l.b16 %v5958
    %v6231 = vunpack.c.l.b16 %v5959
    %v6232 = vunpack.c.l.b16 %v5960
    %v6233 = vunpack.c.l.b16 %v5961
    %v6234 = vunpack.c.l.b16 %v5962
    %v6235 = vunpack.c.l.b16 %v5963
    %v6236 = vunpack.c.l.b16 %v5964
    %v6237 = vunpack.c.l.b16 %v5965
    %v6238 = vunpack.c.l.b16 %v5966
    %v6239 = vunpack.c.l.b16 %v5967
    %v6240 = vunpack.c.l.b16 %v5968
    %v6241 = vunpack.c.l.b16 %v5969
    %v6242 = vunpack.c.l.b16 %v5970
    %v6243 = vunpack.c.l.b16 %v5971
    %v6244 = vunpack.c.l.b16 %v5972
    %v6245 = vunpack.c.l.b16 %v5973
    %v6246 = vunpack.c.l.b16 %v5974
    %v6247 = vunpack.c.l.b16 %v5975
    %v6248 = vunpack.c.l.b16 %v5976
    %v6249 = vunpack.c.l.b16 %v5977
    %v6250 = vunpack.c.l.b16 %v5978
    %v6251 = vunpack.c.l.b16 %v5979
    %v6252 = vpack.c.b16 %v6221, %v6220
    %v6253 = vpack.c.b16 %v6223, %v6222
    %v6254 = vpack.c.b16 %v6225, %v6224
    %v6255 = vpack.c.b16 %v6227, %v6226
    %v6256 = vpack.c.b16 %v6229, %v6228
    %v6257 = vpack.c.b16 %v6231, %v6230
    %v6258 = vpack.c.b16 %v6233, %v6232
    %v6259 = vpack.c.b16 %v6235, %v6234
    %v6260 = vpack.c.b16 %v6237, %v6236
    %v6261 = vpack.c.b16 %v6239, %v6238
    %v6262 = vpack.c.b16 %v6241, %v6240
    %v6263 = vpack.c.b16 %v6243, %v6242
    %v6264 = vpack.c.b16 %v6245, %v6244
    %v6265 = vpack.c.b16 %v6247, %v6246
    %v6266 = vpack.c.b16 %v6249, %v6248
    %v6267 = vpack.c.b16 %v6251, %v6250
    %6284 = vmatprep.subr.bf16.mxu0 0
    %6285 = vmatpush1.bf16.msra.mxu0 %v6252
    %6286 = vmatprep.subr.bf16.mxu0 0
    %6287 = vmatpush1.bf16.msra.mxu0 %v6253
    %6288 = vmatprep.subr.bf16.mxu0 0
    %6289 = vmatpush1.bf16.msra.mxu0 %v6254
    %6290 = vmatprep.subr.bf16.mxu0 0
    %6291 = vmatpush1.bf16.msra.mxu0 %v6255
    %6292 = vmatprep.subr.bf16.mxu0 0
    %6293 = vmatpush1.bf16.msra.mxu0 %v6256
    %6294 = vmatprep.subr.bf16.mxu0 0
    %6295 = vmatpush1.bf16.msra.mxu0 %v6257
    %6296 = vmatprep.subr.bf16.mxu0 0
    %6297 = vmatpush1.bf16.msra.mxu0 %v6258
    %6298 = vmatprep.subr.bf16.mxu0 0
    %6299 = vmatpush1.bf16.msra.mxu0 %v6259
    %6300 = vmatprep.subr.bf16.mxu0 0
    %6301 = vmatpush1.bf16.msra.mxu0 %v6260
    %6302 = vmatprep.subr.bf16.mxu0 0
    %6303 = vmatpush1.bf16.msra.mxu0 %v6261
    %6304 = vmatprep.subr.bf16.mxu0 0
    %6305 = vmatpush1.bf16.msra.mxu0 %v6262
    %6306 = vmatprep.subr.bf16.mxu0 0
    %6307 = vmatpush1.bf16.msra.mxu0 %v6263
    %6308 = vmatprep.subr.bf16.mxu0 0
    %6309 = vmatpush1.bf16.msra.mxu0 %v6264
    %6310 = vmatprep.subr.bf16.mxu0 0
    %6311 = vmatpush1.bf16.msra.mxu0 %v6265
    %6312 = vmatprep.subr.bf16.mxu0 0
    %6313 = vmatpush1.bf16.msra.mxu0 %v6266
    %6314 = vmatprep.subr.bf16.mxu0 0
    %6315 = vmatpush1.bf16.msra.mxu0 %v6267
    %6316 = vmatprep.mubr.bf16.mxu0 %v6186
    %6317 = vmatmul.mubr.bf16.gmra.mrb[0].mxu0 %v5994
    %v6318 = vpop.f32.mrb[0].mxu0
    %v6319 = vadd.f32 %v6018, %v6318
    %v6320 = vpop.f32.mrb[0].mxu0
    %v6321 = vpop.f32.mrb[0].mxu0
    %v6322 = vadd.f32 %v6018, %v6321
    %v6323 = vpop.f32.mrb[0].mxu0
    %6324 = vdwg.mxu0
    %v6325 = vtanh.pop %v6319
    %v6326 = vtanh.pop %v6322
    %s6327 = scalar_lea.vmem %s85, 16
    %6328 = vst.msk [vmem:[%s6327] sm:$0xff] %vm725, %v6325
    %6329 = vst.msk [vmem:[%s6327 + $0x8] sm:$0xff] %vm725, %v6326
    %v6331 = vshrl.u32 %v6003, 16
    %v6333 = vshll.u32 %v6003, 16
    %v6335 = vrot.slane %v6333, 1
    %v6336 = vor.u32 %v6331, %v6335
    %v6338 = vshll.u32 %v6000, 16
    %v6340 = vrot.slane %v6338, 1
    %v6341 = vsel %vm5987, %v6336, %v6340
    %6344 = vmatprep.subr.bf16.mxu0 0
    %6345 = vmatpush1.bf16.msra.mxu0 %v6098
    %6346 = vmatprep.subr.bf16.mxu0 0
    %6347 = vmatpush1.bf16.msra.mxu0 %v6099
    %6348 = vmatprep.subr.bf16.mxu0 0
    %6349 = vmatpush1.bf16.msra.mxu0 %v6100
    %6350 = vmatprep.subr.bf16.mxu0 0
    %6351 = vmatpush1.bf16.msra.mxu0 %v6101
    %6352 = vmatprep.subr.bf16.mxu0 0
    %6353 = vmatpush1.bf16.msra.mxu0 %v6102
    %6354 = vmatprep.subr.bf16.mxu0 0
    %6355 = vmatpush1.bf16.msra.mxu0 %v6103
    %6356 = vmatprep.subr.bf16.mxu0 0
    %6357 = vmatpush1.bf16.msra.mxu0 %v6104
    %6358 = vmatprep.subr.bf16.mxu0 0
    %6359 = vmatpush1.bf16.msra.mxu0 %v6105
    %6360 = vmatprep.subr.bf16.mxu0 0
    %6361 = vmatpush1.bf16.msra.mxu0 %v6106
    %6362 = vmatprep.subr.bf16.mxu0 0
    %6363 = vmatpush1.bf16.msra.mxu0 %v6107
    %6364 = vmatprep.subr.bf16.mxu0 0
    %6365 = vmatpush1.bf16.msra.mxu0 %v6108
    %6366 = vmatprep.subr.bf16.mxu0 0
    %6367 = vmatpush1.bf16.msra.mxu0 %v6109
    %6368 = vmatprep.subr.bf16.mxu0 0
    %6369 = vmatpush1.bf16.msra.mxu0 %v6110
    %6370 = vmatprep.subr.bf16.mxu0 0
    %6371 = vmatpush1.bf16.msra.mxu0 %v6111
    %6372 = vmatprep.subr.bf16.mxu0 0
    %6373 = vmatpush1.bf16.msra.mxu0 %v6112
    %6374 = vmatprep.subr.bf16.mxu0 0
    %6375 = vmatpush1.bf16.msra.mxu0 %v6113
    %6376 = vmatprep.mubr.bf16.mxu0 %v6341
    %6377 = vmatmul.mubr.bf16.gmra.mrb[0].mxu0 %v6010
    %v6378 = vpop.f32.mrb[0].mxu0
    %v6379 = vadd.f32 %v6018, %v6378
    %v6380 = vpop.f32.mrb[0].mxu0
    %v6381 = vpop.f32.mrb[0].mxu0
    %v6382 = vadd.f32 %v6018, %v6381
    %v6383 = vpop.f32.mrb[0].mxu0
    %6384 = vdwg.mxu0
    %v6385 = vtanh.pop %v6379
    %v6386 = vtanh.pop %v6382
    %s6387 = scalar_lea.vmem %s85, 32
    %6388 = vst.msk [vmem:[%s6387] sm:$0xff] %vm725, %v6385
    %6389 = vst.msk [vmem:[%s6387 + $0x8] sm:$0xff] %vm725, %v6386
    %v6391 = vshrl.u32 %v6010, 16
    %v6393 = vshll.u32 %v6010, 16
    %v6395 = vrot.slane %v6393, 1
    %v6396 = vor.u32 %v6391, %v6395
    %v6398 = vshll.u32 %v6011, 16
    %v6400 = vrot.slane %v6398, 1
    %v6401 = vsel %vm5987, %v6396, %v6400
    %6403 = vmatprep.subr.bf16.mxu0 0
    %6404 = vmatpush1.bf16.msra.mxu0 %v6252
    %6405 = vmatprep.subr.bf16.mxu0 0
    %6406 = vmatpush1.bf16.msra.mxu0 %v6253
    %6407 = vmatprep.subr.bf16.mxu0 0
    %6408 = vmatpush1.bf16.msra.mxu0 %v6254
    %6409 = vmatprep.subr.bf16.mxu0 0
    %6410 = vmatpush1.bf16.msra.mxu0 %v6255
    %6411 = vmatprep.subr.bf16.mxu0 0
    %6412 = vmatpush1.bf16.msra.mxu0 %v6256
    %6413 = vmatprep.subr.bf16.mxu0 0
    %6414 = vmatpush1.bf16.msra.mxu0 %v6257
    %6415 = vmatprep.subr.bf16.mxu0 0
    %6416 = vmatpush1.bf16.msra.mxu0 %v6258
    %6417 = vmatprep.subr.bf16.mxu0 0
    %6418 = vmatpush1.bf16.msra.mxu0 %v6259
    %6419 = vmatprep.subr.bf16.mxu0 0
    %6420 = vmatpush1.bf16.msra.mxu0 %v6260
    %6421 = vmatprep.subr.bf16.mxu0 0
    %6422 = vmatpush1.bf16.msra.mxu0 %v6261
    %6423 = vmatprep.subr.bf16.mxu0 0
    %6424 = vmatpush1.bf16.msra.mxu0 %v6262
    %6425 = vmatprep.subr.bf16.mxu0 0
    %6426 = vmatpush1.bf16.msra.mxu0 %v6263
    %6427 = vmatprep.subr.bf16.mxu0 0
    %6428 = vmatpush1.bf16.msra.mxu0 %v6264
    %6429 = vmatprep.subr.bf16.mxu0 0
    %6430 = vmatpush1.bf16.msra.mxu0 %v6265
    %6431 = vmatprep.subr.bf16.mxu0 0
    %6432 = vmatpush1.bf16.msra.mxu0 %v6266
    %6433 = vmatprep.subr.bf16.mxu0 0
    %6434 = vmatpush1.bf16.msra.mxu0 %v6267
    %6435 = vmatprep.mubr.bf16.mxu0 %v6401
    %6436 = vmatmul.mubr.bf16.gmra.mrb[0].mxu0 %v6010
    %v6437 = vpop.f32.mrb[0].mxu0
    %v6438 = vadd.f32 %v6018, %v6437
    %v6439 = vpop.f32.mrb[0].mxu0
    %v6440 = vpop.f32.mrb[0].mxu0
    %v6441 = vadd.f32 %v6018, %v6440
    %v6442 = vpop.f32.mrb[0].mxu0
    %6443 = vdwg.mxu0
    %v6444 = vtanh.pop %v6438
    %v6445 = vtanh.pop %v6441
    %s6446 = scalar_lea.vmem %s85, 48
    %6447 = vst.msk [vmem:[%s6446] sm:$0xff] %vm725, %v6444
    %6448 = vst.msk [vmem:[%s6446 + $0x8] sm:$0xff] %vm725, %v6445
    // Predicated region
    $region278: #{fully_conv_network.1} parent=1 // pred_check
      _
    $region279: #{fully_conv_network.1} parent=1 // pred_check_branch
      %6450 = sbr.rel (0) target = $region281
    $region280: #{fully_conv_network.1} parent=1 // pred_region
      _
    $region281: #{fully_conv_network.1} parent=1 // pred_fallthru
      _
    // Predicated region
    $region282: #{fully_conv_network.1} parent=1 // pred_check
      _
    $region283: #{fully_conv_network.1} parent=1 // pred_check_branch
      %6452 = sbr.rel (0) target = $region285
    $region284: #{fully_conv_network.1} parent=1 // pred_region
      _
    $region285: #{fully_conv_network.1} parent=1 // pred_fallthru
      _
    %6453 = vsyncpa [#allocation3], 1
    %6454 = vsyncpa [#allocation5], 1
    %6455 = vsyncpa [#allocation8], 1
    %6456 = vsyncpa [#allocation11], 1
    %6457 = vsyncpa [#allocation14], 1
    %6458 = vsyncpa [#allocation17], 1
    %6459 = vsyncpa [#allocation20], 1
    %6460 = vsyncpa [#allocation23], 1
    %6461 = vsyncpa [#allocation26], 1
    %6462 = vsyncpa [#allocation29], 1
    %6463 = vsyncpa [#allocation32], 1
    %6464 = vsyncpa [#allocation35], 1
    %6465 = vsyncpa [#allocation38], 1
    %6466 = vsyncpa [#allocation41], 1

</llo_original>
